<compile_context>
chip_gen: v7x
topology: tpu7x:2x2x1
jax: 0.10.0
libtpu: 0.0.40
codegen_flags: <defaults>
</compile_context>

<pallas_src>
import jax
import jax.numpy as jnp
from jax.experimental import pallas as pl
from jax.experimental.pallas import tpu as pltpu

SEQ = 50            # fc1 = Linear(50*15, 3) => seq_len must be 50
BATCH = 2
IN_DIM = 26
HIDDEN = 15
GATES = 4 * HIDDEN  # 60, gate order i|f|g|o (PyTorch convention)
OUT_DIM = 3
HALF = SEQ // 2     # 25: steps per output row of the batch-mixing flatten


def lstm_fused_kernel(x_ref, wih_ref, whh_ref, b_ref, wfc_ref, bfc_ref,
                      out_ref, xproj_ref):
    B, H = BATCH, HIDDEN

    # ---- prologue: hoisted input projection (one MXU matmul, both LSTM biases folded
    #      in; g-gate columns already pre-scaled by 2 in the wrapper) -----------------
    xproj_ref[...] = (
        jnp.dot(x_ref[...], wih_ref[...],
                preferred_element_type=jnp.float32,
                precision=jax.lax.Precision.DEFAULT)
        + b_ref[...])                                   # (S*B, 4H)

    # Recurrent weight, broadcast hoisted out of the loop (used by the VPU recurrence).
    whh_bc = jnp.broadcast_to(whh_ref[...][None, :, :], (B, H, GATES))   # (2,15,60)

    h = jnp.zeros((B, H), jnp.float32)
    c = jnp.zeros((B, H), jnp.float32)

    # fc1 accumulators: acc[p][oc] += relu(h_t) * Wfc_slice  (elementwise, (2,15)),
    # where p = t // 25 selects which output row receives step t (batch-mixing flatten).
    acc = [[jnp.zeros((B, H), jnp.float32) for _ in range(OUT_DIM)]
           for _ in range(B)]

    # ---- recurrence: fully unrolled; only sigmoid -> c -> tanh -> h is serial --------
    for t in range(SEQ):
        xp = xproj_ref[B * t:B * t + B, :]              # (2,60) static slice, prefetchable
        if t == 0:
            gates = xp                                  # h == 0 at t == 0
        else:
            # h @ W_hh on the VPU/XLU (no per-step MXU fill/drain on the serial chain).
            recur = jnp.sum(h[:, :, None] * whh_bc, axis=1)      # (2,60)
            gates = xp + recur

        sig = jax.nn.sigmoid(gates)                     # ONE EUP pass for all 4 gates
        i_g = sig[:, 0 * H:1 * H]                       # sigma(i)
        f_g = sig[:, 1 * H:2 * H]                       # sigma(f)
        g_g = 2.0 * sig[:, 2 * H:3 * H] - 1.0           # tanh(g) = 2*sigma(2g) - 1
        o_g = sig[:, 3 * H:4 * H]                       # sigma(o)

        c = f_g * c + i_g * g_g
        h = o_g * jnp.tanh(c)                           # second (unavoidable) EUP pass

        # fused ReLU + fc1 accumulation: independent of h/c, hides under next-step work.
        relu_h = jnp.maximum(h, 0.0)
        p = t // HALF                                   # static
        for oc in range(OUT_DIM):
            acc[p][oc] = acc[p][oc] + relu_h * wfc_ref[t, oc]    # (2,15) VPU FMA

    # ---- epilogue: 6 full reductions, assembled in registers, ONE (2,3) store --------
    rows = []
    for p in range(B):
        cols = [jnp.sum(acc[p][oc], keepdims=True) for oc in range(OUT_DIM)]  # (1,1) each
        rows.append(jnp.concatenate(cols, axis=1))                            # (1,3)
    out_ref[...] = jnp.concatenate(rows, axis=0) + bfc_ref[...]               # (2,3)


@jax.jit
def lstm_forward(x, wih_cat, whh_cat, b_cat, wfc_step, bfc2d):
    S, B, IN = x.shape
    x2d = x.reshape(S * B, IN)          # row r = B*t + b (C order), as the kernel assumes
    return pl.pallas_call(
        lstm_fused_kernel,
        out_shape=jax.ShapeDtypeStruct((B, OUT_DIM), jnp.float32),
        scratch_shapes=[
            pltpu.VMEM((S * B, GATES), jnp.float32),    # hoisted x-projection
        ],
    )(x2d, wih_cat, whh_cat, b_cat, wfc_step, bfc2d)


def pack_params(weight_ih, weight_hh, bias_ih, bias_hh, wfc, bfc):
    """Kernel-friendly packing (all done once, outside the kernel)."""
    # Pre-scale the g-gate block (columns [2H, 3H)) by 2 so one in-kernel sigmoid gives
    # sigma(2g) there; tanh(g) is recovered as 2*sigma(2g) - 1.
    gscale = jnp.ones((GATES,), jnp.float32).at[2 * HIDDEN:3 * HIDDEN].set(2.0)
    wih_cat = weight_ih.T * gscale[None, :]                       # (26, 60) cols i|f|g|o
    whh_cat = weight_hh.T * gscale[None, :]                       # (15, 60)
    b_cat = ((bias_ih + bias_hh) * gscale).reshape(1, GATES)      # (1, 60)

    # fc1 weight re-indexed to the per-step layout the kernel consumes.
    # Reference flatten: hs(S,B,H).view(B, S*H)  =>  out[p, o] sums over t in
    # [25p, 25p+25), both batch rows b, with weight wfc[o, (2*(t%25)+b)*H + h].
    wfc_r = wfc.reshape(OUT_DIM, SEQ, HIDDEN)                     # [o, q, h] = wfc[o, q*H+h]
    q_idx = (2 * (jnp.arange(SEQ) % HALF))[:, None] + jnp.arange(BATCH)[None, :]   # (50, 2)
    wfc_step = jnp.transpose(wfc_r[:, q_idx, :], (1, 0, 2, 3))    # (50, 3, 2, 15)
    bfc2d = bfc.reshape(1, OUT_DIM)                               # (1, 3)
    return wih_cat, whh_cat, b_cat, wfc_step, bfc2d


# -----------------------------------------------------------------------------
# Pure-JAX reference (mirrors the PyTorch module) for correctness checking.
# -----------------------------------------------------------------------------
def ref_forward(x, weight_ih, weight_hh, bias_ih, bias_hh, wfc, bfc):
    S, B, _ = x.shape
    H = HIDDEN

    def step(carry, xt):
        h, c = carry
        gates = xt @ weight_ih.T + bias_ih + h @ weight_hh.T + bias_hh
        i, f, g, o = jnp.split(gates, 4, axis=-1)
        i = jax.nn.sigmoid(i)
        f = jax.nn.sigmoid(f)
        g = jnp.tanh(g)
        o = jax.nn.sigmoid(o)
        c = f * c + i * g
        h = o * jnp.tanh(c)
        return (h, c), h

    init = (jnp.zeros((B, H), jnp.float32), jnp.zeros((B, H), jnp.float32))
    _, hs = jax.lax.scan(step, init, x)          # (S, B, H)
    hs = jnp.maximum(hs, 0.0)
    flat = hs.reshape(B, S * H)                  # raw row-major view, as in torch
    return flat @ wfc.T + bfc


if __name__ == "__main__":
    key = jax.random.PRNGKey(0)
    ks = jax.random.split(key, 7)

    # Deterministic synthetic parameters (PyTorch-style shapes, gate order i,f,g,o)
    k_lstm = 1.0 / jnp.sqrt(HIDDEN)
    weight_ih = jax.random.uniform(ks[0], (4 * HIDDEN, IN_DIM), jnp.float32,
                                   -k_lstm, k_lstm)
    weight_hh = jax.random.uniform(ks[1], (4 * HIDDEN, HIDDEN), jnp.float32,
                                   -k_lstm, k_lstm)
    bias_ih = jax.random.uniform(ks[2], (4 * HIDDEN,), jnp.float32, -k_lstm, k_lstm)
    bias_hh = jax.random.uniform(ks[3], (4 * HIDDEN,), jnp.float32, -k_lstm, k_lstm)

    k_fc = 1.0 / jnp.sqrt(SEQ * HIDDEN)
    wfc = jax.random.uniform(ks[4], (OUT_DIM, SEQ * HIDDEN), jnp.float32, -k_fc, k_fc)
    bfc = jax.random.uniform(ks[5], (OUT_DIM,), jnp.float32, -k_fc, k_fc)

    wih_cat, whh_cat, b_cat, wfc_step, bfc2d = pack_params(
        weight_ih, weight_hh, bias_ih, bias_hh, wfc, bfc)

    # Input: (seq=50, batch=2, features=26), PyTorch default seq-major layout.
    x = jax.random.normal(ks[6], (SEQ, BATCH, IN_DIM), jnp.float32)

    out = lstm_forward(x, wih_cat, whh_cat, b_cat, wfc_step, bfc2d)
    out = jax.block_until_ready(out)

    ref = ref_forward(x, weight_ih, weight_hh, bias_ih, bias_hh, wfc, bfc)
    assert out.shape == (BATCH, OUT_DIM)
    assert jnp.allclose(out, ref, rtol=1e-4, atol=1e-4), (out, ref)

    print("KERNEL_OK")
</pallas_src>

<mosaic_0001>
module attributes {stable_mosaic.version = 11 : i64} {
  func.func @lstm_fused_kernel(%arg0: memref<100x26xf32, #tpu.memory_space<vmem>>, %arg1: memref<26x60xf32, #tpu.memory_space<vmem>>, %arg2: memref<15x60xf32, #tpu.memory_space<vmem>>, %arg3: memref<1x60xf32, #tpu.memory_space<vmem>>, %arg4: memref<50x3x2x15xf32, #tpu.memory_space<vmem>>, %arg5: memref<1x3xf32, #tpu.memory_space<vmem>>, %arg6: memref<2x3xf32, #tpu.memory_space<vmem>>, %arg7: memref<100x60xf32, #tpu.memory_space<vmem>>) attributes {dimension_semantics = [], scalar_prefetch = 0 : i64, scratch_operands = 1 : i64, tpu.core_type = #tpu.core_type<tc>} {
    %c0 = arith.constant 0 : index
    %c0_0 = arith.constant 0 : index
    %0 = vector.load %arg0[%c0, %c0_0] : memref<100x26xf32, #tpu.memory_space<vmem>>, vector<100x26xf32>
    %c0_1 = arith.constant 0 : index
    %c0_2 = arith.constant 0 : index
    %1 = vector.load %arg1[%c0_1, %c0_2] : memref<26x60xf32, #tpu.memory_space<vmem>>, vector<26x60xf32>
    %cst = arith.constant dense<0.000000e+00> : vector<100x60xf32>
    %2 = tpu.matmul %0, %1, %cst {dimension_numbers = #tpu.dot_dimension_numbers<[1], [0], [0], [1], [0, 0, 1, 1], [], []>} : vector<100x26xf32>, vector<26x60xf32>, vector<100x60xf32> -> vector<100x60xf32>
    %c0_3 = arith.constant 0 : index
    %c0_4 = arith.constant 0 : index
    %3 = vector.load %arg3[%c0_3, %c0_4] : memref<1x60xf32, #tpu.memory_space<vmem>>, vector<1x60xf32>
    %4 = vector.broadcast %3 : vector<1x60xf32> to vector<100x60xf32>
    %5 = arith.addf %2, %4 : vector<100x60xf32>
    %c0_5 = arith.constant 0 : index
    %c0_6 = arith.constant 0 : index
    %6 = vector.load %arg7[%c0_5, %c0_6] : memref<100x60xf32, #tpu.memory_space<vmem>>, vector<100x60xf32>
    tpu.vector_store %arg7[%c0_5, %c0_6], %5 {strides = array<i32>} : memref<100x60xf32, #tpu.memory_space<vmem>>, vector<100x60xf32>,
    %c0_7 = arith.constant 0 : index
    %c0_8 = arith.constant 0 : index
    %7 = vector.load %arg2[%c0_7, %c0_8] : memref<15x60xf32, #tpu.memory_space<vmem>>, vector<15x60xf32>
    %8 = vector.shape_cast %7 : vector<15x60xf32> to vector<1x15x60xf32>
    %9 = vector.shape_cast %8 : vector<1x15x60xf32> to vector<1x15x60xf32>
    %10 = vector.broadcast %9 : vector<1x15x60xf32> to vector<2x15x60xf32>
    %cst_9 = arith.constant 0.000000e+00 : f32
    %11 = vector.broadcast %cst_9 : f32 to vector<2x15xf32>
    %cst_10 = arith.constant 0.000000e+00 : f32
    %12 = vector.broadcast %cst_10 : f32 to vector<2x15xf32>
    %cst_11 = arith.constant 0.000000e+00 : f32
    %13 = vector.broadcast %cst_11 : f32 to vector<2x15xf32>
    %cst_12 = arith.constant 0.000000e+00 : f32
    %14 = vector.broadcast %cst_12 : f32 to vector<2x15xf32>
    %cst_13 = arith.constant 0.000000e+00 : f32
    %15 = vector.broadcast %cst_13 : f32 to vector<2x15xf32>
    %cst_14 = arith.constant 0.000000e+00 : f32
    %16 = vector.broadcast %cst_14 : f32 to vector<2x15xf32>
    %cst_15 = arith.constant 0.000000e+00 : f32
    %17 = vector.broadcast %cst_15 : f32 to vector<2x15xf32>
    %c0_16 = arith.constant 0 : index
    %c0_17 = arith.constant 0 : index
    %18 = vector.load %arg7[%c0_16, %c0_17] : memref<100x60xf32, #tpu.memory_space<vmem>>, vector<2x60xf32>
    %19 = arith.negf %18 : vector<2x60xf32>
    %20 = math.exp %19 : vector<2x60xf32>
    %cst_18 = arith.constant 1.000000e+00 : f32
    %21 = vector.broadcast %cst_18 : f32 to vector<2x60xf32>
    %22 = arith.addf %21, %20 : vector<2x60xf32>
    %23 = arith.divf %21, %22 : vector<2x60xf32>
    %24 = vector.extract_strided_slice %23 {offsets = [0, 0], sizes = [2, 15], strides = [1, 1]} : vector<2x60xf32> to vector<2x15xf32>
    %25 = vector.extract_strided_slice %23 {offsets = [0, 15], sizes = [2, 15], strides = [1, 1]} : vector<2x60xf32> to vector<2x15xf32>
    %26 = vector.extract_strided_slice %23 {offsets = [0, 30], sizes = [2, 15], strides = [1, 1]} : vector<2x60xf32> to vector<2x15xf32>
    %cst_19 = arith.constant 2.000000e+00 : f32
    %27 = vector.broadcast %cst_19 : f32 to vector<2x15xf32>
    %28 = arith.mulf %27, %26 : vector<2x15xf32>
    %cst_20 = arith.constant 1.000000e+00 : f32
    %29 = vector.broadcast %cst_20 : f32 to vector<2x15xf32>
    %30 = arith.subf %28, %29 : vector<2x15xf32>
    %31 = vector.extract_strided_slice %23 {offsets = [0, 45], sizes = [2, 15], strides = [1, 1]} : vector<2x60xf32> to vector<2x15xf32>
    %32 = arith.mulf %25, %11 : vector<2x15xf32>
    %33 = arith.mulf %24, %30 : vector<2x15xf32>
    %34 = arith.addf %32, %33 : vector<2x15xf32>
    %35 = math.tanh %34 : vector<2x15xf32>
    %36 = arith.mulf %31, %35 : vector<2x15xf32>
    %cst_21 = arith.constant 0.000000e+00 : f32
    %37 = vector.broadcast %cst_21 : f32 to vector<2x15xf32>
    %38 = arith.maximumf %36, %37 : vector<2x15xf32>
    %c0_22 = arith.constant 0 : index
    %c0_23 = arith.constant 0 : index
    %c0_24 = arith.constant 0 : index
    %c0_25 = arith.constant 0 : index
    %39 = vector.load %arg4[%c0_22, %c0_23, %c0_24, %c0_25] : memref<50x3x2x15xf32, #tpu.memory_space<vmem>>, vector<1x1x2x15xf32>
    %40 = vector.shape_cast %39 : vector<1x1x2x15xf32> to vector<2x15xf32>
    %41 = arith.mulf %38, %40 : vector<2x15xf32>
    %42 = arith.addf %12, %41 : vector<2x15xf32>
    %c0_26 = arith.constant 0 : index
    %c1 = arith.constant 1 : index
    %c0_27 = arith.constant 0 : index
    %c0_28 = arith.constant 0 : index
    %43 = vector.load %arg4[%c0_26, %c1, %c0_27, %c0_28] : memref<50x3x2x15xf32, #tpu.memory_space<vmem>>, vector<1x1x2x15xf32>
    %44 = vector.shape_cast %43 : vector<1x1x2x15xf32> to vector<2x15xf32>
    %45 = arith.mulf %38, %44 : vector<2x15xf32>
    %46 = arith.addf %13, %45 : vector<2x15xf32>
    %c0_29 = arith.constant 0 : index
    %c2 = arith.constant 2 : index
    %c0_30 = arith.constant 0 : index
    %c0_31 = arith.constant 0 : index
    %47 = vector.load %arg4[%c0_29, %c2, %c0_30, %c0_31] : memref<50x3x2x15xf32, #tpu.memory_space<vmem>>, vector<1x1x2x15xf32>
    %48 = vector.shape_cast %47 : vector<1x1x2x15xf32> to vector<2x15xf32>
    %49 = arith.mulf %38, %48 : vector<2x15xf32>
    %50 = arith.addf %14, %49 : vector<2x15xf32>
    %c2_32 = arith.constant 2 : index
    %c0_33 = arith.constant 0 : index
    %51 = vector.load %arg7[%c2_32, %c0_33] : memref<100x60xf32, #tpu.memory_space<vmem>>, vector<2x60xf32>
    %52 = vector.shape_cast %36 : vector<2x15xf32> to vector<2x15x1xf32>
    %53 = vector.broadcast %52 : vector<2x15x1xf32> to vector<2x15x60xf32>
    %54 = arith.mulf %53, %10 : vector<2x15x60xf32>
    %cst_34 = arith.constant dense<0.000000e+00> : vector<2x60xf32>
    %55 = vector.multi_reduction <add>, %54, %cst_34 [1] : vector<2x15x60xf32> to vector<2x60xf32>
    %56 = arith.addf %51, %55 : vector<2x60xf32>
    %57 = arith.negf %56 : vector<2x60xf32>
    %58 = math.exp %57 : vector<2x60xf32>
    %cst_35 = arith.constant 1.000000e+00 : f32
    %59 = vector.broadcast %cst_35 : f32 to vector<2x60xf32>
    %60 = arith.addf %59, %58 : vector<2x60xf32>
    %61 = arith.divf %59, %60 : vector<2x60xf32>
    %62 = vector.extract_strided_slice %61 {offsets = [0, 0], sizes = [2, 15], strides = [1, 1]} : vector<2x60xf32> to vector<2x15xf32>
    %63 = vector.extract_strided_slice %61 {offsets = [0, 15], sizes = [2, 15], strides = [1, 1]} : vector<2x60xf32> to vector<2x15xf32>
    %64 = vector.extract_strided_slice %61 {offsets = [0, 30], sizes = [2, 15], strides = [1, 1]} : vector<2x60xf32> to vector<2x15xf32>
    %cst_36 = arith.constant 2.000000e+00 : f32
    %65 = vector.broadcast %cst_36 : f32 to vector<2x15xf32>
    %66 = arith.mulf %65, %64 : vector<2x15xf32>
    %cst_37 = arith.constant 1.000000e+00 : f32
    %67 = vector.broadcast %cst_37 : f32 to vector<2x15xf32>
    %68 = arith.subf %66, %67 : vector<2x15xf32>
    %69 = vector.extract_strided_slice %61 {offsets = [0, 45], sizes = [2, 15], strides = [1, 1]} : vector<2x60xf32> to vector<2x15xf32>
    %70 = arith.mulf %63, %34 : vector<2x15xf32>
    %71 = arith.mulf %62, %68 : vector<2x15xf32>
    %72 = arith.addf %70, %71 : vector<2x15xf32>
    %73 = math.tanh %72 : vector<2x15xf32>
    %74 = arith.mulf %69, %73 : vector<2x15xf32>
    %cst_38 = arith.constant 0.000000e+00 : f32
    %75 = vector.broadcast %cst_38 : f32 to vector<2x15xf32>
    %76 = arith.maximumf %74, %75 : vector<2x15xf32>
    %c1_39 = arith.constant 1 : index
    %c0_40 = arith.constant 0 : index
    %c0_41 = arith.constant 0 : index
    %c0_42 = arith.constant 0 : index
    %77 = vector.load %arg4[%c1_39, %c0_40, %c0_41, %c0_42] : memref<50x3x2x15xf32, #tpu.memory_space<vmem>>, vector<1x1x2x15xf32>
    %78 = vector.shape_cast %77 : vector<1x1x2x15xf32> to vector<2x15xf32>
    %79 = arith.mulf %76, %78 : vector<2x15xf32>
    %80 = arith.addf %42, %79 : vector<2x15xf32>
    %c1_43 = arith.constant 1 : index
    %c1_44 = arith.constant 1 : index
    %c0_45 = arith.constant 0 : index
    %c0_46 = arith.constant 0 : index
    %81 = vector.load %arg4[%c1_43, %c1_44, %c0_45, %c0_46] : memref<50x3x2x15xf32, #tpu.memory_space<vmem>>, vector<1x1x2x15xf32>
    %82 = vector.shape_cast %81 : vector<1x1x2x15xf32> to vector<2x15xf32>
    %83 = arith.mulf %76, %82 : vector<2x15xf32>
    %84 = arith.addf %46, %83 : vector<2x15xf32>
    %c1_47 = arith.constant 1 : index
    %c2_48 = arith.constant 2 : index
    %c0_49 = arith.constant 0 : index
    %c0_50 = arith.constant 0 : index
    %85 = vector.load %arg4[%c1_47, %c2_48, %c0_49, %c0_50] : memref<50x3x2x15xf32, #tpu.memory_space<vmem>>, vector<1x1x2x15xf32>
    %86 = vector.shape_cast %85 : vector<1x1x2x15xf32> to vector<2x15xf32>
    %87 = arith.mulf %76, %86 : vector<2x15xf32>
    %88 = arith.addf %50, %87 : vector<2x15xf32>
    %c4 = arith.constant 4 : index
    %c0_51 = arith.constant 0 : index
    %89 = vector.load %arg7[%c4, %c0_51] : memref<100x60xf32, #tpu.memory_space<vmem>>, vector<2x60xf32>
    %90 = vector.shape_cast %74 : vector<2x15xf32> to vector<2x15x1xf32>
    %91 = vector.broadcast %90 : vector<2x15x1xf32> to vector<2x15x60xf32>
    %92 = arith.mulf %91, %10 : vector<2x15x60xf32>
    %cst_52 = arith.constant dense<0.000000e+00> : vector<2x60xf32>
    %93 = vector.multi_reduction <add>, %92, %cst_52 [1] : vector<2x15x60xf32> to vector<2x60xf32>
    %94 = arith.addf %89, %93 : vector<2x60xf32>
    %95 = arith.negf %94 : vector<2x60xf32>
    %96 = math.exp %95 : vector<2x60xf32>
    %cst_53 = arith.constant 1.000000e+00 : f32
    %97 = vector.broadcast %cst_53 : f32 to vector<2x60xf32>
    %98 = arith.addf %97, %96 : vector<2x60xf32>
    %99 = arith.divf %97, %98 : vector<2x60xf32>
    %100 = vector.extract_strided_slice %99 {offsets = [0, 0], sizes = [2, 15], strides = [1, 1]} : vector<2x60xf32> to vector<2x15xf32>
    %101 = vector.extract_strided_slice %99 {offsets = [0, 15], sizes = [2, 15], strides = [1, 1]} : vector<2x60xf32> to vector<2x15xf32>
    %102 = vector.extract_strided_slice %99 {offsets = [0, 30], sizes = [2, 15], strides = [1, 1]} : vector<2x60xf32> to vector<2x15xf32>
    %cst_54 = arith.constant 2.000000e+00 : f32
    %103 = vector.broadcast %cst_54 : f32 to vector<2x15xf32>
    %104 = arith.mulf %103, %102 : vector<2x15xf32>
    %cst_55 = arith.constant 1.000000e+00 : f32
    %105 = vector.broadcast %cst_55 : f32 to vector<2x15xf32>
    %106 = arith.subf %104, %105 : vector<2x15xf32>
    %107 = vector.extract_strided_slice %99 {offsets = [0, 45], sizes = [2, 15], strides = [1, 1]} : vector<2x60xf32> to vector<2x15xf32>
    %108 = arith.mulf %101, %72 : vector<2x15xf32>
    %109 = arith.mulf %100, %106 : vector<2x15xf32>
    %110 = arith.addf %108, %109 : vector<2x15xf32>
    %111 = math.tanh %110 : vector<2x15xf32>
    %112 = arith.mulf %107, %111 : vector<2x15xf32>
    %cst_56 = arith.constant 0.000000e+00 : f32
    %113 = vector.broadcast %cst_56 : f32 to vector<2x15xf32>
    %114 = arith.maximumf %112, %113 : vector<2x15xf32>
    %c2_57 = arith.constant 2 : index
    %c0_58 = arith.constant 0 : index
    %c0_59 = arith.constant 0 : index
    %c0_60 = arith.constant 0 : index
    %115 = vector.load %arg4[%c2_57, %c0_58, %c0_59, %c0_60] : memref<50x3x2x15xf32, #tpu.memory_space<vmem>>, vector<1x1x2x15xf32>
    %116 = vector.shape_cast %115 : vector<1x1x2x15xf32> to vector<2x15xf32>
    %117 = arith.mulf %114, %116 : vector<2x15xf32>
    %118 = arith.addf %80, %117 : vector<2x15xf32>
    %c2_61 = arith.constant 2 : index
    %c1_62 = arith.constant 1 : index
    %c0_63 = arith.constant 0 : index
    %c0_64 = arith.constant 0 : index
    %119 = vector.load %arg4[%c2_61, %c1_62, %c0_63, %c0_64] : memref<50x3x2x15xf32, #tpu.memory_space<vmem>>, vector<1x1x2x15xf32>
    %120 = vector.shape_cast %119 : vector<1x1x2x15xf32> to vector<2x15xf32>
    %121 = arith.mulf %114, %120 : vector<2x15xf32>
    %122 = arith.addf %84, %121 : vector<2x15xf32>
    %c2_65 = arith.constant 2 : index
    %c2_66 = arith.constant 2 : index
    %c0_67 = arith.constant 0 : index
    %c0_68 = arith.constant 0 : index
    %123 = vector.load %arg4[%c2_65, %c2_66, %c0_67, %c0_68] : memref<50x3x2x15xf32, #tpu.memory_space<vmem>>, vector<1x1x2x15xf32>
    %124 = vector.shape_cast %123 : vector<1x1x2x15xf32> to vector<2x15xf32>
    %125 = arith.mulf %114, %124 : vector<2x15xf32>
    %126 = arith.addf %88, %125 : vector<2x15xf32>
    %c6 = arith.constant 6 : index
    %c0_69 = arith.constant 0 : index
    %127 = vector.load %arg7[%c6, %c0_69] : memref<100x60xf32, #tpu.memory_space<vmem>>, vector<2x60xf32>
    %128 = vector.shape_cast %112 : vector<2x15xf32> to vector<2x15x1xf32>
    %129 = vector.broadcast %128 : vector<2x15x1xf32> to vector<2x15x60xf32>
    %130 = arith.mulf %129, %10 : vector<2x15x60xf32>
    %cst_70 = arith.constant dense<0.000000e+00> : vector<2x60xf32>
    %131 = vector.multi_reduction <add>, %130, %cst_70 [1] : vector<2x15x60xf32> to vector<2x60xf32>
    %132 = arith.addf %127, %131 : vector<2x60xf32>
    %133 = arith.negf %132 : vector<2x60xf32>
    %134 = math.exp %133 : vector<2x60xf32>
    %cst_71 = arith.constant 1.000000e+00 : f32
    %135 = vector.broadcast %cst_71 : f32 to vector<2x60xf32>
    %136 = arith.addf %135, %134 : vector<2x60xf32>
    %137 = arith.divf %135, %136 : vector<2x60xf32>
    %138 = vector.extract_strided_slice %137 {offsets = [0, 0], sizes = [2, 15], strides = [1, 1]} : vector<2x60xf32> to vector<2x15xf32>
    %139 = vector.extract_strided_slice %137 {offsets = [0, 15], sizes = [2, 15], strides = [1, 1]} : vector<2x60xf32> to vector<2x15xf32>
    %140 = vector.extract_strided_slice %137 {offsets = [0, 30], sizes = [2, 15], strides = [1, 1]} : vector<2x60xf32> to vector<2x15xf32>
    %cst_72 = arith.constant 2.000000e+00 : f32
    %141 = vector.broadcast %cst_72 : f32 to vector<2x15xf32>
    %142 = arith.mulf %141, %140 : vector<2x15xf32>
    %cst_73 = arith.constant 1.000000e+00 : f32
    %143 = vector.broadcast %cst_73 : f32 to vector<2x15xf32>
    %144 = arith.subf %142, %143 : vector<2x15xf32>
    %145 = vector.extract_strided_slice %137 {offsets = [0, 45], sizes = [2, 15], strides = [1, 1]} : vector<2x60xf32> to vector<2x15xf32>
    %146 = arith.mulf %139, %110 : vector<2x15xf32>
    %147 = arith.mulf %138, %144 : vector<2x15xf32>
    %148 = arith.addf %146, %147 : vector<2x15xf32>
    %149 = math.tanh %148 : vector<2x15xf32>
    %150 = arith.mulf %145, %149 : vector<2x15xf32>
    %cst_74 = arith.constant 0.000000e+00 : f32
    %151 = vector.broadcast %cst_74 : f32 to vector<2x15xf32>
    %152 = arith.maximumf %150, %151 : vector<2x15xf32>
    %c3 = arith.constant 3 : index
    %c0_75 = arith.constant 0 : index
    %c0_76 = arith.constant 0 : index
    %c0_77 = arith.constant 0 : index
    %153 = vector.load %arg4[%c3, %c0_75, %c0_76, %c0_77] : memref<50x3x2x15xf32, #tpu.memory_space<vmem>>, vector<1x1x2x15xf32>
    %154 = vector.shape_cast %153 : vector<1x1x2x15xf32> to vector<2x15xf32>
    %155 = arith.mulf %152, %154 : vector<2x15xf32>
    %156 = arith.addf %118, %155 : vector<2x15xf32>
    %c3_78 = arith.constant 3 : index
    %c1_79 = arith.constant 1 : index
    %c0_80 = arith.constant 0 : index
    %c0_81 = arith.constant 0 : index
    %157 = vector.load %arg4[%c3_78, %c1_79, %c0_80, %c0_81] : memref<50x3x2x15xf32, #tpu.memory_space<vmem>>, vector<1x1x2x15xf32>
    %158 = vector.shape_cast %157 : vector<1x1x2x15xf32> to vector<2x15xf32>
    %159 = arith.mulf %152, %158 : vector<2x15xf32>
    %160 = arith.addf %122, %159 : vector<2x15xf32>
    %c3_82 = arith.constant 3 : index
    %c2_83 = arith.constant 2 : index
    %c0_84 = arith.constant 0 : index
    %c0_85 = arith.constant 0 : index
    %161 = vector.load %arg4[%c3_82, %c2_83, %c0_84, %c0_85] : memref<50x3x2x15xf32, #tpu.memory_space<vmem>>, vector<1x1x2x15xf32>
    %162 = vector.shape_cast %161 : vector<1x1x2x15xf32> to vector<2x15xf32>
    %163 = arith.mulf %152, %162 : vector<2x15xf32>
    %164 = arith.addf %126, %163 : vector<2x15xf32>
    %c8 = arith.constant 8 : index
    %c0_86 = arith.constant 0 : index
    %165 = vector.load %arg7[%c8, %c0_86] : memref<100x60xf32, #tpu.memory_space<vmem>>, vector<2x60xf32>
    %166 = vector.shape_cast %150 : vector<2x15xf32> to vector<2x15x1xf32>
    %167 = vector.broadcast %166 : vector<2x15x1xf32> to vector<2x15x60xf32>
    %168 = arith.mulf %167, %10 : vector<2x15x60xf32>
    %cst_87 = arith.constant dense<0.000000e+00> : vector<2x60xf32>
    %169 = vector.multi_reduction <add>, %168, %cst_87 [1] : vector<2x15x60xf32> to vector<2x60xf32>
    %170 = arith.addf %165, %169 : vector<2x60xf32>
    %171 = arith.negf %170 : vector<2x60xf32>
    %172 = math.exp %171 : vector<2x60xf32>
    %cst_88 = arith.constant 1.000000e+00 : f32
    %173 = vector.broadcast %cst_88 : f32 to vector<2x60xf32>
    %174 = arith.addf %173, %172 : vector<2x60xf32>
    %175 = arith.divf %173, %174 : vector<2x60xf32>
    %176 = vector.extract_strided_slice %175 {offsets = [0, 0], sizes = [2, 15], strides = [1, 1]} : vector<2x60xf32> to vector<2x15xf32>
    %177 = vector.extract_strided_slice %175 {offsets = [0, 15], sizes = [2, 15], strides = [1, 1]} : vector<2x60xf32> to vector<2x15xf32>
    %178 = vector.extract_strided_slice %175 {offsets = [0, 30], sizes = [2, 15], strides = [1, 1]} : vector<2x60xf32> to vector<2x15xf32>
    %cst_89 = arith.constant 2.000000e+00 : f32
    %179 = vector.broadcast %cst_89 : f32 to vector<2x15xf32>
    %180 = arith.mulf %179, %178 : vector<2x15xf32>
    %cst_90 = arith.constant 1.000000e+00 : f32
    %181 = vector.broadcast %cst_90 : f32 to vector<2x15xf32>
    %182 = arith.subf %180, %181 : vector<2x15xf32>
    %183 = vector.extract_strided_slice %175 {offsets = [0, 45], sizes = [2, 15], strides = [1, 1]} : vector<2x60xf32> to vector<2x15xf32>
    %184 = arith.mulf %177, %148 : vector<2x15xf32>
    %185 = arith.mulf %176, %182 : vector<2x15xf32>
    %186 = arith.addf %184, %185 : vector<2x15xf32>
    %187 = math.tanh %186 : vector<2x15xf32>
    %188 = arith.mulf %183, %187 : vector<2x15xf32>
    %cst_91 = arith.constant 0.000000e+00 : f32
    %189 = vector.broadcast %cst_91 : f32 to vector<2x15xf32>
    %190 = arith.maximumf %188, %189 : vector<2x15xf32>
    %c4_92 = arith.constant 4 : index
    %c0_93 = arith.constant 0 : index
    %c0_94 = arith.constant 0 : index
    %c0_95 = arith.constant 0 : index
    %191 = vector.load %arg4[%c4_92, %c0_93, %c0_94, %c0_95] : memref<50x3x2x15xf32, #tpu.memory_space<vmem>>, vector<1x1x2x15xf32>
    %192 = vector.shape_cast %191 : vector<1x1x2x15xf32> to vector<2x15xf32>
    %193 = arith.mulf %190, %192 : vector<2x15xf32>
    %194 = arith.addf %156, %193 : vector<2x15xf32>
    %c4_96 = arith.constant 4 : index
    %c1_97 = arith.constant 1 : index
    %c0_98 = arith.constant 0 : index
    %c0_99 = arith.constant 0 : index
    %195 = vector.load %arg4[%c4_96, %c1_97, %c0_98, %c0_99] : memref<50x3x2x15xf32, #tpu.memory_space<vmem>>, vector<1x1x2x15xf32>
    %196 = vector.shape_cast %195 : vector<1x1x2x15xf32> to vector<2x15xf32>
    %197 = arith.mulf %190, %196 : vector<2x15xf32>
    %198 = arith.addf %160, %197 : vector<2x15xf32>
    %c4_100 = arith.constant 4 : index
    %c2_101 = arith.constant 2 : index
    %c0_102 = arith.constant 0 : index
    %c0_103 = arith.constant 0 : index
    %199 = vector.load %arg4[%c4_100, %c2_101, %c0_102, %c0_103] : memref<50x3x2x15xf32, #tpu.memory_space<vmem>>, vector<1x1x2x15xf32>
    %200 = vector.shape_cast %199 : vector<1x1x2x15xf32> to vector<2x15xf32>
    %201 = arith.mulf %190, %200 : vector<2x15xf32>
    %202 = arith.addf %164, %201 : vector<2x15xf32>
    %c10 = arith.constant 10 : index
    %c0_104 = arith.constant 0 : index
    %203 = vector.load %arg7[%c10, %c0_104] : memref<100x60xf32, #tpu.memory_space<vmem>>, vector<2x60xf32>
    %204 = vector.shape_cast %188 : vector<2x15xf32> to vector<2x15x1xf32>
    %205 = vector.broadcast %204 : vector<2x15x1xf32> to vector<2x15x60xf32>
    %206 = arith.mulf %205, %10 : vector<2x15x60xf32>
    %cst_105 = arith.constant dense<0.000000e+00> : vector<2x60xf32>
    %207 = vector.multi_reduction <add>, %206, %cst_105 [1] : vector<2x15x60xf32> to vector<2x60xf32>
    %208 = arith.addf %203, %207 : vector<2x60xf32>
    %209 = arith.negf %208 : vector<2x60xf32>
    %210 = math.exp %209 : vector<2x60xf32>
    %cst_106 = arith.constant 1.000000e+00 : f32
    %211 = vector.broadcast %cst_106 : f32 to vector<2x60xf32>
    %212 = arith.addf %211, %210 : vector<2x60xf32>
    %213 = arith.divf %211, %212 : vector<2x60xf32>
    %214 = vector.extract_strided_slice %213 {offsets = [0, 0], sizes = [2, 15], strides = [1, 1]} : vector<2x60xf32> to vector<2x15xf32>
    %215 = vector.extract_strided_slice %213 {offsets = [0, 15], sizes = [2, 15], strides = [1, 1]} : vector<2x60xf32> to vector<2x15xf32>
    %216 = vector.extract_strided_slice %213 {offsets = [0, 30], sizes = [2, 15], strides = [1, 1]} : vector<2x60xf32> to vector<2x15xf32>
    %cst_107 = arith.constant 2.000000e+00 : f32
    %217 = vector.broadcast %cst_107 : f32 to vector<2x15xf32>
    %218 = arith.mulf %217, %216 : vector<2x15xf32>
    %cst_108 = arith.constant 1.000000e+00 : f32
    %219 = vector.broadcast %cst_108 : f32 to vector<2x15xf32>
    %220 = arith.subf %218, %219 : vector<2x15xf32>
    %221 = vector.extract_strided_slice %213 {offsets = [0, 45], sizes = [2, 15], strides = [1, 1]} : vector<2x60xf32> to vector<2x15xf32>
    %222 = arith.mulf %215, %186 : vector<2x15xf32>
    %223 = arith.mulf %214, %220 : vector<2x15xf32>
    %224 = arith.addf %222, %223 : vector<2x15xf32>
    %225 = math.tanh %224 : vector<2x15xf32>
    %226 = arith.mulf %221, %225 : vector<2x15xf32>
    %cst_109 = arith.constant 0.000000e+00 : f32
    %227 = vector.broadcast %cst_109 : f32 to vector<2x15xf32>
    %228 = arith.maximumf %226, %227 : vector<2x15xf32>
    %c5 = arith.constant 5 : index
    %c0_110 = arith.constant 0 : index
    %c0_111 = arith.constant 0 : index
    %c0_112 = arith.constant 0 : index
    %229 = vector.load %arg4[%c5, %c0_110, %c0_111, %c0_112] : memref<50x3x2x15xf32, #tpu.memory_space<vmem>>, vector<1x1x2x15xf32>
    %230 = vector.shape_cast %229 : vector<1x1x2x15xf32> to vector<2x15xf32>
    %231 = arith.mulf %228, %230 : vector<2x15xf32>
    %232 = arith.addf %194, %231 : vector<2x15xf32>
    %c5_113 = arith.constant 5 : index
    %c1_114 = arith.constant 1 : index
    %c0_115 = arith.constant 0 : index
    %c0_116 = arith.constant 0 : index
    %233 = vector.load %arg4[%c5_113, %c1_114, %c0_115, %c0_116] : memref<50x3x2x15xf32, #tpu.memory_space<vmem>>, vector<1x1x2x15xf32>
    %234 = vector.shape_cast %233 : vector<1x1x2x15xf32> to vector<2x15xf32>
    %235 = arith.mulf %228, %234 : vector<2x15xf32>
    %236 = arith.addf %198, %235 : vector<2x15xf32>
    %c5_117 = arith.constant 5 : index
    %c2_118 = arith.constant 2 : index
    %c0_119 = arith.constant 0 : index
    %c0_120 = arith.constant 0 : index
    %237 = vector.load %arg4[%c5_117, %c2_118, %c0_119, %c0_120] : memref<50x3x2x15xf32, #tpu.memory_space<vmem>>, vector<1x1x2x15xf32>
    %238 = vector.shape_cast %237 : vector<1x1x2x15xf32> to vector<2x15xf32>
    %239 = arith.mulf %228, %238 : vector<2x15xf32>
    %240 = arith.addf %202, %239 : vector<2x15xf32>
    %c12 = arith.constant 12 : index
    %c0_121 = arith.constant 0 : index
    %241 = vector.load %arg7[%c12, %c0_121] : memref<100x60xf32, #tpu.memory_space<vmem>>, vector<2x60xf32>
    %242 = vector.shape_cast %226 : vector<2x15xf32> to vector<2x15x1xf32>
    %243 = vector.broadcast %242 : vector<2x15x1xf32> to vector<2x15x60xf32>
    %244 = arith.mulf %243, %10 : vector<2x15x60xf32>
    %cst_122 = arith.constant dense<0.000000e+00> : vector<2x60xf32>
    %245 = vector.multi_reduction <add>, %244, %cst_122 [1] : vector<2x15x60xf32> to vector<2x60xf32>
    %246 = arith.addf %241, %245 : vector<2x60xf32>
    %247 = arith.negf %246 : vector<2x60xf32>
    %248 = math.exp %247 : vector<2x60xf32>
    %cst_123 = arith.constant 1.000000e+00 : f32
    %249 = vector.broadcast %cst_123 : f32 to vector<2x60xf32>
    %250 = arith.addf %249, %248 : vector<2x60xf32>
    %251 = arith.divf %249, %250 : vector<2x60xf32>
    %252 = vector.extract_strided_slice %251 {offsets = [0, 0], sizes = [2, 15], strides = [1, 1]} : vector<2x60xf32> to vector<2x15xf32>
    %253 = vector.extract_strided_slice %251 {offsets = [0, 15], sizes = [2, 15], strides = [1, 1]} : vector<2x60xf32> to vector<2x15xf32>
    %254 = vector.extract_strided_slice %251 {offsets = [0, 30], sizes = [2, 15], strides = [1, 1]} : vector<2x60xf32> to vector<2x15xf32>
    %cst_124 = arith.constant 2.000000e+00 : f32
    %255 = vector.broadcast %cst_124 : f32 to vector<2x15xf32>
    %256 = arith.mulf %255, %254 : vector<2x15xf32>
    %cst_125 = arith.constant 1.000000e+00 : f32
    %257 = vector.broadcast %cst_125 : f32 to vector<2x15xf32>
    %258 = arith.subf %256, %257 : vector<2x15xf32>
    %259 = vector.extract_strided_slice %251 {offsets = [0, 45], sizes = [2, 15], strides = [1, 1]} : vector<2x60xf32> to vector<2x15xf32>
    %260 = arith.mulf %253, %224 : vector<2x15xf32>
    %261 = arith.mulf %252, %258 : vector<2x15xf32>
    %262 = arith.addf %260, %261 : vector<2x15xf32>
    %263 = math.tanh %262 : vector<2x15xf32>
    %264 = arith.mulf %259, %263 : vector<2x15xf32>
    %cst_126 = arith.constant 0.000000e+00 : f32
    %265 = vector.broadcast %cst_126 : f32 to vector<2x15xf32>
    %266 = arith.maximumf %264, %265 : vector<2x15xf32>
    %c6_127 = arith.constant 6 : index
    %c0_128 = arith.constant 0 : index
    %c0_129 = arith.constant 0 : index
    %c0_130 = arith.constant 0 : index
    %267 = vector.load %arg4[%c6_127, %c0_128, %c0_129, %c0_130] : memref<50x3x2x15xf32, #tpu.memory_space<vmem>>, vector<1x1x2x15xf32>
    %268 = vector.shape_cast %267 : vector<1x1x2x15xf32> to vector<2x15xf32>
    %269 = arith.mulf %266, %268 : vector<2x15xf32>
    %270 = arith.addf %232, %269 : vector<2x15xf32>
    %c6_131 = arith.constant 6 : index
    %c1_132 = arith.constant 1 : index
    %c0_133 = arith.constant 0 : index
    %c0_134 = arith.constant 0 : index
    %271 = vector.load %arg4[%c6_131, %c1_132, %c0_133, %c0_134] : memref<50x3x2x15xf32, #tpu.memory_space<vmem>>, vector<1x1x2x15xf32>
    %272 = vector.shape_cast %271 : vector<1x1x2x15xf32> to vector<2x15xf32>
    %273 = arith.mulf %266, %272 : vector<2x15xf32>
    %274 = arith.addf %236, %273 : vector<2x15xf32>
    %c6_135 = arith.constant 6 : index
    %c2_136 = arith.constant 2 : index
    %c0_137 = arith.constant 0 : index
    %c0_138 = arith.constant 0 : index
    %275 = vector.load %arg4[%c6_135, %c2_136, %c0_137, %c0_138] : memref<50x3x2x15xf32, #tpu.memory_space<vmem>>, vector<1x1x2x15xf32>
    %276 = vector.shape_cast %275 : vector<1x1x2x15xf32> to vector<2x15xf32>
    %277 = arith.mulf %266, %276 : vector<2x15xf32>
    %278 = arith.addf %240, %277 : vector<2x15xf32>
    %c14 = arith.constant 14 : index
    %c0_139 = arith.constant 0 : index
    %279 = vector.load %arg7[%c14, %c0_139] : memref<100x60xf32, #tpu.memory_space<vmem>>, vector<2x60xf32>
    %280 = vector.shape_cast %264 : vector<2x15xf32> to vector<2x15x1xf32>
    %281 = vector.broadcast %280 : vector<2x15x1xf32> to vector<2x15x60xf32>
    %282 = arith.mulf %281, %10 : vector<2x15x60xf32>
    %cst_140 = arith.constant dense<0.000000e+00> : vector<2x60xf32>
    %283 = vector.multi_reduction <add>, %282, %cst_140 [1] : vector<2x15x60xf32> to vector<2x60xf32>
    %284 = arith.addf %279, %283 : vector<2x60xf32>
    %285 = arith.negf %284 : vector<2x60xf32>
    %286 = math.exp %285 : vector<2x60xf32>
    %cst_141 = arith.constant 1.000000e+00 : f32
    %287 = vector.broadcast %cst_141 : f32 to vector<2x60xf32>
    %288 = arith.addf %287, %286 : vector<2x60xf32>
    %289 = arith.divf %287, %288 : vector<2x60xf32>
    %290 = vector.extract_strided_slice %289 {offsets = [0, 0], sizes = [2, 15], strides = [1, 1]} : vector<2x60xf32> to vector<2x15xf32>
    %291 = vector.extract_strided_slice %289 {offsets = [0, 15], sizes = [2, 15], strides = [1, 1]} : vector<2x60xf32> to vector<2x15xf32>
    %292 = vector.extract_strided_slice %289 {offsets = [0, 30], sizes = [2, 15], strides = [1, 1]} : vector<2x60xf32> to vector<2x15xf32>
    %cst_142 = arith.constant 2.000000e+00 : f32
    %293 = vector.broadcast %cst_142 : f32 to vector<2x15xf32>
    %294 = arith.mulf %293, %292 : vector<2x15xf32>
    %cst_143 = arith.constant 1.000000e+00 : f32
    %295 = vector.broadcast %cst_143 : f32 to vector<2x15xf32>
    %296 = arith.subf %294, %295 : vector<2x15xf32>
    %297 = vector.extract_strided_slice %289 {offsets = [0, 45], sizes = [2, 15], strides = [1, 1]} : vector<2x60xf32> to vector<2x15xf32>
    %298 = arith.mulf %291, %262 : vector<2x15xf32>
    %299 = arith.mulf %290, %296 : vector<2x15xf32>
    %300 = arith.addf %298, %299 : vector<2x15xf32>
    %301 = math.tanh %300 : vector<2x15xf32>
    %302 = arith.mulf %297, %301 : vector<2x15xf32>
    %cst_144 = arith.constant 0.000000e+00 : f32
    %303 = vector.broadcast %cst_144 : f32 to vector<2x15xf32>
    %304 = arith.maximumf %302, %303 : vector<2x15xf32>
    %c7 = arith.constant 7 : index
    %c0_145 = arith.constant 0 : index
    %c0_146 = arith.constant 0 : index
    %c0_147 = arith.constant 0 : index
    %305 = vector.load %arg4[%c7, %c0_145, %c0_146, %c0_147] : memref<50x3x2x15xf32, #tpu.memory_space<vmem>>, vector<1x1x2x15xf32>
    %306 = vector.shape_cast %305 : vector<1x1x2x15xf32> to vector<2x15xf32>
    %307 = arith.mulf %304, %306 : vector<2x15xf32>
    %308 = arith.addf %270, %307 : vector<2x15xf32>
    %c7_148 = arith.constant 7 : index
    %c1_149 = arith.constant 1 : index
    %c0_150 = arith.constant 0 : index
    %c0_151 = arith.constant 0 : index
    %309 = vector.load %arg4[%c7_148, %c1_149, %c0_150, %c0_151] : memref<50x3x2x15xf32, #tpu.memory_space<vmem>>, vector<1x1x2x15xf32>
    %310 = vector.shape_cast %309 : vector<1x1x2x15xf32> to vector<2x15xf32>
    %311 = arith.mulf %304, %310 : vector<2x15xf32>
    %312 = arith.addf %274, %311 : vector<2x15xf32>
    %c7_152 = arith.constant 7 : index
    %c2_153 = arith.constant 2 : index
    %c0_154 = arith.constant 0 : index
    %c0_155 = arith.constant 0 : index
    %313 = vector.load %arg4[%c7_152, %c2_153, %c0_154, %c0_155] : memref<50x3x2x15xf32, #tpu.memory_space<vmem>>, vector<1x1x2x15xf32>
    %314 = vector.shape_cast %313 : vector<1x1x2x15xf32> to vector<2x15xf32>
    %315 = arith.mulf %304, %314 : vector<2x15xf32>
    %316 = arith.addf %278, %315 : vector<2x15xf32>
    %c16 = arith.constant 16 : index
    %c0_156 = arith.constant 0 : index
    %317 = vector.load %arg7[%c16, %c0_156] : memref<100x60xf32, #tpu.memory_space<vmem>>, vector<2x60xf32>
    %318 = vector.shape_cast %302 : vector<2x15xf32> to vector<2x15x1xf32>
    %319 = vector.broadcast %318 : vector<2x15x1xf32> to vector<2x15x60xf32>
    %320 = arith.mulf %319, %10 : vector<2x15x60xf32>
    %cst_157 = arith.constant dense<0.000000e+00> : vector<2x60xf32>
    %321 = vector.multi_reduction <add>, %320, %cst_157 [1] : vector<2x15x60xf32> to vector<2x60xf32>
    %322 = arith.addf %317, %321 : vector<2x60xf32>
    %323 = arith.negf %322 : vector<2x60xf32>
    %324 = math.exp %323 : vector<2x60xf32>
    %cst_158 = arith.constant 1.000000e+00 : f32
    %325 = vector.broadcast %cst_158 : f32 to vector<2x60xf32>
    %326 = arith.addf %325, %324 : vector<2x60xf32>
    %327 = arith.divf %325, %326 : vector<2x60xf32>
    %328 = vector.extract_strided_slice %327 {offsets = [0, 0], sizes = [2, 15], strides = [1, 1]} : vector<2x60xf32> to vector<2x15xf32>
    %329 = vector.extract_strided_slice %327 {offsets = [0, 15], sizes = [2, 15], strides = [1, 1]} : vector<2x60xf32> to vector<2x15xf32>
    %330 = vector.extract_strided_slice %327 {offsets = [0, 30], sizes = [2, 15], strides = [1, 1]} : vector<2x60xf32> to vector<2x15xf32>
    %cst_159 = arith.constant 2.000000e+00 : f32
    %331 = vector.broadcast %cst_159 : f32 to vector<2x15xf32>
    %332 = arith.mulf %331, %330 : vector<2x15xf32>
    %cst_160 = arith.constant 1.000000e+00 : f32
    %333 = vector.broadcast %cst_160 : f32 to vector<2x15xf32>
    %334 = arith.subf %332, %333 : vector<2x15xf32>
    %335 = vector.extract_strided_slice %327 {offsets = [0, 45], sizes = [2, 15], strides = [1, 1]} : vector<2x60xf32> to vector<2x15xf32>
    %336 = arith.mulf %329, %300 : vector<2x15xf32>
    %337 = arith.mulf %328, %334 : vector<2x15xf32>
    %338 = arith.addf %336, %337 : vector<2x15xf32>
    %339 = math.tanh %338 : vector<2x15xf32>
    %340 = arith.mulf %335, %339 : vector<2x15xf32>
    %cst_161 = arith.constant 0.000000e+00 : f32
    %341 = vector.broadcast %cst_161 : f32 to vector<2x15xf32>
    %342 = arith.maximumf %340, %341 : vector<2x15xf32>
    %c8_162 = arith.constant 8 : index
    %c0_163 = arith.constant 0 : index
    %c0_164 = arith.constant 0 : index
    %c0_165 = arith.constant 0 : index
    %343 = vector.load %arg4[%c8_162, %c0_163, %c0_164, %c0_165] : memref<50x3x2x15xf32, #tpu.memory_space<vmem>>, vector<1x1x2x15xf32>
    %344 = vector.shape_cast %343 : vector<1x1x2x15xf32> to vector<2x15xf32>
    %345 = arith.mulf %342, %344 : vector<2x15xf32>
    %346 = arith.addf %308, %345 : vector<2x15xf32>
    %c8_166 = arith.constant 8 : index
    %c1_167 = arith.constant 1 : index
    %c0_168 = arith.constant 0 : index
    %c0_169 = arith.constant 0 : index
    %347 = vector.load %arg4[%c8_166, %c1_167, %c0_168, %c0_169] : memref<50x3x2x15xf32, #tpu.memory_space<vmem>>, vector<1x1x2x15xf32>
    %348 = vector.shape_cast %347 : vector<1x1x2x15xf32> to vector<2x15xf32>
    %349 = arith.mulf %342, %348 : vector<2x15xf32>
    %350 = arith.addf %312, %349 : vector<2x15xf32>
    %c8_170 = arith.constant 8 : index
    %c2_171 = arith.constant 2 : index
    %c0_172 = arith.constant 0 : index
    %c0_173 = arith.constant 0 : index
    %351 = vector.load %arg4[%c8_170, %c2_171, %c0_172, %c0_173] : memref<50x3x2x15xf32, #tpu.memory_space<vmem>>, vector<1x1x2x15xf32>
    %352 = vector.shape_cast %351 : vector<1x1x2x15xf32> to vector<2x15xf32>
    %353 = arith.mulf %342, %352 : vector<2x15xf32>
    %354 = arith.addf %316, %353 : vector<2x15xf32>
    %c18 = arith.constant 18 : index
    %c0_174 = arith.constant 0 : index
    %355 = vector.load %arg7[%c18, %c0_174] : memref<100x60xf32, #tpu.memory_space<vmem>>, vector<2x60xf32>
    %356 = vector.shape_cast %340 : vector<2x15xf32> to vector<2x15x1xf32>
    %357 = vector.broadcast %356 : vector<2x15x1xf32> to vector<2x15x60xf32>
    %358 = arith.mulf %357, %10 : vector<2x15x60xf32>
    %cst_175 = arith.constant dense<0.000000e+00> : vector<2x60xf32>
    %359 = vector.multi_reduction <add>, %358, %cst_175 [1] : vector<2x15x60xf32> to vector<2x60xf32>
    %360 = arith.addf %355, %359 : vector<2x60xf32>
    %361 = arith.negf %360 : vector<2x60xf32>
    %362 = math.exp %361 : vector<2x60xf32>
    %cst_176 = arith.constant 1.000000e+00 : f32
    %363 = vector.broadcast %cst_176 : f32 to vector<2x60xf32>
    %364 = arith.addf %363, %362 : vector<2x60xf32>
    %365 = arith.divf %363, %364 : vector<2x60xf32>
    %366 = vector.extract_strided_slice %365 {offsets = [0, 0], sizes = [2, 15], strides = [1, 1]} : vector<2x60xf32> to vector<2x15xf32>
    %367 = vector.extract_strided_slice %365 {offsets = [0, 15], sizes = [2, 15], strides = [1, 1]} : vector<2x60xf32> to vector<2x15xf32>
    %368 = vector.extract_strided_slice %365 {offsets = [0, 30], sizes = [2, 15], strides = [1, 1]} : vector<2x60xf32> to vector<2x15xf32>
    %cst_177 = arith.constant 2.000000e+00 : f32
    %369 = vector.broadcast %cst_177 : f32 to vector<2x15xf32>
    %370 = arith.mulf %369, %368 : vector<2x15xf32>
    %cst_178 = arith.constant 1.000000e+00 : f32
    %371 = vector.broadcast %cst_178 : f32 to vector<2x15xf32>
    %372 = arith.subf %370, %371 : vector<2x15xf32>
    %373 = vector.extract_strided_slice %365 {offsets = [0, 45], sizes = [2, 15], strides = [1, 1]} : vector<2x60xf32> to vector<2x15xf32>
    %374 = arith.mulf %367, %338 : vector<2x15xf32>
    %375 = arith.mulf %366, %372 : vector<2x15xf32>
    %376 = arith.addf %374, %375 : vector<2x15xf32>
    %377 = math.tanh %376 : vector<2x15xf32>
    %378 = arith.mulf %373, %377 : vector<2x15xf32>
    %cst_179 = arith.constant 0.000000e+00 : f32
    %379 = vector.broadcast %cst_179 : f32 to vector<2x15xf32>
    %380 = arith.maximumf %378, %379 : vector<2x15xf32>
    %c9 = arith.constant 9 : index
    %c0_180 = arith.constant 0 : index
    %c0_181 = arith.constant 0 : index
    %c0_182 = arith.constant 0 : index
    %381 = vector.load %arg4[%c9, %c0_180, %c0_181, %c0_182] : memref<50x3x2x15xf32, #tpu.memory_space<vmem>>, vector<1x1x2x15xf32>
    %382 = vector.shape_cast %381 : vector<1x1x2x15xf32> to vector<2x15xf32>
    %383 = arith.mulf %380, %382 : vector<2x15xf32>
    %384 = arith.addf %346, %383 : vector<2x15xf32>
    %c9_183 = arith.constant 9 : index
    %c1_184 = arith.constant 1 : index
    %c0_185 = arith.constant 0 : index
    %c0_186 = arith.constant 0 : index
    %385 = vector.load %arg4[%c9_183, %c1_184, %c0_185, %c0_186] : memref<50x3x2x15xf32, #tpu.memory_space<vmem>>, vector<1x1x2x15xf32>
    %386 = vector.shape_cast %385 : vector<1x1x2x15xf32> to vector<2x15xf32>
    %387 = arith.mulf %380, %386 : vector<2x15xf32>
    %388 = arith.addf %350, %387 : vector<2x15xf32>
    %c9_187 = arith.constant 9 : index
    %c2_188 = arith.constant 2 : index
    %c0_189 = arith.constant 0 : index
    %c0_190 = arith.constant 0 : index
    %389 = vector.load %arg4[%c9_187, %c2_188, %c0_189, %c0_190] : memref<50x3x2x15xf32, #tpu.memory_space<vmem>>, vector<1x1x2x15xf32>
    %390 = vector.shape_cast %389 : vector<1x1x2x15xf32> to vector<2x15xf32>
    %391 = arith.mulf %380, %390 : vector<2x15xf32>
    %392 = arith.addf %354, %391 : vector<2x15xf32>
    %c20 = arith.constant 20 : index
    %c0_191 = arith.constant 0 : index
    %393 = vector.load %arg7[%c20, %c0_191] : memref<100x60xf32, #tpu.memory_space<vmem>>, vector<2x60xf32>
    %394 = vector.shape_cast %378 : vector<2x15xf32> to vector<2x15x1xf32>
    %395 = vector.broadcast %394 : vector<2x15x1xf32> to vector<2x15x60xf32>
    %396 = arith.mulf %395, %10 : vector<2x15x60xf32>
    %cst_192 = arith.constant dense<0.000000e+00> : vector<2x60xf32>
    %397 = vector.multi_reduction <add>, %396, %cst_192 [1] : vector<2x15x60xf32> to vector<2x60xf32>
    %398 = arith.addf %393, %397 : vector<2x60xf32>
    %399 = arith.negf %398 : vector<2x60xf32>
    %400 = math.exp %399 : vector<2x60xf32>
    %cst_193 = arith.constant 1.000000e+00 : f32
    %401 = vector.broadcast %cst_193 : f32 to vector<2x60xf32>
    %402 = arith.addf %401, %400 : vector<2x60xf32>
    %403 = arith.divf %401, %402 : vector<2x60xf32>
    %404 = vector.extract_strided_slice %403 {offsets = [0, 0], sizes = [2, 15], strides = [1, 1]} : vector<2x60xf32> to vector<2x15xf32>
    %405 = vector.extract_strided_slice %403 {offsets = [0, 15], sizes = [2, 15], strides = [1, 1]} : vector<2x60xf32> to vector<2x15xf32>
    %406 = vector.extract_strided_slice %403 {offsets = [0, 30], sizes = [2, 15], strides = [1, 1]} : vector<2x60xf32> to vector<2x15xf32>
    %cst_194 = arith.constant 2.000000e+00 : f32
    %407 = vector.broadcast %cst_194 : f32 to vector<2x15xf32>
    %408 = arith.mulf %407, %406 : vector<2x15xf32>
    %cst_195 = arith.constant 1.000000e+00 : f32
    %409 = vector.broadcast %cst_195 : f32 to vector<2x15xf32>
    %410 = arith.subf %408, %409 : vector<2x15xf32>
    %411 = vector.extract_strided_slice %403 {offsets = [0, 45], sizes = [2, 15], strides = [1, 1]} : vector<2x60xf32> to vector<2x15xf32>
    %412 = arith.mulf %405, %376 : vector<2x15xf32>
    %413 = arith.mulf %404, %410 : vector<2x15xf32>
    %414 = arith.addf %412, %413 : vector<2x15xf32>
    %415 = math.tanh %414 : vector<2x15xf32>
    %416 = arith.mulf %411, %415 : vector<2x15xf32>
    %cst_196 = arith.constant 0.000000e+00 : f32
    %417 = vector.broadcast %cst_196 : f32 to vector<2x15xf32>
    %418 = arith.maximumf %416, %417 : vector<2x15xf32>
    %c10_197 = arith.constant 10 : index
    %c0_198 = arith.constant 0 : index
    %c0_199 = arith.constant 0 : index
    %c0_200 = arith.constant 0 : index
    %419 = vector.load %arg4[%c10_197, %c0_198, %c0_199, %c0_200] : memref<50x3x2x15xf32, #tpu.memory_space<vmem>>, vector<1x1x2x15xf32>
    %420 = vector.shape_cast %419 : vector<1x1x2x15xf32> to vector<2x15xf32>
    %421 = arith.mulf %418, %420 : vector<2x15xf32>
    %422 = arith.addf %384, %421 : vector<2x15xf32>
    %c10_201 = arith.constant 10 : index
    %c1_202 = arith.constant 1 : index
    %c0_203 = arith.constant 0 : index
    %c0_204 = arith.constant 0 : index
    %423 = vector.load %arg4[%c10_201, %c1_202, %c0_203, %c0_204] : memref<50x3x2x15xf32, #tpu.memory_space<vmem>>, vector<1x1x2x15xf32>
    %424 = vector.shape_cast %423 : vector<1x1x2x15xf32> to vector<2x15xf32>
    %425 = arith.mulf %418, %424 : vector<2x15xf32>
    %426 = arith.addf %388, %425 : vector<2x15xf32>
    %c10_205 = arith.constant 10 : index
    %c2_206 = arith.constant 2 : index
    %c0_207 = arith.constant 0 : index
    %c0_208 = arith.constant 0 : index
    %427 = vector.load %arg4[%c10_205, %c2_206, %c0_207, %c0_208] : memref<50x3x2x15xf32, #tpu.memory_space<vmem>>, vector<1x1x2x15xf32>
    %428 = vector.shape_cast %427 : vector<1x1x2x15xf32> to vector<2x15xf32>
    %429 = arith.mulf %418, %428 : vector<2x15xf32>
    %430 = arith.addf %392, %429 : vector<2x15xf32>
    %c22 = arith.constant 22 : index
    %c0_209 = arith.constant 0 : index
    %431 = vector.load %arg7[%c22, %c0_209] : memref<100x60xf32, #tpu.memory_space<vmem>>, vector<2x60xf32>
    %432 = vector.shape_cast %416 : vector<2x15xf32> to vector<2x15x1xf32>
    %433 = vector.broadcast %432 : vector<2x15x1xf32> to vector<2x15x60xf32>
    %434 = arith.mulf %433, %10 : vector<2x15x60xf32>
    %cst_210 = arith.constant dense<0.000000e+00> : vector<2x60xf32>
    %435 = vector.multi_reduction <add>, %434, %cst_210 [1] : vector<2x15x60xf32> to vector<2x60xf32>
    %436 = arith.addf %431, %435 : vector<2x60xf32>
    %437 = arith.negf %436 : vector<2x60xf32>
    %438 = math.exp %437 : vector<2x60xf32>
    %cst_211 = arith.constant 1.000000e+00 : f32
    %439 = vector.broadcast %cst_211 : f32 to vector<2x60xf32>
    %440 = arith.addf %439, %438 : vector<2x60xf32>
    %441 = arith.divf %439, %440 : vector<2x60xf32>
    %442 = vector.extract_strided_slice %441 {offsets = [0, 0], sizes = [2, 15], strides = [1, 1]} : vector<2x60xf32> to vector<2x15xf32>
    %443 = vector.extract_strided_slice %441 {offsets = [0, 15], sizes = [2, 15], strides = [1, 1]} : vector<2x60xf32> to vector<2x15xf32>
    %444 = vector.extract_strided_slice %441 {offsets = [0, 30], sizes = [2, 15], strides = [1, 1]} : vector<2x60xf32> to vector<2x15xf32>
    %cst_212 = arith.constant 2.000000e+00 : f32
    %445 = vector.broadcast %cst_212 : f32 to vector<2x15xf32>
    %446 = arith.mulf %445, %444 : vector<2x15xf32>
    %cst_213 = arith.constant 1.000000e+00 : f32
    %447 = vector.broadcast %cst_213 : f32 to vector<2x15xf32>
    %448 = arith.subf %446, %447 : vector<2x15xf32>
    %449 = vector.extract_strided_slice %441 {offsets = [0, 45], sizes = [2, 15], strides = [1, 1]} : vector<2x60xf32> to vector<2x15xf32>
    %450 = arith.mulf %443, %414 : vector<2x15xf32>
    %451 = arith.mulf %442, %448 : vector<2x15xf32>
    %452 = arith.addf %450, %451 : vector<2x15xf32>
    %453 = math.tanh %452 : vector<2x15xf32>
    %454 = arith.mulf %449, %453 : vector<2x15xf32>
    %cst_214 = arith.constant 0.000000e+00 : f32
    %455 = vector.broadcast %cst_214 : f32 to vector<2x15xf32>
    %456 = arith.maximumf %454, %455 : vector<2x15xf32>
    %c11 = arith.constant 11 : index
    %c0_215 = arith.constant 0 : index
    %c0_216 = arith.constant 0 : index
    %c0_217 = arith.constant 0 : index
    %457 = vector.load %arg4[%c11, %c0_215, %c0_216, %c0_217] : memref<50x3x2x15xf32, #tpu.memory_space<vmem>>, vector<1x1x2x15xf32>
    %458 = vector.shape_cast %457 : vector<1x1x2x15xf32> to vector<2x15xf32>
    %459 = arith.mulf %456, %458 : vector<2x15xf32>
    %460 = arith.addf %422, %459 : vector<2x15xf32>
    %c11_218 = arith.constant 11 : index
    %c1_219 = arith.constant 1 : index
    %c0_220 = arith.constant 0 : index
    %c0_221 = arith.constant 0 : index
    %461 = vector.load %arg4[%c11_218, %c1_219, %c0_220, %c0_221] : memref<50x3x2x15xf32, #tpu.memory_space<vmem>>, vector<1x1x2x15xf32>
    %462 = vector.shape_cast %461 : vector<1x1x2x15xf32> to vector<2x15xf32>
    %463 = arith.mulf %456, %462 : vector<2x15xf32>
    %464 = arith.addf %426, %463 : vector<2x15xf32>
    %c11_222 = arith.constant 11 : index
    %c2_223 = arith.constant 2 : index
    %c0_224 = arith.constant 0 : index
    %c0_225 = arith.constant 0 : index
    %465 = vector.load %arg4[%c11_222, %c2_223, %c0_224, %c0_225] : memref<50x3x2x15xf32, #tpu.memory_space<vmem>>, vector<1x1x2x15xf32>
    %466 = vector.shape_cast %465 : vector<1x1x2x15xf32> to vector<2x15xf32>
    %467 = arith.mulf %456, %466 : vector<2x15xf32>
    %468 = arith.addf %430, %467 : vector<2x15xf32>
    %c24 = arith.constant 24 : index
    %c0_226 = arith.constant 0 : index
    %469 = vector.load %arg7[%c24, %c0_226] : memref<100x60xf32, #tpu.memory_space<vmem>>, vector<2x60xf32>
    %470 = vector.shape_cast %454 : vector<2x15xf32> to vector<2x15x1xf32>
    %471 = vector.broadcast %470 : vector<2x15x1xf32> to vector<2x15x60xf32>
    %472 = arith.mulf %471, %10 : vector<2x15x60xf32>
    %cst_227 = arith.constant dense<0.000000e+00> : vector<2x60xf32>
    %473 = vector.multi_reduction <add>, %472, %cst_227 [1] : vector<2x15x60xf32> to vector<2x60xf32>
    %474 = arith.addf %469, %473 : vector<2x60xf32>
    %475 = arith.negf %474 : vector<2x60xf32>
    %476 = math.exp %475 : vector<2x60xf32>
    %cst_228 = arith.constant 1.000000e+00 : f32
    %477 = vector.broadcast %cst_228 : f32 to vector<2x60xf32>
    %478 = arith.addf %477, %476 : vector<2x60xf32>
    %479 = arith.divf %477, %478 : vector<2x60xf32>
    %480 = vector.extract_strided_slice %479 {offsets = [0, 0], sizes = [2, 15], strides = [1, 1]} : vector<2x60xf32> to vector<2x15xf32>
    %481 = vector.extract_strided_slice %479 {offsets = [0, 15], sizes = [2, 15], strides = [1, 1]} : vector<2x60xf32> to vector<2x15xf32>
    %482 = vector.extract_strided_slice %479 {offsets = [0, 30], sizes = [2, 15], strides = [1, 1]} : vector<2x60xf32> to vector<2x15xf32>
    %cst_229 = arith.constant 2.000000e+00 : f32
    %483 = vector.broadcast %cst_229 : f32 to vector<2x15xf32>
    %484 = arith.mulf %483, %482 : vector<2x15xf32>
    %cst_230 = arith.constant 1.000000e+00 : f32
    %485 = vector.broadcast %cst_230 : f32 to vector<2x15xf32>
    %486 = arith.subf %484, %485 : vector<2x15xf32>
    %487 = vector.extract_strided_slice %479 {offsets = [0, 45], sizes = [2, 15], strides = [1, 1]} : vector<2x60xf32> to vector<2x15xf32>
    %488 = arith.mulf %481, %452 : vector<2x15xf32>
    %489 = arith.mulf %480, %486 : vector<2x15xf32>
    %490 = arith.addf %488, %489 : vector<2x15xf32>
    %491 = math.tanh %490 : vector<2x15xf32>
    %492 = arith.mulf %487, %491 : vector<2x15xf32>
    %cst_231 = arith.constant 0.000000e+00 : f32
    %493 = vector.broadcast %cst_231 : f32 to vector<2x15xf32>
    %494 = arith.maximumf %492, %493 : vector<2x15xf32>
    %c12_232 = arith.constant 12 : index
    %c0_233 = arith.constant 0 : index
    %c0_234 = arith.constant 0 : index
    %c0_235 = arith.constant 0 : index
    %495 = vector.load %arg4[%c12_232, %c0_233, %c0_234, %c0_235] : memref<50x3x2x15xf32, #tpu.memory_space<vmem>>, vector<1x1x2x15xf32>
    %496 = vector.shape_cast %495 : vector<1x1x2x15xf32> to vector<2x15xf32>
    %497 = arith.mulf %494, %496 : vector<2x15xf32>
    %498 = arith.addf %460, %497 : vector<2x15xf32>
    %c12_236 = arith.constant 12 : index
    %c1_237 = arith.constant 1 : index
    %c0_238 = arith.constant 0 : index
    %c0_239 = arith.constant 0 : index
    %499 = vector.load %arg4[%c12_236, %c1_237, %c0_238, %c0_239] : memref<50x3x2x15xf32, #tpu.memory_space<vmem>>, vector<1x1x2x15xf32>
    %500 = vector.shape_cast %499 : vector<1x1x2x15xf32> to vector<2x15xf32>
    %501 = arith.mulf %494, %500 : vector<2x15xf32>
    %502 = arith.addf %464, %501 : vector<2x15xf32>
    %c12_240 = arith.constant 12 : index
    %c2_241 = arith.constant 2 : index
    %c0_242 = arith.constant 0 : index
    %c0_243 = arith.constant 0 : index
    %503 = vector.load %arg4[%c12_240, %c2_241, %c0_242, %c0_243] : memref<50x3x2x15xf32, #tpu.memory_space<vmem>>, vector<1x1x2x15xf32>
    %504 = vector.shape_cast %503 : vector<1x1x2x15xf32> to vector<2x15xf32>
    %505 = arith.mulf %494, %504 : vector<2x15xf32>
    %506 = arith.addf %468, %505 : vector<2x15xf32>
    %c26 = arith.constant 26 : index
    %c0_244 = arith.constant 0 : index
    %507 = vector.load %arg7[%c26, %c0_244] : memref<100x60xf32, #tpu.memory_space<vmem>>, vector<2x60xf32>
    %508 = vector.shape_cast %492 : vector<2x15xf32> to vector<2x15x1xf32>
    %509 = vector.broadcast %508 : vector<2x15x1xf32> to vector<2x15x60xf32>
    %510 = arith.mulf %509, %10 : vector<2x15x60xf32>
    %cst_245 = arith.constant dense<0.000000e+00> : vector<2x60xf32>
    %511 = vector.multi_reduction <add>, %510, %cst_245 [1] : vector<2x15x60xf32> to vector<2x60xf32>
    %512 = arith.addf %507, %511 : vector<2x60xf32>
    %513 = arith.negf %512 : vector<2x60xf32>
    %514 = math.exp %513 : vector<2x60xf32>
    %cst_246 = arith.constant 1.000000e+00 : f32
    %515 = vector.broadcast %cst_246 : f32 to vector<2x60xf32>
    %516 = arith.addf %515, %514 : vector<2x60xf32>
    %517 = arith.divf %515, %516 : vector<2x60xf32>
    %518 = vector.extract_strided_slice %517 {offsets = [0, 0], sizes = [2, 15], strides = [1, 1]} : vector<2x60xf32> to vector<2x15xf32>
    %519 = vector.extract_strided_slice %517 {offsets = [0, 15], sizes = [2, 15], strides = [1, 1]} : vector<2x60xf32> to vector<2x15xf32>
    %520 = vector.extract_strided_slice %517 {offsets = [0, 30], sizes = [2, 15], strides = [1, 1]} : vector<2x60xf32> to vector<2x15xf32>
    %cst_247 = arith.constant 2.000000e+00 : f32
    %521 = vector.broadcast %cst_247 : f32 to vector<2x15xf32>
    %522 = arith.mulf %521, %520 : vector<2x15xf32>
    %cst_248 = arith.constant 1.000000e+00 : f32
    %523 = vector.broadcast %cst_248 : f32 to vector<2x15xf32>
    %524 = arith.subf %522, %523 : vector<2x15xf32>
    %525 = vector.extract_strided_slice %517 {offsets = [0, 45], sizes = [2, 15], strides = [1, 1]} : vector<2x60xf32> to vector<2x15xf32>
    %526 = arith.mulf %519, %490 : vector<2x15xf32>
    %527 = arith.mulf %518, %524 : vector<2x15xf32>
    %528 = arith.addf %526, %527 : vector<2x15xf32>
    %529 = math.tanh %528 : vector<2x15xf32>
    %530 = arith.mulf %525, %529 : vector<2x15xf32>
    %cst_249 = arith.constant 0.000000e+00 : f32
    %531 = vector.broadcast %cst_249 : f32 to vector<2x15xf32>
    %532 = arith.maximumf %530, %531 : vector<2x15xf32>
    %c13 = arith.constant 13 : index
    %c0_250 = arith.constant 0 : index
    %c0_251 = arith.constant 0 : index
    %c0_252 = arith.constant 0 : index
    %533 = vector.load %arg4[%c13, %c0_250, %c0_251, %c0_252] : memref<50x3x2x15xf32, #tpu.memory_space<vmem>>, vector<1x1x2x15xf32>
    %534 = vector.shape_cast %533 : vector<1x1x2x15xf32> to vector<2x15xf32>
    %535 = arith.mulf %532, %534 : vector<2x15xf32>
    %536 = arith.addf %498, %535 : vector<2x15xf32>
    %c13_253 = arith.constant 13 : index
    %c1_254 = arith.constant 1 : index
    %c0_255 = arith.constant 0 : index
    %c0_256 = arith.constant 0 : index
    %537 = vector.load %arg4[%c13_253, %c1_254, %c0_255, %c0_256] : memref<50x3x2x15xf32, #tpu.memory_space<vmem>>, vector<1x1x2x15xf32>
    %538 = vector.shape_cast %537 : vector<1x1x2x15xf32> to vector<2x15xf32>
    %539 = arith.mulf %532, %538 : vector<2x15xf32>
    %540 = arith.addf %502, %539 : vector<2x15xf32>
    %c13_257 = arith.constant 13 : index
    %c2_258 = arith.constant 2 : index
    %c0_259 = arith.constant 0 : index
    %c0_260 = arith.constant 0 : index
    %541 = vector.load %arg4[%c13_257, %c2_258, %c0_259, %c0_260] : memref<50x3x2x15xf32, #tpu.memory_space<vmem>>, vector<1x1x2x15xf32>
    %542 = vector.shape_cast %541 : vector<1x1x2x15xf32> to vector<2x15xf32>
    %543 = arith.mulf %532, %542 : vector<2x15xf32>
    %544 = arith.addf %506, %543 : vector<2x15xf32>
    %c28 = arith.constant 28 : index
    %c0_261 = arith.constant 0 : index
    %545 = vector.load %arg7[%c28, %c0_261] : memref<100x60xf32, #tpu.memory_space<vmem>>, vector<2x60xf32>
    %546 = vector.shape_cast %530 : vector<2x15xf32> to vector<2x15x1xf32>
    %547 = vector.broadcast %546 : vector<2x15x1xf32> to vector<2x15x60xf32>
    %548 = arith.mulf %547, %10 : vector<2x15x60xf32>
    %cst_262 = arith.constant dense<0.000000e+00> : vector<2x60xf32>
    %549 = vector.multi_reduction <add>, %548, %cst_262 [1] : vector<2x15x60xf32> to vector<2x60xf32>
    %550 = arith.addf %545, %549 : vector<2x60xf32>
    %551 = arith.negf %550 : vector<2x60xf32>
    %552 = math.exp %551 : vector<2x60xf32>
    %cst_263 = arith.constant 1.000000e+00 : f32
    %553 = vector.broadcast %cst_263 : f32 to vector<2x60xf32>
    %554 = arith.addf %553, %552 : vector<2x60xf32>
    %555 = arith.divf %553, %554 : vector<2x60xf32>
    %556 = vector.extract_strided_slice %555 {offsets = [0, 0], sizes = [2, 15], strides = [1, 1]} : vector<2x60xf32> to vector<2x15xf32>
    %557 = vector.extract_strided_slice %555 {offsets = [0, 15], sizes = [2, 15], strides = [1, 1]} : vector<2x60xf32> to vector<2x15xf32>
    %558 = vector.extract_strided_slice %555 {offsets = [0, 30], sizes = [2, 15], strides = [1, 1]} : vector<2x60xf32> to vector<2x15xf32>
    %cst_264 = arith.constant 2.000000e+00 : f32
    %559 = vector.broadcast %cst_264 : f32 to vector<2x15xf32>
    %560 = arith.mulf %559, %558 : vector<2x15xf32>
    %cst_265 = arith.constant 1.000000e+00 : f32
    %561 = vector.broadcast %cst_265 : f32 to vector<2x15xf32>
    %562 = arith.subf %560, %561 : vector<2x15xf32>
    %563 = vector.extract_strided_slice %555 {offsets = [0, 45], sizes = [2, 15], strides = [1, 1]} : vector<2x60xf32> to vector<2x15xf32>
    %564 = arith.mulf %557, %528 : vector<2x15xf32>
    %565 = arith.mulf %556, %562 : vector<2x15xf32>
    %566 = arith.addf %564, %565 : vector<2x15xf32>
    %567 = math.tanh %566 : vector<2x15xf32>
    %568 = arith.mulf %563, %567 : vector<2x15xf32>
    %cst_266 = arith.constant 0.000000e+00 : f32
    %569 = vector.broadcast %cst_266 : f32 to vector<2x15xf32>
    %570 = arith.maximumf %568, %569 : vector<2x15xf32>
    %c14_267 = arith.constant 14 : index
    %c0_268 = arith.constant 0 : index
    %c0_269 = arith.constant 0 : index
    %c0_270 = arith.constant 0 : index
    %571 = vector.load %arg4[%c14_267, %c0_268, %c0_269, %c0_270] : memref<50x3x2x15xf32, #tpu.memory_space<vmem>>, vector<1x1x2x15xf32>
    %572 = vector.shape_cast %571 : vector<1x1x2x15xf32> to vector<2x15xf32>
    %573 = arith.mulf %570, %572 : vector<2x15xf32>
    %574 = arith.addf %536, %573 : vector<2x15xf32>
    %c14_271 = arith.constant 14 : index
    %c1_272 = arith.constant 1 : index
    %c0_273 = arith.constant 0 : index
    %c0_274 = arith.constant 0 : index
    %575 = vector.load %arg4[%c14_271, %c1_272, %c0_273, %c0_274] : memref<50x3x2x15xf32, #tpu.memory_space<vmem>>, vector<1x1x2x15xf32>
    %576 = vector.shape_cast %575 : vector<1x1x2x15xf32> to vector<2x15xf32>
    %577 = arith.mulf %570, %576 : vector<2x15xf32>
    %578 = arith.addf %540, %577 : vector<2x15xf32>
    %c14_275 = arith.constant 14 : index
    %c2_276 = arith.constant 2 : index
    %c0_277 = arith.constant 0 : index
    %c0_278 = arith.constant 0 : index
    %579 = vector.load %arg4[%c14_275, %c2_276, %c0_277, %c0_278] : memref<50x3x2x15xf32, #tpu.memory_space<vmem>>, vector<1x1x2x15xf32>
    %580 = vector.shape_cast %579 : vector<1x1x2x15xf32> to vector<2x15xf32>
    %581 = arith.mulf %570, %580 : vector<2x15xf32>
    %582 = arith.addf %544, %581 : vector<2x15xf32>
    %c30 = arith.constant 30 : index
    %c0_279 = arith.constant 0 : index
    %583 = vector.load %arg7[%c30, %c0_279] : memref<100x60xf32, #tpu.memory_space<vmem>>, vector<2x60xf32>
    %584 = vector.shape_cast %568 : vector<2x15xf32> to vector<2x15x1xf32>
    %585 = vector.broadcast %584 : vector<2x15x1xf32> to vector<2x15x60xf32>
    %586 = arith.mulf %585, %10 : vector<2x15x60xf32>
    %cst_280 = arith.constant dense<0.000000e+00> : vector<2x60xf32>
    %587 = vector.multi_reduction <add>, %586, %cst_280 [1] : vector<2x15x60xf32> to vector<2x60xf32>
    %588 = arith.addf %583, %587 : vector<2x60xf32>
    %589 = arith.negf %588 : vector<2x60xf32>
    %590 = math.exp %589 : vector<2x60xf32>
    %cst_281 = arith.constant 1.000000e+00 : f32
    %591 = vector.broadcast %cst_281 : f32 to vector<2x60xf32>
    %592 = arith.addf %591, %590 : vector<2x60xf32>
    %593 = arith.divf %591, %592 : vector<2x60xf32>
    %594 = vector.extract_strided_slice %593 {offsets = [0, 0], sizes = [2, 15], strides = [1, 1]} : vector<2x60xf32> to vector<2x15xf32>
    %595 = vector.extract_strided_slice %593 {offsets = [0, 15], sizes = [2, 15], strides = [1, 1]} : vector<2x60xf32> to vector<2x15xf32>
    %596 = vector.extract_strided_slice %593 {offsets = [0, 30], sizes = [2, 15], strides = [1, 1]} : vector<2x60xf32> to vector<2x15xf32>
    %cst_282 = arith.constant 2.000000e+00 : f32
    %597 = vector.broadcast %cst_282 : f32 to vector<2x15xf32>
    %598 = arith.mulf %597, %596 : vector<2x15xf32>
    %cst_283 = arith.constant 1.000000e+00 : f32
    %599 = vector.broadcast %cst_283 : f32 to vector<2x15xf32>
    %600 = arith.subf %598, %599 : vector<2x15xf32>
    %601 = vector.extract_strided_slice %593 {offsets = [0, 45], sizes = [2, 15], strides = [1, 1]} : vector<2x60xf32> to vector<2x15xf32>
    %602 = arith.mulf %595, %566 : vector<2x15xf32>
    %603 = arith.mulf %594, %600 : vector<2x15xf32>
    %604 = arith.addf %602, %603 : vector<2x15xf32>
    %605 = math.tanh %604 : vector<2x15xf32>
    %606 = arith.mulf %601, %605 : vector<2x15xf32>
    %cst_284 = arith.constant 0.000000e+00 : f32
    %607 = vector.broadcast %cst_284 : f32 to vector<2x15xf32>
    %608 = arith.maximumf %606, %607 : vector<2x15xf32>
    %c15 = arith.constant 15 : index
    %c0_285 = arith.constant 0 : index
    %c0_286 = arith.constant 0 : index
    %c0_287 = arith.constant 0 : index
    %609 = vector.load %arg4[%c15, %c0_285, %c0_286, %c0_287] : memref<50x3x2x15xf32, #tpu.memory_space<vmem>>, vector<1x1x2x15xf32>
    %610 = vector.shape_cast %609 : vector<1x1x2x15xf32> to vector<2x15xf32>
    %611 = arith.mulf %608, %610 : vector<2x15xf32>
    %612 = arith.addf %574, %611 : vector<2x15xf32>
    %c15_288 = arith.constant 15 : index
    %c1_289 = arith.constant 1 : index
    %c0_290 = arith.constant 0 : index
    %c0_291 = arith.constant 0 : index
    %613 = vector.load %arg4[%c15_288, %c1_289, %c0_290, %c0_291] : memref<50x3x2x15xf32, #tpu.memory_space<vmem>>, vector<1x1x2x15xf32>
    %614 = vector.shape_cast %613 : vector<1x1x2x15xf32> to vector<2x15xf32>
    %615 = arith.mulf %608, %614 : vector<2x15xf32>
    %616 = arith.addf %578, %615 : vector<2x15xf32>
    %c15_292 = arith.constant 15 : index
    %c2_293 = arith.constant 2 : index
    %c0_294 = arith.constant 0 : index
    %c0_295 = arith.constant 0 : index
    %617 = vector.load %arg4[%c15_292, %c2_293, %c0_294, %c0_295] : memref<50x3x2x15xf32, #tpu.memory_space<vmem>>, vector<1x1x2x15xf32>
    %618 = vector.shape_cast %617 : vector<1x1x2x15xf32> to vector<2x15xf32>
    %619 = arith.mulf %608, %618 : vector<2x15xf32>
    %620 = arith.addf %582, %619 : vector<2x15xf32>
    %c32 = arith.constant 32 : index
    %c0_296 = arith.constant 0 : index
    %621 = vector.load %arg7[%c32, %c0_296] : memref<100x60xf32, #tpu.memory_space<vmem>>, vector<2x60xf32>
    %622 = vector.shape_cast %606 : vector<2x15xf32> to vector<2x15x1xf32>
    %623 = vector.broadcast %622 : vector<2x15x1xf32> to vector<2x15x60xf32>
    %624 = arith.mulf %623, %10 : vector<2x15x60xf32>
    %cst_297 = arith.constant dense<0.000000e+00> : vector<2x60xf32>
    %625 = vector.multi_reduction <add>, %624, %cst_297 [1] : vector<2x15x60xf32> to vector<2x60xf32>
    %626 = arith.addf %621, %625 : vector<2x60xf32>
    %627 = arith.negf %626 : vector<2x60xf32>
    %628 = math.exp %627 : vector<2x60xf32>
    %cst_298 = arith.constant 1.000000e+00 : f32
    %629 = vector.broadcast %cst_298 : f32 to vector<2x60xf32>
    %630 = arith.addf %629, %628 : vector<2x60xf32>
    %631 = arith.divf %629, %630 : vector<2x60xf32>
    %632 = vector.extract_strided_slice %631 {offsets = [0, 0], sizes = [2, 15], strides = [1, 1]} : vector<2x60xf32> to vector<2x15xf32>
    %633 = vector.extract_strided_slice %631 {offsets = [0, 15], sizes = [2, 15], strides = [1, 1]} : vector<2x60xf32> to vector<2x15xf32>
    %634 = vector.extract_strided_slice %631 {offsets = [0, 30], sizes = [2, 15], strides = [1, 1]} : vector<2x60xf32> to vector<2x15xf32>
    %cst_299 = arith.constant 2.000000e+00 : f32
    %635 = vector.broadcast %cst_299 : f32 to vector<2x15xf32>
    %636 = arith.mulf %635, %634 : vector<2x15xf32>
    %cst_300 = arith.constant 1.000000e+00 : f32
    %637 = vector.broadcast %cst_300 : f32 to vector<2x15xf32>
    %638 = arith.subf %636, %637 : vector<2x15xf32>
    %639 = vector.extract_strided_slice %631 {offsets = [0, 45], sizes = [2, 15], strides = [1, 1]} : vector<2x60xf32> to vector<2x15xf32>
    %640 = arith.mulf %633, %604 : vector<2x15xf32>
    %641 = arith.mulf %632, %638 : vector<2x15xf32>
    %642 = arith.addf %640, %641 : vector<2x15xf32>
    %643 = math.tanh %642 : vector<2x15xf32>
    %644 = arith.mulf %639, %643 : vector<2x15xf32>
    %cst_301 = arith.constant 0.000000e+00 : f32
    %645 = vector.broadcast %cst_301 : f32 to vector<2x15xf32>
    %646 = arith.maximumf %644, %645 : vector<2x15xf32>
    %c16_302 = arith.constant 16 : index
    %c0_303 = arith.constant 0 : index
    %c0_304 = arith.constant 0 : index
    %c0_305 = arith.constant 0 : index
    %647 = vector.load %arg4[%c16_302, %c0_303, %c0_304, %c0_305] : memref<50x3x2x15xf32, #tpu.memory_space<vmem>>, vector<1x1x2x15xf32>
    %648 = vector.shape_cast %647 : vector<1x1x2x15xf32> to vector<2x15xf32>
    %649 = arith.mulf %646, %648 : vector<2x15xf32>
    %650 = arith.addf %612, %649 : vector<2x15xf32>
    %c16_306 = arith.constant 16 : index
    %c1_307 = arith.constant 1 : index
    %c0_308 = arith.constant 0 : index
    %c0_309 = arith.constant 0 : index
    %651 = vector.load %arg4[%c16_306, %c1_307, %c0_308, %c0_309] : memref<50x3x2x15xf32, #tpu.memory_space<vmem>>, vector<1x1x2x15xf32>
    %652 = vector.shape_cast %651 : vector<1x1x2x15xf32> to vector<2x15xf32>
    %653 = arith.mulf %646, %652 : vector<2x15xf32>
    %654 = arith.addf %616, %653 : vector<2x15xf32>
    %c16_310 = arith.constant 16 : index
    %c2_311 = arith.constant 2 : index
    %c0_312 = arith.constant 0 : index
    %c0_313 = arith.constant 0 : index
    %655 = vector.load %arg4[%c16_310, %c2_311, %c0_312, %c0_313] : memref<50x3x2x15xf32, #tpu.memory_space<vmem>>, vector<1x1x2x15xf32>
    %656 = vector.shape_cast %655 : vector<1x1x2x15xf32> to vector<2x15xf32>
    %657 = arith.mulf %646, %656 : vector<2x15xf32>
    %658 = arith.addf %620, %657 : vector<2x15xf32>
    %c34 = arith.constant 34 : index
    %c0_314 = arith.constant 0 : index
    %659 = vector.load %arg7[%c34, %c0_314] : memref<100x60xf32, #tpu.memory_space<vmem>>, vector<2x60xf32>
    %660 = vector.shape_cast %644 : vector<2x15xf32> to vector<2x15x1xf32>
    %661 = vector.broadcast %660 : vector<2x15x1xf32> to vector<2x15x60xf32>
    %662 = arith.mulf %661, %10 : vector<2x15x60xf32>
    %cst_315 = arith.constant dense<0.000000e+00> : vector<2x60xf32>
    %663 = vector.multi_reduction <add>, %662, %cst_315 [1] : vector<2x15x60xf32> to vector<2x60xf32>
    %664 = arith.addf %659, %663 : vector<2x60xf32>
    %665 = arith.negf %664 : vector<2x60xf32>
    %666 = math.exp %665 : vector<2x60xf32>
    %cst_316 = arith.constant 1.000000e+00 : f32
    %667 = vector.broadcast %cst_316 : f32 to vector<2x60xf32>
    %668 = arith.addf %667, %666 : vector<2x60xf32>
    %669 = arith.divf %667, %668 : vector<2x60xf32>
    %670 = vector.extract_strided_slice %669 {offsets = [0, 0], sizes = [2, 15], strides = [1, 1]} : vector<2x60xf32> to vector<2x15xf32>
    %671 = vector.extract_strided_slice %669 {offsets = [0, 15], sizes = [2, 15], strides = [1, 1]} : vector<2x60xf32> to vector<2x15xf32>
    %672 = vector.extract_strided_slice %669 {offsets = [0, 30], sizes = [2, 15], strides = [1, 1]} : vector<2x60xf32> to vector<2x15xf32>
    %cst_317 = arith.constant 2.000000e+00 : f32
    %673 = vector.broadcast %cst_317 : f32 to vector<2x15xf32>
    %674 = arith.mulf %673, %672 : vector<2x15xf32>
    %cst_318 = arith.constant 1.000000e+00 : f32
    %675 = vector.broadcast %cst_318 : f32 to vector<2x15xf32>
    %676 = arith.subf %674, %675 : vector<2x15xf32>
    %677 = vector.extract_strided_slice %669 {offsets = [0, 45], sizes = [2, 15], strides = [1, 1]} : vector<2x60xf32> to vector<2x15xf32>
    %678 = arith.mulf %671, %642 : vector<2x15xf32>
    %679 = arith.mulf %670, %676 : vector<2x15xf32>
    %680 = arith.addf %678, %679 : vector<2x15xf32>
    %681 = math.tanh %680 : vector<2x15xf32>
    %682 = arith.mulf %677, %681 : vector<2x15xf32>
    %cst_319 = arith.constant 0.000000e+00 : f32
    %683 = vector.broadcast %cst_319 : f32 to vector<2x15xf32>
    %684 = arith.maximumf %682, %683 : vector<2x15xf32>
    %c17 = arith.constant 17 : index
    %c0_320 = arith.constant 0 : index
    %c0_321 = arith.constant 0 : index
    %c0_322 = arith.constant 0 : index
    %685 = vector.load %arg4[%c17, %c0_320, %c0_321, %c0_322] : memref<50x3x2x15xf32, #tpu.memory_space<vmem>>, vector<1x1x2x15xf32>
    %686 = vector.shape_cast %685 : vector<1x1x2x15xf32> to vector<2x15xf32>
    %687 = arith.mulf %684, %686 : vector<2x15xf32>
    %688 = arith.addf %650, %687 : vector<2x15xf32>
    %c17_323 = arith.constant 17 : index
    %c1_324 = arith.constant 1 : index
    %c0_325 = arith.constant 0 : index
    %c0_326 = arith.constant 0 : index
    %689 = vector.load %arg4[%c17_323, %c1_324, %c0_325, %c0_326] : memref<50x3x2x15xf32, #tpu.memory_space<vmem>>, vector<1x1x2x15xf32>
    %690 = vector.shape_cast %689 : vector<1x1x2x15xf32> to vector<2x15xf32>
    %691 = arith.mulf %684, %690 : vector<2x15xf32>
    %692 = arith.addf %654, %691 : vector<2x15xf32>
    %c17_327 = arith.constant 17 : index
    %c2_328 = arith.constant 2 : index
    %c0_329 = arith.constant 0 : index
    %c0_330 = arith.constant 0 : index
    %693 = vector.load %arg4[%c17_327, %c2_328, %c0_329, %c0_330] : memref<50x3x2x15xf32, #tpu.memory_space<vmem>>, vector<1x1x2x15xf32>
    %694 = vector.shape_cast %693 : vector<1x1x2x15xf32> to vector<2x15xf32>
    %695 = arith.mulf %684, %694 : vector<2x15xf32>
    %696 = arith.addf %658, %695 : vector<2x15xf32>
    %c36 = arith.constant 36 : index
    %c0_331 = arith.constant 0 : index
    %697 = vector.load %arg7[%c36, %c0_331] : memref<100x60xf32, #tpu.memory_space<vmem>>, vector<2x60xf32>
    %698 = vector.shape_cast %682 : vector<2x15xf32> to vector<2x15x1xf32>
    %699 = vector.broadcast %698 : vector<2x15x1xf32> to vector<2x15x60xf32>
    %700 = arith.mulf %699, %10 : vector<2x15x60xf32>
    %cst_332 = arith.constant dense<0.000000e+00> : vector<2x60xf32>
    %701 = vector.multi_reduction <add>, %700, %cst_332 [1] : vector<2x15x60xf32> to vector<2x60xf32>
    %702 = arith.addf %697, %701 : vector<2x60xf32>
    %703 = arith.negf %702 : vector<2x60xf32>
    %704 = math.exp %703 : vector<2x60xf32>
    %cst_333 = arith.constant 1.000000e+00 : f32
    %705 = vector.broadcast %cst_333 : f32 to vector<2x60xf32>
    %706 = arith.addf %705, %704 : vector<2x60xf32>
    %707 = arith.divf %705, %706 : vector<2x60xf32>
    %708 = vector.extract_strided_slice %707 {offsets = [0, 0], sizes = [2, 15], strides = [1, 1]} : vector<2x60xf32> to vector<2x15xf32>
    %709 = vector.extract_strided_slice %707 {offsets = [0, 15], sizes = [2, 15], strides = [1, 1]} : vector<2x60xf32> to vector<2x15xf32>
    %710 = vector.extract_strided_slice %707 {offsets = [0, 30], sizes = [2, 15], strides = [1, 1]} : vector<2x60xf32> to vector<2x15xf32>
    %cst_334 = arith.constant 2.000000e+00 : f32
    %711 = vector.broadcast %cst_334 : f32 to vector<2x15xf32>
    %712 = arith.mulf %711, %710 : vector<2x15xf32>
    %cst_335 = arith.constant 1.000000e+00 : f32
    %713 = vector.broadcast %cst_335 : f32 to vector<2x15xf32>
    %714 = arith.subf %712, %713 : vector<2x15xf32>
    %715 = vector.extract_strided_slice %707 {offsets = [0, 45], sizes = [2, 15], strides = [1, 1]} : vector<2x60xf32> to vector<2x15xf32>
    %716 = arith.mulf %709, %680 : vector<2x15xf32>
    %717 = arith.mulf %708, %714 : vector<2x15xf32>
    %718 = arith.addf %716, %717 : vector<2x15xf32>
    %719 = math.tanh %718 : vector<2x15xf32>
    %720 = arith.mulf %715, %719 : vector<2x15xf32>
    %cst_336 = arith.constant 0.000000e+00 : f32
    %721 = vector.broadcast %cst_336 : f32 to vector<2x15xf32>
    %722 = arith.maximumf %720, %721 : vector<2x15xf32>
    %c18_337 = arith.constant 18 : index
    %c0_338 = arith.constant 0 : index
    %c0_339 = arith.constant 0 : index
    %c0_340 = arith.constant 0 : index
    %723 = vector.load %arg4[%c18_337, %c0_338, %c0_339, %c0_340] : memref<50x3x2x15xf32, #tpu.memory_space<vmem>>, vector<1x1x2x15xf32>
    %724 = vector.shape_cast %723 : vector<1x1x2x15xf32> to vector<2x15xf32>
    %725 = arith.mulf %722, %724 : vector<2x15xf32>
    %726 = arith.addf %688, %725 : vector<2x15xf32>
    %c18_341 = arith.constant 18 : index
    %c1_342 = arith.constant 1 : index
    %c0_343 = arith.constant 0 : index
    %c0_344 = arith.constant 0 : index
    %727 = vector.load %arg4[%c18_341, %c1_342, %c0_343, %c0_344] : memref<50x3x2x15xf32, #tpu.memory_space<vmem>>, vector<1x1x2x15xf32>
    %728 = vector.shape_cast %727 : vector<1x1x2x15xf32> to vector<2x15xf32>
    %729 = arith.mulf %722, %728 : vector<2x15xf32>
    %730 = arith.addf %692, %729 : vector<2x15xf32>
    %c18_345 = arith.constant 18 : index
    %c2_346 = arith.constant 2 : index
    %c0_347 = arith.constant 0 : index
    %c0_348 = arith.constant 0 : index
    %731 = vector.load %arg4[%c18_345, %c2_346, %c0_347, %c0_348] : memref<50x3x2x15xf32, #tpu.memory_space<vmem>>, vector<1x1x2x15xf32>
    %732 = vector.shape_cast %731 : vector<1x1x2x15xf32> to vector<2x15xf32>
    %733 = arith.mulf %722, %732 : vector<2x15xf32>
    %734 = arith.addf %696, %733 : vector<2x15xf32>
    %c38 = arith.constant 38 : index
    %c0_349 = arith.constant 0 : index
    %735 = vector.load %arg7[%c38, %c0_349] : memref<100x60xf32, #tpu.memory_space<vmem>>, vector<2x60xf32>
    %736 = vector.shape_cast %720 : vector<2x15xf32> to vector<2x15x1xf32>
    %737 = vector.broadcast %736 : vector<2x15x1xf32> to vector<2x15x60xf32>
    %738 = arith.mulf %737, %10 : vector<2x15x60xf32>
    %cst_350 = arith.constant dense<0.000000e+00> : vector<2x60xf32>
    %739 = vector.multi_reduction <add>, %738, %cst_350 [1] : vector<2x15x60xf32> to vector<2x60xf32>
    %740 = arith.addf %735, %739 : vector<2x60xf32>
    %741 = arith.negf %740 : vector<2x60xf32>
    %742 = math.exp %741 : vector<2x60xf32>
    %cst_351 = arith.constant 1.000000e+00 : f32
    %743 = vector.broadcast %cst_351 : f32 to vector<2x60xf32>
    %744 = arith.addf %743, %742 : vector<2x60xf32>
    %745 = arith.divf %743, %744 : vector<2x60xf32>
    %746 = vector.extract_strided_slice %745 {offsets = [0, 0], sizes = [2, 15], strides = [1, 1]} : vector<2x60xf32> to vector<2x15xf32>
    %747 = vector.extract_strided_slice %745 {offsets = [0, 15], sizes = [2, 15], strides = [1, 1]} : vector<2x60xf32> to vector<2x15xf32>
    %748 = vector.extract_strided_slice %745 {offsets = [0, 30], sizes = [2, 15], strides = [1, 1]} : vector<2x60xf32> to vector<2x15xf32>
    %cst_352 = arith.constant 2.000000e+00 : f32
    %749 = vector.broadcast %cst_352 : f32 to vector<2x15xf32>
    %750 = arith.mulf %749, %748 : vector<2x15xf32>
    %cst_353 = arith.constant 1.000000e+00 : f32
    %751 = vector.broadcast %cst_353 : f32 to vector<2x15xf32>
    %752 = arith.subf %750, %751 : vector<2x15xf32>
    %753 = vector.extract_strided_slice %745 {offsets = [0, 45], sizes = [2, 15], strides = [1, 1]} : vector<2x60xf32> to vector<2x15xf32>
    %754 = arith.mulf %747, %718 : vector<2x15xf32>
    %755 = arith.mulf %746, %752 : vector<2x15xf32>
    %756 = arith.addf %754, %755 : vector<2x15xf32>
    %757 = math.tanh %756 : vector<2x15xf32>
    %758 = arith.mulf %753, %757 : vector<2x15xf32>
    %cst_354 = arith.constant 0.000000e+00 : f32
    %759 = vector.broadcast %cst_354 : f32 to vector<2x15xf32>
    %760 = arith.maximumf %758, %759 : vector<2x15xf32>
    %c19 = arith.constant 19 : index
    %c0_355 = arith.constant 0 : index
    %c0_356 = arith.constant 0 : index
    %c0_357 = arith.constant 0 : index
    %761 = vector.load %arg4[%c19, %c0_355, %c0_356, %c0_357] : memref<50x3x2x15xf32, #tpu.memory_space<vmem>>, vector<1x1x2x15xf32>
    %762 = vector.shape_cast %761 : vector<1x1x2x15xf32> to vector<2x15xf32>
    %763 = arith.mulf %760, %762 : vector<2x15xf32>
    %764 = arith.addf %726, %763 : vector<2x15xf32>
    %c19_358 = arith.constant 19 : index
    %c1_359 = arith.constant 1 : index
    %c0_360 = arith.constant 0 : index
    %c0_361 = arith.constant 0 : index
    %765 = vector.load %arg4[%c19_358, %c1_359, %c0_360, %c0_361] : memref<50x3x2x15xf32, #tpu.memory_space<vmem>>, vector<1x1x2x15xf32>
    %766 = vector.shape_cast %765 : vector<1x1x2x15xf32> to vector<2x15xf32>
    %767 = arith.mulf %760, %766 : vector<2x15xf32>
    %768 = arith.addf %730, %767 : vector<2x15xf32>
    %c19_362 = arith.constant 19 : index
    %c2_363 = arith.constant 2 : index
    %c0_364 = arith.constant 0 : index
    %c0_365 = arith.constant 0 : index
    %769 = vector.load %arg4[%c19_362, %c2_363, %c0_364, %c0_365] : memref<50x3x2x15xf32, #tpu.memory_space<vmem>>, vector<1x1x2x15xf32>
    %770 = vector.shape_cast %769 : vector<1x1x2x15xf32> to vector<2x15xf32>
    %771 = arith.mulf %760, %770 : vector<2x15xf32>
    %772 = arith.addf %734, %771 : vector<2x15xf32>
    %c40 = arith.constant 40 : index
    %c0_366 = arith.constant 0 : index
    %773 = vector.load %arg7[%c40, %c0_366] : memref<100x60xf32, #tpu.memory_space<vmem>>, vector<2x60xf32>
    %774 = vector.shape_cast %758 : vector<2x15xf32> to vector<2x15x1xf32>
    %775 = vector.broadcast %774 : vector<2x15x1xf32> to vector<2x15x60xf32>
    %776 = arith.mulf %775, %10 : vector<2x15x60xf32>
    %cst_367 = arith.constant dense<0.000000e+00> : vector<2x60xf32>
    %777 = vector.multi_reduction <add>, %776, %cst_367 [1] : vector<2x15x60xf32> to vector<2x60xf32>
    %778 = arith.addf %773, %777 : vector<2x60xf32>
    %779 = arith.negf %778 : vector<2x60xf32>
    %780 = math.exp %779 : vector<2x60xf32>
    %cst_368 = arith.constant 1.000000e+00 : f32
    %781 = vector.broadcast %cst_368 : f32 to vector<2x60xf32>
    %782 = arith.addf %781, %780 : vector<2x60xf32>
    %783 = arith.divf %781, %782 : vector<2x60xf32>
    %784 = vector.extract_strided_slice %783 {offsets = [0, 0], sizes = [2, 15], strides = [1, 1]} : vector<2x60xf32> to vector<2x15xf32>
    %785 = vector.extract_strided_slice %783 {offsets = [0, 15], sizes = [2, 15], strides = [1, 1]} : vector<2x60xf32> to vector<2x15xf32>
    %786 = vector.extract_strided_slice %783 {offsets = [0, 30], sizes = [2, 15], strides = [1, 1]} : vector<2x60xf32> to vector<2x15xf32>
    %cst_369 = arith.constant 2.000000e+00 : f32
    %787 = vector.broadcast %cst_369 : f32 to vector<2x15xf32>
    %788 = arith.mulf %787, %786 : vector<2x15xf32>
    %cst_370 = arith.constant 1.000000e+00 : f32
    %789 = vector.broadcast %cst_370 : f32 to vector<2x15xf32>
    %790 = arith.subf %788, %789 : vector<2x15xf32>
    %791 = vector.extract_strided_slice %783 {offsets = [0, 45], sizes = [2, 15], strides = [1, 1]} : vector<2x60xf32> to vector<2x15xf32>
    %792 = arith.mulf %785, %756 : vector<2x15xf32>
    %793 = arith.mulf %784, %790 : vector<2x15xf32>
    %794 = arith.addf %792, %793 : vector<2x15xf32>
    %795 = math.tanh %794 : vector<2x15xf32>
    %796 = arith.mulf %791, %795 : vector<2x15xf32>
    %cst_371 = arith.constant 0.000000e+00 : f32
    %797 = vector.broadcast %cst_371 : f32 to vector<2x15xf32>
    %798 = arith.maximumf %796, %797 : vector<2x15xf32>
    %c20_372 = arith.constant 20 : index
    %c0_373 = arith.constant 0 : index
    %c0_374 = arith.constant 0 : index
    %c0_375 = arith.constant 0 : index
    %799 = vector.load %arg4[%c20_372, %c0_373, %c0_374, %c0_375] : memref<50x3x2x15xf32, #tpu.memory_space<vmem>>, vector<1x1x2x15xf32>
    %800 = vector.shape_cast %799 : vector<1x1x2x15xf32> to vector<2x15xf32>
    %801 = arith.mulf %798, %800 : vector<2x15xf32>
    %802 = arith.addf %764, %801 : vector<2x15xf32>
    %c20_376 = arith.constant 20 : index
    %c1_377 = arith.constant 1 : index
    %c0_378 = arith.constant 0 : index
    %c0_379 = arith.constant 0 : index
    %803 = vector.load %arg4[%c20_376, %c1_377, %c0_378, %c0_379] : memref<50x3x2x15xf32, #tpu.memory_space<vmem>>, vector<1x1x2x15xf32>
    %804 = vector.shape_cast %803 : vector<1x1x2x15xf32> to vector<2x15xf32>
    %805 = arith.mulf %798, %804 : vector<2x15xf32>
    %806 = arith.addf %768, %805 : vector<2x15xf32>
    %c20_380 = arith.constant 20 : index
    %c2_381 = arith.constant 2 : index
    %c0_382 = arith.constant 0 : index
    %c0_383 = arith.constant 0 : index
    %807 = vector.load %arg4[%c20_380, %c2_381, %c0_382, %c0_383] : memref<50x3x2x15xf32, #tpu.memory_space<vmem>>, vector<1x1x2x15xf32>
    %808 = vector.shape_cast %807 : vector<1x1x2x15xf32> to vector<2x15xf32>
    %809 = arith.mulf %798, %808 : vector<2x15xf32>
    %810 = arith.addf %772, %809 : vector<2x15xf32>
    %c42 = arith.constant 42 : index
    %c0_384 = arith.constant 0 : index
    %811 = vector.load %arg7[%c42, %c0_384] : memref<100x60xf32, #tpu.memory_space<vmem>>, vector<2x60xf32>
    %812 = vector.shape_cast %796 : vector<2x15xf32> to vector<2x15x1xf32>
    %813 = vector.broadcast %812 : vector<2x15x1xf32> to vector<2x15x60xf32>
    %814 = arith.mulf %813, %10 : vector<2x15x60xf32>
    %cst_385 = arith.constant dense<0.000000e+00> : vector<2x60xf32>
    %815 = vector.multi_reduction <add>, %814, %cst_385 [1] : vector<2x15x60xf32> to vector<2x60xf32>
    %816 = arith.addf %811, %815 : vector<2x60xf32>
    %817 = arith.negf %816 : vector<2x60xf32>
    %818 = math.exp %817 : vector<2x60xf32>
    %cst_386 = arith.constant 1.000000e+00 : f32
    %819 = vector.broadcast %cst_386 : f32 to vector<2x60xf32>
    %820 = arith.addf %819, %818 : vector<2x60xf32>
    %821 = arith.divf %819, %820 : vector<2x60xf32>
    %822 = vector.extract_strided_slice %821 {offsets = [0, 0], sizes = [2, 15], strides = [1, 1]} : vector<2x60xf32> to vector<2x15xf32>
    %823 = vector.extract_strided_slice %821 {offsets = [0, 15], sizes = [2, 15], strides = [1, 1]} : vector<2x60xf32> to vector<2x15xf32>
    %824 = vector.extract_strided_slice %821 {offsets = [0, 30], sizes = [2, 15], strides = [1, 1]} : vector<2x60xf32> to vector<2x15xf32>
    %cst_387 = arith.constant 2.000000e+00 : f32
    %825 = vector.broadcast %cst_387 : f32 to vector<2x15xf32>
    %826 = arith.mulf %825, %824 : vector<2x15xf32>
    %cst_388 = arith.constant 1.000000e+00 : f32
    %827 = vector.broadcast %cst_388 : f32 to vector<2x15xf32>
    %828 = arith.subf %826, %827 : vector<2x15xf32>
    %829 = vector.extract_strided_slice %821 {offsets = [0, 45], sizes = [2, 15], strides = [1, 1]} : vector<2x60xf32> to vector<2x15xf32>
    %830 = arith.mulf %823, %794 : vector<2x15xf32>
    %831 = arith.mulf %822, %828 : vector<2x15xf32>
    %832 = arith.addf %830, %831 : vector<2x15xf32>
    %833 = math.tanh %832 : vector<2x15xf32>
    %834 = arith.mulf %829, %833 : vector<2x15xf32>
    %cst_389 = arith.constant 0.000000e+00 : f32
    %835 = vector.broadcast %cst_389 : f32 to vector<2x15xf32>
    %836 = arith.maximumf %834, %835 : vector<2x15xf32>
    %c21 = arith.constant 21 : index
    %c0_390 = arith.constant 0 : index
    %c0_391 = arith.constant 0 : index
    %c0_392 = arith.constant 0 : index
    %837 = vector.load %arg4[%c21, %c0_390, %c0_391, %c0_392] : memref<50x3x2x15xf32, #tpu.memory_space<vmem>>, vector<1x1x2x15xf32>
    %838 = vector.shape_cast %837 : vector<1x1x2x15xf32> to vector<2x15xf32>
    %839 = arith.mulf %836, %838 : vector<2x15xf32>
    %840 = arith.addf %802, %839 : vector<2x15xf32>
    %c21_393 = arith.constant 21 : index
    %c1_394 = arith.constant 1 : index
    %c0_395 = arith.constant 0 : index
    %c0_396 = arith.constant 0 : index
    %841 = vector.load %arg4[%c21_393, %c1_394, %c0_395, %c0_396] : memref<50x3x2x15xf32, #tpu.memory_space<vmem>>, vector<1x1x2x15xf32>
    %842 = vector.shape_cast %841 : vector<1x1x2x15xf32> to vector<2x15xf32>
    %843 = arith.mulf %836, %842 : vector<2x15xf32>
    %844 = arith.addf %806, %843 : vector<2x15xf32>
    %c21_397 = arith.constant 21 : index
    %c2_398 = arith.constant 2 : index
    %c0_399 = arith.constant 0 : index
    %c0_400 = arith.constant 0 : index
    %845 = vector.load %arg4[%c21_397, %c2_398, %c0_399, %c0_400] : memref<50x3x2x15xf32, #tpu.memory_space<vmem>>, vector<1x1x2x15xf32>
    %846 = vector.shape_cast %845 : vector<1x1x2x15xf32> to vector<2x15xf32>
    %847 = arith.mulf %836, %846 : vector<2x15xf32>
    %848 = arith.addf %810, %847 : vector<2x15xf32>
    %c44 = arith.constant 44 : index
    %c0_401 = arith.constant 0 : index
    %849 = vector.load %arg7[%c44, %c0_401] : memref<100x60xf32, #tpu.memory_space<vmem>>, vector<2x60xf32>
    %850 = vector.shape_cast %834 : vector<2x15xf32> to vector<2x15x1xf32>
    %851 = vector.broadcast %850 : vector<2x15x1xf32> to vector<2x15x60xf32>
    %852 = arith.mulf %851, %10 : vector<2x15x60xf32>
    %cst_402 = arith.constant dense<0.000000e+00> : vector<2x60xf32>
    %853 = vector.multi_reduction <add>, %852, %cst_402 [1] : vector<2x15x60xf32> to vector<2x60xf32>
    %854 = arith.addf %849, %853 : vector<2x60xf32>
    %855 = arith.negf %854 : vector<2x60xf32>
    %856 = math.exp %855 : vector<2x60xf32>
    %cst_403 = arith.constant 1.000000e+00 : f32
    %857 = vector.broadcast %cst_403 : f32 to vector<2x60xf32>
    %858 = arith.addf %857, %856 : vector<2x60xf32>
    %859 = arith.divf %857, %858 : vector<2x60xf32>
    %860 = vector.extract_strided_slice %859 {offsets = [0, 0], sizes = [2, 15], strides = [1, 1]} : vector<2x60xf32> to vector<2x15xf32>
    %861 = vector.extract_strided_slice %859 {offsets = [0, 15], sizes = [2, 15], strides = [1, 1]} : vector<2x60xf32> to vector<2x15xf32>
    %862 = vector.extract_strided_slice %859 {offsets = [0, 30], sizes = [2, 15], strides = [1, 1]} : vector<2x60xf32> to vector<2x15xf32>
    %cst_404 = arith.constant 2.000000e+00 : f32
    %863 = vector.broadcast %cst_404 : f32 to vector<2x15xf32>
    %864 = arith.mulf %863, %862 : vector<2x15xf32>
    %cst_405 = arith.constant 1.000000e+00 : f32
    %865 = vector.broadcast %cst_405 : f32 to vector<2x15xf32>
    %866 = arith.subf %864, %865 : vector<2x15xf32>
    %867 = vector.extract_strided_slice %859 {offsets = [0, 45], sizes = [2, 15], strides = [1, 1]} : vector<2x60xf32> to vector<2x15xf32>
    %868 = arith.mulf %861, %832 : vector<2x15xf32>
    %869 = arith.mulf %860, %866 : vector<2x15xf32>
    %870 = arith.addf %868, %869 : vector<2x15xf32>
    %871 = math.tanh %870 : vector<2x15xf32>
    %872 = arith.mulf %867, %871 : vector<2x15xf32>
    %cst_406 = arith.constant 0.000000e+00 : f32
    %873 = vector.broadcast %cst_406 : f32 to vector<2x15xf32>
    %874 = arith.maximumf %872, %873 : vector<2x15xf32>
    %c22_407 = arith.constant 22 : index
    %c0_408 = arith.constant 0 : index
    %c0_409 = arith.constant 0 : index
    %c0_410 = arith.constant 0 : index
    %875 = vector.load %arg4[%c22_407, %c0_408, %c0_409, %c0_410] : memref<50x3x2x15xf32, #tpu.memory_space<vmem>>, vector<1x1x2x15xf32>
    %876 = vector.shape_cast %875 : vector<1x1x2x15xf32> to vector<2x15xf32>
    %877 = arith.mulf %874, %876 : vector<2x15xf32>
    %878 = arith.addf %840, %877 : vector<2x15xf32>
    %c22_411 = arith.constant 22 : index
    %c1_412 = arith.constant 1 : index
    %c0_413 = arith.constant 0 : index
    %c0_414 = arith.constant 0 : index
    %879 = vector.load %arg4[%c22_411, %c1_412, %c0_413, %c0_414] : memref<50x3x2x15xf32, #tpu.memory_space<vmem>>, vector<1x1x2x15xf32>
    %880 = vector.shape_cast %879 : vector<1x1x2x15xf32> to vector<2x15xf32>
    %881 = arith.mulf %874, %880 : vector<2x15xf32>
    %882 = arith.addf %844, %881 : vector<2x15xf32>
    %c22_415 = arith.constant 22 : index
    %c2_416 = arith.constant 2 : index
    %c0_417 = arith.constant 0 : index
    %c0_418 = arith.constant 0 : index
    %883 = vector.load %arg4[%c22_415, %c2_416, %c0_417, %c0_418] : memref<50x3x2x15xf32, #tpu.memory_space<vmem>>, vector<1x1x2x15xf32>
    %884 = vector.shape_cast %883 : vector<1x1x2x15xf32> to vector<2x15xf32>
    %885 = arith.mulf %874, %884 : vector<2x15xf32>
    %886 = arith.addf %848, %885 : vector<2x15xf32>
    %c46 = arith.constant 46 : index
    %c0_419 = arith.constant 0 : index
    %887 = vector.load %arg7[%c46, %c0_419] : memref<100x60xf32, #tpu.memory_space<vmem>>, vector<2x60xf32>
    %888 = vector.shape_cast %872 : vector<2x15xf32> to vector<2x15x1xf32>
    %889 = vector.broadcast %888 : vector<2x15x1xf32> to vector<2x15x60xf32>
    %890 = arith.mulf %889, %10 : vector<2x15x60xf32>
    %cst_420 = arith.constant dense<0.000000e+00> : vector<2x60xf32>
    %891 = vector.multi_reduction <add>, %890, %cst_420 [1] : vector<2x15x60xf32> to vector<2x60xf32>
    %892 = arith.addf %887, %891 : vector<2x60xf32>
    %893 = arith.negf %892 : vector<2x60xf32>
    %894 = math.exp %893 : vector<2x60xf32>
    %cst_421 = arith.constant 1.000000e+00 : f32
    %895 = vector.broadcast %cst_421 : f32 to vector<2x60xf32>
    %896 = arith.addf %895, %894 : vector<2x60xf32>
    %897 = arith.divf %895, %896 : vector<2x60xf32>
    %898 = vector.extract_strided_slice %897 {offsets = [0, 0], sizes = [2, 15], strides = [1, 1]} : vector<2x60xf32> to vector<2x15xf32>
    %899 = vector.extract_strided_slice %897 {offsets = [0, 15], sizes = [2, 15], strides = [1, 1]} : vector<2x60xf32> to vector<2x15xf32>
    %900 = vector.extract_strided_slice %897 {offsets = [0, 30], sizes = [2, 15], strides = [1, 1]} : vector<2x60xf32> to vector<2x15xf32>
    %cst_422 = arith.constant 2.000000e+00 : f32
    %901 = vector.broadcast %cst_422 : f32 to vector<2x15xf32>
    %902 = arith.mulf %901, %900 : vector<2x15xf32>
    %cst_423 = arith.constant 1.000000e+00 : f32
    %903 = vector.broadcast %cst_423 : f32 to vector<2x15xf32>
    %904 = arith.subf %902, %903 : vector<2x15xf32>
    %905 = vector.extract_strided_slice %897 {offsets = [0, 45], sizes = [2, 15], strides = [1, 1]} : vector<2x60xf32> to vector<2x15xf32>
    %906 = arith.mulf %899, %870 : vector<2x15xf32>
    %907 = arith.mulf %898, %904 : vector<2x15xf32>
    %908 = arith.addf %906, %907 : vector<2x15xf32>
    %909 = math.tanh %908 : vector<2x15xf32>
    %910 = arith.mulf %905, %909 : vector<2x15xf32>
    %cst_424 = arith.constant 0.000000e+00 : f32
    %911 = vector.broadcast %cst_424 : f32 to vector<2x15xf32>
    %912 = arith.maximumf %910, %911 : vector<2x15xf32>
    %c23 = arith.constant 23 : index
    %c0_425 = arith.constant 0 : index
    %c0_426 = arith.constant 0 : index
    %c0_427 = arith.constant 0 : index
    %913 = vector.load %arg4[%c23, %c0_425, %c0_426, %c0_427] : memref<50x3x2x15xf32, #tpu.memory_space<vmem>>, vector<1x1x2x15xf32>
    %914 = vector.shape_cast %913 : vector<1x1x2x15xf32> to vector<2x15xf32>
    %915 = arith.mulf %912, %914 : vector<2x15xf32>
    %916 = arith.addf %878, %915 : vector<2x15xf32>
    %c23_428 = arith.constant 23 : index
    %c1_429 = arith.constant 1 : index
    %c0_430 = arith.constant 0 : index
    %c0_431 = arith.constant 0 : index
    %917 = vector.load %arg4[%c23_428, %c1_429, %c0_430, %c0_431] : memref<50x3x2x15xf32, #tpu.memory_space<vmem>>, vector<1x1x2x15xf32>
    %918 = vector.shape_cast %917 : vector<1x1x2x15xf32> to vector<2x15xf32>
    %919 = arith.mulf %912, %918 : vector<2x15xf32>
    %920 = arith.addf %882, %919 : vector<2x15xf32>
    %c23_432 = arith.constant 23 : index
    %c2_433 = arith.constant 2 : index
    %c0_434 = arith.constant 0 : index
    %c0_435 = arith.constant 0 : index
    %921 = vector.load %arg4[%c23_432, %c2_433, %c0_434, %c0_435] : memref<50x3x2x15xf32, #tpu.memory_space<vmem>>, vector<1x1x2x15xf32>
    %922 = vector.shape_cast %921 : vector<1x1x2x15xf32> to vector<2x15xf32>
    %923 = arith.mulf %912, %922 : vector<2x15xf32>
    %924 = arith.addf %886, %923 : vector<2x15xf32>
    %c48 = arith.constant 48 : index
    %c0_436 = arith.constant 0 : index
    %925 = vector.load %arg7[%c48, %c0_436] : memref<100x60xf32, #tpu.memory_space<vmem>>, vector<2x60xf32>
    %926 = vector.shape_cast %910 : vector<2x15xf32> to vector<2x15x1xf32>
    %927 = vector.broadcast %926 : vector<2x15x1xf32> to vector<2x15x60xf32>
    %928 = arith.mulf %927, %10 : vector<2x15x60xf32>
    %cst_437 = arith.constant dense<0.000000e+00> : vector<2x60xf32>
    %929 = vector.multi_reduction <add>, %928, %cst_437 [1] : vector<2x15x60xf32> to vector<2x60xf32>
    %930 = arith.addf %925, %929 : vector<2x60xf32>
    %931 = arith.negf %930 : vector<2x60xf32>
    %932 = math.exp %931 : vector<2x60xf32>
    %cst_438 = arith.constant 1.000000e+00 : f32
    %933 = vector.broadcast %cst_438 : f32 to vector<2x60xf32>
    %934 = arith.addf %933, %932 : vector<2x60xf32>
    %935 = arith.divf %933, %934 : vector<2x60xf32>
    %936 = vector.extract_strided_slice %935 {offsets = [0, 0], sizes = [2, 15], strides = [1, 1]} : vector<2x60xf32> to vector<2x15xf32>
    %937 = vector.extract_strided_slice %935 {offsets = [0, 15], sizes = [2, 15], strides = [1, 1]} : vector<2x60xf32> to vector<2x15xf32>
    %938 = vector.extract_strided_slice %935 {offsets = [0, 30], sizes = [2, 15], strides = [1, 1]} : vector<2x60xf32> to vector<2x15xf32>
    %cst_439 = arith.constant 2.000000e+00 : f32
    %939 = vector.broadcast %cst_439 : f32 to vector<2x15xf32>
    %940 = arith.mulf %939, %938 : vector<2x15xf32>
    %cst_440 = arith.constant 1.000000e+00 : f32
    %941 = vector.broadcast %cst_440 : f32 to vector<2x15xf32>
    %942 = arith.subf %940, %941 : vector<2x15xf32>
    %943 = vector.extract_strided_slice %935 {offsets = [0, 45], sizes = [2, 15], strides = [1, 1]} : vector<2x60xf32> to vector<2x15xf32>
    %944 = arith.mulf %937, %908 : vector<2x15xf32>
    %945 = arith.mulf %936, %942 : vector<2x15xf32>
    %946 = arith.addf %944, %945 : vector<2x15xf32>
    %947 = math.tanh %946 : vector<2x15xf32>
    %948 = arith.mulf %943, %947 : vector<2x15xf32>
    %cst_441 = arith.constant 0.000000e+00 : f32
    %949 = vector.broadcast %cst_441 : f32 to vector<2x15xf32>
    %950 = arith.maximumf %948, %949 : vector<2x15xf32>
    %c24_442 = arith.constant 24 : index
    %c0_443 = arith.constant 0 : index
    %c0_444 = arith.constant 0 : index
    %c0_445 = arith.constant 0 : index
    %951 = vector.load %arg4[%c24_442, %c0_443, %c0_444, %c0_445] : memref<50x3x2x15xf32, #tpu.memory_space<vmem>>, vector<1x1x2x15xf32>
    %952 = vector.shape_cast %951 : vector<1x1x2x15xf32> to vector<2x15xf32>
    %953 = arith.mulf %950, %952 : vector<2x15xf32>
    %954 = arith.addf %916, %953 : vector<2x15xf32>
    %c24_446 = arith.constant 24 : index
    %c1_447 = arith.constant 1 : index
    %c0_448 = arith.constant 0 : index
    %c0_449 = arith.constant 0 : index
    %955 = vector.load %arg4[%c24_446, %c1_447, %c0_448, %c0_449] : memref<50x3x2x15xf32, #tpu.memory_space<vmem>>, vector<1x1x2x15xf32>
    %956 = vector.shape_cast %955 : vector<1x1x2x15xf32> to vector<2x15xf32>
    %957 = arith.mulf %950, %956 : vector<2x15xf32>
    %958 = arith.addf %920, %957 : vector<2x15xf32>
    %c24_450 = arith.constant 24 : index
    %c2_451 = arith.constant 2 : index
    %c0_452 = arith.constant 0 : index
    %c0_453 = arith.constant 0 : index
    %959 = vector.load %arg4[%c24_450, %c2_451, %c0_452, %c0_453] : memref<50x3x2x15xf32, #tpu.memory_space<vmem>>, vector<1x1x2x15xf32>
    %960 = vector.shape_cast %959 : vector<1x1x2x15xf32> to vector<2x15xf32>
    %961 = arith.mulf %950, %960 : vector<2x15xf32>
    %962 = arith.addf %924, %961 : vector<2x15xf32>
    %c50 = arith.constant 50 : index
    %c0_454 = arith.constant 0 : index
    %963 = vector.load %arg7[%c50, %c0_454] : memref<100x60xf32, #tpu.memory_space<vmem>>, vector<2x60xf32>
    %964 = vector.shape_cast %948 : vector<2x15xf32> to vector<2x15x1xf32>
    %965 = vector.broadcast %964 : vector<2x15x1xf32> to vector<2x15x60xf32>
    %966 = arith.mulf %965, %10 : vector<2x15x60xf32>
    %cst_455 = arith.constant dense<0.000000e+00> : vector<2x60xf32>
    %967 = vector.multi_reduction <add>, %966, %cst_455 [1] : vector<2x15x60xf32> to vector<2x60xf32>
    %968 = arith.addf %963, %967 : vector<2x60xf32>
    %969 = arith.negf %968 : vector<2x60xf32>
    %970 = math.exp %969 : vector<2x60xf32>
    %cst_456 = arith.constant 1.000000e+00 : f32
    %971 = vector.broadcast %cst_456 : f32 to vector<2x60xf32>
    %972 = arith.addf %971, %970 : vector<2x60xf32>
    %973 = arith.divf %971, %972 : vector<2x60xf32>
    %974 = vector.extract_strided_slice %973 {offsets = [0, 0], sizes = [2, 15], strides = [1, 1]} : vector<2x60xf32> to vector<2x15xf32>
    %975 = vector.extract_strided_slice %973 {offsets = [0, 15], sizes = [2, 15], strides = [1, 1]} : vector<2x60xf32> to vector<2x15xf32>
    %976 = vector.extract_strided_slice %973 {offsets = [0, 30], sizes = [2, 15], strides = [1, 1]} : vector<2x60xf32> to vector<2x15xf32>
    %cst_457 = arith.constant 2.000000e+00 : f32
    %977 = vector.broadcast %cst_457 : f32 to vector<2x15xf32>
    %978 = arith.mulf %977, %976 : vector<2x15xf32>
    %cst_458 = arith.constant 1.000000e+00 : f32
    %979 = vector.broadcast %cst_458 : f32 to vector<2x15xf32>
    %980 = arith.subf %978, %979 : vector<2x15xf32>
    %981 = vector.extract_strided_slice %973 {offsets = [0, 45], sizes = [2, 15], strides = [1, 1]} : vector<2x60xf32> to vector<2x15xf32>
    %982 = arith.mulf %975, %946 : vector<2x15xf32>
    %983 = arith.mulf %974, %980 : vector<2x15xf32>
    %984 = arith.addf %982, %983 : vector<2x15xf32>
    %985 = math.tanh %984 : vector<2x15xf32>
    %986 = arith.mulf %981, %985 : vector<2x15xf32>
    %cst_459 = arith.constant 0.000000e+00 : f32
    %987 = vector.broadcast %cst_459 : f32 to vector<2x15xf32>
    %988 = arith.maximumf %986, %987 : vector<2x15xf32>
    %c25 = arith.constant 25 : index
    %c0_460 = arith.constant 0 : index
    %c0_461 = arith.constant 0 : index
    %c0_462 = arith.constant 0 : index
    %989 = vector.load %arg4[%c25, %c0_460, %c0_461, %c0_462] : memref<50x3x2x15xf32, #tpu.memory_space<vmem>>, vector<1x1x2x15xf32>
    %990 = vector.shape_cast %989 : vector<1x1x2x15xf32> to vector<2x15xf32>
    %991 = arith.mulf %988, %990 : vector<2x15xf32>
    %992 = arith.addf %15, %991 : vector<2x15xf32>
    %c25_463 = arith.constant 25 : index
    %c1_464 = arith.constant 1 : index
    %c0_465 = arith.constant 0 : index
    %c0_466 = arith.constant 0 : index
    %993 = vector.load %arg4[%c25_463, %c1_464, %c0_465, %c0_466] : memref<50x3x2x15xf32, #tpu.memory_space<vmem>>, vector<1x1x2x15xf32>
    %994 = vector.shape_cast %993 : vector<1x1x2x15xf32> to vector<2x15xf32>
    %995 = arith.mulf %988, %994 : vector<2x15xf32>
    %996 = arith.addf %16, %995 : vector<2x15xf32>
    %c25_467 = arith.constant 25 : index
    %c2_468 = arith.constant 2 : index
    %c0_469 = arith.constant 0 : index
    %c0_470 = arith.constant 0 : index
    %997 = vector.load %arg4[%c25_467, %c2_468, %c0_469, %c0_470] : memref<50x3x2x15xf32, #tpu.memory_space<vmem>>, vector<1x1x2x15xf32>
    %998 = vector.shape_cast %997 : vector<1x1x2x15xf32> to vector<2x15xf32>
    %999 = arith.mulf %988, %998 : vector<2x15xf32>
    %1000 = arith.addf %17, %999 : vector<2x15xf32>
    %c52 = arith.constant 52 : index
    %c0_471 = arith.constant 0 : index
    %1001 = vector.load %arg7[%c52, %c0_471] : memref<100x60xf32, #tpu.memory_space<vmem>>, vector<2x60xf32>
    %1002 = vector.shape_cast %986 : vector<2x15xf32> to vector<2x15x1xf32>
    %1003 = vector.broadcast %1002 : vector<2x15x1xf32> to vector<2x15x60xf32>
    %1004 = arith.mulf %1003, %10 : vector<2x15x60xf32>
    %cst_472 = arith.constant dense<0.000000e+00> : vector<2x60xf32>
    %1005 = vector.multi_reduction <add>, %1004, %cst_472 [1] : vector<2x15x60xf32> to vector<2x60xf32>
    %1006 = arith.addf %1001, %1005 : vector<2x60xf32>
    %1007 = arith.negf %1006 : vector<2x60xf32>
    %1008 = math.exp %1007 : vector<2x60xf32>
    %cst_473 = arith.constant 1.000000e+00 : f32
    %1009 = vector.broadcast %cst_473 : f32 to vector<2x60xf32>
    %1010 = arith.addf %1009, %1008 : vector<2x60xf32>
    %1011 = arith.divf %1009, %1010 : vector<2x60xf32>
    %1012 = vector.extract_strided_slice %1011 {offsets = [0, 0], sizes = [2, 15], strides = [1, 1]} : vector<2x60xf32> to vector<2x15xf32>
    %1013 = vector.extract_strided_slice %1011 {offsets = [0, 15], sizes = [2, 15], strides = [1, 1]} : vector<2x60xf32> to vector<2x15xf32>
    %1014 = vector.extract_strided_slice %1011 {offsets = [0, 30], sizes = [2, 15], strides = [1, 1]} : vector<2x60xf32> to vector<2x15xf32>
    %cst_474 = arith.constant 2.000000e+00 : f32
    %1015 = vector.broadcast %cst_474 : f32 to vector<2x15xf32>
    %1016 = arith.mulf %1015, %1014 : vector<2x15xf32>
    %cst_475 = arith.constant 1.000000e+00 : f32
    %1017 = vector.broadcast %cst_475 : f32 to vector<2x15xf32>
    %1018 = arith.subf %1016, %1017 : vector<2x15xf32>
    %1019 = vector.extract_strided_slice %1011 {offsets = [0, 45], sizes = [2, 15], strides = [1, 1]} : vector<2x60xf32> to vector<2x15xf32>
    %1020 = arith.mulf %1013, %984 : vector<2x15xf32>
    %1021 = arith.mulf %1012, %1018 : vector<2x15xf32>
    %1022 = arith.addf %1020, %1021 : vector<2x15xf32>
    %1023 = math.tanh %1022 : vector<2x15xf32>
    %1024 = arith.mulf %1019, %1023 : vector<2x15xf32>
    %cst_476 = arith.constant 0.000000e+00 : f32
    %1025 = vector.broadcast %cst_476 : f32 to vector<2x15xf32>
    %1026 = arith.maximumf %1024, %1025 : vector<2x15xf32>
    %c26_477 = arith.constant 26 : index
    %c0_478 = arith.constant 0 : index
    %c0_479 = arith.constant 0 : index
    %c0_480 = arith.constant 0 : index
    %1027 = vector.load %arg4[%c26_477, %c0_478, %c0_479, %c0_480] : memref<50x3x2x15xf32, #tpu.memory_space<vmem>>, vector<1x1x2x15xf32>
    %1028 = vector.shape_cast %1027 : vector<1x1x2x15xf32> to vector<2x15xf32>
    %1029 = arith.mulf %1026, %1028 : vector<2x15xf32>
    %1030 = arith.addf %992, %1029 : vector<2x15xf32>
    %c26_481 = arith.constant 26 : index
    %c1_482 = arith.constant 1 : index
    %c0_483 = arith.constant 0 : index
    %c0_484 = arith.constant 0 : index
    %1031 = vector.load %arg4[%c26_481, %c1_482, %c0_483, %c0_484] : memref<50x3x2x15xf32, #tpu.memory_space<vmem>>, vector<1x1x2x15xf32>
    %1032 = vector.shape_cast %1031 : vector<1x1x2x15xf32> to vector<2x15xf32>
    %1033 = arith.mulf %1026, %1032 : vector<2x15xf32>
    %1034 = arith.addf %996, %1033 : vector<2x15xf32>
    %c26_485 = arith.constant 26 : index
    %c2_486 = arith.constant 2 : index
    %c0_487 = arith.constant 0 : index
    %c0_488 = arith.constant 0 : index
    %1035 = vector.load %arg4[%c26_485, %c2_486, %c0_487, %c0_488] : memref<50x3x2x15xf32, #tpu.memory_space<vmem>>, vector<1x1x2x15xf32>
    %1036 = vector.shape_cast %1035 : vector<1x1x2x15xf32> to vector<2x15xf32>
    %1037 = arith.mulf %1026, %1036 : vector<2x15xf32>
    %1038 = arith.addf %1000, %1037 : vector<2x15xf32>
    %c54 = arith.constant 54 : index
    %c0_489 = arith.constant 0 : index
    %1039 = vector.load %arg7[%c54, %c0_489] : memref<100x60xf32, #tpu.memory_space<vmem>>, vector<2x60xf32>
    %1040 = vector.shape_cast %1024 : vector<2x15xf32> to vector<2x15x1xf32>
    %1041 = vector.broadcast %1040 : vector<2x15x1xf32> to vector<2x15x60xf32>
    %1042 = arith.mulf %1041, %10 : vector<2x15x60xf32>
    %cst_490 = arith.constant dense<0.000000e+00> : vector<2x60xf32>
    %1043 = vector.multi_reduction <add>, %1042, %cst_490 [1] : vector<2x15x60xf32> to vector<2x60xf32>
    %1044 = arith.addf %1039, %1043 : vector<2x60xf32>
    %1045 = arith.negf %1044 : vector<2x60xf32>
    %1046 = math.exp %1045 : vector<2x60xf32>
    %cst_491 = arith.constant 1.000000e+00 : f32
    %1047 = vector.broadcast %cst_491 : f32 to vector<2x60xf32>
    %1048 = arith.addf %1047, %1046 : vector<2x60xf32>
    %1049 = arith.divf %1047, %1048 : vector<2x60xf32>
    %1050 = vector.extract_strided_slice %1049 {offsets = [0, 0], sizes = [2, 15], strides = [1, 1]} : vector<2x60xf32> to vector<2x15xf32>
    %1051 = vector.extract_strided_slice %1049 {offsets = [0, 15], sizes = [2, 15], strides = [1, 1]} : vector<2x60xf32> to vector<2x15xf32>
    %1052 = vector.extract_strided_slice %1049 {offsets = [0, 30], sizes = [2, 15], strides = [1, 1]} : vector<2x60xf32> to vector<2x15xf32>
    %cst_492 = arith.constant 2.000000e+00 : f32
    %1053 = vector.broadcast %cst_492 : f32 to vector<2x15xf32>
    %1054 = arith.mulf %1053, %1052 : vector<2x15xf32>
    %cst_493 = arith.constant 1.000000e+00 : f32
    %1055 = vector.broadcast %cst_493 : f32 to vector<2x15xf32>
    %1056 = arith.subf %1054, %1055 : vector<2x15xf32>
    %1057 = vector.extract_strided_slice %1049 {offsets = [0, 45], sizes = [2, 15], strides = [1, 1]} : vector<2x60xf32> to vector<2x15xf32>
    %1058 = arith.mulf %1051, %1022 : vector<2x15xf32>
    %1059 = arith.mulf %1050, %1056 : vector<2x15xf32>
    %1060 = arith.addf %1058, %1059 : vector<2x15xf32>
    %1061 = math.tanh %1060 : vector<2x15xf32>
    %1062 = arith.mulf %1057, %1061 : vector<2x15xf32>
    %cst_494 = arith.constant 0.000000e+00 : f32
    %1063 = vector.broadcast %cst_494 : f32 to vector<2x15xf32>
    %1064 = arith.maximumf %1062, %1063 : vector<2x15xf32>
    %c27 = arith.constant 27 : index
    %c0_495 = arith.constant 0 : index
    %c0_496 = arith.constant 0 : index
    %c0_497 = arith.constant 0 : index
    %1065 = vector.load %arg4[%c27, %c0_495, %c0_496, %c0_497] : memref<50x3x2x15xf32, #tpu.memory_space<vmem>>, vector<1x1x2x15xf32>
    %1066 = vector.shape_cast %1065 : vector<1x1x2x15xf32> to vector<2x15xf32>
    %1067 = arith.mulf %1064, %1066 : vector<2x15xf32>
    %1068 = arith.addf %1030, %1067 : vector<2x15xf32>
    %c27_498 = arith.constant 27 : index
    %c1_499 = arith.constant 1 : index
    %c0_500 = arith.constant 0 : index
    %c0_501 = arith.constant 0 : index
    %1069 = vector.load %arg4[%c27_498, %c1_499, %c0_500, %c0_501] : memref<50x3x2x15xf32, #tpu.memory_space<vmem>>, vector<1x1x2x15xf32>
    %1070 = vector.shape_cast %1069 : vector<1x1x2x15xf32> to vector<2x15xf32>
    %1071 = arith.mulf %1064, %1070 : vector<2x15xf32>
    %1072 = arith.addf %1034, %1071 : vector<2x15xf32>
    %c27_502 = arith.constant 27 : index
    %c2_503 = arith.constant 2 : index
    %c0_504 = arith.constant 0 : index
    %c0_505 = arith.constant 0 : index
    %1073 = vector.load %arg4[%c27_502, %c2_503, %c0_504, %c0_505] : memref<50x3x2x15xf32, #tpu.memory_space<vmem>>, vector<1x1x2x15xf32>
    %1074 = vector.shape_cast %1073 : vector<1x1x2x15xf32> to vector<2x15xf32>
    %1075 = arith.mulf %1064, %1074 : vector<2x15xf32>
    %1076 = arith.addf %1038, %1075 : vector<2x15xf32>
    %c56 = arith.constant 56 : index
    %c0_506 = arith.constant 0 : index
    %1077 = vector.load %arg7[%c56, %c0_506] : memref<100x60xf32, #tpu.memory_space<vmem>>, vector<2x60xf32>
    %1078 = vector.shape_cast %1062 : vector<2x15xf32> to vector<2x15x1xf32>
    %1079 = vector.broadcast %1078 : vector<2x15x1xf32> to vector<2x15x60xf32>
    %1080 = arith.mulf %1079, %10 : vector<2x15x60xf32>
    %cst_507 = arith.constant dense<0.000000e+00> : vector<2x60xf32>
    %1081 = vector.multi_reduction <add>, %1080, %cst_507 [1] : vector<2x15x60xf32> to vector<2x60xf32>
    %1082 = arith.addf %1077, %1081 : vector<2x60xf32>
    %1083 = arith.negf %1082 : vector<2x60xf32>
    %1084 = math.exp %1083 : vector<2x60xf32>
    %cst_508 = arith.constant 1.000000e+00 : f32
    %1085 = vector.broadcast %cst_508 : f32 to vector<2x60xf32>
    %1086 = arith.addf %1085, %1084 : vector<2x60xf32>
    %1087 = arith.divf %1085, %1086 : vector<2x60xf32>
    %1088 = vector.extract_strided_slice %1087 {offsets = [0, 0], sizes = [2, 15], strides = [1, 1]} : vector<2x60xf32> to vector<2x15xf32>
    %1089 = vector.extract_strided_slice %1087 {offsets = [0, 15], sizes = [2, 15], strides = [1, 1]} : vector<2x60xf32> to vector<2x15xf32>
    %1090 = vector.extract_strided_slice %1087 {offsets = [0, 30], sizes = [2, 15], strides = [1, 1]} : vector<2x60xf32> to vector<2x15xf32>
    %cst_509 = arith.constant 2.000000e+00 : f32
    %1091 = vector.broadcast %cst_509 : f32 to vector<2x15xf32>
    %1092 = arith.mulf %1091, %1090 : vector<2x15xf32>
    %cst_510 = arith.constant 1.000000e+00 : f32
    %1093 = vector.broadcast %cst_510 : f32 to vector<2x15xf32>
    %1094 = arith.subf %1092, %1093 : vector<2x15xf32>
    %1095 = vector.extract_strided_slice %1087 {offsets = [0, 45], sizes = [2, 15], strides = [1, 1]} : vector<2x60xf32> to vector<2x15xf32>
    %1096 = arith.mulf %1089, %1060 : vector<2x15xf32>
    %1097 = arith.mulf %1088, %1094 : vector<2x15xf32>
    %1098 = arith.addf %1096, %1097 : vector<2x15xf32>
    %1099 = math.tanh %1098 : vector<2x15xf32>
    %1100 = arith.mulf %1095, %1099 : vector<2x15xf32>
    %cst_511 = arith.constant 0.000000e+00 : f32
    %1101 = vector.broadcast %cst_511 : f32 to vector<2x15xf32>
    %1102 = arith.maximumf %1100, %1101 : vector<2x15xf32>
    %c28_512 = arith.constant 28 : index
    %c0_513 = arith.constant 0 : index
    %c0_514 = arith.constant 0 : index
    %c0_515 = arith.constant 0 : index
    %1103 = vector.load %arg4[%c28_512, %c0_513, %c0_514, %c0_515] : memref<50x3x2x15xf32, #tpu.memory_space<vmem>>, vector<1x1x2x15xf32>
    %1104 = vector.shape_cast %1103 : vector<1x1x2x15xf32> to vector<2x15xf32>
    %1105 = arith.mulf %1102, %1104 : vector<2x15xf32>
    %1106 = arith.addf %1068, %1105 : vector<2x15xf32>
    %c28_516 = arith.constant 28 : index
    %c1_517 = arith.constant 1 : index
    %c0_518 = arith.constant 0 : index
    %c0_519 = arith.constant 0 : index
    %1107 = vector.load %arg4[%c28_516, %c1_517, %c0_518, %c0_519] : memref<50x3x2x15xf32, #tpu.memory_space<vmem>>, vector<1x1x2x15xf32>
    %1108 = vector.shape_cast %1107 : vector<1x1x2x15xf32> to vector<2x15xf32>
    %1109 = arith.mulf %1102, %1108 : vector<2x15xf32>
    %1110 = arith.addf %1072, %1109 : vector<2x15xf32>
    %c28_520 = arith.constant 28 : index
    %c2_521 = arith.constant 2 : index
    %c0_522 = arith.constant 0 : index
    %c0_523 = arith.constant 0 : index
    %1111 = vector.load %arg4[%c28_520, %c2_521, %c0_522, %c0_523] : memref<50x3x2x15xf32, #tpu.memory_space<vmem>>, vector<1x1x2x15xf32>
    %1112 = vector.shape_cast %1111 : vector<1x1x2x15xf32> to vector<2x15xf32>
    %1113 = arith.mulf %1102, %1112 : vector<2x15xf32>
    %1114 = arith.addf %1076, %1113 : vector<2x15xf32>
    %c58 = arith.constant 58 : index
    %c0_524 = arith.constant 0 : index
    %1115 = vector.load %arg7[%c58, %c0_524] : memref<100x60xf32, #tpu.memory_space<vmem>>, vector<2x60xf32>
    %1116 = vector.shape_cast %1100 : vector<2x15xf32> to vector<2x15x1xf32>
    %1117 = vector.broadcast %1116 : vector<2x15x1xf32> to vector<2x15x60xf32>
    %1118 = arith.mulf %1117, %10 : vector<2x15x60xf32>
    %cst_525 = arith.constant dense<0.000000e+00> : vector<2x60xf32>
    %1119 = vector.multi_reduction <add>, %1118, %cst_525 [1] : vector<2x15x60xf32> to vector<2x60xf32>
    %1120 = arith.addf %1115, %1119 : vector<2x60xf32>
    %1121 = arith.negf %1120 : vector<2x60xf32>
    %1122 = math.exp %1121 : vector<2x60xf32>
    %cst_526 = arith.constant 1.000000e+00 : f32
    %1123 = vector.broadcast %cst_526 : f32 to vector<2x60xf32>
    %1124 = arith.addf %1123, %1122 : vector<2x60xf32>
    %1125 = arith.divf %1123, %1124 : vector<2x60xf32>
    %1126 = vector.extract_strided_slice %1125 {offsets = [0, 0], sizes = [2, 15], strides = [1, 1]} : vector<2x60xf32> to vector<2x15xf32>
    %1127 = vector.extract_strided_slice %1125 {offsets = [0, 15], sizes = [2, 15], strides = [1, 1]} : vector<2x60xf32> to vector<2x15xf32>
    %1128 = vector.extract_strided_slice %1125 {offsets = [0, 30], sizes = [2, 15], strides = [1, 1]} : vector<2x60xf32> to vector<2x15xf32>
    %cst_527 = arith.constant 2.000000e+00 : f32
    %1129 = vector.broadcast %cst_527 : f32 to vector<2x15xf32>
    %1130 = arith.mulf %1129, %1128 : vector<2x15xf32>
    %cst_528 = arith.constant 1.000000e+00 : f32
    %1131 = vector.broadcast %cst_528 : f32 to vector<2x15xf32>
    %1132 = arith.subf %1130, %1131 : vector<2x15xf32>
    %1133 = vector.extract_strided_slice %1125 {offsets = [0, 45], sizes = [2, 15], strides = [1, 1]} : vector<2x60xf32> to vector<2x15xf32>
    %1134 = arith.mulf %1127, %1098 : vector<2x15xf32>
    %1135 = arith.mulf %1126, %1132 : vector<2x15xf32>
    %1136 = arith.addf %1134, %1135 : vector<2x15xf32>
    %1137 = math.tanh %1136 : vector<2x15xf32>
    %1138 = arith.mulf %1133, %1137 : vector<2x15xf32>
    %cst_529 = arith.constant 0.000000e+00 : f32
    %1139 = vector.broadcast %cst_529 : f32 to vector<2x15xf32>
    %1140 = arith.maximumf %1138, %1139 : vector<2x15xf32>
    %c29 = arith.constant 29 : index
    %c0_530 = arith.constant 0 : index
    %c0_531 = arith.constant 0 : index
    %c0_532 = arith.constant 0 : index
    %1141 = vector.load %arg4[%c29, %c0_530, %c0_531, %c0_532] : memref<50x3x2x15xf32, #tpu.memory_space<vmem>>, vector<1x1x2x15xf32>
    %1142 = vector.shape_cast %1141 : vector<1x1x2x15xf32> to vector<2x15xf32>
    %1143 = arith.mulf %1140, %1142 : vector<2x15xf32>
    %1144 = arith.addf %1106, %1143 : vector<2x15xf32>
    %c29_533 = arith.constant 29 : index
    %c1_534 = arith.constant 1 : index
    %c0_535 = arith.constant 0 : index
    %c0_536 = arith.constant 0 : index
    %1145 = vector.load %arg4[%c29_533, %c1_534, %c0_535, %c0_536] : memref<50x3x2x15xf32, #tpu.memory_space<vmem>>, vector<1x1x2x15xf32>
    %1146 = vector.shape_cast %1145 : vector<1x1x2x15xf32> to vector<2x15xf32>
    %1147 = arith.mulf %1140, %1146 : vector<2x15xf32>
    %1148 = arith.addf %1110, %1147 : vector<2x15xf32>
    %c29_537 = arith.constant 29 : index
    %c2_538 = arith.constant 2 : index
    %c0_539 = arith.constant 0 : index
    %c0_540 = arith.constant 0 : index
    %1149 = vector.load %arg4[%c29_537, %c2_538, %c0_539, %c0_540] : memref<50x3x2x15xf32, #tpu.memory_space<vmem>>, vector<1x1x2x15xf32>
    %1150 = vector.shape_cast %1149 : vector<1x1x2x15xf32> to vector<2x15xf32>
    %1151 = arith.mulf %1140, %1150 : vector<2x15xf32>
    %1152 = arith.addf %1114, %1151 : vector<2x15xf32>
    %c60 = arith.constant 60 : index
    %c0_541 = arith.constant 0 : index
    %1153 = vector.load %arg7[%c60, %c0_541] : memref<100x60xf32, #tpu.memory_space<vmem>>, vector<2x60xf32>
    %1154 = vector.shape_cast %1138 : vector<2x15xf32> to vector<2x15x1xf32>
    %1155 = vector.broadcast %1154 : vector<2x15x1xf32> to vector<2x15x60xf32>
    %1156 = arith.mulf %1155, %10 : vector<2x15x60xf32>
    %cst_542 = arith.constant dense<0.000000e+00> : vector<2x60xf32>
    %1157 = vector.multi_reduction <add>, %1156, %cst_542 [1] : vector<2x15x60xf32> to vector<2x60xf32>
    %1158 = arith.addf %1153, %1157 : vector<2x60xf32>
    %1159 = arith.negf %1158 : vector<2x60xf32>
    %1160 = math.exp %1159 : vector<2x60xf32>
    %cst_543 = arith.constant 1.000000e+00 : f32
    %1161 = vector.broadcast %cst_543 : f32 to vector<2x60xf32>
    %1162 = arith.addf %1161, %1160 : vector<2x60xf32>
    %1163 = arith.divf %1161, %1162 : vector<2x60xf32>
    %1164 = vector.extract_strided_slice %1163 {offsets = [0, 0], sizes = [2, 15], strides = [1, 1]} : vector<2x60xf32> to vector<2x15xf32>
    %1165 = vector.extract_strided_slice %1163 {offsets = [0, 15], sizes = [2, 15], strides = [1, 1]} : vector<2x60xf32> to vector<2x15xf32>
    %1166 = vector.extract_strided_slice %1163 {offsets = [0, 30], sizes = [2, 15], strides = [1, 1]} : vector<2x60xf32> to vector<2x15xf32>
    %cst_544 = arith.constant 2.000000e+00 : f32
    %1167 = vector.broadcast %cst_544 : f32 to vector<2x15xf32>
    %1168 = arith.mulf %1167, %1166 : vector<2x15xf32>
    %cst_545 = arith.constant 1.000000e+00 : f32
    %1169 = vector.broadcast %cst_545 : f32 to vector<2x15xf32>
    %1170 = arith.subf %1168, %1169 : vector<2x15xf32>
    %1171 = vector.extract_strided_slice %1163 {offsets = [0, 45], sizes = [2, 15], strides = [1, 1]} : vector<2x60xf32> to vector<2x15xf32>
    %1172 = arith.mulf %1165, %1136 : vector<2x15xf32>
    %1173 = arith.mulf %1164, %1170 : vector<2x15xf32>
    %1174 = arith.addf %1172, %1173 : vector<2x15xf32>
    %1175 = math.tanh %1174 : vector<2x15xf32>
    %1176 = arith.mulf %1171, %1175 : vector<2x15xf32>
    %cst_546 = arith.constant 0.000000e+00 : f32
    %1177 = vector.broadcast %cst_546 : f32 to vector<2x15xf32>
    %1178 = arith.maximumf %1176, %1177 : vector<2x15xf32>
    %c30_547 = arith.constant 30 : index
    %c0_548 = arith.constant 0 : index
    %c0_549 = arith.constant 0 : index
    %c0_550 = arith.constant 0 : index
    %1179 = vector.load %arg4[%c30_547, %c0_548, %c0_549, %c0_550] : memref<50x3x2x15xf32, #tpu.memory_space<vmem>>, vector<1x1x2x15xf32>
    %1180 = vector.shape_cast %1179 : vector<1x1x2x15xf32> to vector<2x15xf32>
    %1181 = arith.mulf %1178, %1180 : vector<2x15xf32>
    %1182 = arith.addf %1144, %1181 : vector<2x15xf32>
    %c30_551 = arith.constant 30 : index
    %c1_552 = arith.constant 1 : index
    %c0_553 = arith.constant 0 : index
    %c0_554 = arith.constant 0 : index
    %1183 = vector.load %arg4[%c30_551, %c1_552, %c0_553, %c0_554] : memref<50x3x2x15xf32, #tpu.memory_space<vmem>>, vector<1x1x2x15xf32>
    %1184 = vector.shape_cast %1183 : vector<1x1x2x15xf32> to vector<2x15xf32>
    %1185 = arith.mulf %1178, %1184 : vector<2x15xf32>
    %1186 = arith.addf %1148, %1185 : vector<2x15xf32>
    %c30_555 = arith.constant 30 : index
    %c2_556 = arith.constant 2 : index
    %c0_557 = arith.constant 0 : index
    %c0_558 = arith.constant 0 : index
    %1187 = vector.load %arg4[%c30_555, %c2_556, %c0_557, %c0_558] : memref<50x3x2x15xf32, #tpu.memory_space<vmem>>, vector<1x1x2x15xf32>
    %1188 = vector.shape_cast %1187 : vector<1x1x2x15xf32> to vector<2x15xf32>
    %1189 = arith.mulf %1178, %1188 : vector<2x15xf32>
    %1190 = arith.addf %1152, %1189 : vector<2x15xf32>
    %c62 = arith.constant 62 : index
    %c0_559 = arith.constant 0 : index
    %1191 = vector.load %arg7[%c62, %c0_559] : memref<100x60xf32, #tpu.memory_space<vmem>>, vector<2x60xf32>
    %1192 = vector.shape_cast %1176 : vector<2x15xf32> to vector<2x15x1xf32>
    %1193 = vector.broadcast %1192 : vector<2x15x1xf32> to vector<2x15x60xf32>
    %1194 = arith.mulf %1193, %10 : vector<2x15x60xf32>
    %cst_560 = arith.constant dense<0.000000e+00> : vector<2x60xf32>
    %1195 = vector.multi_reduction <add>, %1194, %cst_560 [1] : vector<2x15x60xf32> to vector<2x60xf32>
    %1196 = arith.addf %1191, %1195 : vector<2x60xf32>
    %1197 = arith.negf %1196 : vector<2x60xf32>
    %1198 = math.exp %1197 : vector<2x60xf32>
    %cst_561 = arith.constant 1.000000e+00 : f32
    %1199 = vector.broadcast %cst_561 : f32 to vector<2x60xf32>
    %1200 = arith.addf %1199, %1198 : vector<2x60xf32>
    %1201 = arith.divf %1199, %1200 : vector<2x60xf32>
    %1202 = vector.extract_strided_slice %1201 {offsets = [0, 0], sizes = [2, 15], strides = [1, 1]} : vector<2x60xf32> to vector<2x15xf32>
    %1203 = vector.extract_strided_slice %1201 {offsets = [0, 15], sizes = [2, 15], strides = [1, 1]} : vector<2x60xf32> to vector<2x15xf32>
    %1204 = vector.extract_strided_slice %1201 {offsets = [0, 30], sizes = [2, 15], strides = [1, 1]} : vector<2x60xf32> to vector<2x15xf32>
    %cst_562 = arith.constant 2.000000e+00 : f32
    %1205 = vector.broadcast %cst_562 : f32 to vector<2x15xf32>
    %1206 = arith.mulf %1205, %1204 : vector<2x15xf32>
    %cst_563 = arith.constant 1.000000e+00 : f32
    %1207 = vector.broadcast %cst_563 : f32 to vector<2x15xf32>
    %1208 = arith.subf %1206, %1207 : vector<2x15xf32>
    %1209 = vector.extract_strided_slice %1201 {offsets = [0, 45], sizes = [2, 15], strides = [1, 1]} : vector<2x60xf32> to vector<2x15xf32>
    %1210 = arith.mulf %1203, %1174 : vector<2x15xf32>
    %1211 = arith.mulf %1202, %1208 : vector<2x15xf32>
    %1212 = arith.addf %1210, %1211 : vector<2x15xf32>
    %1213 = math.tanh %1212 : vector<2x15xf32>
    %1214 = arith.mulf %1209, %1213 : vector<2x15xf32>
    %cst_564 = arith.constant 0.000000e+00 : f32
    %1215 = vector.broadcast %cst_564 : f32 to vector<2x15xf32>
    %1216 = arith.maximumf %1214, %1215 : vector<2x15xf32>
    %c31 = arith.constant 31 : index
    %c0_565 = arith.constant 0 : index
    %c0_566 = arith.constant 0 : index
    %c0_567 = arith.constant 0 : index
    %1217 = vector.load %arg4[%c31, %c0_565, %c0_566, %c0_567] : memref<50x3x2x15xf32, #tpu.memory_space<vmem>>, vector<1x1x2x15xf32>
    %1218 = vector.shape_cast %1217 : vector<1x1x2x15xf32> to vector<2x15xf32>
    %1219 = arith.mulf %1216, %1218 : vector<2x15xf32>
    %1220 = arith.addf %1182, %1219 : vector<2x15xf32>
    %c31_568 = arith.constant 31 : index
    %c1_569 = arith.constant 1 : index
    %c0_570 = arith.constant 0 : index
    %c0_571 = arith.constant 0 : index
    %1221 = vector.load %arg4[%c31_568, %c1_569, %c0_570, %c0_571] : memref<50x3x2x15xf32, #tpu.memory_space<vmem>>, vector<1x1x2x15xf32>
    %1222 = vector.shape_cast %1221 : vector<1x1x2x15xf32> to vector<2x15xf32>
    %1223 = arith.mulf %1216, %1222 : vector<2x15xf32>
    %1224 = arith.addf %1186, %1223 : vector<2x15xf32>
    %c31_572 = arith.constant 31 : index
    %c2_573 = arith.constant 2 : index
    %c0_574 = arith.constant 0 : index
    %c0_575 = arith.constant 0 : index
    %1225 = vector.load %arg4[%c31_572, %c2_573, %c0_574, %c0_575] : memref<50x3x2x15xf32, #tpu.memory_space<vmem>>, vector<1x1x2x15xf32>
    %1226 = vector.shape_cast %1225 : vector<1x1x2x15xf32> to vector<2x15xf32>
    %1227 = arith.mulf %1216, %1226 : vector<2x15xf32>
    %1228 = arith.addf %1190, %1227 : vector<2x15xf32>
    %c64 = arith.constant 64 : index
    %c0_576 = arith.constant 0 : index
    %1229 = vector.load %arg7[%c64, %c0_576] : memref<100x60xf32, #tpu.memory_space<vmem>>, vector<2x60xf32>
    %1230 = vector.shape_cast %1214 : vector<2x15xf32> to vector<2x15x1xf32>
    %1231 = vector.broadcast %1230 : vector<2x15x1xf32> to vector<2x15x60xf32>
    %1232 = arith.mulf %1231, %10 : vector<2x15x60xf32>
    %cst_577 = arith.constant dense<0.000000e+00> : vector<2x60xf32>
    %1233 = vector.multi_reduction <add>, %1232, %cst_577 [1] : vector<2x15x60xf32> to vector<2x60xf32>
    %1234 = arith.addf %1229, %1233 : vector<2x60xf32>
    %1235 = arith.negf %1234 : vector<2x60xf32>
    %1236 = math.exp %1235 : vector<2x60xf32>
    %cst_578 = arith.constant 1.000000e+00 : f32
    %1237 = vector.broadcast %cst_578 : f32 to vector<2x60xf32>
    %1238 = arith.addf %1237, %1236 : vector<2x60xf32>
    %1239 = arith.divf %1237, %1238 : vector<2x60xf32>
    %1240 = vector.extract_strided_slice %1239 {offsets = [0, 0], sizes = [2, 15], strides = [1, 1]} : vector<2x60xf32> to vector<2x15xf32>
    %1241 = vector.extract_strided_slice %1239 {offsets = [0, 15], sizes = [2, 15], strides = [1, 1]} : vector<2x60xf32> to vector<2x15xf32>
    %1242 = vector.extract_strided_slice %1239 {offsets = [0, 30], sizes = [2, 15], strides = [1, 1]} : vector<2x60xf32> to vector<2x15xf32>
    %cst_579 = arith.constant 2.000000e+00 : f32
    %1243 = vector.broadcast %cst_579 : f32 to vector<2x15xf32>
    %1244 = arith.mulf %1243, %1242 : vector<2x15xf32>
    %cst_580 = arith.constant 1.000000e+00 : f32
    %1245 = vector.broadcast %cst_580 : f32 to vector<2x15xf32>
    %1246 = arith.subf %1244, %1245 : vector<2x15xf32>
    %1247 = vector.extract_strided_slice %1239 {offsets = [0, 45], sizes = [2, 15], strides = [1, 1]} : vector<2x60xf32> to vector<2x15xf32>
    %1248 = arith.mulf %1241, %1212 : vector<2x15xf32>
    %1249 = arith.mulf %1240, %1246 : vector<2x15xf32>
    %1250 = arith.addf %1248, %1249 : vector<2x15xf32>
    %1251 = math.tanh %1250 : vector<2x15xf32>
    %1252 = arith.mulf %1247, %1251 : vector<2x15xf32>
    %cst_581 = arith.constant 0.000000e+00 : f32
    %1253 = vector.broadcast %cst_581 : f32 to vector<2x15xf32>
    %1254 = arith.maximumf %1252, %1253 : vector<2x15xf32>
    %c32_582 = arith.constant 32 : index
    %c0_583 = arith.constant 0 : index
    %c0_584 = arith.constant 0 : index
    %c0_585 = arith.constant 0 : index
    %1255 = vector.load %arg4[%c32_582, %c0_583, %c0_584, %c0_585] : memref<50x3x2x15xf32, #tpu.memory_space<vmem>>, vector<1x1x2x15xf32>
    %1256 = vector.shape_cast %1255 : vector<1x1x2x15xf32> to vector<2x15xf32>
    %1257 = arith.mulf %1254, %1256 : vector<2x15xf32>
    %1258 = arith.addf %1220, %1257 : vector<2x15xf32>
    %c32_586 = arith.constant 32 : index
    %c1_587 = arith.constant 1 : index
    %c0_588 = arith.constant 0 : index
    %c0_589 = arith.constant 0 : index
    %1259 = vector.load %arg4[%c32_586, %c1_587, %c0_588, %c0_589] : memref<50x3x2x15xf32, #tpu.memory_space<vmem>>, vector<1x1x2x15xf32>
    %1260 = vector.shape_cast %1259 : vector<1x1x2x15xf32> to vector<2x15xf32>
    %1261 = arith.mulf %1254, %1260 : vector<2x15xf32>
    %1262 = arith.addf %1224, %1261 : vector<2x15xf32>
    %c32_590 = arith.constant 32 : index
    %c2_591 = arith.constant 2 : index
    %c0_592 = arith.constant 0 : index
    %c0_593 = arith.constant 0 : index
    %1263 = vector.load %arg4[%c32_590, %c2_591, %c0_592, %c0_593] : memref<50x3x2x15xf32, #tpu.memory_space<vmem>>, vector<1x1x2x15xf32>
    %1264 = vector.shape_cast %1263 : vector<1x1x2x15xf32> to vector<2x15xf32>
    %1265 = arith.mulf %1254, %1264 : vector<2x15xf32>
    %1266 = arith.addf %1228, %1265 : vector<2x15xf32>
    %c66 = arith.constant 66 : index
    %c0_594 = arith.constant 0 : index
    %1267 = vector.load %arg7[%c66, %c0_594] : memref<100x60xf32, #tpu.memory_space<vmem>>, vector<2x60xf32>
    %1268 = vector.shape_cast %1252 : vector<2x15xf32> to vector<2x15x1xf32>
    %1269 = vector.broadcast %1268 : vector<2x15x1xf32> to vector<2x15x60xf32>
    %1270 = arith.mulf %1269, %10 : vector<2x15x60xf32>
    %cst_595 = arith.constant dense<0.000000e+00> : vector<2x60xf32>
    %1271 = vector.multi_reduction <add>, %1270, %cst_595 [1] : vector<2x15x60xf32> to vector<2x60xf32>
    %1272 = arith.addf %1267, %1271 : vector<2x60xf32>
    %1273 = arith.negf %1272 : vector<2x60xf32>
    %1274 = math.exp %1273 : vector<2x60xf32>
    %cst_596 = arith.constant 1.000000e+00 : f32
    %1275 = vector.broadcast %cst_596 : f32 to vector<2x60xf32>
    %1276 = arith.addf %1275, %1274 : vector<2x60xf32>
    %1277 = arith.divf %1275, %1276 : vector<2x60xf32>
    %1278 = vector.extract_strided_slice %1277 {offsets = [0, 0], sizes = [2, 15], strides = [1, 1]} : vector<2x60xf32> to vector<2x15xf32>
    %1279 = vector.extract_strided_slice %1277 {offsets = [0, 15], sizes = [2, 15], strides = [1, 1]} : vector<2x60xf32> to vector<2x15xf32>
    %1280 = vector.extract_strided_slice %1277 {offsets = [0, 30], sizes = [2, 15], strides = [1, 1]} : vector<2x60xf32> to vector<2x15xf32>
    %cst_597 = arith.constant 2.000000e+00 : f32
    %1281 = vector.broadcast %cst_597 : f32 to vector<2x15xf32>
    %1282 = arith.mulf %1281, %1280 : vector<2x15xf32>
    %cst_598 = arith.constant 1.000000e+00 : f32
    %1283 = vector.broadcast %cst_598 : f32 to vector<2x15xf32>
    %1284 = arith.subf %1282, %1283 : vector<2x15xf32>
    %1285 = vector.extract_strided_slice %1277 {offsets = [0, 45], sizes = [2, 15], strides = [1, 1]} : vector<2x60xf32> to vector<2x15xf32>
    %1286 = arith.mulf %1279, %1250 : vector<2x15xf32>
    %1287 = arith.mulf %1278, %1284 : vector<2x15xf32>
    %1288 = arith.addf %1286, %1287 : vector<2x15xf32>
    %1289 = math.tanh %1288 : vector<2x15xf32>
    %1290 = arith.mulf %1285, %1289 : vector<2x15xf32>
    %cst_599 = arith.constant 0.000000e+00 : f32
    %1291 = vector.broadcast %cst_599 : f32 to vector<2x15xf32>
    %1292 = arith.maximumf %1290, %1291 : vector<2x15xf32>
    %c33 = arith.constant 33 : index
    %c0_600 = arith.constant 0 : index
    %c0_601 = arith.constant 0 : index
    %c0_602 = arith.constant 0 : index
    %1293 = vector.load %arg4[%c33, %c0_600, %c0_601, %c0_602] : memref<50x3x2x15xf32, #tpu.memory_space<vmem>>, vector<1x1x2x15xf32>
    %1294 = vector.shape_cast %1293 : vector<1x1x2x15xf32> to vector<2x15xf32>
    %1295 = arith.mulf %1292, %1294 : vector<2x15xf32>
    %1296 = arith.addf %1258, %1295 : vector<2x15xf32>
    %c33_603 = arith.constant 33 : index
    %c1_604 = arith.constant 1 : index
    %c0_605 = arith.constant 0 : index
    %c0_606 = arith.constant 0 : index
    %1297 = vector.load %arg4[%c33_603, %c1_604, %c0_605, %c0_606] : memref<50x3x2x15xf32, #tpu.memory_space<vmem>>, vector<1x1x2x15xf32>
    %1298 = vector.shape_cast %1297 : vector<1x1x2x15xf32> to vector<2x15xf32>
    %1299 = arith.mulf %1292, %1298 : vector<2x15xf32>
    %1300 = arith.addf %1262, %1299 : vector<2x15xf32>
    %c33_607 = arith.constant 33 : index
    %c2_608 = arith.constant 2 : index
    %c0_609 = arith.constant 0 : index
    %c0_610 = arith.constant 0 : index
    %1301 = vector.load %arg4[%c33_607, %c2_608, %c0_609, %c0_610] : memref<50x3x2x15xf32, #tpu.memory_space<vmem>>, vector<1x1x2x15xf32>
    %1302 = vector.shape_cast %1301 : vector<1x1x2x15xf32> to vector<2x15xf32>
    %1303 = arith.mulf %1292, %1302 : vector<2x15xf32>
    %1304 = arith.addf %1266, %1303 : vector<2x15xf32>
    %c68 = arith.constant 68 : index
    %c0_611 = arith.constant 0 : index
    %1305 = vector.load %arg7[%c68, %c0_611] : memref<100x60xf32, #tpu.memory_space<vmem>>, vector<2x60xf32>
    %1306 = vector.shape_cast %1290 : vector<2x15xf32> to vector<2x15x1xf32>
    %1307 = vector.broadcast %1306 : vector<2x15x1xf32> to vector<2x15x60xf32>
    %1308 = arith.mulf %1307, %10 : vector<2x15x60xf32>
    %cst_612 = arith.constant dense<0.000000e+00> : vector<2x60xf32>
    %1309 = vector.multi_reduction <add>, %1308, %cst_612 [1] : vector<2x15x60xf32> to vector<2x60xf32>
    %1310 = arith.addf %1305, %1309 : vector<2x60xf32>
    %1311 = arith.negf %1310 : vector<2x60xf32>
    %1312 = math.exp %1311 : vector<2x60xf32>
    %cst_613 = arith.constant 1.000000e+00 : f32
    %1313 = vector.broadcast %cst_613 : f32 to vector<2x60xf32>
    %1314 = arith.addf %1313, %1312 : vector<2x60xf32>
    %1315 = arith.divf %1313, %1314 : vector<2x60xf32>
    %1316 = vector.extract_strided_slice %1315 {offsets = [0, 0], sizes = [2, 15], strides = [1, 1]} : vector<2x60xf32> to vector<2x15xf32>
    %1317 = vector.extract_strided_slice %1315 {offsets = [0, 15], sizes = [2, 15], strides = [1, 1]} : vector<2x60xf32> to vector<2x15xf32>
    %1318 = vector.extract_strided_slice %1315 {offsets = [0, 30], sizes = [2, 15], strides = [1, 1]} : vector<2x60xf32> to vector<2x15xf32>
    %cst_614 = arith.constant 2.000000e+00 : f32
    %1319 = vector.broadcast %cst_614 : f32 to vector<2x15xf32>
    %1320 = arith.mulf %1319, %1318 : vector<2x15xf32>
    %cst_615 = arith.constant 1.000000e+00 : f32
    %1321 = vector.broadcast %cst_615 : f32 to vector<2x15xf32>
    %1322 = arith.subf %1320, %1321 : vector<2x15xf32>
    %1323 = vector.extract_strided_slice %1315 {offsets = [0, 45], sizes = [2, 15], strides = [1, 1]} : vector<2x60xf32> to vector<2x15xf32>
    %1324 = arith.mulf %1317, %1288 : vector<2x15xf32>
    %1325 = arith.mulf %1316, %1322 : vector<2x15xf32>
    %1326 = arith.addf %1324, %1325 : vector<2x15xf32>
    %1327 = math.tanh %1326 : vector<2x15xf32>
    %1328 = arith.mulf %1323, %1327 : vector<2x15xf32>
    %cst_616 = arith.constant 0.000000e+00 : f32
    %1329 = vector.broadcast %cst_616 : f32 to vector<2x15xf32>
    %1330 = arith.maximumf %1328, %1329 : vector<2x15xf32>
    %c34_617 = arith.constant 34 : index
    %c0_618 = arith.constant 0 : index
    %c0_619 = arith.constant 0 : index
    %c0_620 = arith.constant 0 : index
    %1331 = vector.load %arg4[%c34_617, %c0_618, %c0_619, %c0_620] : memref<50x3x2x15xf32, #tpu.memory_space<vmem>>, vector<1x1x2x15xf32>
    %1332 = vector.shape_cast %1331 : vector<1x1x2x15xf32> to vector<2x15xf32>
    %1333 = arith.mulf %1330, %1332 : vector<2x15xf32>
    %1334 = arith.addf %1296, %1333 : vector<2x15xf32>
    %c34_621 = arith.constant 34 : index
    %c1_622 = arith.constant 1 : index
    %c0_623 = arith.constant 0 : index
    %c0_624 = arith.constant 0 : index
    %1335 = vector.load %arg4[%c34_621, %c1_622, %c0_623, %c0_624] : memref<50x3x2x15xf32, #tpu.memory_space<vmem>>, vector<1x1x2x15xf32>
    %1336 = vector.shape_cast %1335 : vector<1x1x2x15xf32> to vector<2x15xf32>
    %1337 = arith.mulf %1330, %1336 : vector<2x15xf32>
    %1338 = arith.addf %1300, %1337 : vector<2x15xf32>
    %c34_625 = arith.constant 34 : index
    %c2_626 = arith.constant 2 : index
    %c0_627 = arith.constant 0 : index
    %c0_628 = arith.constant 0 : index
    %1339 = vector.load %arg4[%c34_625, %c2_626, %c0_627, %c0_628] : memref<50x3x2x15xf32, #tpu.memory_space<vmem>>, vector<1x1x2x15xf32>
    %1340 = vector.shape_cast %1339 : vector<1x1x2x15xf32> to vector<2x15xf32>
    %1341 = arith.mulf %1330, %1340 : vector<2x15xf32>
    %1342 = arith.addf %1304, %1341 : vector<2x15xf32>
    %c70 = arith.constant 70 : index
    %c0_629 = arith.constant 0 : index
    %1343 = vector.load %arg7[%c70, %c0_629] : memref<100x60xf32, #tpu.memory_space<vmem>>, vector<2x60xf32>
    %1344 = vector.shape_cast %1328 : vector<2x15xf32> to vector<2x15x1xf32>
    %1345 = vector.broadcast %1344 : vector<2x15x1xf32> to vector<2x15x60xf32>
    %1346 = arith.mulf %1345, %10 : vector<2x15x60xf32>
    %cst_630 = arith.constant dense<0.000000e+00> : vector<2x60xf32>
    %1347 = vector.multi_reduction <add>, %1346, %cst_630 [1] : vector<2x15x60xf32> to vector<2x60xf32>
    %1348 = arith.addf %1343, %1347 : vector<2x60xf32>
    %1349 = arith.negf %1348 : vector<2x60xf32>
    %1350 = math.exp %1349 : vector<2x60xf32>
    %cst_631 = arith.constant 1.000000e+00 : f32
    %1351 = vector.broadcast %cst_631 : f32 to vector<2x60xf32>
    %1352 = arith.addf %1351, %1350 : vector<2x60xf32>
    %1353 = arith.divf %1351, %1352 : vector<2x60xf32>
    %1354 = vector.extract_strided_slice %1353 {offsets = [0, 0], sizes = [2, 15], strides = [1, 1]} : vector<2x60xf32> to vector<2x15xf32>
    %1355 = vector.extract_strided_slice %1353 {offsets = [0, 15], sizes = [2, 15], strides = [1, 1]} : vector<2x60xf32> to vector<2x15xf32>
    %1356 = vector.extract_strided_slice %1353 {offsets = [0, 30], sizes = [2, 15], strides = [1, 1]} : vector<2x60xf32> to vector<2x15xf32>
    %cst_632 = arith.constant 2.000000e+00 : f32
    %1357 = vector.broadcast %cst_632 : f32 to vector<2x15xf32>
    %1358 = arith.mulf %1357, %1356 : vector<2x15xf32>
    %cst_633 = arith.constant 1.000000e+00 : f32
    %1359 = vector.broadcast %cst_633 : f32 to vector<2x15xf32>
    %1360 = arith.subf %1358, %1359 : vector<2x15xf32>
    %1361 = vector.extract_strided_slice %1353 {offsets = [0, 45], sizes = [2, 15], strides = [1, 1]} : vector<2x60xf32> to vector<2x15xf32>
    %1362 = arith.mulf %1355, %1326 : vector<2x15xf32>
    %1363 = arith.mulf %1354, %1360 : vector<2x15xf32>
    %1364 = arith.addf %1362, %1363 : vector<2x15xf32>
    %1365 = math.tanh %1364 : vector<2x15xf32>
    %1366 = arith.mulf %1361, %1365 : vector<2x15xf32>
    %cst_634 = arith.constant 0.000000e+00 : f32
    %1367 = vector.broadcast %cst_634 : f32 to vector<2x15xf32>
    %1368 = arith.maximumf %1366, %1367 : vector<2x15xf32>
    %c35 = arith.constant 35 : index
    %c0_635 = arith.constant 0 : index
    %c0_636 = arith.constant 0 : index
    %c0_637 = arith.constant 0 : index
    %1369 = vector.load %arg4[%c35, %c0_635, %c0_636, %c0_637] : memref<50x3x2x15xf32, #tpu.memory_space<vmem>>, vector<1x1x2x15xf32>
    %1370 = vector.shape_cast %1369 : vector<1x1x2x15xf32> to vector<2x15xf32>
    %1371 = arith.mulf %1368, %1370 : vector<2x15xf32>
    %1372 = arith.addf %1334, %1371 : vector<2x15xf32>
    %c35_638 = arith.constant 35 : index
    %c1_639 = arith.constant 1 : index
    %c0_640 = arith.constant 0 : index
    %c0_641 = arith.constant 0 : index
    %1373 = vector.load %arg4[%c35_638, %c1_639, %c0_640, %c0_641] : memref<50x3x2x15xf32, #tpu.memory_space<vmem>>, vector<1x1x2x15xf32>
    %1374 = vector.shape_cast %1373 : vector<1x1x2x15xf32> to vector<2x15xf32>
    %1375 = arith.mulf %1368, %1374 : vector<2x15xf32>
    %1376 = arith.addf %1338, %1375 : vector<2x15xf32>
    %c35_642 = arith.constant 35 : index
    %c2_643 = arith.constant 2 : index
    %c0_644 = arith.constant 0 : index
    %c0_645 = arith.constant 0 : index
    %1377 = vector.load %arg4[%c35_642, %c2_643, %c0_644, %c0_645] : memref<50x3x2x15xf32, #tpu.memory_space<vmem>>, vector<1x1x2x15xf32>
    %1378 = vector.shape_cast %1377 : vector<1x1x2x15xf32> to vector<2x15xf32>
    %1379 = arith.mulf %1368, %1378 : vector<2x15xf32>
    %1380 = arith.addf %1342, %1379 : vector<2x15xf32>
    %c72 = arith.constant 72 : index
    %c0_646 = arith.constant 0 : index
    %1381 = vector.load %arg7[%c72, %c0_646] : memref<100x60xf32, #tpu.memory_space<vmem>>, vector<2x60xf32>
    %1382 = vector.shape_cast %1366 : vector<2x15xf32> to vector<2x15x1xf32>
    %1383 = vector.broadcast %1382 : vector<2x15x1xf32> to vector<2x15x60xf32>
    %1384 = arith.mulf %1383, %10 : vector<2x15x60xf32>
    %cst_647 = arith.constant dense<0.000000e+00> : vector<2x60xf32>
    %1385 = vector.multi_reduction <add>, %1384, %cst_647 [1] : vector<2x15x60xf32> to vector<2x60xf32>
    %1386 = arith.addf %1381, %1385 : vector<2x60xf32>
    %1387 = arith.negf %1386 : vector<2x60xf32>
    %1388 = math.exp %1387 : vector<2x60xf32>
    %cst_648 = arith.constant 1.000000e+00 : f32
    %1389 = vector.broadcast %cst_648 : f32 to vector<2x60xf32>
    %1390 = arith.addf %1389, %1388 : vector<2x60xf32>
    %1391 = arith.divf %1389, %1390 : vector<2x60xf32>
    %1392 = vector.extract_strided_slice %1391 {offsets = [0, 0], sizes = [2, 15], strides = [1, 1]} : vector<2x60xf32> to vector<2x15xf32>
    %1393 = vector.extract_strided_slice %1391 {offsets = [0, 15], sizes = [2, 15], strides = [1, 1]} : vector<2x60xf32> to vector<2x15xf32>
    %1394 = vector.extract_strided_slice %1391 {offsets = [0, 30], sizes = [2, 15], strides = [1, 1]} : vector<2x60xf32> to vector<2x15xf32>
    %cst_649 = arith.constant 2.000000e+00 : f32
    %1395 = vector.broadcast %cst_649 : f32 to vector<2x15xf32>
    %1396 = arith.mulf %1395, %1394 : vector<2x15xf32>
    %cst_650 = arith.constant 1.000000e+00 : f32
    %1397 = vector.broadcast %cst_650 : f32 to vector<2x15xf32>
    %1398 = arith.subf %1396, %1397 : vector<2x15xf32>
    %1399 = vector.extract_strided_slice %1391 {offsets = [0, 45], sizes = [2, 15], strides = [1, 1]} : vector<2x60xf32> to vector<2x15xf32>
    %1400 = arith.mulf %1393, %1364 : vector<2x15xf32>
    %1401 = arith.mulf %1392, %1398 : vector<2x15xf32>
    %1402 = arith.addf %1400, %1401 : vector<2x15xf32>
    %1403 = math.tanh %1402 : vector<2x15xf32>
    %1404 = arith.mulf %1399, %1403 : vector<2x15xf32>
    %cst_651 = arith.constant 0.000000e+00 : f32
    %1405 = vector.broadcast %cst_651 : f32 to vector<2x15xf32>
    %1406 = arith.maximumf %1404, %1405 : vector<2x15xf32>
    %c36_652 = arith.constant 36 : index
    %c0_653 = arith.constant 0 : index
    %c0_654 = arith.constant 0 : index
    %c0_655 = arith.constant 0 : index
    %1407 = vector.load %arg4[%c36_652, %c0_653, %c0_654, %c0_655] : memref<50x3x2x15xf32, #tpu.memory_space<vmem>>, vector<1x1x2x15xf32>
    %1408 = vector.shape_cast %1407 : vector<1x1x2x15xf32> to vector<2x15xf32>
    %1409 = arith.mulf %1406, %1408 : vector<2x15xf32>
    %1410 = arith.addf %1372, %1409 : vector<2x15xf32>
    %c36_656 = arith.constant 36 : index
    %c1_657 = arith.constant 1 : index
    %c0_658 = arith.constant 0 : index
    %c0_659 = arith.constant 0 : index
    %1411 = vector.load %arg4[%c36_656, %c1_657, %c0_658, %c0_659] : memref<50x3x2x15xf32, #tpu.memory_space<vmem>>, vector<1x1x2x15xf32>
    %1412 = vector.shape_cast %1411 : vector<1x1x2x15xf32> to vector<2x15xf32>
    %1413 = arith.mulf %1406, %1412 : vector<2x15xf32>
    %1414 = arith.addf %1376, %1413 : vector<2x15xf32>
    %c36_660 = arith.constant 36 : index
    %c2_661 = arith.constant 2 : index
    %c0_662 = arith.constant 0 : index
    %c0_663 = arith.constant 0 : index
    %1415 = vector.load %arg4[%c36_660, %c2_661, %c0_662, %c0_663] : memref<50x3x2x15xf32, #tpu.memory_space<vmem>>, vector<1x1x2x15xf32>
    %1416 = vector.shape_cast %1415 : vector<1x1x2x15xf32> to vector<2x15xf32>
    %1417 = arith.mulf %1406, %1416 : vector<2x15xf32>
    %1418 = arith.addf %1380, %1417 : vector<2x15xf32>
    %c74 = arith.constant 74 : index
    %c0_664 = arith.constant 0 : index
    %1419 = vector.load %arg7[%c74, %c0_664] : memref<100x60xf32, #tpu.memory_space<vmem>>, vector<2x60xf32>
    %1420 = vector.shape_cast %1404 : vector<2x15xf32> to vector<2x15x1xf32>
    %1421 = vector.broadcast %1420 : vector<2x15x1xf32> to vector<2x15x60xf32>
    %1422 = arith.mulf %1421, %10 : vector<2x15x60xf32>
    %cst_665 = arith.constant dense<0.000000e+00> : vector<2x60xf32>
    %1423 = vector.multi_reduction <add>, %1422, %cst_665 [1] : vector<2x15x60xf32> to vector<2x60xf32>
    %1424 = arith.addf %1419, %1423 : vector<2x60xf32>
    %1425 = arith.negf %1424 : vector<2x60xf32>
    %1426 = math.exp %1425 : vector<2x60xf32>
    %cst_666 = arith.constant 1.000000e+00 : f32
    %1427 = vector.broadcast %cst_666 : f32 to vector<2x60xf32>
    %1428 = arith.addf %1427, %1426 : vector<2x60xf32>
    %1429 = arith.divf %1427, %1428 : vector<2x60xf32>
    %1430 = vector.extract_strided_slice %1429 {offsets = [0, 0], sizes = [2, 15], strides = [1, 1]} : vector<2x60xf32> to vector<2x15xf32>
    %1431 = vector.extract_strided_slice %1429 {offsets = [0, 15], sizes = [2, 15], strides = [1, 1]} : vector<2x60xf32> to vector<2x15xf32>
    %1432 = vector.extract_strided_slice %1429 {offsets = [0, 30], sizes = [2, 15], strides = [1, 1]} : vector<2x60xf32> to vector<2x15xf32>
    %cst_667 = arith.constant 2.000000e+00 : f32
    %1433 = vector.broadcast %cst_667 : f32 to vector<2x15xf32>
    %1434 = arith.mulf %1433, %1432 : vector<2x15xf32>
    %cst_668 = arith.constant 1.000000e+00 : f32
    %1435 = vector.broadcast %cst_668 : f32 to vector<2x15xf32>
    %1436 = arith.subf %1434, %1435 : vector<2x15xf32>
    %1437 = vector.extract_strided_slice %1429 {offsets = [0, 45], sizes = [2, 15], strides = [1, 1]} : vector<2x60xf32> to vector<2x15xf32>
    %1438 = arith.mulf %1431, %1402 : vector<2x15xf32>
    %1439 = arith.mulf %1430, %1436 : vector<2x15xf32>
    %1440 = arith.addf %1438, %1439 : vector<2x15xf32>
    %1441 = math.tanh %1440 : vector<2x15xf32>
    %1442 = arith.mulf %1437, %1441 : vector<2x15xf32>
    %cst_669 = arith.constant 0.000000e+00 : f32
    %1443 = vector.broadcast %cst_669 : f32 to vector<2x15xf32>
    %1444 = arith.maximumf %1442, %1443 : vector<2x15xf32>
    %c37 = arith.constant 37 : index
    %c0_670 = arith.constant 0 : index
    %c0_671 = arith.constant 0 : index
    %c0_672 = arith.constant 0 : index
    %1445 = vector.load %arg4[%c37, %c0_670, %c0_671, %c0_672] : memref<50x3x2x15xf32, #tpu.memory_space<vmem>>, vector<1x1x2x15xf32>
    %1446 = vector.shape_cast %1445 : vector<1x1x2x15xf32> to vector<2x15xf32>
    %1447 = arith.mulf %1444, %1446 : vector<2x15xf32>
    %1448 = arith.addf %1410, %1447 : vector<2x15xf32>
    %c37_673 = arith.constant 37 : index
    %c1_674 = arith.constant 1 : index
    %c0_675 = arith.constant 0 : index
    %c0_676 = arith.constant 0 : index
    %1449 = vector.load %arg4[%c37_673, %c1_674, %c0_675, %c0_676] : memref<50x3x2x15xf32, #tpu.memory_space<vmem>>, vector<1x1x2x15xf32>
    %1450 = vector.shape_cast %1449 : vector<1x1x2x15xf32> to vector<2x15xf32>
    %1451 = arith.mulf %1444, %1450 : vector<2x15xf32>
    %1452 = arith.addf %1414, %1451 : vector<2x15xf32>
    %c37_677 = arith.constant 37 : index
    %c2_678 = arith.constant 2 : index
    %c0_679 = arith.constant 0 : index
    %c0_680 = arith.constant 0 : index
    %1453 = vector.load %arg4[%c37_677, %c2_678, %c0_679, %c0_680] : memref<50x3x2x15xf32, #tpu.memory_space<vmem>>, vector<1x1x2x15xf32>
    %1454 = vector.shape_cast %1453 : vector<1x1x2x15xf32> to vector<2x15xf32>
    %1455 = arith.mulf %1444, %1454 : vector<2x15xf32>
    %1456 = arith.addf %1418, %1455 : vector<2x15xf32>
    %c76 = arith.constant 76 : index
    %c0_681 = arith.constant 0 : index
    %1457 = vector.load %arg7[%c76, %c0_681] : memref<100x60xf32, #tpu.memory_space<vmem>>, vector<2x60xf32>
    %1458 = vector.shape_cast %1442 : vector<2x15xf32> to vector<2x15x1xf32>
    %1459 = vector.broadcast %1458 : vector<2x15x1xf32> to vector<2x15x60xf32>
    %1460 = arith.mulf %1459, %10 : vector<2x15x60xf32>
    %cst_682 = arith.constant dense<0.000000e+00> : vector<2x60xf32>
    %1461 = vector.multi_reduction <add>, %1460, %cst_682 [1] : vector<2x15x60xf32> to vector<2x60xf32>
    %1462 = arith.addf %1457, %1461 : vector<2x60xf32>
    %1463 = arith.negf %1462 : vector<2x60xf32>
    %1464 = math.exp %1463 : vector<2x60xf32>
    %cst_683 = arith.constant 1.000000e+00 : f32
    %1465 = vector.broadcast %cst_683 : f32 to vector<2x60xf32>
    %1466 = arith.addf %1465, %1464 : vector<2x60xf32>
    %1467 = arith.divf %1465, %1466 : vector<2x60xf32>
    %1468 = vector.extract_strided_slice %1467 {offsets = [0, 0], sizes = [2, 15], strides = [1, 1]} : vector<2x60xf32> to vector<2x15xf32>
    %1469 = vector.extract_strided_slice %1467 {offsets = [0, 15], sizes = [2, 15], strides = [1, 1]} : vector<2x60xf32> to vector<2x15xf32>
    %1470 = vector.extract_strided_slice %1467 {offsets = [0, 30], sizes = [2, 15], strides = [1, 1]} : vector<2x60xf32> to vector<2x15xf32>
    %cst_684 = arith.constant 2.000000e+00 : f32
    %1471 = vector.broadcast %cst_684 : f32 to vector<2x15xf32>
    %1472 = arith.mulf %1471, %1470 : vector<2x15xf32>
    %cst_685 = arith.constant 1.000000e+00 : f32
    %1473 = vector.broadcast %cst_685 : f32 to vector<2x15xf32>
    %1474 = arith.subf %1472, %1473 : vector<2x15xf32>
    %1475 = vector.extract_strided_slice %1467 {offsets = [0, 45], sizes = [2, 15], strides = [1, 1]} : vector<2x60xf32> to vector<2x15xf32>
    %1476 = arith.mulf %1469, %1440 : vector<2x15xf32>
    %1477 = arith.mulf %1468, %1474 : vector<2x15xf32>
    %1478 = arith.addf %1476, %1477 : vector<2x15xf32>
    %1479 = math.tanh %1478 : vector<2x15xf32>
    %1480 = arith.mulf %1475, %1479 : vector<2x15xf32>
    %cst_686 = arith.constant 0.000000e+00 : f32
    %1481 = vector.broadcast %cst_686 : f32 to vector<2x15xf32>
    %1482 = arith.maximumf %1480, %1481 : vector<2x15xf32>
    %c38_687 = arith.constant 38 : index
    %c0_688 = arith.constant 0 : index
    %c0_689 = arith.constant 0 : index
    %c0_690 = arith.constant 0 : index
    %1483 = vector.load %arg4[%c38_687, %c0_688, %c0_689, %c0_690] : memref<50x3x2x15xf32, #tpu.memory_space<vmem>>, vector<1x1x2x15xf32>
    %1484 = vector.shape_cast %1483 : vector<1x1x2x15xf32> to vector<2x15xf32>
    %1485 = arith.mulf %1482, %1484 : vector<2x15xf32>
    %1486 = arith.addf %1448, %1485 : vector<2x15xf32>
    %c38_691 = arith.constant 38 : index
    %c1_692 = arith.constant 1 : index
    %c0_693 = arith.constant 0 : index
    %c0_694 = arith.constant 0 : index
    %1487 = vector.load %arg4[%c38_691, %c1_692, %c0_693, %c0_694] : memref<50x3x2x15xf32, #tpu.memory_space<vmem>>, vector<1x1x2x15xf32>
    %1488 = vector.shape_cast %1487 : vector<1x1x2x15xf32> to vector<2x15xf32>
    %1489 = arith.mulf %1482, %1488 : vector<2x15xf32>
    %1490 = arith.addf %1452, %1489 : vector<2x15xf32>
    %c38_695 = arith.constant 38 : index
    %c2_696 = arith.constant 2 : index
    %c0_697 = arith.constant 0 : index
    %c0_698 = arith.constant 0 : index
    %1491 = vector.load %arg4[%c38_695, %c2_696, %c0_697, %c0_698] : memref<50x3x2x15xf32, #tpu.memory_space<vmem>>, vector<1x1x2x15xf32>
    %1492 = vector.shape_cast %1491 : vector<1x1x2x15xf32> to vector<2x15xf32>
    %1493 = arith.mulf %1482, %1492 : vector<2x15xf32>
    %1494 = arith.addf %1456, %1493 : vector<2x15xf32>
    %c78 = arith.constant 78 : index
    %c0_699 = arith.constant 0 : index
    %1495 = vector.load %arg7[%c78, %c0_699] : memref<100x60xf32, #tpu.memory_space<vmem>>, vector<2x60xf32>
    %1496 = vector.shape_cast %1480 : vector<2x15xf32> to vector<2x15x1xf32>
    %1497 = vector.broadcast %1496 : vector<2x15x1xf32> to vector<2x15x60xf32>
    %1498 = arith.mulf %1497, %10 : vector<2x15x60xf32>
    %cst_700 = arith.constant dense<0.000000e+00> : vector<2x60xf32>
    %1499 = vector.multi_reduction <add>, %1498, %cst_700 [1] : vector<2x15x60xf32> to vector<2x60xf32>
    %1500 = arith.addf %1495, %1499 : vector<2x60xf32>
    %1501 = arith.negf %1500 : vector<2x60xf32>
    %1502 = math.exp %1501 : vector<2x60xf32>
    %cst_701 = arith.constant 1.000000e+00 : f32
    %1503 = vector.broadcast %cst_701 : f32 to vector<2x60xf32>
    %1504 = arith.addf %1503, %1502 : vector<2x60xf32>
    %1505 = arith.divf %1503, %1504 : vector<2x60xf32>
    %1506 = vector.extract_strided_slice %1505 {offsets = [0, 0], sizes = [2, 15], strides = [1, 1]} : vector<2x60xf32> to vector<2x15xf32>
    %1507 = vector.extract_strided_slice %1505 {offsets = [0, 15], sizes = [2, 15], strides = [1, 1]} : vector<2x60xf32> to vector<2x15xf32>
    %1508 = vector.extract_strided_slice %1505 {offsets = [0, 30], sizes = [2, 15], strides = [1, 1]} : vector<2x60xf32> to vector<2x15xf32>
    %cst_702 = arith.constant 2.000000e+00 : f32
    %1509 = vector.broadcast %cst_702 : f32 to vector<2x15xf32>
    %1510 = arith.mulf %1509, %1508 : vector<2x15xf32>
    %cst_703 = arith.constant 1.000000e+00 : f32
    %1511 = vector.broadcast %cst_703 : f32 to vector<2x15xf32>
    %1512 = arith.subf %1510, %1511 : vector<2x15xf32>
    %1513 = vector.extract_strided_slice %1505 {offsets = [0, 45], sizes = [2, 15], strides = [1, 1]} : vector<2x60xf32> to vector<2x15xf32>
    %1514 = arith.mulf %1507, %1478 : vector<2x15xf32>
    %1515 = arith.mulf %1506, %1512 : vector<2x15xf32>
    %1516 = arith.addf %1514, %1515 : vector<2x15xf32>
    %1517 = math.tanh %1516 : vector<2x15xf32>
    %1518 = arith.mulf %1513, %1517 : vector<2x15xf32>
    %cst_704 = arith.constant 0.000000e+00 : f32
    %1519 = vector.broadcast %cst_704 : f32 to vector<2x15xf32>
    %1520 = arith.maximumf %1518, %1519 : vector<2x15xf32>
    %c39 = arith.constant 39 : index
    %c0_705 = arith.constant 0 : index
    %c0_706 = arith.constant 0 : index
    %c0_707 = arith.constant 0 : index
    %1521 = vector.load %arg4[%c39, %c0_705, %c0_706, %c0_707] : memref<50x3x2x15xf32, #tpu.memory_space<vmem>>, vector<1x1x2x15xf32>
    %1522 = vector.shape_cast %1521 : vector<1x1x2x15xf32> to vector<2x15xf32>
    %1523 = arith.mulf %1520, %1522 : vector<2x15xf32>
    %1524 = arith.addf %1486, %1523 : vector<2x15xf32>
    %c39_708 = arith.constant 39 : index
    %c1_709 = arith.constant 1 : index
    %c0_710 = arith.constant 0 : index
    %c0_711 = arith.constant 0 : index
    %1525 = vector.load %arg4[%c39_708, %c1_709, %c0_710, %c0_711] : memref<50x3x2x15xf32, #tpu.memory_space<vmem>>, vector<1x1x2x15xf32>
    %1526 = vector.shape_cast %1525 : vector<1x1x2x15xf32> to vector<2x15xf32>
    %1527 = arith.mulf %1520, %1526 : vector<2x15xf32>
    %1528 = arith.addf %1490, %1527 : vector<2x15xf32>
    %c39_712 = arith.constant 39 : index
    %c2_713 = arith.constant 2 : index
    %c0_714 = arith.constant 0 : index
    %c0_715 = arith.constant 0 : index
    %1529 = vector.load %arg4[%c39_712, %c2_713, %c0_714, %c0_715] : memref<50x3x2x15xf32, #tpu.memory_space<vmem>>, vector<1x1x2x15xf32>
    %1530 = vector.shape_cast %1529 : vector<1x1x2x15xf32> to vector<2x15xf32>
    %1531 = arith.mulf %1520, %1530 : vector<2x15xf32>
    %1532 = arith.addf %1494, %1531 : vector<2x15xf32>
    %c80 = arith.constant 80 : index
    %c0_716 = arith.constant 0 : index
    %1533 = vector.load %arg7[%c80, %c0_716] : memref<100x60xf32, #tpu.memory_space<vmem>>, vector<2x60xf32>
    %1534 = vector.shape_cast %1518 : vector<2x15xf32> to vector<2x15x1xf32>
    %1535 = vector.broadcast %1534 : vector<2x15x1xf32> to vector<2x15x60xf32>
    %1536 = arith.mulf %1535, %10 : vector<2x15x60xf32>
    %cst_717 = arith.constant dense<0.000000e+00> : vector<2x60xf32>
    %1537 = vector.multi_reduction <add>, %1536, %cst_717 [1] : vector<2x15x60xf32> to vector<2x60xf32>
    %1538 = arith.addf %1533, %1537 : vector<2x60xf32>
    %1539 = arith.negf %1538 : vector<2x60xf32>
    %1540 = math.exp %1539 : vector<2x60xf32>
    %cst_718 = arith.constant 1.000000e+00 : f32
    %1541 = vector.broadcast %cst_718 : f32 to vector<2x60xf32>
    %1542 = arith.addf %1541, %1540 : vector<2x60xf32>
    %1543 = arith.divf %1541, %1542 : vector<2x60xf32>
    %1544 = vector.extract_strided_slice %1543 {offsets = [0, 0], sizes = [2, 15], strides = [1, 1]} : vector<2x60xf32> to vector<2x15xf32>
    %1545 = vector.extract_strided_slice %1543 {offsets = [0, 15], sizes = [2, 15], strides = [1, 1]} : vector<2x60xf32> to vector<2x15xf32>
    %1546 = vector.extract_strided_slice %1543 {offsets = [0, 30], sizes = [2, 15], strides = [1, 1]} : vector<2x60xf32> to vector<2x15xf32>
    %cst_719 = arith.constant 2.000000e+00 : f32
    %1547 = vector.broadcast %cst_719 : f32 to vector<2x15xf32>
    %1548 = arith.mulf %1547, %1546 : vector<2x15xf32>
    %cst_720 = arith.constant 1.000000e+00 : f32
    %1549 = vector.broadcast %cst_720 : f32 to vector<2x15xf32>
    %1550 = arith.subf %1548, %1549 : vector<2x15xf32>
    %1551 = vector.extract_strided_slice %1543 {offsets = [0, 45], sizes = [2, 15], strides = [1, 1]} : vector<2x60xf32> to vector<2x15xf32>
    %1552 = arith.mulf %1545, %1516 : vector<2x15xf32>
    %1553 = arith.mulf %1544, %1550 : vector<2x15xf32>
    %1554 = arith.addf %1552, %1553 : vector<2x15xf32>
    %1555 = math.tanh %1554 : vector<2x15xf32>
    %1556 = arith.mulf %1551, %1555 : vector<2x15xf32>
    %cst_721 = arith.constant 0.000000e+00 : f32
    %1557 = vector.broadcast %cst_721 : f32 to vector<2x15xf32>
    %1558 = arith.maximumf %1556, %1557 : vector<2x15xf32>
    %c40_722 = arith.constant 40 : index
    %c0_723 = arith.constant 0 : index
    %c0_724 = arith.constant 0 : index
    %c0_725 = arith.constant 0 : index
    %1559 = vector.load %arg4[%c40_722, %c0_723, %c0_724, %c0_725] : memref<50x3x2x15xf32, #tpu.memory_space<vmem>>, vector<1x1x2x15xf32>
    %1560 = vector.shape_cast %1559 : vector<1x1x2x15xf32> to vector<2x15xf32>
    %1561 = arith.mulf %1558, %1560 : vector<2x15xf32>
    %1562 = arith.addf %1524, %1561 : vector<2x15xf32>
    %c40_726 = arith.constant 40 : index
    %c1_727 = arith.constant 1 : index
    %c0_728 = arith.constant 0 : index
    %c0_729 = arith.constant 0 : index
    %1563 = vector.load %arg4[%c40_726, %c1_727, %c0_728, %c0_729] : memref<50x3x2x15xf32, #tpu.memory_space<vmem>>, vector<1x1x2x15xf32>
    %1564 = vector.shape_cast %1563 : vector<1x1x2x15xf32> to vector<2x15xf32>
    %1565 = arith.mulf %1558, %1564 : vector<2x15xf32>
    %1566 = arith.addf %1528, %1565 : vector<2x15xf32>
    %c40_730 = arith.constant 40 : index
    %c2_731 = arith.constant 2 : index
    %c0_732 = arith.constant 0 : index
    %c0_733 = arith.constant 0 : index
    %1567 = vector.load %arg4[%c40_730, %c2_731, %c0_732, %c0_733] : memref<50x3x2x15xf32, #tpu.memory_space<vmem>>, vector<1x1x2x15xf32>
    %1568 = vector.shape_cast %1567 : vector<1x1x2x15xf32> to vector<2x15xf32>
    %1569 = arith.mulf %1558, %1568 : vector<2x15xf32>
    %1570 = arith.addf %1532, %1569 : vector<2x15xf32>
    %c82 = arith.constant 82 : index
    %c0_734 = arith.constant 0 : index
    %1571 = vector.load %arg7[%c82, %c0_734] : memref<100x60xf32, #tpu.memory_space<vmem>>, vector<2x60xf32>
    %1572 = vector.shape_cast %1556 : vector<2x15xf32> to vector<2x15x1xf32>
    %1573 = vector.broadcast %1572 : vector<2x15x1xf32> to vector<2x15x60xf32>
    %1574 = arith.mulf %1573, %10 : vector<2x15x60xf32>
    %cst_735 = arith.constant dense<0.000000e+00> : vector<2x60xf32>
    %1575 = vector.multi_reduction <add>, %1574, %cst_735 [1] : vector<2x15x60xf32> to vector<2x60xf32>
    %1576 = arith.addf %1571, %1575 : vector<2x60xf32>
    %1577 = arith.negf %1576 : vector<2x60xf32>
    %1578 = math.exp %1577 : vector<2x60xf32>
    %cst_736 = arith.constant 1.000000e+00 : f32
    %1579 = vector.broadcast %cst_736 : f32 to vector<2x60xf32>
    %1580 = arith.addf %1579, %1578 : vector<2x60xf32>
    %1581 = arith.divf %1579, %1580 : vector<2x60xf32>
    %1582 = vector.extract_strided_slice %1581 {offsets = [0, 0], sizes = [2, 15], strides = [1, 1]} : vector<2x60xf32> to vector<2x15xf32>
    %1583 = vector.extract_strided_slice %1581 {offsets = [0, 15], sizes = [2, 15], strides = [1, 1]} : vector<2x60xf32> to vector<2x15xf32>
    %1584 = vector.extract_strided_slice %1581 {offsets = [0, 30], sizes = [2, 15], strides = [1, 1]} : vector<2x60xf32> to vector<2x15xf32>
    %cst_737 = arith.constant 2.000000e+00 : f32
    %1585 = vector.broadcast %cst_737 : f32 to vector<2x15xf32>
    %1586 = arith.mulf %1585, %1584 : vector<2x15xf32>
    %cst_738 = arith.constant 1.000000e+00 : f32
    %1587 = vector.broadcast %cst_738 : f32 to vector<2x15xf32>
    %1588 = arith.subf %1586, %1587 : vector<2x15xf32>
    %1589 = vector.extract_strided_slice %1581 {offsets = [0, 45], sizes = [2, 15], strides = [1, 1]} : vector<2x60xf32> to vector<2x15xf32>
    %1590 = arith.mulf %1583, %1554 : vector<2x15xf32>
    %1591 = arith.mulf %1582, %1588 : vector<2x15xf32>
    %1592 = arith.addf %1590, %1591 : vector<2x15xf32>
    %1593 = math.tanh %1592 : vector<2x15xf32>
    %1594 = arith.mulf %1589, %1593 : vector<2x15xf32>
    %cst_739 = arith.constant 0.000000e+00 : f32
    %1595 = vector.broadcast %cst_739 : f32 to vector<2x15xf32>
    %1596 = arith.maximumf %1594, %1595 : vector<2x15xf32>
    %c41 = arith.constant 41 : index
    %c0_740 = arith.constant 0 : index
    %c0_741 = arith.constant 0 : index
    %c0_742 = arith.constant 0 : index
    %1597 = vector.load %arg4[%c41, %c0_740, %c0_741, %c0_742] : memref<50x3x2x15xf32, #tpu.memory_space<vmem>>, vector<1x1x2x15xf32>
    %1598 = vector.shape_cast %1597 : vector<1x1x2x15xf32> to vector<2x15xf32>
    %1599 = arith.mulf %1596, %1598 : vector<2x15xf32>
    %1600 = arith.addf %1562, %1599 : vector<2x15xf32>
    %c41_743 = arith.constant 41 : index
    %c1_744 = arith.constant 1 : index
    %c0_745 = arith.constant 0 : index
    %c0_746 = arith.constant 0 : index
    %1601 = vector.load %arg4[%c41_743, %c1_744, %c0_745, %c0_746] : memref<50x3x2x15xf32, #tpu.memory_space<vmem>>, vector<1x1x2x15xf32>
    %1602 = vector.shape_cast %1601 : vector<1x1x2x15xf32> to vector<2x15xf32>
    %1603 = arith.mulf %1596, %1602 : vector<2x15xf32>
    %1604 = arith.addf %1566, %1603 : vector<2x15xf32>
    %c41_747 = arith.constant 41 : index
    %c2_748 = arith.constant 2 : index
    %c0_749 = arith.constant 0 : index
    %c0_750 = arith.constant 0 : index
    %1605 = vector.load %arg4[%c41_747, %c2_748, %c0_749, %c0_750] : memref<50x3x2x15xf32, #tpu.memory_space<vmem>>, vector<1x1x2x15xf32>
    %1606 = vector.shape_cast %1605 : vector<1x1x2x15xf32> to vector<2x15xf32>
    %1607 = arith.mulf %1596, %1606 : vector<2x15xf32>
    %1608 = arith.addf %1570, %1607 : vector<2x15xf32>
    %c84 = arith.constant 84 : index
    %c0_751 = arith.constant 0 : index
    %1609 = vector.load %arg7[%c84, %c0_751] : memref<100x60xf32, #tpu.memory_space<vmem>>, vector<2x60xf32>
    %1610 = vector.shape_cast %1594 : vector<2x15xf32> to vector<2x15x1xf32>
    %1611 = vector.broadcast %1610 : vector<2x15x1xf32> to vector<2x15x60xf32>
    %1612 = arith.mulf %1611, %10 : vector<2x15x60xf32>
    %cst_752 = arith.constant dense<0.000000e+00> : vector<2x60xf32>
    %1613 = vector.multi_reduction <add>, %1612, %cst_752 [1] : vector<2x15x60xf32> to vector<2x60xf32>
    %1614 = arith.addf %1609, %1613 : vector<2x60xf32>
    %1615 = arith.negf %1614 : vector<2x60xf32>
    %1616 = math.exp %1615 : vector<2x60xf32>
    %cst_753 = arith.constant 1.000000e+00 : f32
    %1617 = vector.broadcast %cst_753 : f32 to vector<2x60xf32>
    %1618 = arith.addf %1617, %1616 : vector<2x60xf32>
    %1619 = arith.divf %1617, %1618 : vector<2x60xf32>
    %1620 = vector.extract_strided_slice %1619 {offsets = [0, 0], sizes = [2, 15], strides = [1, 1]} : vector<2x60xf32> to vector<2x15xf32>
    %1621 = vector.extract_strided_slice %1619 {offsets = [0, 15], sizes = [2, 15], strides = [1, 1]} : vector<2x60xf32> to vector<2x15xf32>
    %1622 = vector.extract_strided_slice %1619 {offsets = [0, 30], sizes = [2, 15], strides = [1, 1]} : vector<2x60xf32> to vector<2x15xf32>
    %cst_754 = arith.constant 2.000000e+00 : f32
    %1623 = vector.broadcast %cst_754 : f32 to vector<2x15xf32>
    %1624 = arith.mulf %1623, %1622 : vector<2x15xf32>
    %cst_755 = arith.constant 1.000000e+00 : f32
    %1625 = vector.broadcast %cst_755 : f32 to vector<2x15xf32>
    %1626 = arith.subf %1624, %1625 : vector<2x15xf32>
    %1627 = vector.extract_strided_slice %1619 {offsets = [0, 45], sizes = [2, 15], strides = [1, 1]} : vector<2x60xf32> to vector<2x15xf32>
    %1628 = arith.mulf %1621, %1592 : vector<2x15xf32>
    %1629 = arith.mulf %1620, %1626 : vector<2x15xf32>
    %1630 = arith.addf %1628, %1629 : vector<2x15xf32>
    %1631 = math.tanh %1630 : vector<2x15xf32>
    %1632 = arith.mulf %1627, %1631 : vector<2x15xf32>
    %cst_756 = arith.constant 0.000000e+00 : f32
    %1633 = vector.broadcast %cst_756 : f32 to vector<2x15xf32>
    %1634 = arith.maximumf %1632, %1633 : vector<2x15xf32>
    %c42_757 = arith.constant 42 : index
    %c0_758 = arith.constant 0 : index
    %c0_759 = arith.constant 0 : index
    %c0_760 = arith.constant 0 : index
    %1635 = vector.load %arg4[%c42_757, %c0_758, %c0_759, %c0_760] : memref<50x3x2x15xf32, #tpu.memory_space<vmem>>, vector<1x1x2x15xf32>
    %1636 = vector.shape_cast %1635 : vector<1x1x2x15xf32> to vector<2x15xf32>
    %1637 = arith.mulf %1634, %1636 : vector<2x15xf32>
    %1638 = arith.addf %1600, %1637 : vector<2x15xf32>
    %c42_761 = arith.constant 42 : index
    %c1_762 = arith.constant 1 : index
    %c0_763 = arith.constant 0 : index
    %c0_764 = arith.constant 0 : index
    %1639 = vector.load %arg4[%c42_761, %c1_762, %c0_763, %c0_764] : memref<50x3x2x15xf32, #tpu.memory_space<vmem>>, vector<1x1x2x15xf32>
    %1640 = vector.shape_cast %1639 : vector<1x1x2x15xf32> to vector<2x15xf32>
    %1641 = arith.mulf %1634, %1640 : vector<2x15xf32>
    %1642 = arith.addf %1604, %1641 : vector<2x15xf32>
    %c42_765 = arith.constant 42 : index
    %c2_766 = arith.constant 2 : index
    %c0_767 = arith.constant 0 : index
    %c0_768 = arith.constant 0 : index
    %1643 = vector.load %arg4[%c42_765, %c2_766, %c0_767, %c0_768] : memref<50x3x2x15xf32, #tpu.memory_space<vmem>>, vector<1x1x2x15xf32>
    %1644 = vector.shape_cast %1643 : vector<1x1x2x15xf32> to vector<2x15xf32>
    %1645 = arith.mulf %1634, %1644 : vector<2x15xf32>
    %1646 = arith.addf %1608, %1645 : vector<2x15xf32>
    %c86 = arith.constant 86 : index
    %c0_769 = arith.constant 0 : index
    %1647 = vector.load %arg7[%c86, %c0_769] : memref<100x60xf32, #tpu.memory_space<vmem>>, vector<2x60xf32>
    %1648 = vector.shape_cast %1632 : vector<2x15xf32> to vector<2x15x1xf32>
    %1649 = vector.broadcast %1648 : vector<2x15x1xf32> to vector<2x15x60xf32>
    %1650 = arith.mulf %1649, %10 : vector<2x15x60xf32>
    %cst_770 = arith.constant dense<0.000000e+00> : vector<2x60xf32>
    %1651 = vector.multi_reduction <add>, %1650, %cst_770 [1] : vector<2x15x60xf32> to vector<2x60xf32>
    %1652 = arith.addf %1647, %1651 : vector<2x60xf32>
    %1653 = arith.negf %1652 : vector<2x60xf32>
    %1654 = math.exp %1653 : vector<2x60xf32>
    %cst_771 = arith.constant 1.000000e+00 : f32
    %1655 = vector.broadcast %cst_771 : f32 to vector<2x60xf32>
    %1656 = arith.addf %1655, %1654 : vector<2x60xf32>
    %1657 = arith.divf %1655, %1656 : vector<2x60xf32>
    %1658 = vector.extract_strided_slice %1657 {offsets = [0, 0], sizes = [2, 15], strides = [1, 1]} : vector<2x60xf32> to vector<2x15xf32>
    %1659 = vector.extract_strided_slice %1657 {offsets = [0, 15], sizes = [2, 15], strides = [1, 1]} : vector<2x60xf32> to vector<2x15xf32>
    %1660 = vector.extract_strided_slice %1657 {offsets = [0, 30], sizes = [2, 15], strides = [1, 1]} : vector<2x60xf32> to vector<2x15xf32>
    %cst_772 = arith.constant 2.000000e+00 : f32
    %1661 = vector.broadcast %cst_772 : f32 to vector<2x15xf32>
    %1662 = arith.mulf %1661, %1660 : vector<2x15xf32>
    %cst_773 = arith.constant 1.000000e+00 : f32
    %1663 = vector.broadcast %cst_773 : f32 to vector<2x15xf32>
    %1664 = arith.subf %1662, %1663 : vector<2x15xf32>
    %1665 = vector.extract_strided_slice %1657 {offsets = [0, 45], sizes = [2, 15], strides = [1, 1]} : vector<2x60xf32> to vector<2x15xf32>
    %1666 = arith.mulf %1659, %1630 : vector<2x15xf32>
    %1667 = arith.mulf %1658, %1664 : vector<2x15xf32>
    %1668 = arith.addf %1666, %1667 : vector<2x15xf32>
    %1669 = math.tanh %1668 : vector<2x15xf32>
    %1670 = arith.mulf %1665, %1669 : vector<2x15xf32>
    %cst_774 = arith.constant 0.000000e+00 : f32
    %1671 = vector.broadcast %cst_774 : f32 to vector<2x15xf32>
    %1672 = arith.maximumf %1670, %1671 : vector<2x15xf32>
    %c43 = arith.constant 43 : index
    %c0_775 = arith.constant 0 : index
    %c0_776 = arith.constant 0 : index
    %c0_777 = arith.constant 0 : index
    %1673 = vector.load %arg4[%c43, %c0_775, %c0_776, %c0_777] : memref<50x3x2x15xf32, #tpu.memory_space<vmem>>, vector<1x1x2x15xf32>
    %1674 = vector.shape_cast %1673 : vector<1x1x2x15xf32> to vector<2x15xf32>
    %1675 = arith.mulf %1672, %1674 : vector<2x15xf32>
    %1676 = arith.addf %1638, %1675 : vector<2x15xf32>
    %c43_778 = arith.constant 43 : index
    %c1_779 = arith.constant 1 : index
    %c0_780 = arith.constant 0 : index
    %c0_781 = arith.constant 0 : index
    %1677 = vector.load %arg4[%c43_778, %c1_779, %c0_780, %c0_781] : memref<50x3x2x15xf32, #tpu.memory_space<vmem>>, vector<1x1x2x15xf32>
    %1678 = vector.shape_cast %1677 : vector<1x1x2x15xf32> to vector<2x15xf32>
    %1679 = arith.mulf %1672, %1678 : vector<2x15xf32>
    %1680 = arith.addf %1642, %1679 : vector<2x15xf32>
    %c43_782 = arith.constant 43 : index
    %c2_783 = arith.constant 2 : index
    %c0_784 = arith.constant 0 : index
    %c0_785 = arith.constant 0 : index
    %1681 = vector.load %arg4[%c43_782, %c2_783, %c0_784, %c0_785] : memref<50x3x2x15xf32, #tpu.memory_space<vmem>>, vector<1x1x2x15xf32>
    %1682 = vector.shape_cast %1681 : vector<1x1x2x15xf32> to vector<2x15xf32>
    %1683 = arith.mulf %1672, %1682 : vector<2x15xf32>
    %1684 = arith.addf %1646, %1683 : vector<2x15xf32>
    %c88 = arith.constant 88 : index
    %c0_786 = arith.constant 0 : index
    %1685 = vector.load %arg7[%c88, %c0_786] : memref<100x60xf32, #tpu.memory_space<vmem>>, vector<2x60xf32>
    %1686 = vector.shape_cast %1670 : vector<2x15xf32> to vector<2x15x1xf32>
    %1687 = vector.broadcast %1686 : vector<2x15x1xf32> to vector<2x15x60xf32>
    %1688 = arith.mulf %1687, %10 : vector<2x15x60xf32>
    %cst_787 = arith.constant dense<0.000000e+00> : vector<2x60xf32>
    %1689 = vector.multi_reduction <add>, %1688, %cst_787 [1] : vector<2x15x60xf32> to vector<2x60xf32>
    %1690 = arith.addf %1685, %1689 : vector<2x60xf32>
    %1691 = arith.negf %1690 : vector<2x60xf32>
    %1692 = math.exp %1691 : vector<2x60xf32>
    %cst_788 = arith.constant 1.000000e+00 : f32
    %1693 = vector.broadcast %cst_788 : f32 to vector<2x60xf32>
    %1694 = arith.addf %1693, %1692 : vector<2x60xf32>
    %1695 = arith.divf %1693, %1694 : vector<2x60xf32>
    %1696 = vector.extract_strided_slice %1695 {offsets = [0, 0], sizes = [2, 15], strides = [1, 1]} : vector<2x60xf32> to vector<2x15xf32>
    %1697 = vector.extract_strided_slice %1695 {offsets = [0, 15], sizes = [2, 15], strides = [1, 1]} : vector<2x60xf32> to vector<2x15xf32>
    %1698 = vector.extract_strided_slice %1695 {offsets = [0, 30], sizes = [2, 15], strides = [1, 1]} : vector<2x60xf32> to vector<2x15xf32>
    %cst_789 = arith.constant 2.000000e+00 : f32
    %1699 = vector.broadcast %cst_789 : f32 to vector<2x15xf32>
    %1700 = arith.mulf %1699, %1698 : vector<2x15xf32>
    %cst_790 = arith.constant 1.000000e+00 : f32
    %1701 = vector.broadcast %cst_790 : f32 to vector<2x15xf32>
    %1702 = arith.subf %1700, %1701 : vector<2x15xf32>
    %1703 = vector.extract_strided_slice %1695 {offsets = [0, 45], sizes = [2, 15], strides = [1, 1]} : vector<2x60xf32> to vector<2x15xf32>
    %1704 = arith.mulf %1697, %1668 : vector<2x15xf32>
    %1705 = arith.mulf %1696, %1702 : vector<2x15xf32>
    %1706 = arith.addf %1704, %1705 : vector<2x15xf32>
    %1707 = math.tanh %1706 : vector<2x15xf32>
    %1708 = arith.mulf %1703, %1707 : vector<2x15xf32>
    %cst_791 = arith.constant 0.000000e+00 : f32
    %1709 = vector.broadcast %cst_791 : f32 to vector<2x15xf32>
    %1710 = arith.maximumf %1708, %1709 : vector<2x15xf32>
    %c44_792 = arith.constant 44 : index
    %c0_793 = arith.constant 0 : index
    %c0_794 = arith.constant 0 : index
    %c0_795 = arith.constant 0 : index
    %1711 = vector.load %arg4[%c44_792, %c0_793, %c0_794, %c0_795] : memref<50x3x2x15xf32, #tpu.memory_space<vmem>>, vector<1x1x2x15xf32>
    %1712 = vector.shape_cast %1711 : vector<1x1x2x15xf32> to vector<2x15xf32>
    %1713 = arith.mulf %1710, %1712 : vector<2x15xf32>
    %1714 = arith.addf %1676, %1713 : vector<2x15xf32>
    %c44_796 = arith.constant 44 : index
    %c1_797 = arith.constant 1 : index
    %c0_798 = arith.constant 0 : index
    %c0_799 = arith.constant 0 : index
    %1715 = vector.load %arg4[%c44_796, %c1_797, %c0_798, %c0_799] : memref<50x3x2x15xf32, #tpu.memory_space<vmem>>, vector<1x1x2x15xf32>
    %1716 = vector.shape_cast %1715 : vector<1x1x2x15xf32> to vector<2x15xf32>
    %1717 = arith.mulf %1710, %1716 : vector<2x15xf32>
    %1718 = arith.addf %1680, %1717 : vector<2x15xf32>
    %c44_800 = arith.constant 44 : index
    %c2_801 = arith.constant 2 : index
    %c0_802 = arith.constant 0 : index
    %c0_803 = arith.constant 0 : index
    %1719 = vector.load %arg4[%c44_800, %c2_801, %c0_802, %c0_803] : memref<50x3x2x15xf32, #tpu.memory_space<vmem>>, vector<1x1x2x15xf32>
    %1720 = vector.shape_cast %1719 : vector<1x1x2x15xf32> to vector<2x15xf32>
    %1721 = arith.mulf %1710, %1720 : vector<2x15xf32>
    %1722 = arith.addf %1684, %1721 : vector<2x15xf32>
    %c90 = arith.constant 90 : index
    %c0_804 = arith.constant 0 : index
    %1723 = vector.load %arg7[%c90, %c0_804] : memref<100x60xf32, #tpu.memory_space<vmem>>, vector<2x60xf32>
    %1724 = vector.shape_cast %1708 : vector<2x15xf32> to vector<2x15x1xf32>
    %1725 = vector.broadcast %1724 : vector<2x15x1xf32> to vector<2x15x60xf32>
    %1726 = arith.mulf %1725, %10 : vector<2x15x60xf32>
    %cst_805 = arith.constant dense<0.000000e+00> : vector<2x60xf32>
    %1727 = vector.multi_reduction <add>, %1726, %cst_805 [1] : vector<2x15x60xf32> to vector<2x60xf32>
    %1728 = arith.addf %1723, %1727 : vector<2x60xf32>
    %1729 = arith.negf %1728 : vector<2x60xf32>
    %1730 = math.exp %1729 : vector<2x60xf32>
    %cst_806 = arith.constant 1.000000e+00 : f32
    %1731 = vector.broadcast %cst_806 : f32 to vector<2x60xf32>
    %1732 = arith.addf %1731, %1730 : vector<2x60xf32>
    %1733 = arith.divf %1731, %1732 : vector<2x60xf32>
    %1734 = vector.extract_strided_slice %1733 {offsets = [0, 0], sizes = [2, 15], strides = [1, 1]} : vector<2x60xf32> to vector<2x15xf32>
    %1735 = vector.extract_strided_slice %1733 {offsets = [0, 15], sizes = [2, 15], strides = [1, 1]} : vector<2x60xf32> to vector<2x15xf32>
    %1736 = vector.extract_strided_slice %1733 {offsets = [0, 30], sizes = [2, 15], strides = [1, 1]} : vector<2x60xf32> to vector<2x15xf32>
    %cst_807 = arith.constant 2.000000e+00 : f32
    %1737 = vector.broadcast %cst_807 : f32 to vector<2x15xf32>
    %1738 = arith.mulf %1737, %1736 : vector<2x15xf32>
    %cst_808 = arith.constant 1.000000e+00 : f32
    %1739 = vector.broadcast %cst_808 : f32 to vector<2x15xf32>
    %1740 = arith.subf %1738, %1739 : vector<2x15xf32>
    %1741 = vector.extract_strided_slice %1733 {offsets = [0, 45], sizes = [2, 15], strides = [1, 1]} : vector<2x60xf32> to vector<2x15xf32>
    %1742 = arith.mulf %1735, %1706 : vector<2x15xf32>
    %1743 = arith.mulf %1734, %1740 : vector<2x15xf32>
    %1744 = arith.addf %1742, %1743 : vector<2x15xf32>
    %1745 = math.tanh %1744 : vector<2x15xf32>
    %1746 = arith.mulf %1741, %1745 : vector<2x15xf32>
    %cst_809 = arith.constant 0.000000e+00 : f32
    %1747 = vector.broadcast %cst_809 : f32 to vector<2x15xf32>
    %1748 = arith.maximumf %1746, %1747 : vector<2x15xf32>
    %c45 = arith.constant 45 : index
    %c0_810 = arith.constant 0 : index
    %c0_811 = arith.constant 0 : index
    %c0_812 = arith.constant 0 : index
    %1749 = vector.load %arg4[%c45, %c0_810, %c0_811, %c0_812] : memref<50x3x2x15xf32, #tpu.memory_space<vmem>>, vector<1x1x2x15xf32>
    %1750 = vector.shape_cast %1749 : vector<1x1x2x15xf32> to vector<2x15xf32>
    %1751 = arith.mulf %1748, %1750 : vector<2x15xf32>
    %1752 = arith.addf %1714, %1751 : vector<2x15xf32>
    %c45_813 = arith.constant 45 : index
    %c1_814 = arith.constant 1 : index
    %c0_815 = arith.constant 0 : index
    %c0_816 = arith.constant 0 : index
    %1753 = vector.load %arg4[%c45_813, %c1_814, %c0_815, %c0_816] : memref<50x3x2x15xf32, #tpu.memory_space<vmem>>, vector<1x1x2x15xf32>
    %1754 = vector.shape_cast %1753 : vector<1x1x2x15xf32> to vector<2x15xf32>
    %1755 = arith.mulf %1748, %1754 : vector<2x15xf32>
    %1756 = arith.addf %1718, %1755 : vector<2x15xf32>
    %c45_817 = arith.constant 45 : index
    %c2_818 = arith.constant 2 : index
    %c0_819 = arith.constant 0 : index
    %c0_820 = arith.constant 0 : index
    %1757 = vector.load %arg4[%c45_817, %c2_818, %c0_819, %c0_820] : memref<50x3x2x15xf32, #tpu.memory_space<vmem>>, vector<1x1x2x15xf32>
    %1758 = vector.shape_cast %1757 : vector<1x1x2x15xf32> to vector<2x15xf32>
    %1759 = arith.mulf %1748, %1758 : vector<2x15xf32>
    %1760 = arith.addf %1722, %1759 : vector<2x15xf32>
    %c92 = arith.constant 92 : index
    %c0_821 = arith.constant 0 : index
    %1761 = vector.load %arg7[%c92, %c0_821] : memref<100x60xf32, #tpu.memory_space<vmem>>, vector<2x60xf32>
    %1762 = vector.shape_cast %1746 : vector<2x15xf32> to vector<2x15x1xf32>
    %1763 = vector.broadcast %1762 : vector<2x15x1xf32> to vector<2x15x60xf32>
    %1764 = arith.mulf %1763, %10 : vector<2x15x60xf32>
    %cst_822 = arith.constant dense<0.000000e+00> : vector<2x60xf32>
    %1765 = vector.multi_reduction <add>, %1764, %cst_822 [1] : vector<2x15x60xf32> to vector<2x60xf32>
    %1766 = arith.addf %1761, %1765 : vector<2x60xf32>
    %1767 = arith.negf %1766 : vector<2x60xf32>
    %1768 = math.exp %1767 : vector<2x60xf32>
    %cst_823 = arith.constant 1.000000e+00 : f32
    %1769 = vector.broadcast %cst_823 : f32 to vector<2x60xf32>
    %1770 = arith.addf %1769, %1768 : vector<2x60xf32>
    %1771 = arith.divf %1769, %1770 : vector<2x60xf32>
    %1772 = vector.extract_strided_slice %1771 {offsets = [0, 0], sizes = [2, 15], strides = [1, 1]} : vector<2x60xf32> to vector<2x15xf32>
    %1773 = vector.extract_strided_slice %1771 {offsets = [0, 15], sizes = [2, 15], strides = [1, 1]} : vector<2x60xf32> to vector<2x15xf32>
    %1774 = vector.extract_strided_slice %1771 {offsets = [0, 30], sizes = [2, 15], strides = [1, 1]} : vector<2x60xf32> to vector<2x15xf32>
    %cst_824 = arith.constant 2.000000e+00 : f32
    %1775 = vector.broadcast %cst_824 : f32 to vector<2x15xf32>
    %1776 = arith.mulf %1775, %1774 : vector<2x15xf32>
    %cst_825 = arith.constant 1.000000e+00 : f32
    %1777 = vector.broadcast %cst_825 : f32 to vector<2x15xf32>
    %1778 = arith.subf %1776, %1777 : vector<2x15xf32>
    %1779 = vector.extract_strided_slice %1771 {offsets = [0, 45], sizes = [2, 15], strides = [1, 1]} : vector<2x60xf32> to vector<2x15xf32>
    %1780 = arith.mulf %1773, %1744 : vector<2x15xf32>
    %1781 = arith.mulf %1772, %1778 : vector<2x15xf32>
    %1782 = arith.addf %1780, %1781 : vector<2x15xf32>
    %1783 = math.tanh %1782 : vector<2x15xf32>
    %1784 = arith.mulf %1779, %1783 : vector<2x15xf32>
    %cst_826 = arith.constant 0.000000e+00 : f32
    %1785 = vector.broadcast %cst_826 : f32 to vector<2x15xf32>
    %1786 = arith.maximumf %1784, %1785 : vector<2x15xf32>
    %c46_827 = arith.constant 46 : index
    %c0_828 = arith.constant 0 : index
    %c0_829 = arith.constant 0 : index
    %c0_830 = arith.constant 0 : index
    %1787 = vector.load %arg4[%c46_827, %c0_828, %c0_829, %c0_830] : memref<50x3x2x15xf32, #tpu.memory_space<vmem>>, vector<1x1x2x15xf32>
    %1788 = vector.shape_cast %1787 : vector<1x1x2x15xf32> to vector<2x15xf32>
    %1789 = arith.mulf %1786, %1788 : vector<2x15xf32>
    %1790 = arith.addf %1752, %1789 : vector<2x15xf32>
    %c46_831 = arith.constant 46 : index
    %c1_832 = arith.constant 1 : index
    %c0_833 = arith.constant 0 : index
    %c0_834 = arith.constant 0 : index
    %1791 = vector.load %arg4[%c46_831, %c1_832, %c0_833, %c0_834] : memref<50x3x2x15xf32, #tpu.memory_space<vmem>>, vector<1x1x2x15xf32>
    %1792 = vector.shape_cast %1791 : vector<1x1x2x15xf32> to vector<2x15xf32>
    %1793 = arith.mulf %1786, %1792 : vector<2x15xf32>
    %1794 = arith.addf %1756, %1793 : vector<2x15xf32>
    %c46_835 = arith.constant 46 : index
    %c2_836 = arith.constant 2 : index
    %c0_837 = arith.constant 0 : index
    %c0_838 = arith.constant 0 : index
    %1795 = vector.load %arg4[%c46_835, %c2_836, %c0_837, %c0_838] : memref<50x3x2x15xf32, #tpu.memory_space<vmem>>, vector<1x1x2x15xf32>
    %1796 = vector.shape_cast %1795 : vector<1x1x2x15xf32> to vector<2x15xf32>
    %1797 = arith.mulf %1786, %1796 : vector<2x15xf32>
    %1798 = arith.addf %1760, %1797 : vector<2x15xf32>
    %c94 = arith.constant 94 : index
    %c0_839 = arith.constant 0 : index
    %1799 = vector.load %arg7[%c94, %c0_839] : memref<100x60xf32, #tpu.memory_space<vmem>>, vector<2x60xf32>
    %1800 = vector.shape_cast %1784 : vector<2x15xf32> to vector<2x15x1xf32>
    %1801 = vector.broadcast %1800 : vector<2x15x1xf32> to vector<2x15x60xf32>
    %1802 = arith.mulf %1801, %10 : vector<2x15x60xf32>
    %cst_840 = arith.constant dense<0.000000e+00> : vector<2x60xf32>
    %1803 = vector.multi_reduction <add>, %1802, %cst_840 [1] : vector<2x15x60xf32> to vector<2x60xf32>
    %1804 = arith.addf %1799, %1803 : vector<2x60xf32>
    %1805 = arith.negf %1804 : vector<2x60xf32>
    %1806 = math.exp %1805 : vector<2x60xf32>
    %cst_841 = arith.constant 1.000000e+00 : f32
    %1807 = vector.broadcast %cst_841 : f32 to vector<2x60xf32>
    %1808 = arith.addf %1807, %1806 : vector<2x60xf32>
    %1809 = arith.divf %1807, %1808 : vector<2x60xf32>
    %1810 = vector.extract_strided_slice %1809 {offsets = [0, 0], sizes = [2, 15], strides = [1, 1]} : vector<2x60xf32> to vector<2x15xf32>
    %1811 = vector.extract_strided_slice %1809 {offsets = [0, 15], sizes = [2, 15], strides = [1, 1]} : vector<2x60xf32> to vector<2x15xf32>
    %1812 = vector.extract_strided_slice %1809 {offsets = [0, 30], sizes = [2, 15], strides = [1, 1]} : vector<2x60xf32> to vector<2x15xf32>
    %cst_842 = arith.constant 2.000000e+00 : f32
    %1813 = vector.broadcast %cst_842 : f32 to vector<2x15xf32>
    %1814 = arith.mulf %1813, %1812 : vector<2x15xf32>
    %cst_843 = arith.constant 1.000000e+00 : f32
    %1815 = vector.broadcast %cst_843 : f32 to vector<2x15xf32>
    %1816 = arith.subf %1814, %1815 : vector<2x15xf32>
    %1817 = vector.extract_strided_slice %1809 {offsets = [0, 45], sizes = [2, 15], strides = [1, 1]} : vector<2x60xf32> to vector<2x15xf32>
    %1818 = arith.mulf %1811, %1782 : vector<2x15xf32>
    %1819 = arith.mulf %1810, %1816 : vector<2x15xf32>
    %1820 = arith.addf %1818, %1819 : vector<2x15xf32>
    %1821 = math.tanh %1820 : vector<2x15xf32>
    %1822 = arith.mulf %1817, %1821 : vector<2x15xf32>
    %cst_844 = arith.constant 0.000000e+00 : f32
    %1823 = vector.broadcast %cst_844 : f32 to vector<2x15xf32>
    %1824 = arith.maximumf %1822, %1823 : vector<2x15xf32>
    %c47 = arith.constant 47 : index
    %c0_845 = arith.constant 0 : index
    %c0_846 = arith.constant 0 : index
    %c0_847 = arith.constant 0 : index
    %1825 = vector.load %arg4[%c47, %c0_845, %c0_846, %c0_847] : memref<50x3x2x15xf32, #tpu.memory_space<vmem>>, vector<1x1x2x15xf32>
    %1826 = vector.shape_cast %1825 : vector<1x1x2x15xf32> to vector<2x15xf32>
    %1827 = arith.mulf %1824, %1826 : vector<2x15xf32>
    %1828 = arith.addf %1790, %1827 : vector<2x15xf32>
    %c47_848 = arith.constant 47 : index
    %c1_849 = arith.constant 1 : index
    %c0_850 = arith.constant 0 : index
    %c0_851 = arith.constant 0 : index
    %1829 = vector.load %arg4[%c47_848, %c1_849, %c0_850, %c0_851] : memref<50x3x2x15xf32, #tpu.memory_space<vmem>>, vector<1x1x2x15xf32>
    %1830 = vector.shape_cast %1829 : vector<1x1x2x15xf32> to vector<2x15xf32>
    %1831 = arith.mulf %1824, %1830 : vector<2x15xf32>
    %1832 = arith.addf %1794, %1831 : vector<2x15xf32>
    %c47_852 = arith.constant 47 : index
    %c2_853 = arith.constant 2 : index
    %c0_854 = arith.constant 0 : index
    %c0_855 = arith.constant 0 : index
    %1833 = vector.load %arg4[%c47_852, %c2_853, %c0_854, %c0_855] : memref<50x3x2x15xf32, #tpu.memory_space<vmem>>, vector<1x1x2x15xf32>
    %1834 = vector.shape_cast %1833 : vector<1x1x2x15xf32> to vector<2x15xf32>
    %1835 = arith.mulf %1824, %1834 : vector<2x15xf32>
    %1836 = arith.addf %1798, %1835 : vector<2x15xf32>
    %c96 = arith.constant 96 : index
    %c0_856 = arith.constant 0 : index
    %1837 = vector.load %arg7[%c96, %c0_856] : memref<100x60xf32, #tpu.memory_space<vmem>>, vector<2x60xf32>
    %1838 = vector.shape_cast %1822 : vector<2x15xf32> to vector<2x15x1xf32>
    %1839 = vector.broadcast %1838 : vector<2x15x1xf32> to vector<2x15x60xf32>
    %1840 = arith.mulf %1839, %10 : vector<2x15x60xf32>
    %cst_857 = arith.constant dense<0.000000e+00> : vector<2x60xf32>
    %1841 = vector.multi_reduction <add>, %1840, %cst_857 [1] : vector<2x15x60xf32> to vector<2x60xf32>
    %1842 = arith.addf %1837, %1841 : vector<2x60xf32>
    %1843 = arith.negf %1842 : vector<2x60xf32>
    %1844 = math.exp %1843 : vector<2x60xf32>
    %cst_858 = arith.constant 1.000000e+00 : f32
    %1845 = vector.broadcast %cst_858 : f32 to vector<2x60xf32>
    %1846 = arith.addf %1845, %1844 : vector<2x60xf32>
    %1847 = arith.divf %1845, %1846 : vector<2x60xf32>
    %1848 = vector.extract_strided_slice %1847 {offsets = [0, 0], sizes = [2, 15], strides = [1, 1]} : vector<2x60xf32> to vector<2x15xf32>
    %1849 = vector.extract_strided_slice %1847 {offsets = [0, 15], sizes = [2, 15], strides = [1, 1]} : vector<2x60xf32> to vector<2x15xf32>
    %1850 = vector.extract_strided_slice %1847 {offsets = [0, 30], sizes = [2, 15], strides = [1, 1]} : vector<2x60xf32> to vector<2x15xf32>
    %cst_859 = arith.constant 2.000000e+00 : f32
    %1851 = vector.broadcast %cst_859 : f32 to vector<2x15xf32>
    %1852 = arith.mulf %1851, %1850 : vector<2x15xf32>
    %cst_860 = arith.constant 1.000000e+00 : f32
    %1853 = vector.broadcast %cst_860 : f32 to vector<2x15xf32>
    %1854 = arith.subf %1852, %1853 : vector<2x15xf32>
    %1855 = vector.extract_strided_slice %1847 {offsets = [0, 45], sizes = [2, 15], strides = [1, 1]} : vector<2x60xf32> to vector<2x15xf32>
    %1856 = arith.mulf %1849, %1820 : vector<2x15xf32>
    %1857 = arith.mulf %1848, %1854 : vector<2x15xf32>
    %1858 = arith.addf %1856, %1857 : vector<2x15xf32>
    %1859 = math.tanh %1858 : vector<2x15xf32>
    %1860 = arith.mulf %1855, %1859 : vector<2x15xf32>
    %cst_861 = arith.constant 0.000000e+00 : f32
    %1861 = vector.broadcast %cst_861 : f32 to vector<2x15xf32>
    %1862 = arith.maximumf %1860, %1861 : vector<2x15xf32>
    %c48_862 = arith.constant 48 : index
    %c0_863 = arith.constant 0 : index
    %c0_864 = arith.constant 0 : index
    %c0_865 = arith.constant 0 : index
    %1863 = vector.load %arg4[%c48_862, %c0_863, %c0_864, %c0_865] : memref<50x3x2x15xf32, #tpu.memory_space<vmem>>, vector<1x1x2x15xf32>
    %1864 = vector.shape_cast %1863 : vector<1x1x2x15xf32> to vector<2x15xf32>
    %1865 = arith.mulf %1862, %1864 : vector<2x15xf32>
    %1866 = arith.addf %1828, %1865 : vector<2x15xf32>
    %c48_866 = arith.constant 48 : index
    %c1_867 = arith.constant 1 : index
    %c0_868 = arith.constant 0 : index
    %c0_869 = arith.constant 0 : index
    %1867 = vector.load %arg4[%c48_866, %c1_867, %c0_868, %c0_869] : memref<50x3x2x15xf32, #tpu.memory_space<vmem>>, vector<1x1x2x15xf32>
    %1868 = vector.shape_cast %1867 : vector<1x1x2x15xf32> to vector<2x15xf32>
    %1869 = arith.mulf %1862, %1868 : vector<2x15xf32>
    %1870 = arith.addf %1832, %1869 : vector<2x15xf32>
    %c48_870 = arith.constant 48 : index
    %c2_871 = arith.constant 2 : index
    %c0_872 = arith.constant 0 : index
    %c0_873 = arith.constant 0 : index
    %1871 = vector.load %arg4[%c48_870, %c2_871, %c0_872, %c0_873] : memref<50x3x2x15xf32, #tpu.memory_space<vmem>>, vector<1x1x2x15xf32>
    %1872 = vector.shape_cast %1871 : vector<1x1x2x15xf32> to vector<2x15xf32>
    %1873 = arith.mulf %1862, %1872 : vector<2x15xf32>
    %1874 = arith.addf %1836, %1873 : vector<2x15xf32>
    %c98 = arith.constant 98 : index
    %c0_874 = arith.constant 0 : index
    %1875 = vector.load %arg7[%c98, %c0_874] : memref<100x60xf32, #tpu.memory_space<vmem>>, vector<2x60xf32>
    %1876 = vector.shape_cast %1860 : vector<2x15xf32> to vector<2x15x1xf32>
    %1877 = vector.broadcast %1876 : vector<2x15x1xf32> to vector<2x15x60xf32>
    %1878 = arith.mulf %1877, %10 : vector<2x15x60xf32>
    %cst_875 = arith.constant dense<0.000000e+00> : vector<2x60xf32>
    %1879 = vector.multi_reduction <add>, %1878, %cst_875 [1] : vector<2x15x60xf32> to vector<2x60xf32>
    %1880 = arith.addf %1875, %1879 : vector<2x60xf32>
    %1881 = arith.negf %1880 : vector<2x60xf32>
    %1882 = math.exp %1881 : vector<2x60xf32>
    %cst_876 = arith.constant 1.000000e+00 : f32
    %1883 = vector.broadcast %cst_876 : f32 to vector<2x60xf32>
    %1884 = arith.addf %1883, %1882 : vector<2x60xf32>
    %1885 = arith.divf %1883, %1884 : vector<2x60xf32>
    %1886 = vector.extract_strided_slice %1885 {offsets = [0, 0], sizes = [2, 15], strides = [1, 1]} : vector<2x60xf32> to vector<2x15xf32>
    %1887 = vector.extract_strided_slice %1885 {offsets = [0, 15], sizes = [2, 15], strides = [1, 1]} : vector<2x60xf32> to vector<2x15xf32>
    %1888 = vector.extract_strided_slice %1885 {offsets = [0, 30], sizes = [2, 15], strides = [1, 1]} : vector<2x60xf32> to vector<2x15xf32>
    %cst_877 = arith.constant 2.000000e+00 : f32
    %1889 = vector.broadcast %cst_877 : f32 to vector<2x15xf32>
    %1890 = arith.mulf %1889, %1888 : vector<2x15xf32>
    %cst_878 = arith.constant 1.000000e+00 : f32
    %1891 = vector.broadcast %cst_878 : f32 to vector<2x15xf32>
    %1892 = arith.subf %1890, %1891 : vector<2x15xf32>
    %1893 = vector.extract_strided_slice %1885 {offsets = [0, 45], sizes = [2, 15], strides = [1, 1]} : vector<2x60xf32> to vector<2x15xf32>
    %1894 = arith.mulf %1887, %1858 : vector<2x15xf32>
    %1895 = arith.mulf %1886, %1892 : vector<2x15xf32>
    %1896 = arith.addf %1894, %1895 : vector<2x15xf32>
    %1897 = math.tanh %1896 : vector<2x15xf32>
    %1898 = arith.mulf %1893, %1897 : vector<2x15xf32>
    %cst_879 = arith.constant 0.000000e+00 : f32
    %1899 = vector.broadcast %cst_879 : f32 to vector<2x15xf32>
    %1900 = arith.maximumf %1898, %1899 : vector<2x15xf32>
    %c49 = arith.constant 49 : index
    %c0_880 = arith.constant 0 : index
    %c0_881 = arith.constant 0 : index
    %c0_882 = arith.constant 0 : index
    %1901 = vector.load %arg4[%c49, %c0_880, %c0_881, %c0_882] : memref<50x3x2x15xf32, #tpu.memory_space<vmem>>, vector<1x1x2x15xf32>
    %1902 = vector.shape_cast %1901 : vector<1x1x2x15xf32> to vector<2x15xf32>
    %1903 = arith.mulf %1900, %1902 : vector<2x15xf32>
    %1904 = arith.addf %1866, %1903 : vector<2x15xf32>
    %c49_883 = arith.constant 49 : index
    %c1_884 = arith.constant 1 : index
    %c0_885 = arith.constant 0 : index
    %c0_886 = arith.constant 0 : index
    %1905 = vector.load %arg4[%c49_883, %c1_884, %c0_885, %c0_886] : memref<50x3x2x15xf32, #tpu.memory_space<vmem>>, vector<1x1x2x15xf32>
    %1906 = vector.shape_cast %1905 : vector<1x1x2x15xf32> to vector<2x15xf32>
    %1907 = arith.mulf %1900, %1906 : vector<2x15xf32>
    %1908 = arith.addf %1870, %1907 : vector<2x15xf32>
    %c49_887 = arith.constant 49 : index
    %c2_888 = arith.constant 2 : index
    %c0_889 = arith.constant 0 : index
    %c0_890 = arith.constant 0 : index
    %1909 = vector.load %arg4[%c49_887, %c2_888, %c0_889, %c0_890] : memref<50x3x2x15xf32, #tpu.memory_space<vmem>>, vector<1x1x2x15xf32>
    %1910 = vector.shape_cast %1909 : vector<1x1x2x15xf32> to vector<2x15xf32>
    %1911 = arith.mulf %1900, %1910 : vector<2x15xf32>
    %1912 = arith.addf %1874, %1911 : vector<2x15xf32>
    %1913 = vector.shape_cast %954 : vector<2x15xf32> to vector<1x2x15xf32>
    %cst_891 = arith.constant dense<0.000000e+00> : vector<1xf32>
    %1914 = vector.multi_reduction <add>, %1913, %cst_891 [1, 2] : vector<1x2x15xf32> to vector<1xf32>
    %1915 = vector.shape_cast %1914 : vector<1xf32> to vector<1x1x1xf32>
    %1916 = vector.extract %1915[0, 0, 0] : f32 from vector<1x1x1xf32>
    %1917 = vector.broadcast %1916 : f32 to vector<1x1xf32>
    %1918 = vector.shape_cast %958 : vector<2x15xf32> to vector<1x2x15xf32>
    %cst_892 = arith.constant dense<0.000000e+00> : vector<1xf32>
    %1919 = vector.multi_reduction <add>, %1918, %cst_892 [1, 2] : vector<1x2x15xf32> to vector<1xf32>
    %1920 = vector.shape_cast %1919 : vector<1xf32> to vector<1x1x1xf32>
    %1921 = vector.extract %1920[0, 0, 0] : f32 from vector<1x1x1xf32>
    %1922 = vector.broadcast %1921 : f32 to vector<1x1xf32>
    %1923 = vector.shape_cast %962 : vector<2x15xf32> to vector<1x2x15xf32>
    %cst_893 = arith.constant dense<0.000000e+00> : vector<1xf32>
    %1924 = vector.multi_reduction <add>, %1923, %cst_893 [1, 2] : vector<1x2x15xf32> to vector<1xf32>
    %1925 = vector.shape_cast %1924 : vector<1xf32> to vector<1x1x1xf32>
    %1926 = vector.extract %1925[0, 0, 0] : f32 from vector<1x1x1xf32>
    %1927 = vector.broadcast %1926 : f32 to vector<1x1xf32>
    %1928 = tpu.concatenate %1917, %1922, %1927 in 1 : vector<1x1xf32>, vector<1x1xf32>, vector<1x1xf32> -> vector<1x3xf32>
    %1929 = vector.shape_cast %1904 : vector<2x15xf32> to vector<1x2x15xf32>
    %cst_894 = arith.constant dense<0.000000e+00> : vector<1xf32>
    %1930 = vector.multi_reduction <add>, %1929, %cst_894 [1, 2] : vector<1x2x15xf32> to vector<1xf32>
    %1931 = vector.shape_cast %1930 : vector<1xf32> to vector<1x1x1xf32>
    %1932 = vector.extract %1931[0, 0, 0] : f32 from vector<1x1x1xf32>
    %1933 = vector.broadcast %1932 : f32 to vector<1x1xf32>
    %1934 = vector.shape_cast %1908 : vector<2x15xf32> to vector<1x2x15xf32>
    %cst_895 = arith.constant dense<0.000000e+00> : vector<1xf32>
    %1935 = vector.multi_reduction <add>, %1934, %cst_895 [1, 2] : vector<1x2x15xf32> to vector<1xf32>
    %1936 = vector.shape_cast %1935 : vector<1xf32> to vector<1x1x1xf32>
    %1937 = vector.extract %1936[0, 0, 0] : f32 from vector<1x1x1xf32>
    %1938 = vector.broadcast %1937 : f32 to vector<1x1xf32>
    %1939 = vector.shape_cast %1912 : vector<2x15xf32> to vector<1x2x15xf32>
    %cst_896 = arith.constant dense<0.000000e+00> : vector<1xf32>
    %1940 = vector.multi_reduction <add>, %1939, %cst_896 [1, 2] : vector<1x2x15xf32> to vector<1xf32>
    %1941 = vector.shape_cast %1940 : vector<1xf32> to vector<1x1x1xf32>
    %1942 = vector.extract %1941[0, 0, 0] : f32 from vector<1x1x1xf32>
    %1943 = vector.broadcast %1942 : f32 to vector<1x1xf32>
    %1944 = tpu.concatenate %1933, %1938, %1943 in 1 : vector<1x1xf32>, vector<1x1xf32>, vector<1x1xf32> -> vector<1x3xf32>
    %1945 = tpu.concatenate %1928, %1944 in 0 : vector<1x3xf32>, vector<1x3xf32> -> vector<2x3xf32>
    %c0_897 = arith.constant 0 : index
    %c0_898 = arith.constant 0 : index
    %1946 = vector.load %arg5[%c0_897, %c0_898] : memref<1x3xf32, #tpu.memory_space<vmem>>, vector<1x3xf32>
    %1947 = vector.broadcast %1946 : vector<1x3xf32> to vector<2x3xf32>
    %1948 = arith.addf %1945, %1947 : vector<2x3xf32>
    %c0_899 = arith.constant 0 : index
    %c0_900 = arith.constant 0 : index
    %1949 = vector.load %arg6[%c0_899, %c0_900] : memref<2x3xf32, #tpu.memory_space<vmem>>, vector<2x3xf32>
    tpu.vector_store %arg6[%c0_899, %c0_900], %1948 {strides = array<i32>} : memref<2x3xf32, #tpu.memory_space<vmem>>, vector<2x3xf32>,
    return
  }
}

</mosaic_0001>

<llo_original>
// kernel: lstm_forward.1
$region0: #{lstm_forward.1}
  #allocation0 [shape = 'u32[]', space=smem, size = 0x4, offset = 0x4, fixed_abs, tag = 'smem constant byte address 0x4 - core index']
  #allocation1 [shape = 'u32[144,128]{1,0:T(1,128)}', space=vmem, size = 0x12000, scoped, tag = 'internal scratch']
  #allocation2 [shape = 'f32[100,60]{1,0:T(8,128)}', space=vmem, size = 0xd000, scoped, tag = 'scratch operand']
  %s0 = inlined_call_operand.vmem [shape: f32[100,26], index: 0, kind: input, shape index: {}]
  %s1 = inlined_call_operand.vmem [shape: f32[26,60], index: 1, kind: input, shape index: {}]
  %s2 = inlined_call_operand.vmem [shape: f32[15,60], index: 2, kind: input, shape index: {}]
  %s3 = inlined_call_operand.vmem [shape: f32[1,60], index: 3, kind: input, shape index: {}]
  %s4 = inlined_call_operand.vmem [shape: f32[50,3,2,15], index: 4, kind: input, shape index: {}]
  %s5 = inlined_call_operand.vmem [shape: f32[1,3], index: 5, kind: input, shape index: {}]
  %s6 = inlined_call_operand.hbm [shape: f32[2,3], index: 6, kind: output, shape index: {}]
  %s7 = sld [smem:[#allocation0]]
  $region34: #{lstm_forward.1} parent=0
    _
  %s9 = ssub.s32 1, %s7
  %s10 = scalar_select 0, %s9, %s7
  $region1: #{lstm_forward.1} parent=0
    #allocation3 [shape = 'u8[1024]{0}', space=vmem, size = 0x400, scoped, tag = 'output window, operand 0, single buffered']
    #allocation4 [shape = 's32[1]{0}', space=sflag, size = 0x4, scoped, tag = 'scoped memory for lstm_forward.1']
    %11 = vsyncpa [#allocation4], 0
    // Predicated region
    $region2: #{lstm_forward.1} parent=1 // pred_check
      _
    $region3: #{lstm_forward.1} parent=1 // pred_check_branch
      %13 = sbr.rel (0) target = $region5
    $region4: #{lstm_forward.1} parent=1 // pred_region
      _
    $region5: #{lstm_forward.1} parent=1 // pred_fallthru
      _
    // Predicated region
    $region6: #{lstm_forward.1} parent=1 // pred_check
      _
    $region7: #{lstm_forward.1} parent=1 // pred_check_branch
      %15 = sbr.rel (0) target = $region9
    $region8: #{lstm_forward.1} parent=1 // pred_region
      _
    $region9: #{lstm_forward.1} parent=1 // pred_fallthru
      _
    // Predicated region
    $region10: #{lstm_forward.1} parent=1 // pred_check
      _
    $region11: #{lstm_forward.1} parent=1 // pred_check_branch
      %17 = sbr.rel (0) target = $region13
    $region12: #{lstm_forward.1} parent=1 // pred_region
      _
    $region13: #{lstm_forward.1} parent=1 // pred_fallthru
      _
    // Predicated region
    $region14: #{lstm_forward.1} parent=1 // pred_check
      _
    $region15: #{lstm_forward.1} parent=1 // pred_check_branch
      %19 = sbr.rel (0) target = $region17
    $region16: #{lstm_forward.1} parent=1 // pred_region
      _
    $region17: #{lstm_forward.1} parent=1 // pred_fallthru
      _
    // Predicated region
    $region18: #{lstm_forward.1} parent=1 // pred_check
      _
    $region19: #{lstm_forward.1} parent=1 // pred_check_branch
      %21 = sbr.rel (0) target = $region21
    $region20: #{lstm_forward.1} parent=1 // pred_region
      _
    $region21: #{lstm_forward.1} parent=1 // pred_fallthru
      _
    // Predicated region
    $region22: #{lstm_forward.1} parent=1 // pred_check
      _
    $region23: #{lstm_forward.1} parent=1 // pred_check_branch
      %23 = sbr.rel (0) target = $region25
    $region24: #{lstm_forward.1} parent=1 // pred_region
      _
    $region25: #{lstm_forward.1} parent=1 // pred_fallthru
      _
    %v24 = vld [vmem:[%s0] sm:$0xff]
    %v25 = vld [vmem:[%s0 + $0x8] sm:$0xff]
    %v26 = vld [vmem:[%s0 + $0x10] sm:$0xff]
    %v27 = vld [vmem:[%s0 + $0x18] sm:$0xff]
    %v28 = vld [vmem:[%s0 + $0x20] sm:$0xff]
    %v29 = vld [vmem:[%s0 + $0x28] sm:$0xff]
    %v30 = vld [vmem:[%s0 + $0x30] sm:$0xff]
    %v31 = vld [vmem:[%s0 + $0x38] sm:$0xff]
    %v32 = vld [vmem:[%s0 + $0x40] sm:$0xff]
    %v33 = vld [vmem:[%s0 + $0x48] sm:$0xff]
    %v34 = vld [vmem:[%s0 + $0x50] sm:$0xff]
    %v35 = vld [vmem:[%s0 + $0x58] sm:$0xff]
    %v36 = vld [vmem:[%s0 + $0x60] sm:$0xf]
    %v37 = vld [vmem:[%s1] sm:$0xff]
    %v38 = vld [vmem:[%s1 + $0x8] sm:$0xff]
    %v39 = vld [vmem:[%s1 + $0x10] sm:$0xff]
    %v40 = vld [vmem:[%s1 + $0x18] sm:$0x3]
    %v41 = vld [vmem:[%s3] sm:$0x1]
    %v43 = vlaneseq
    %v44 = vshrl.u32 %v43, 7
    %v45 = vsub.s32 0, %v44
    %v46 = vrot.slane %v41, %v45
    %vm48 = vcmask 211968
    %v50 = vsel %vm48, %v24, 0
    %v53 = vsel %vm48, %v25, 0
    %v56 = vsel %vm48, %v26, 0
    %v59 = vsel %vm48, %v27, 0
    %v62 = vsel %vm48, %v28, 0
    %v65 = vsel %vm48, %v29, 0
    %v68 = vsel %vm48, %v30, 0
    %v71 = vsel %vm48, %v31, 0
    %v74 = vsel %vm48, %v32, 0
    %v77 = vsel %vm48, %v33, 0
    %v80 = vsel %vm48, %v34, 0
    %v83 = vsel %vm48, %v35, 0
    %v86 = vsel %vm48, %v36, 0
    %vm88 = vcmask 1041408
    %v90 = vsel %vm88, %v40, 0
    %92 = vmatprep.subr.mxu0 0.0
    %93 = vmatpush1.msra.mxu0 %v37
    %94 = vmatprep.subr.mxu0 0.0
    %95 = vmatpush1.msra.mxu0 %v38
    %96 = vmatprep.subr.mxu0 0.0
    %97 = vmatpush1.msra.mxu0 %v39
    %98 = vmatprep.subr.mxu0 0.0
    %99 = vmatpush1.msra.mxu0 %v90
    %100 = vmatprep.subr.mxu0 0.0
    %101 = vmatpush1.msra.mxu0 0.0
    %102 = vmatprep.subr.mxu0 0.0
    %103 = vmatpush1.msra.mxu0 0.0
    %104 = vmatprep.subr.mxu0 0.0
    %105 = vmatpush1.msra.mxu0 0.0
    %106 = vmatprep.subr.mxu0 0.0
    %107 = vmatpush1.msra.mxu0 0.0
    %108 = vmatprep.subr.mxu0 0.0
    %109 = vmatpush1.msra.mxu0 0.0
    %110 = vmatprep.subr.mxu0 0.0
    %111 = vmatpush1.msra.mxu0 0.0
    %112 = vmatprep.subr.mxu0 0.0
    %113 = vmatpush1.msra.mxu0 0.0
    %114 = vmatprep.subr.mxu0 0.0
    %115 = vmatpush1.msra.mxu0 0.0
    %116 = vmatprep.subr.mxu0 0.0
    %117 = vmatpush1.msra.mxu0 0.0
    %118 = vmatprep.subr.mxu0 0.0
    %119 = vmatpush1.msra.mxu0 0.0
    %120 = vmatprep.subr.mxu0 0.0
    %121 = vmatpush1.msra.mxu0 0.0
    %122 = vmatprep.subr.mxu0 0.0
    %123 = vmatpush1.msra.mxu0 0.0
    %124 = vmatprep.subr.mxu0 0.0
    %125 = vmatpush1.msra.mxu0 0.0
    %126 = vmatprep.subr.mxu0 0.0
    %127 = vmatpush1.msra.mxu0 0.0
    %128 = vmatprep.subr.mxu0 0.0
    %129 = vmatpush1.msra.mxu0 0.0
    %130 = vmatprep.subr.mxu0 0.0
    %131 = vmatpush1.msra.mxu0 0.0
    %132 = vmatprep.subr.mxu0 0.0
    %133 = vmatpush1.msra.mxu0 0.0
    %134 = vmatprep.subr.mxu0 0.0
    %135 = vmatpush1.msra.mxu0 0.0
    %136 = vmatprep.subr.mxu0 0.0
    %137 = vmatpush1.msra.mxu0 0.0
    %138 = vmatprep.subr.mxu0 0.0
    %139 = vmatpush1.msra.mxu0 0.0
    %140 = vmatprep.subr.mxu0 0.0
    %141 = vmatpush1.msra.mxu0 0.0
    %142 = vmatprep.subr.mxu0 0.0
    %143 = vmatpush1.msra.mxu0 0.0
    %144 = vmatprep.subr.mxu0 0.0
    %145 = vmatpush1.msra.mxu0 0.0
    %146 = vmatprep.subr.mxu0 0.0
    %147 = vmatpush1.msra.mxu0 0.0
    %148 = vmatprep.subr.mxu0 0.0
    %149 = vmatpush1.msra.mxu0 0.0
    %150 = vmatprep.subr.mxu0 0.0
    %151 = vmatpush1.msra.mxu0 0.0
    %152 = vmatprep.subr.mxu0 0.0
    %153 = vmatpush1.msra.mxu0 0.0
    %154 = vmatprep.subr.mxu0 0.0
    %155 = vmatpush1.msra.mxu0 0.0
    %156 = vmatprep.mubr.f32.mxu0 0.0
    %157 = vmatmul.mubr.f32.gmra.mrb[0].mxu0 %v50
    %v158 = vpop.f32.mrb[0].mxu0
    %v159 = vadd.f32 %v46, %v158
    %v160 = vpop.f32.mrb[0].mxu0
    %161 = vmatprep.mubr.f32.mxu0 0.0
    %162 = vmatmul.mubr.f32.gmra.mrb[0].mxu0 %v53
    %v163 = vpop.f32.mrb[0].mxu0
    %v164 = vadd.f32 %v46, %v163
    %v165 = vpop.f32.mrb[0].mxu0
    %166 = vmatprep.mubr.f32.mxu0 0.0
    %167 = vmatmul.mubr.f32.gmra.mrb[0].mxu0 %v56
    %v168 = vpop.f32.mrb[0].mxu0
    %v169 = vadd.f32 %v46, %v168
    %v170 = vpop.f32.mrb[0].mxu0
    %171 = vmatprep.mubr.f32.mxu0 0.0
    %172 = vmatmul.mubr.f32.gmra.mrb[0].mxu0 %v59
    %v173 = vpop.f32.mrb[0].mxu0
    %v174 = vadd.f32 %v46, %v173
    %v175 = vpop.f32.mrb[0].mxu0
    %176 = vmatprep.mubr.f32.mxu0 0.0
    %177 = vmatmul.mubr.f32.gmra.mrb[0].mxu0 %v62
    %v178 = vpop.f32.mrb[0].mxu0
    %v179 = vadd.f32 %v46, %v178
    %v180 = vpop.f32.mrb[0].mxu0
    %181 = vmatprep.mubr.f32.mxu0 0.0
    %182 = vmatmul.mubr.f32.gmra.mrb[0].mxu0 %v65
    %v183 = vpop.f32.mrb[0].mxu0
    %v184 = vadd.f32 %v46, %v183
    %v185 = vpop.f32.mrb[0].mxu0
    %186 = vmatprep.mubr.f32.mxu0 0.0
    %187 = vmatmul.mubr.f32.gmra.mrb[0].mxu0 %v68
    %v188 = vpop.f32.mrb[0].mxu0
    %v189 = vadd.f32 %v46, %v188
    %v190 = vpop.f32.mrb[0].mxu0
    %191 = vmatprep.mubr.f32.mxu0 0.0
    %192 = vmatmul.mubr.f32.gmra.mrb[0].mxu0 %v71
    %v193 = vpop.f32.mrb[0].mxu0
    %v194 = vadd.f32 %v46, %v193
    %v195 = vpop.f32.mrb[0].mxu0
    %196 = vmatprep.mubr.f32.mxu0 0.0
    %197 = vmatmul.mubr.f32.gmra.mrb[0].mxu0 %v74
    %v198 = vpop.f32.mrb[0].mxu0
    %v199 = vadd.f32 %v46, %v198
    %v200 = vpop.f32.mrb[0].mxu0
    %201 = vmatprep.mubr.f32.mxu0 0.0
    %202 = vmatmul.mubr.f32.gmra.mrb[0].mxu0 %v77
    %v203 = vpop.f32.mrb[0].mxu0
    %v204 = vadd.f32 %v46, %v203
    %v205 = vpop.f32.mrb[0].mxu0
    %206 = vmatprep.mubr.f32.mxu0 0.0
    %207 = vmatmul.mubr.f32.gmra.mrb[0].mxu0 %v80
    %v208 = vpop.f32.mrb[0].mxu0
    %v209 = vadd.f32 %v46, %v208
    %v210 = vpop.f32.mrb[0].mxu0
    %211 = vmatprep.mubr.f32.mxu0 0.0
    %212 = vmatmul.mubr.f32.gmra.mrb[0].mxu0 %v83
    %v213 = vpop.f32.mrb[0].mxu0
    %v214 = vadd.f32 %v46, %v213
    %v215 = vpop.f32.mrb[0].mxu0
    %216 = vmatprep.mubr.f32.mxu0 0.0
    %217 = vmatmul.mubr.f32.gmra.mrb[0].mxu0 %v86
    %v218 = vpop.f32.mrb[0].mxu0
    %v219 = vadd.f32 %v46, %v218
    %v220 = vpop.f32.mrb[0].mxu0
    %221 = vdwg.mxu0
    %vm222 = vcmask 490496
    %223 = vst.msk [vmem:[#allocation2] sm:$0xff] %vm222, %v159
    %224 = vst.msk [vmem:[#allocation2 + $0x8] sm:$0xff] %vm222, %v164
    %225 = vst.msk [vmem:[#allocation2 + $0x10] sm:$0xff] %vm222, %v169
    %226 = vst.msk [vmem:[#allocation2 + $0x18] sm:$0xff] %vm222, %v174
    %227 = vst.msk [vmem:[#allocation2 + $0x20] sm:$0xff] %vm222, %v179
    %228 = vst.msk [vmem:[#allocation2 + $0x28] sm:$0xff] %vm222, %v184
    %229 = vst.msk [vmem:[#allocation2 + $0x30] sm:$0xff] %vm222, %v189
    %230 = vst.msk [vmem:[#allocation2 + $0x38] sm:$0xff] %vm222, %v194
    %231 = vst.msk [vmem:[#allocation2 + $0x40] sm:$0xff] %vm222, %v199
    %232 = vst.msk [vmem:[#allocation2 + $0x48] sm:$0xff] %vm222, %v204
    %233 = vst.msk [vmem:[#allocation2 + $0x50] sm:$0xff] %vm222, %v209
    %234 = vst.msk [vmem:[#allocation2 + $0x58] sm:$0xff] %vm222, %v214
    %vm235 = vcmask 486400
    %236 = vst.msk [vmem:[#allocation2 + $0x60] sm:$0xf] %vm235, %v219
    %v237 = vld [vmem:[%s2] sm:$0xff]
    %v238 = vld [vmem:[%s2 + $0x8] sm:$0x7f]
    %v239 = vld [vmem:[#allocation2] sm:$0x3]
    %v240 = vxor.u32 %v239, 2147483648
    %v241 = vmul.f32 %v240, 1.442695
    %v242 = vpow.pop %v241
    %v243 = vadd.f32 %v242, 1.0
    %v244 = vrcp.pop %v243
    %v245 = vmul.f32 1.0, %v244
    %v246 = vmul.f32 %v245, 2.0
    %v247 = vsub.f32 %v246, 1.0
    %v248 = vmul.f32 %v245, 0.0
    %250 = vrot.lane.b32.xlu0 %v247, 98
    %v251 = vpop.permute.xlu0 %250
    %v253 = vmul.f32 %v245, %v251
    %255 = vrot.lane.b32.xlu0 %v253, 15
    %v256 = vpop.permute.xlu0 %255
    %v258 = vadd.f32 %v248, %v256
    %v259 = vtanh.pop %v258
    %261 = vrot.lane.b32.xlu0 %v259, 30
    %v262 = vpop.permute.xlu0 %261
    %v264 = vmul.f32 %v245, %v262
    %v265 = vmax.f32 %v264, 0.0
    %v266 = vld [vmem:[%s4] sm:$0x3]
    %268 = vrot.lane.b32.xlu0 %v266, 45
    %v269 = vpop.permute.xlu0 %268
    %v271 = vmul.f32 %v265, %v269
    %v272 = vadd.f32 %v271, 0.0
    %s273 = scalar_lea.vmem %s4, 2
    %v274 = vld [vmem:[%s273] sm:$0x3]
    %276 = vrot.lane.b32.xlu0 %v274, 45
    %v277 = vpop.permute.xlu0 %276
    %v279 = vmul.f32 %v265, %v277
    %v280 = vadd.f32 %v279, 0.0
    %s281 = scalar_lea.vmem %s4, 4
    %v282 = vld [vmem:[%s281] sm:$0x3]
    %284 = vrot.lane.b32.xlu0 %v282, 45
    %v285 = vpop.permute.xlu0 %284
    %v287 = vmul.f32 %v265, %v285
    %v288 = vadd.f32 %v287, 0.0
    %v289 = vld [vmem:[#allocation2 + $0x2] sm:$0x3]
    %v290 = vlaneseq
    %v291 = vshrl.u32 %v290, 7
    %v292 = vsub.s32 0, %v291
    %v293 = vrot.slane %v264, %v292
    %s295 = sor.u32 256, 45
    %296 = vbcast.lane.b32.xlu0 %v293, %s295
    %v297 = vpop.permute.xlu0 %296
    %s299 = sor.u32 256, 53
    %300 = vbcast.lane.b32.xlu0 %v293, %s299
    %v301 = vpop.permute.xlu0 %300
    %v302 = vlaneseq
    %v303 = vshrl.u32 %v302, 7
    %v304 = vsub.s32 1, %v303
    %v305 = vrot.slane %v264, %v304
    %s307 = sor.u32 256, 45
    %308 = vbcast.lane.b32.xlu0 %v305, %s307
    %v309 = vpop.permute.xlu0 %308
    %s311 = sor.u32 256, 53
    %312 = vbcast.lane.b32.xlu0 %v305, %s311
    %v313 = vpop.permute.xlu0 %312
    %v314 = vmul.f32 %v297, %v237
    %v315 = vmul.f32 %v301, %v238
    %v316 = vmul.f32 %v309, %v237
    %v317 = vmul.f32 %v313, %v238
    %v318 = vsel %vm222, %v314, 0.0
    %vm319 = vcmask 489472
    %v320 = vsel %vm319, %v315, 0.0
    %v321 = vadd.f32 %v318, %v320
    %v322 = vrot.slane %v321, 4
    %v323 = vadd.f32 %v321, %v322
    %v324 = vrot.slane %v323, 2
    %v325 = vadd.f32 %v323, %v324
    %v326 = vrot.slane %v325, 1
    %v327 = vadd.f32 %v325, %v326
    %v328 = vsel %vm222, %v316, 0.0
    %v329 = vsel %vm319, %v317, 0.0
    %v330 = vadd.f32 %v328, %v329
    %v331 = vrot.slane %v330, 4
    %v332 = vadd.f32 %v330, %v331
    %v333 = vrot.slane %v332, 2
    %v334 = vadd.f32 %v332, %v333
    %v335 = vrot.slane %v334, 1
    %v336 = vadd.f32 %v334, %v335
    %vm339 = vcmask 1041409
    %v340 = vsel %vm339, %v336, %v327
    %v342 = vadd.f32 %v289, %v340
    %v343 = vxor.u32 %v342, 2147483648
    %v344 = vmul.f32 %v343, 1.442695
    %v345 = vpow.pop %v344
    %v346 = vadd.f32 %v345, 1.0
    %v347 = vrcp.pop %v346
    %v348 = vmul.f32 1.0, %v347
    %v349 = vmul.f32 %v348, 2.0
    %v350 = vsub.f32 %v349, 1.0
    %v351 = vmul.f32 %v348, %v258
    %353 = vrot.lane.b32.xlu0 %v350, 98
    %v354 = vpop.permute.xlu0 %353
    %v356 = vmul.f32 %v348, %v354
    %358 = vrot.lane.b32.xlu0 %v356, 15
    %v359 = vpop.permute.xlu0 %358
    %v361 = vadd.f32 %v351, %v359
    %v362 = vtanh.pop %v361
    %364 = vrot.lane.b32.xlu0 %v362, 30
    %v365 = vpop.permute.xlu0 %364
    %v367 = vmul.f32 %v348, %v365
    %v368 = vmax.f32 %v367, 0.0
    %s369 = scalar_lea.vmem %s4, 6
    %v370 = vld [vmem:[%s369] sm:$0x3]
    %372 = vrot.lane.b32.xlu0 %v370, 45
    %v373 = vpop.permute.xlu0 %372
    %v375 = vmul.f32 %v368, %v373
    %v376 = vadd.f32 %v272, %v375
    %s377 = scalar_lea.vmem %s4, 8
    %v378 = vld [vmem:[%s377] sm:$0x3]
    %380 = vrot.lane.b32.xlu0 %v378, 45
    %v381 = vpop.permute.xlu0 %380
    %v383 = vmul.f32 %v368, %v381
    %v384 = vadd.f32 %v280, %v383
    %s385 = scalar_lea.vmem %s4, 10
    %v386 = vld [vmem:[%s385] sm:$0x3]
    %388 = vrot.lane.b32.xlu0 %v386, 45
    %v389 = vpop.permute.xlu0 %388
    %v391 = vmul.f32 %v368, %v389
    %v392 = vadd.f32 %v288, %v391
    %v393 = vld [vmem:[#allocation2 + $0x4] sm:$0x3]
    %v394 = vlaneseq
    %v395 = vshrl.u32 %v394, 7
    %v396 = vsub.s32 0, %v395
    %v397 = vrot.slane %v367, %v396
    %s399 = sor.u32 256, 45
    %400 = vbcast.lane.b32.xlu0 %v397, %s399
    %v401 = vpop.permute.xlu0 %400
    %s403 = sor.u32 256, 53
    %404 = vbcast.lane.b32.xlu0 %v397, %s403
    %v405 = vpop.permute.xlu0 %404
    %v406 = vlaneseq
    %v407 = vshrl.u32 %v406, 7
    %v408 = vsub.s32 1, %v407
    %v409 = vrot.slane %v367, %v408
    %s411 = sor.u32 256, 45
    %412 = vbcast.lane.b32.xlu0 %v409, %s411
    %v413 = vpop.permute.xlu0 %412
    %s415 = sor.u32 256, 53
    %416 = vbcast.lane.b32.xlu0 %v409, %s415
    %v417 = vpop.permute.xlu0 %416
    %v418 = vmul.f32 %v401, %v237
    %v419 = vmul.f32 %v405, %v238
    %v420 = vmul.f32 %v413, %v237
    %v421 = vmul.f32 %v417, %v238
    %v422 = vsel %vm222, %v418, 0.0
    %v423 = vsel %vm319, %v419, 0.0
    %v424 = vadd.f32 %v422, %v423
    %v425 = vrot.slane %v424, 4
    %v426 = vadd.f32 %v424, %v425
    %v427 = vrot.slane %v426, 2
    %v428 = vadd.f32 %v426, %v427
    %v429 = vrot.slane %v428, 1
    %v430 = vadd.f32 %v428, %v429
    %v431 = vsel %vm222, %v420, 0.0
    %v432 = vsel %vm319, %v421, 0.0
    %v433 = vadd.f32 %v431, %v432
    %v434 = vrot.slane %v433, 4
    %v435 = vadd.f32 %v433, %v434
    %v436 = vrot.slane %v435, 2
    %v437 = vadd.f32 %v435, %v436
    %v438 = vrot.slane %v437, 1
    %v439 = vadd.f32 %v437, %v438
    %v442 = vsel %vm339, %v439, %v430
    %v444 = vadd.f32 %v393, %v442
    %v445 = vxor.u32 %v444, 2147483648
    %v446 = vmul.f32 %v445, 1.442695
    %v447 = vpow.pop %v446
    %v448 = vadd.f32 %v447, 1.0
    %v449 = vrcp.pop %v448
    %v450 = vmul.f32 1.0, %v449
    %v451 = vmul.f32 %v450, 2.0
    %v452 = vsub.f32 %v451, 1.0
    %v453 = vmul.f32 %v450, %v361
    %455 = vrot.lane.b32.xlu0 %v452, 98
    %v456 = vpop.permute.xlu0 %455
    %v458 = vmul.f32 %v450, %v456
    %460 = vrot.lane.b32.xlu0 %v458, 15
    %v461 = vpop.permute.xlu0 %460
    %v463 = vadd.f32 %v453, %v461
    %v464 = vtanh.pop %v463
    %466 = vrot.lane.b32.xlu0 %v464, 30
    %v467 = vpop.permute.xlu0 %466
    %v469 = vmul.f32 %v450, %v467
    %v470 = vmax.f32 %v469, 0.0
    %s471 = scalar_lea.vmem %s4, 12
    %v472 = vld [vmem:[%s471] sm:$0x3]
    %474 = vrot.lane.b32.xlu0 %v472, 45
    %v475 = vpop.permute.xlu0 %474
    %v477 = vmul.f32 %v470, %v475
    %v478 = vadd.f32 %v376, %v477
    %s479 = scalar_lea.vmem %s4, 14
    %v480 = vld [vmem:[%s479] sm:$0x3]
    %482 = vrot.lane.b32.xlu0 %v480, 45
    %v483 = vpop.permute.xlu0 %482
    %v485 = vmul.f32 %v470, %v483
    %v486 = vadd.f32 %v384, %v485
    %s487 = scalar_lea.vmem %s4, 16
    %v488 = vld [vmem:[%s487] sm:$0x3]
    %490 = vrot.lane.b32.xlu0 %v488, 45
    %v491 = vpop.permute.xlu0 %490
    %v493 = vmul.f32 %v470, %v491
    %v494 = vadd.f32 %v392, %v493
    %v495 = vld [vmem:[#allocation2 + $0x6] sm:$0x3]
    %v496 = vlaneseq
    %v497 = vshrl.u32 %v496, 7
    %v498 = vsub.s32 0, %v497
    %v499 = vrot.slane %v469, %v498
    %s501 = sor.u32 256, 45
    %502 = vbcast.lane.b32.xlu0 %v499, %s501
    %v503 = vpop.permute.xlu0 %502
    %s505 = sor.u32 256, 53
    %506 = vbcast.lane.b32.xlu0 %v499, %s505
    %v507 = vpop.permute.xlu0 %506
    %v508 = vlaneseq
    %v509 = vshrl.u32 %v508, 7
    %v510 = vsub.s32 1, %v509
    %v511 = vrot.slane %v469, %v510
    %s513 = sor.u32 256, 45
    %514 = vbcast.lane.b32.xlu0 %v511, %s513
    %v515 = vpop.permute.xlu0 %514
    %s517 = sor.u32 256, 53
    %518 = vbcast.lane.b32.xlu0 %v511, %s517
    %v519 = vpop.permute.xlu0 %518
    %v520 = vmul.f32 %v503, %v237
    %v521 = vmul.f32 %v507, %v238
    %v522 = vmul.f32 %v515, %v237
    %v523 = vmul.f32 %v519, %v238
    %v524 = vsel %vm222, %v520, 0.0
    %v525 = vsel %vm319, %v521, 0.0
    %v526 = vadd.f32 %v524, %v525
    %v527 = vrot.slane %v526, 4
    %v528 = vadd.f32 %v526, %v527
    %v529 = vrot.slane %v528, 2
    %v530 = vadd.f32 %v528, %v529
    %v531 = vrot.slane %v530, 1
    %v532 = vadd.f32 %v530, %v531
    %v533 = vsel %vm222, %v522, 0.0
    %v534 = vsel %vm319, %v523, 0.0
    %v535 = vadd.f32 %v533, %v534
    %v536 = vrot.slane %v535, 4
    %v537 = vadd.f32 %v535, %v536
    %v538 = vrot.slane %v537, 2
    %v539 = vadd.f32 %v537, %v538
    %v540 = vrot.slane %v539, 1
    %v541 = vadd.f32 %v539, %v540
    %v544 = vsel %vm339, %v541, %v532
    %v546 = vadd.f32 %v495, %v544
    %v547 = vxor.u32 %v546, 2147483648
    %v548 = vmul.f32 %v547, 1.442695
    %v549 = vpow.pop %v548
    %v550 = vadd.f32 %v549, 1.0
    %v551 = vrcp.pop %v550
    %v552 = vmul.f32 1.0, %v551
    %v553 = vmul.f32 %v552, 2.0
    %v554 = vsub.f32 %v553, 1.0
    %v555 = vmul.f32 %v552, %v463
    %557 = vrot.lane.b32.xlu0 %v554, 98
    %v558 = vpop.permute.xlu0 %557
    %v560 = vmul.f32 %v552, %v558
    %562 = vrot.lane.b32.xlu0 %v560, 15
    %v563 = vpop.permute.xlu0 %562
    %v565 = vadd.f32 %v555, %v563
    %v566 = vtanh.pop %v565
    %568 = vrot.lane.b32.xlu0 %v566, 30
    %v569 = vpop.permute.xlu0 %568
    %v571 = vmul.f32 %v552, %v569
    %v572 = vmax.f32 %v571, 0.0
    %s573 = scalar_lea.vmem %s4, 18
    %v574 = vld [vmem:[%s573] sm:$0x3]
    %576 = vrot.lane.b32.xlu0 %v574, 45
    %v577 = vpop.permute.xlu0 %576
    %v579 = vmul.f32 %v572, %v577
    %v580 = vadd.f32 %v478, %v579
    %s581 = scalar_lea.vmem %s4, 20
    %v582 = vld [vmem:[%s581] sm:$0x3]
    %584 = vrot.lane.b32.xlu0 %v582, 45
    %v585 = vpop.permute.xlu0 %584
    %v587 = vmul.f32 %v572, %v585
    %v588 = vadd.f32 %v486, %v587
    %s589 = scalar_lea.vmem %s4, 22
    %v590 = vld [vmem:[%s589] sm:$0x3]
    %592 = vrot.lane.b32.xlu0 %v590, 45
    %v593 = vpop.permute.xlu0 %592
    %v595 = vmul.f32 %v572, %v593
    %v596 = vadd.f32 %v494, %v595
    %v597 = vld [vmem:[#allocation2 + $0x8] sm:$0x3]
    %v598 = vlaneseq
    %v599 = vshrl.u32 %v598, 7
    %v600 = vsub.s32 0, %v599
    %v601 = vrot.slane %v571, %v600
    %s603 = sor.u32 256, 45
    %604 = vbcast.lane.b32.xlu0 %v601, %s603
    %v605 = vpop.permute.xlu0 %604
    %s607 = sor.u32 256, 53
    %608 = vbcast.lane.b32.xlu0 %v601, %s607
    %v609 = vpop.permute.xlu0 %608
    %v610 = vlaneseq
    %v611 = vshrl.u32 %v610, 7
    %v612 = vsub.s32 1, %v611
    %v613 = vrot.slane %v571, %v612
    %s615 = sor.u32 256, 45
    %616 = vbcast.lane.b32.xlu0 %v613, %s615
    %v617 = vpop.permute.xlu0 %616
    %s619 = sor.u32 256, 53
    %620 = vbcast.lane.b32.xlu0 %v613, %s619
    %v621 = vpop.permute.xlu0 %620
    %v622 = vmul.f32 %v605, %v237
    %v623 = vmul.f32 %v609, %v238
    %v624 = vmul.f32 %v617, %v237
    %v625 = vmul.f32 %v621, %v238
    %v626 = vsel %vm222, %v622, 0.0
    %v627 = vsel %vm319, %v623, 0.0
    %v628 = vadd.f32 %v626, %v627
    %v629 = vrot.slane %v628, 4
    %v630 = vadd.f32 %v628, %v629
    %v631 = vrot.slane %v630, 2
    %v632 = vadd.f32 %v630, %v631
    %v633 = vrot.slane %v632, 1
    %v634 = vadd.f32 %v632, %v633
    %v635 = vsel %vm222, %v624, 0.0
    %v636 = vsel %vm319, %v625, 0.0
    %v637 = vadd.f32 %v635, %v636
    %v638 = vrot.slane %v637, 4
    %v639 = vadd.f32 %v637, %v638
    %v640 = vrot.slane %v639, 2
    %v641 = vadd.f32 %v639, %v640
    %v642 = vrot.slane %v641, 1
    %v643 = vadd.f32 %v641, %v642
    %v646 = vsel %vm339, %v643, %v634
    %v648 = vadd.f32 %v597, %v646
    %v649 = vxor.u32 %v648, 2147483648
    %v650 = vmul.f32 %v649, 1.442695
    %v651 = vpow.pop %v650
    %v652 = vadd.f32 %v651, 1.0
    %v653 = vrcp.pop %v652
    %v654 = vmul.f32 1.0, %v653
    %v655 = vmul.f32 %v654, 2.0
    %v656 = vsub.f32 %v655, 1.0
    %v657 = vmul.f32 %v654, %v565
    %659 = vrot.lane.b32.xlu0 %v656, 98
    %v660 = vpop.permute.xlu0 %659
    %v662 = vmul.f32 %v654, %v660
    %664 = vrot.lane.b32.xlu0 %v662, 15
    %v665 = vpop.permute.xlu0 %664
    %v667 = vadd.f32 %v657, %v665
    %v668 = vtanh.pop %v667
    %670 = vrot.lane.b32.xlu0 %v668, 30
    %v671 = vpop.permute.xlu0 %670
    %v673 = vmul.f32 %v654, %v671
    %v674 = vmax.f32 %v673, 0.0
    %s675 = scalar_lea.vmem %s4, 24
    %v676 = vld [vmem:[%s675] sm:$0x3]
    %678 = vrot.lane.b32.xlu0 %v676, 45
    %v679 = vpop.permute.xlu0 %678
    %v681 = vmul.f32 %v674, %v679
    %v682 = vadd.f32 %v580, %v681
    %s683 = scalar_lea.vmem %s4, 26
    %v684 = vld [vmem:[%s683] sm:$0x3]
    %686 = vrot.lane.b32.xlu0 %v684, 45
    %v687 = vpop.permute.xlu0 %686
    %v689 = vmul.f32 %v674, %v687
    %v690 = vadd.f32 %v588, %v689
    %s691 = scalar_lea.vmem %s4, 28
    %v692 = vld [vmem:[%s691] sm:$0x3]
    %694 = vrot.lane.b32.xlu0 %v692, 45
    %v695 = vpop.permute.xlu0 %694
    %v697 = vmul.f32 %v674, %v695
    %v698 = vadd.f32 %v596, %v697
    %v699 = vld [vmem:[#allocation2 + $0xa] sm:$0x3]
    %v700 = vlaneseq
    %v701 = vshrl.u32 %v700, 7
    %v702 = vsub.s32 0, %v701
    %v703 = vrot.slane %v673, %v702
    %s705 = sor.u32 256, 45
    %706 = vbcast.lane.b32.xlu0 %v703, %s705
    %v707 = vpop.permute.xlu0 %706
    %s709 = sor.u32 256, 53
    %710 = vbcast.lane.b32.xlu0 %v703, %s709
    %v711 = vpop.permute.xlu0 %710
    %v712 = vlaneseq
    %v713 = vshrl.u32 %v712, 7
    %v714 = vsub.s32 1, %v713
    %v715 = vrot.slane %v673, %v714
    %s717 = sor.u32 256, 45
    %718 = vbcast.lane.b32.xlu0 %v715, %s717
    %v719 = vpop.permute.xlu0 %718
    %s721 = sor.u32 256, 53
    %722 = vbcast.lane.b32.xlu0 %v715, %s721
    %v723 = vpop.permute.xlu0 %722
    %v724 = vmul.f32 %v707, %v237
    %v725 = vmul.f32 %v711, %v238
    %v726 = vmul.f32 %v719, %v237
    %v727 = vmul.f32 %v723, %v238
    %v728 = vsel %vm222, %v724, 0.0
    %v729 = vsel %vm319, %v725, 0.0
    %v730 = vadd.f32 %v728, %v729
    %v731 = vrot.slane %v730, 4
    %v732 = vadd.f32 %v730, %v731
    %v733 = vrot.slane %v732, 2
    %v734 = vadd.f32 %v732, %v733
    %v735 = vrot.slane %v734, 1
    %v736 = vadd.f32 %v734, %v735
    %v737 = vsel %vm222, %v726, 0.0
    %v738 = vsel %vm319, %v727, 0.0
    %v739 = vadd.f32 %v737, %v738
    %v740 = vrot.slane %v739, 4
    %v741 = vadd.f32 %v739, %v740
    %v742 = vrot.slane %v741, 2
    %v743 = vadd.f32 %v741, %v742
    %v744 = vrot.slane %v743, 1
    %v745 = vadd.f32 %v743, %v744
    %v748 = vsel %vm339, %v745, %v736
    %v750 = vadd.f32 %v699, %v748
    %v751 = vxor.u32 %v750, 2147483648
    %v752 = vmul.f32 %v751, 1.442695
    %v753 = vpow.pop %v752
    %v754 = vadd.f32 %v753, 1.0
    %v755 = vrcp.pop %v754
    %v756 = vmul.f32 1.0, %v755
    %v757 = vmul.f32 %v756, 2.0
    %v758 = vsub.f32 %v757, 1.0
    %v759 = vmul.f32 %v756, %v667
    %761 = vrot.lane.b32.xlu0 %v758, 98
    %v762 = vpop.permute.xlu0 %761
    %v764 = vmul.f32 %v756, %v762
    %766 = vrot.lane.b32.xlu0 %v764, 15
    %v767 = vpop.permute.xlu0 %766
    %v769 = vadd.f32 %v759, %v767
    %v770 = vtanh.pop %v769
    %772 = vrot.lane.b32.xlu0 %v770, 30
    %v773 = vpop.permute.xlu0 %772
    %v775 = vmul.f32 %v756, %v773
    %v776 = vmax.f32 %v775, 0.0
    %s777 = scalar_lea.vmem %s4, 30
    %v778 = vld [vmem:[%s777] sm:$0x3]
    %780 = vrot.lane.b32.xlu0 %v778, 45
    %v781 = vpop.permute.xlu0 %780
    %v783 = vmul.f32 %v776, %v781
    %v784 = vadd.f32 %v682, %v783
    %s785 = scalar_lea.vmem %s4, 32
    %v786 = vld [vmem:[%s785] sm:$0x3]
    %788 = vrot.lane.b32.xlu0 %v786, 45
    %v789 = vpop.permute.xlu0 %788
    %v791 = vmul.f32 %v776, %v789
    %v792 = vadd.f32 %v690, %v791
    %s793 = scalar_lea.vmem %s4, 34
    %v794 = vld [vmem:[%s793] sm:$0x3]
    %796 = vrot.lane.b32.xlu0 %v794, 45
    %v797 = vpop.permute.xlu0 %796
    %v799 = vmul.f32 %v776, %v797
    %v800 = vadd.f32 %v698, %v799
    %v801 = vld [vmem:[#allocation2 + $0xc] sm:$0x3]
    %v802 = vlaneseq
    %v803 = vshrl.u32 %v802, 7
    %v804 = vsub.s32 0, %v803
    %v805 = vrot.slane %v775, %v804
    %s807 = sor.u32 256, 45
    %808 = vbcast.lane.b32.xlu0 %v805, %s807
    %v809 = vpop.permute.xlu0 %808
    %s811 = sor.u32 256, 53
    %812 = vbcast.lane.b32.xlu0 %v805, %s811
    %v813 = vpop.permute.xlu0 %812
    %v814 = vlaneseq
    %v815 = vshrl.u32 %v814, 7
    %v816 = vsub.s32 1, %v815
    %v817 = vrot.slane %v775, %v816
    %s819 = sor.u32 256, 45
    %820 = vbcast.lane.b32.xlu0 %v817, %s819
    %v821 = vpop.permute.xlu0 %820
    %s823 = sor.u32 256, 53
    %824 = vbcast.lane.b32.xlu0 %v817, %s823
    %v825 = vpop.permute.xlu0 %824
    %v826 = vmul.f32 %v809, %v237
    %v827 = vmul.f32 %v813, %v238
    %v828 = vmul.f32 %v821, %v237
    %v829 = vmul.f32 %v825, %v238
    %v830 = vsel %vm222, %v826, 0.0
    %v831 = vsel %vm319, %v827, 0.0
    %v832 = vadd.f32 %v830, %v831
    %v833 = vrot.slane %v832, 4
    %v834 = vadd.f32 %v832, %v833
    %v835 = vrot.slane %v834, 2
    %v836 = vadd.f32 %v834, %v835
    %v837 = vrot.slane %v836, 1
    %v838 = vadd.f32 %v836, %v837
    %v839 = vsel %vm222, %v828, 0.0
    %v840 = vsel %vm319, %v829, 0.0
    %v841 = vadd.f32 %v839, %v840
    %v842 = vrot.slane %v841, 4
    %v843 = vadd.f32 %v841, %v842
    %v844 = vrot.slane %v843, 2
    %v845 = vadd.f32 %v843, %v844
    %v846 = vrot.slane %v845, 1
    %v847 = vadd.f32 %v845, %v846
    %v850 = vsel %vm339, %v847, %v838
    %v852 = vadd.f32 %v801, %v850
    %v853 = vxor.u32 %v852, 2147483648
    %v854 = vmul.f32 %v853, 1.442695
    %v855 = vpow.pop %v854
    %v856 = vadd.f32 %v855, 1.0
    %v857 = vrcp.pop %v856
    %v858 = vmul.f32 1.0, %v857
    %v859 = vmul.f32 %v858, 2.0
    %v860 = vsub.f32 %v859, 1.0
    %v861 = vmul.f32 %v858, %v769
    %863 = vrot.lane.b32.xlu0 %v860, 98
    %v864 = vpop.permute.xlu0 %863
    %v866 = vmul.f32 %v858, %v864
    %868 = vrot.lane.b32.xlu0 %v866, 15
    %v869 = vpop.permute.xlu0 %868
    %v871 = vadd.f32 %v861, %v869
    %v872 = vtanh.pop %v871
    %874 = vrot.lane.b32.xlu0 %v872, 30
    %v875 = vpop.permute.xlu0 %874
    %v877 = vmul.f32 %v858, %v875
    %v878 = vmax.f32 %v877, 0.0
    %s879 = scalar_lea.vmem %s4, 36
    %v880 = vld [vmem:[%s879] sm:$0x3]
    %882 = vrot.lane.b32.xlu0 %v880, 45
    %v883 = vpop.permute.xlu0 %882
    %v885 = vmul.f32 %v878, %v883
    %v886 = vadd.f32 %v784, %v885
    %s887 = scalar_lea.vmem %s4, 38
    %v888 = vld [vmem:[%s887] sm:$0x3]
    %890 = vrot.lane.b32.xlu0 %v888, 45
    %v891 = vpop.permute.xlu0 %890
    %v893 = vmul.f32 %v878, %v891
    %v894 = vadd.f32 %v792, %v893
    %s895 = scalar_lea.vmem %s4, 40
    %v896 = vld [vmem:[%s895] sm:$0x3]
    %898 = vrot.lane.b32.xlu0 %v896, 45
    %v899 = vpop.permute.xlu0 %898
    %v901 = vmul.f32 %v878, %v899
    %v902 = vadd.f32 %v800, %v901
    %v903 = vld [vmem:[#allocation2 + $0xe] sm:$0x3]
    %v904 = vlaneseq
    %v905 = vshrl.u32 %v904, 7
    %v906 = vsub.s32 0, %v905
    %v907 = vrot.slane %v877, %v906
    %s909 = sor.u32 256, 45
    %910 = vbcast.lane.b32.xlu0 %v907, %s909
    %v911 = vpop.permute.xlu0 %910
    %s913 = sor.u32 256, 53
    %914 = vbcast.lane.b32.xlu0 %v907, %s913
    %v915 = vpop.permute.xlu0 %914
    %v916 = vlaneseq
    %v917 = vshrl.u32 %v916, 7
    %v918 = vsub.s32 1, %v917
    %v919 = vrot.slane %v877, %v918
    %s921 = sor.u32 256, 45
    %922 = vbcast.lane.b32.xlu0 %v919, %s921
    %v923 = vpop.permute.xlu0 %922
    %s925 = sor.u32 256, 53
    %926 = vbcast.lane.b32.xlu0 %v919, %s925
    %v927 = vpop.permute.xlu0 %926
    %v928 = vmul.f32 %v911, %v237
    %v929 = vmul.f32 %v915, %v238
    %v930 = vmul.f32 %v923, %v237
    %v931 = vmul.f32 %v927, %v238
    %v932 = vsel %vm222, %v928, 0.0
    %v933 = vsel %vm319, %v929, 0.0
    %v934 = vadd.f32 %v932, %v933
    %v935 = vrot.slane %v934, 4
    %v936 = vadd.f32 %v934, %v935
    %v937 = vrot.slane %v936, 2
    %v938 = vadd.f32 %v936, %v937
    %v939 = vrot.slane %v938, 1
    %v940 = vadd.f32 %v938, %v939
    %v941 = vsel %vm222, %v930, 0.0
    %v942 = vsel %vm319, %v931, 0.0
    %v943 = vadd.f32 %v941, %v942
    %v944 = vrot.slane %v943, 4
    %v945 = vadd.f32 %v943, %v944
    %v946 = vrot.slane %v945, 2
    %v947 = vadd.f32 %v945, %v946
    %v948 = vrot.slane %v947, 1
    %v949 = vadd.f32 %v947, %v948
    %v952 = vsel %vm339, %v949, %v940
    %v954 = vadd.f32 %v903, %v952
    %v955 = vxor.u32 %v954, 2147483648
    %v956 = vmul.f32 %v955, 1.442695
    %v957 = vpow.pop %v956
    %v958 = vadd.f32 %v957, 1.0
    %v959 = vrcp.pop %v958
    %v960 = vmul.f32 1.0, %v959
    %v961 = vmul.f32 %v960, 2.0
    %v962 = vsub.f32 %v961, 1.0
    %v963 = vmul.f32 %v960, %v871
    %965 = vrot.lane.b32.xlu0 %v962, 98
    %v966 = vpop.permute.xlu0 %965
    %v968 = vmul.f32 %v960, %v966
    %970 = vrot.lane.b32.xlu0 %v968, 15
    %v971 = vpop.permute.xlu0 %970
    %v973 = vadd.f32 %v963, %v971
    %v974 = vtanh.pop %v973
    %976 = vrot.lane.b32.xlu0 %v974, 30
    %v977 = vpop.permute.xlu0 %976
    %v979 = vmul.f32 %v960, %v977
    %v980 = vmax.f32 %v979, 0.0
    %s981 = scalar_lea.vmem %s4, 42
    %v982 = vld [vmem:[%s981] sm:$0x3]
    %984 = vrot.lane.b32.xlu0 %v982, 45
    %v985 = vpop.permute.xlu0 %984
    %v987 = vmul.f32 %v980, %v985
    %v988 = vadd.f32 %v886, %v987
    %s989 = scalar_lea.vmem %s4, 44
    %v990 = vld [vmem:[%s989] sm:$0x3]
    %992 = vrot.lane.b32.xlu0 %v990, 45
    %v993 = vpop.permute.xlu0 %992
    %v995 = vmul.f32 %v980, %v993
    %v996 = vadd.f32 %v894, %v995
    %s997 = scalar_lea.vmem %s4, 46
    %v998 = vld [vmem:[%s997] sm:$0x3]
    %1000 = vrot.lane.b32.xlu0 %v998, 45
    %v1001 = vpop.permute.xlu0 %1000
    %v1003 = vmul.f32 %v980, %v1001
    %v1004 = vadd.f32 %v902, %v1003
    %v1005 = vld [vmem:[#allocation2 + $0x10] sm:$0x3]
    %v1006 = vlaneseq
    %v1007 = vshrl.u32 %v1006, 7
    %v1008 = vsub.s32 0, %v1007
    %v1009 = vrot.slane %v979, %v1008
    %s1011 = sor.u32 256, 45
    %1012 = vbcast.lane.b32.xlu0 %v1009, %s1011
    %v1013 = vpop.permute.xlu0 %1012
    %s1015 = sor.u32 256, 53
    %1016 = vbcast.lane.b32.xlu0 %v1009, %s1015
    %v1017 = vpop.permute.xlu0 %1016
    %v1018 = vlaneseq
    %v1019 = vshrl.u32 %v1018, 7
    %v1020 = vsub.s32 1, %v1019
    %v1021 = vrot.slane %v979, %v1020
    %s1023 = sor.u32 256, 45
    %1024 = vbcast.lane.b32.xlu0 %v1021, %s1023
    %v1025 = vpop.permute.xlu0 %1024
    %s1027 = sor.u32 256, 53
    %1028 = vbcast.lane.b32.xlu0 %v1021, %s1027
    %v1029 = vpop.permute.xlu0 %1028
    %v1030 = vmul.f32 %v1013, %v237
    %v1031 = vmul.f32 %v1017, %v238
    %v1032 = vmul.f32 %v1025, %v237
    %v1033 = vmul.f32 %v1029, %v238
    %v1034 = vsel %vm222, %v1030, 0.0
    %v1035 = vsel %vm319, %v1031, 0.0
    %v1036 = vadd.f32 %v1034, %v1035
    %v1037 = vrot.slane %v1036, 4
    %v1038 = vadd.f32 %v1036, %v1037
    %v1039 = vrot.slane %v1038, 2
    %v1040 = vadd.f32 %v1038, %v1039
    %v1041 = vrot.slane %v1040, 1
    %v1042 = vadd.f32 %v1040, %v1041
    %v1043 = vsel %vm222, %v1032, 0.0
    %v1044 = vsel %vm319, %v1033, 0.0
    %v1045 = vadd.f32 %v1043, %v1044
    %v1046 = vrot.slane %v1045, 4
    %v1047 = vadd.f32 %v1045, %v1046
    %v1048 = vrot.slane %v1047, 2
    %v1049 = vadd.f32 %v1047, %v1048
    %v1050 = vrot.slane %v1049, 1
    %v1051 = vadd.f32 %v1049, %v1050
    %v1054 = vsel %vm339, %v1051, %v1042
    %v1056 = vadd.f32 %v1005, %v1054
    %v1057 = vxor.u32 %v1056, 2147483648
    %v1058 = vmul.f32 %v1057, 1.442695
    %v1059 = vpow.pop %v1058
    %v1060 = vadd.f32 %v1059, 1.0
    %v1061 = vrcp.pop %v1060
    %v1062 = vmul.f32 1.0, %v1061
    %v1063 = vmul.f32 %v1062, 2.0
    %v1064 = vsub.f32 %v1063, 1.0
    %v1065 = vmul.f32 %v1062, %v973
    %1067 = vrot.lane.b32.xlu0 %v1064, 98
    %v1068 = vpop.permute.xlu0 %1067
    %v1070 = vmul.f32 %v1062, %v1068
    %1072 = vrot.lane.b32.xlu0 %v1070, 15
    %v1073 = vpop.permute.xlu0 %1072
    %v1075 = vadd.f32 %v1065, %v1073
    %v1076 = vtanh.pop %v1075
    %1078 = vrot.lane.b32.xlu0 %v1076, 30
    %v1079 = vpop.permute.xlu0 %1078
    %v1081 = vmul.f32 %v1062, %v1079
    %v1082 = vmax.f32 %v1081, 0.0
    %s1083 = scalar_lea.vmem %s4, 48
    %v1084 = vld [vmem:[%s1083] sm:$0x3]
    %1086 = vrot.lane.b32.xlu0 %v1084, 45
    %v1087 = vpop.permute.xlu0 %1086
    %v1089 = vmul.f32 %v1082, %v1087
    %v1090 = vadd.f32 %v988, %v1089
    %s1091 = scalar_lea.vmem %s4, 50
    %v1092 = vld [vmem:[%s1091] sm:$0x3]
    %1094 = vrot.lane.b32.xlu0 %v1092, 45
    %v1095 = vpop.permute.xlu0 %1094
    %v1097 = vmul.f32 %v1082, %v1095
    %v1098 = vadd.f32 %v996, %v1097
    %s1099 = scalar_lea.vmem %s4, 52
    %v1100 = vld [vmem:[%s1099] sm:$0x3]
    %1102 = vrot.lane.b32.xlu0 %v1100, 45
    %v1103 = vpop.permute.xlu0 %1102
    %v1105 = vmul.f32 %v1082, %v1103
    %v1106 = vadd.f32 %v1004, %v1105
    %v1107 = vld [vmem:[#allocation2 + $0x12] sm:$0x3]
    %v1108 = vlaneseq
    %v1109 = vshrl.u32 %v1108, 7
    %v1110 = vsub.s32 0, %v1109
    %v1111 = vrot.slane %v1081, %v1110
    %s1113 = sor.u32 256, 45
    %1114 = vbcast.lane.b32.xlu0 %v1111, %s1113
    %v1115 = vpop.permute.xlu0 %1114
    %s1117 = sor.u32 256, 53
    %1118 = vbcast.lane.b32.xlu0 %v1111, %s1117
    %v1119 = vpop.permute.xlu0 %1118
    %v1120 = vlaneseq
    %v1121 = vshrl.u32 %v1120, 7
    %v1122 = vsub.s32 1, %v1121
    %v1123 = vrot.slane %v1081, %v1122
    %s1125 = sor.u32 256, 45
    %1126 = vbcast.lane.b32.xlu0 %v1123, %s1125
    %v1127 = vpop.permute.xlu0 %1126
    %s1129 = sor.u32 256, 53
    %1130 = vbcast.lane.b32.xlu0 %v1123, %s1129
    %v1131 = vpop.permute.xlu0 %1130
    %v1132 = vmul.f32 %v1115, %v237
    %v1133 = vmul.f32 %v1119, %v238
    %v1134 = vmul.f32 %v1127, %v237
    %v1135 = vmul.f32 %v1131, %v238
    %v1136 = vsel %vm222, %v1132, 0.0
    %v1137 = vsel %vm319, %v1133, 0.0
    %v1138 = vadd.f32 %v1136, %v1137
    %v1139 = vrot.slane %v1138, 4
    %v1140 = vadd.f32 %v1138, %v1139
    %v1141 = vrot.slane %v1140, 2
    %v1142 = vadd.f32 %v1140, %v1141
    %v1143 = vrot.slane %v1142, 1
    %v1144 = vadd.f32 %v1142, %v1143
    %v1145 = vsel %vm222, %v1134, 0.0
    %v1146 = vsel %vm319, %v1135, 0.0
    %v1147 = vadd.f32 %v1145, %v1146
    %v1148 = vrot.slane %v1147, 4
    %v1149 = vadd.f32 %v1147, %v1148
    %v1150 = vrot.slane %v1149, 2
    %v1151 = vadd.f32 %v1149, %v1150
    %v1152 = vrot.slane %v1151, 1
    %v1153 = vadd.f32 %v1151, %v1152
    %v1156 = vsel %vm339, %v1153, %v1144
    %v1158 = vadd.f32 %v1107, %v1156
    %v1159 = vxor.u32 %v1158, 2147483648
    %v1160 = vmul.f32 %v1159, 1.442695
    %v1161 = vpow.pop %v1160
    %v1162 = vadd.f32 %v1161, 1.0
    %v1163 = vrcp.pop %v1162
    %v1164 = vmul.f32 1.0, %v1163
    %v1165 = vmul.f32 %v1164, 2.0
    %v1166 = vsub.f32 %v1165, 1.0
    %v1167 = vmul.f32 %v1164, %v1075
    %1169 = vrot.lane.b32.xlu0 %v1166, 98
    %v1170 = vpop.permute.xlu0 %1169
    %v1172 = vmul.f32 %v1164, %v1170
    %1174 = vrot.lane.b32.xlu0 %v1172, 15
    %v1175 = vpop.permute.xlu0 %1174
    %v1177 = vadd.f32 %v1167, %v1175
    %v1178 = vtanh.pop %v1177
    %1180 = vrot.lane.b32.xlu0 %v1178, 30
    %v1181 = vpop.permute.xlu0 %1180
    %v1183 = vmul.f32 %v1164, %v1181
    %v1184 = vmax.f32 %v1183, 0.0
    %s1185 = scalar_lea.vmem %s4, 54
    %v1186 = vld [vmem:[%s1185] sm:$0x3]
    %1188 = vrot.lane.b32.xlu0 %v1186, 45
    %v1189 = vpop.permute.xlu0 %1188
    %v1191 = vmul.f32 %v1184, %v1189
    %v1192 = vadd.f32 %v1090, %v1191
    %s1193 = scalar_lea.vmem %s4, 56
    %v1194 = vld [vmem:[%s1193] sm:$0x3]
    %1196 = vrot.lane.b32.xlu0 %v1194, 45
    %v1197 = vpop.permute.xlu0 %1196
    %v1199 = vmul.f32 %v1184, %v1197
    %v1200 = vadd.f32 %v1098, %v1199
    %s1201 = scalar_lea.vmem %s4, 58
    %v1202 = vld [vmem:[%s1201] sm:$0x3]
    %1204 = vrot.lane.b32.xlu0 %v1202, 45
    %v1205 = vpop.permute.xlu0 %1204
    %v1207 = vmul.f32 %v1184, %v1205
    %v1208 = vadd.f32 %v1106, %v1207
    %v1209 = vld [vmem:[#allocation2 + $0x14] sm:$0x3]
    %v1210 = vlaneseq
    %v1211 = vshrl.u32 %v1210, 7
    %v1212 = vsub.s32 0, %v1211
    %v1213 = vrot.slane %v1183, %v1212
    %s1215 = sor.u32 256, 45
    %1216 = vbcast.lane.b32.xlu0 %v1213, %s1215
    %v1217 = vpop.permute.xlu0 %1216
    %s1219 = sor.u32 256, 53
    %1220 = vbcast.lane.b32.xlu0 %v1213, %s1219
    %v1221 = vpop.permute.xlu0 %1220
    %v1222 = vlaneseq
    %v1223 = vshrl.u32 %v1222, 7
    %v1224 = vsub.s32 1, %v1223
    %v1225 = vrot.slane %v1183, %v1224
    %s1227 = sor.u32 256, 45
    %1228 = vbcast.lane.b32.xlu0 %v1225, %s1227
    %v1229 = vpop.permute.xlu0 %1228
    %s1231 = sor.u32 256, 53
    %1232 = vbcast.lane.b32.xlu0 %v1225, %s1231
    %v1233 = vpop.permute.xlu0 %1232
    %v1234 = vmul.f32 %v1217, %v237
    %v1235 = vmul.f32 %v1221, %v238
    %v1236 = vmul.f32 %v1229, %v237
    %v1237 = vmul.f32 %v1233, %v238
    %v1238 = vsel %vm222, %v1234, 0.0
    %v1239 = vsel %vm319, %v1235, 0.0
    %v1240 = vadd.f32 %v1238, %v1239
    %v1241 = vrot.slane %v1240, 4
    %v1242 = vadd.f32 %v1240, %v1241
    %v1243 = vrot.slane %v1242, 2
    %v1244 = vadd.f32 %v1242, %v1243
    %v1245 = vrot.slane %v1244, 1
    %v1246 = vadd.f32 %v1244, %v1245
    %v1247 = vsel %vm222, %v1236, 0.0
    %v1248 = vsel %vm319, %v1237, 0.0
    %v1249 = vadd.f32 %v1247, %v1248
    %v1250 = vrot.slane %v1249, 4
    %v1251 = vadd.f32 %v1249, %v1250
    %v1252 = vrot.slane %v1251, 2
    %v1253 = vadd.f32 %v1251, %v1252
    %v1254 = vrot.slane %v1253, 1
    %v1255 = vadd.f32 %v1253, %v1254
    %v1258 = vsel %vm339, %v1255, %v1246
    %v1260 = vadd.f32 %v1209, %v1258
    %v1261 = vxor.u32 %v1260, 2147483648
    %v1262 = vmul.f32 %v1261, 1.442695
    %v1263 = vpow.pop %v1262
    %v1264 = vadd.f32 %v1263, 1.0
    %v1265 = vrcp.pop %v1264
    %v1266 = vmul.f32 1.0, %v1265
    %v1267 = vmul.f32 %v1266, 2.0
    %v1268 = vsub.f32 %v1267, 1.0
    %v1269 = vmul.f32 %v1266, %v1177
    %1271 = vrot.lane.b32.xlu0 %v1268, 98
    %v1272 = vpop.permute.xlu0 %1271
    %v1274 = vmul.f32 %v1266, %v1272
    %1276 = vrot.lane.b32.xlu0 %v1274, 15
    %v1277 = vpop.permute.xlu0 %1276
    %v1279 = vadd.f32 %v1269, %v1277
    %v1280 = vtanh.pop %v1279
    %1282 = vrot.lane.b32.xlu0 %v1280, 30
    %v1283 = vpop.permute.xlu0 %1282
    %v1285 = vmul.f32 %v1266, %v1283
    %v1286 = vmax.f32 %v1285, 0.0
    %s1287 = scalar_lea.vmem %s4, 60
    %v1288 = vld [vmem:[%s1287] sm:$0x3]
    %1290 = vrot.lane.b32.xlu0 %v1288, 45
    %v1291 = vpop.permute.xlu0 %1290
    %v1293 = vmul.f32 %v1286, %v1291
    %v1294 = vadd.f32 %v1192, %v1293
    %s1295 = scalar_lea.vmem %s4, 62
    %v1296 = vld [vmem:[%s1295] sm:$0x3]
    %1298 = vrot.lane.b32.xlu0 %v1296, 45
    %v1299 = vpop.permute.xlu0 %1298
    %v1301 = vmul.f32 %v1286, %v1299
    %v1302 = vadd.f32 %v1200, %v1301
    %s1303 = scalar_lea.vmem %s4, 64
    %v1304 = vld [vmem:[%s1303] sm:$0x3]
    %1306 = vrot.lane.b32.xlu0 %v1304, 45
    %v1307 = vpop.permute.xlu0 %1306
    %v1309 = vmul.f32 %v1286, %v1307
    %v1310 = vadd.f32 %v1208, %v1309
    %v1311 = vld [vmem:[#allocation2 + $0x16] sm:$0x3]
    %v1312 = vlaneseq
    %v1313 = vshrl.u32 %v1312, 7
    %v1314 = vsub.s32 0, %v1313
    %v1315 = vrot.slane %v1285, %v1314
    %s1317 = sor.u32 256, 45
    %1318 = vbcast.lane.b32.xlu0 %v1315, %s1317
    %v1319 = vpop.permute.xlu0 %1318
    %s1321 = sor.u32 256, 53
    %1322 = vbcast.lane.b32.xlu0 %v1315, %s1321
    %v1323 = vpop.permute.xlu0 %1322
    %v1324 = vlaneseq
    %v1325 = vshrl.u32 %v1324, 7
    %v1326 = vsub.s32 1, %v1325
    %v1327 = vrot.slane %v1285, %v1326
    %s1329 = sor.u32 256, 45
    %1330 = vbcast.lane.b32.xlu0 %v1327, %s1329
    %v1331 = vpop.permute.xlu0 %1330
    %s1333 = sor.u32 256, 53
    %1334 = vbcast.lane.b32.xlu0 %v1327, %s1333
    %v1335 = vpop.permute.xlu0 %1334
    %v1336 = vmul.f32 %v1319, %v237
    %v1337 = vmul.f32 %v1323, %v238
    %v1338 = vmul.f32 %v1331, %v237
    %v1339 = vmul.f32 %v1335, %v238
    %v1340 = vsel %vm222, %v1336, 0.0
    %v1341 = vsel %vm319, %v1337, 0.0
    %v1342 = vadd.f32 %v1340, %v1341
    %v1343 = vrot.slane %v1342, 4
    %v1344 = vadd.f32 %v1342, %v1343
    %v1345 = vrot.slane %v1344, 2
    %v1346 = vadd.f32 %v1344, %v1345
    %v1347 = vrot.slane %v1346, 1
    %v1348 = vadd.f32 %v1346, %v1347
    %v1349 = vsel %vm222, %v1338, 0.0
    %v1350 = vsel %vm319, %v1339, 0.0
    %v1351 = vadd.f32 %v1349, %v1350
    %v1352 = vrot.slane %v1351, 4
    %v1353 = vadd.f32 %v1351, %v1352
    %v1354 = vrot.slane %v1353, 2
    %v1355 = vadd.f32 %v1353, %v1354
    %v1356 = vrot.slane %v1355, 1
    %v1357 = vadd.f32 %v1355, %v1356
    %v1360 = vsel %vm339, %v1357, %v1348
    %v1362 = vadd.f32 %v1311, %v1360
    %v1363 = vxor.u32 %v1362, 2147483648
    %v1364 = vmul.f32 %v1363, 1.442695
    %v1365 = vpow.pop %v1364
    %v1366 = vadd.f32 %v1365, 1.0
    %v1367 = vrcp.pop %v1366
    %v1368 = vmul.f32 1.0, %v1367
    %v1369 = vmul.f32 %v1368, 2.0
    %v1370 = vsub.f32 %v1369, 1.0
    %v1371 = vmul.f32 %v1368, %v1279
    %1373 = vrot.lane.b32.xlu0 %v1370, 98
    %v1374 = vpop.permute.xlu0 %1373
    %v1376 = vmul.f32 %v1368, %v1374
    %1378 = vrot.lane.b32.xlu0 %v1376, 15
    %v1379 = vpop.permute.xlu0 %1378
    %v1381 = vadd.f32 %v1371, %v1379
    %v1382 = vtanh.pop %v1381
    %1384 = vrot.lane.b32.xlu0 %v1382, 30
    %v1385 = vpop.permute.xlu0 %1384
    %v1387 = vmul.f32 %v1368, %v1385
    %v1388 = vmax.f32 %v1387, 0.0
    %s1389 = scalar_lea.vmem %s4, 66
    %v1390 = vld [vmem:[%s1389] sm:$0x3]
    %1392 = vrot.lane.b32.xlu0 %v1390, 45
    %v1393 = vpop.permute.xlu0 %1392
    %v1395 = vmul.f32 %v1388, %v1393
    %v1396 = vadd.f32 %v1294, %v1395
    %s1397 = scalar_lea.vmem %s4, 68
    %v1398 = vld [vmem:[%s1397] sm:$0x3]
    %1400 = vrot.lane.b32.xlu0 %v1398, 45
    %v1401 = vpop.permute.xlu0 %1400
    %v1403 = vmul.f32 %v1388, %v1401
    %v1404 = vadd.f32 %v1302, %v1403
    %s1405 = scalar_lea.vmem %s4, 70
    %v1406 = vld [vmem:[%s1405] sm:$0x3]
    %1408 = vrot.lane.b32.xlu0 %v1406, 45
    %v1409 = vpop.permute.xlu0 %1408
    %v1411 = vmul.f32 %v1388, %v1409
    %v1412 = vadd.f32 %v1310, %v1411
    %v1413 = vld [vmem:[#allocation2 + $0x18] sm:$0x3]
    %v1414 = vlaneseq
    %v1415 = vshrl.u32 %v1414, 7
    %v1416 = vsub.s32 0, %v1415
    %v1417 = vrot.slane %v1387, %v1416
    %s1419 = sor.u32 256, 45
    %1420 = vbcast.lane.b32.xlu0 %v1417, %s1419
    %v1421 = vpop.permute.xlu0 %1420
    %s1423 = sor.u32 256, 53
    %1424 = vbcast.lane.b32.xlu0 %v1417, %s1423
    %v1425 = vpop.permute.xlu0 %1424
    %v1426 = vlaneseq
    %v1427 = vshrl.u32 %v1426, 7
    %v1428 = vsub.s32 1, %v1427
    %v1429 = vrot.slane %v1387, %v1428
    %s1431 = sor.u32 256, 45
    %1432 = vbcast.lane.b32.xlu0 %v1429, %s1431
    %v1433 = vpop.permute.xlu0 %1432
    %s1435 = sor.u32 256, 53
    %1436 = vbcast.lane.b32.xlu0 %v1429, %s1435
    %v1437 = vpop.permute.xlu0 %1436
    %v1438 = vmul.f32 %v1421, %v237
    %v1439 = vmul.f32 %v1425, %v238
    %v1440 = vmul.f32 %v1433, %v237
    %v1441 = vmul.f32 %v1437, %v238
    %v1442 = vsel %vm222, %v1438, 0.0
    %v1443 = vsel %vm319, %v1439, 0.0
    %v1444 = vadd.f32 %v1442, %v1443
    %v1445 = vrot.slane %v1444, 4
    %v1446 = vadd.f32 %v1444, %v1445
    %v1447 = vrot.slane %v1446, 2
    %v1448 = vadd.f32 %v1446, %v1447
    %v1449 = vrot.slane %v1448, 1
    %v1450 = vadd.f32 %v1448, %v1449
    %v1451 = vsel %vm222, %v1440, 0.0
    %v1452 = vsel %vm319, %v1441, 0.0
    %v1453 = vadd.f32 %v1451, %v1452
    %v1454 = vrot.slane %v1453, 4
    %v1455 = vadd.f32 %v1453, %v1454
    %v1456 = vrot.slane %v1455, 2
    %v1457 = vadd.f32 %v1455, %v1456
    %v1458 = vrot.slane %v1457, 1
    %v1459 = vadd.f32 %v1457, %v1458
    %v1462 = vsel %vm339, %v1459, %v1450
    %v1464 = vadd.f32 %v1413, %v1462
    %v1465 = vxor.u32 %v1464, 2147483648
    %v1466 = vmul.f32 %v1465, 1.442695
    %v1467 = vpow.pop %v1466
    %v1468 = vadd.f32 %v1467, 1.0
    %v1469 = vrcp.pop %v1468
    %v1470 = vmul.f32 1.0, %v1469
    %v1471 = vmul.f32 %v1470, 2.0
    %v1472 = vsub.f32 %v1471, 1.0
    %v1473 = vmul.f32 %v1470, %v1381
    %1475 = vrot.lane.b32.xlu0 %v1472, 98
    %v1476 = vpop.permute.xlu0 %1475
    %v1478 = vmul.f32 %v1470, %v1476
    %1480 = vrot.lane.b32.xlu0 %v1478, 15
    %v1481 = vpop.permute.xlu0 %1480
    %v1483 = vadd.f32 %v1473, %v1481
    %v1484 = vtanh.pop %v1483
    %1486 = vrot.lane.b32.xlu0 %v1484, 30
    %v1487 = vpop.permute.xlu0 %1486
    %v1489 = vmul.f32 %v1470, %v1487
    %v1490 = vmax.f32 %v1489, 0.0
    %s1491 = scalar_lea.vmem %s4, 72
    %v1492 = vld [vmem:[%s1491] sm:$0x3]
    %1494 = vrot.lane.b32.xlu0 %v1492, 45
    %v1495 = vpop.permute.xlu0 %1494
    %v1497 = vmul.f32 %v1490, %v1495
    %v1498 = vadd.f32 %v1396, %v1497
    %s1499 = scalar_lea.vmem %s4, 74
    %v1500 = vld [vmem:[%s1499] sm:$0x3]
    %1502 = vrot.lane.b32.xlu0 %v1500, 45
    %v1503 = vpop.permute.xlu0 %1502
    %v1505 = vmul.f32 %v1490, %v1503
    %v1506 = vadd.f32 %v1404, %v1505
    %s1507 = scalar_lea.vmem %s4, 76
    %v1508 = vld [vmem:[%s1507] sm:$0x3]
    %1510 = vrot.lane.b32.xlu0 %v1508, 45
    %v1511 = vpop.permute.xlu0 %1510
    %v1513 = vmul.f32 %v1490, %v1511
    %v1514 = vadd.f32 %v1412, %v1513
    %v1515 = vld [vmem:[#allocation2 + $0x1a] sm:$0x3]
    %v1516 = vlaneseq
    %v1517 = vshrl.u32 %v1516, 7
    %v1518 = vsub.s32 0, %v1517
    %v1519 = vrot.slane %v1489, %v1518
    %s1521 = sor.u32 256, 45
    %1522 = vbcast.lane.b32.xlu0 %v1519, %s1521
    %v1523 = vpop.permute.xlu0 %1522
    %s1525 = sor.u32 256, 53
    %1526 = vbcast.lane.b32.xlu0 %v1519, %s1525
    %v1527 = vpop.permute.xlu0 %1526
    %v1528 = vlaneseq
    %v1529 = vshrl.u32 %v1528, 7
    %v1530 = vsub.s32 1, %v1529
    %v1531 = vrot.slane %v1489, %v1530
    %s1533 = sor.u32 256, 45
    %1534 = vbcast.lane.b32.xlu0 %v1531, %s1533
    %v1535 = vpop.permute.xlu0 %1534
    %s1537 = sor.u32 256, 53
    %1538 = vbcast.lane.b32.xlu0 %v1531, %s1537
    %v1539 = vpop.permute.xlu0 %1538
    %v1540 = vmul.f32 %v1523, %v237
    %v1541 = vmul.f32 %v1527, %v238
    %v1542 = vmul.f32 %v1535, %v237
    %v1543 = vmul.f32 %v1539, %v238
    %v1544 = vsel %vm222, %v1540, 0.0
    %v1545 = vsel %vm319, %v1541, 0.0
    %v1546 = vadd.f32 %v1544, %v1545
    %v1547 = vrot.slane %v1546, 4
    %v1548 = vadd.f32 %v1546, %v1547
    %v1549 = vrot.slane %v1548, 2
    %v1550 = vadd.f32 %v1548, %v1549
    %v1551 = vrot.slane %v1550, 1
    %v1552 = vadd.f32 %v1550, %v1551
    %v1553 = vsel %vm222, %v1542, 0.0
    %v1554 = vsel %vm319, %v1543, 0.0
    %v1555 = vadd.f32 %v1553, %v1554
    %v1556 = vrot.slane %v1555, 4
    %v1557 = vadd.f32 %v1555, %v1556
    %v1558 = vrot.slane %v1557, 2
    %v1559 = vadd.f32 %v1557, %v1558
    %v1560 = vrot.slane %v1559, 1
    %v1561 = vadd.f32 %v1559, %v1560
    %v1564 = vsel %vm339, %v1561, %v1552
    %v1566 = vadd.f32 %v1515, %v1564
    %v1567 = vxor.u32 %v1566, 2147483648
    %v1568 = vmul.f32 %v1567, 1.442695
    %v1569 = vpow.pop %v1568
    %v1570 = vadd.f32 %v1569, 1.0
    %v1571 = vrcp.pop %v1570
    %v1572 = vmul.f32 1.0, %v1571
    %v1573 = vmul.f32 %v1572, 2.0
    %v1574 = vsub.f32 %v1573, 1.0
    %v1575 = vmul.f32 %v1572, %v1483
    %1577 = vrot.lane.b32.xlu0 %v1574, 98
    %v1578 = vpop.permute.xlu0 %1577
    %v1580 = vmul.f32 %v1572, %v1578
    %1582 = vrot.lane.b32.xlu0 %v1580, 15
    %v1583 = vpop.permute.xlu0 %1582
    %v1585 = vadd.f32 %v1575, %v1583
    %v1586 = vtanh.pop %v1585
    %1588 = vrot.lane.b32.xlu0 %v1586, 30
    %v1589 = vpop.permute.xlu0 %1588
    %v1591 = vmul.f32 %v1572, %v1589
    %v1592 = vmax.f32 %v1591, 0.0
    %s1593 = scalar_lea.vmem %s4, 78
    %v1594 = vld [vmem:[%s1593] sm:$0x3]
    %1596 = vrot.lane.b32.xlu0 %v1594, 45
    %v1597 = vpop.permute.xlu0 %1596
    %v1599 = vmul.f32 %v1592, %v1597
    %v1600 = vadd.f32 %v1498, %v1599
    %s1601 = scalar_lea.vmem %s4, 80
    %v1602 = vld [vmem:[%s1601] sm:$0x3]
    %1604 = vrot.lane.b32.xlu0 %v1602, 45
    %v1605 = vpop.permute.xlu0 %1604
    %v1607 = vmul.f32 %v1592, %v1605
    %v1608 = vadd.f32 %v1506, %v1607
    %s1609 = scalar_lea.vmem %s4, 82
    %v1610 = vld [vmem:[%s1609] sm:$0x3]
    %1612 = vrot.lane.b32.xlu0 %v1610, 45
    %v1613 = vpop.permute.xlu0 %1612
    %v1615 = vmul.f32 %v1592, %v1613
    %v1616 = vadd.f32 %v1514, %v1615
    %v1617 = vld [vmem:[#allocation2 + $0x1c] sm:$0x3]
    %v1618 = vlaneseq
    %v1619 = vshrl.u32 %v1618, 7
    %v1620 = vsub.s32 0, %v1619
    %v1621 = vrot.slane %v1591, %v1620
    %s1623 = sor.u32 256, 45
    %1624 = vbcast.lane.b32.xlu0 %v1621, %s1623
    %v1625 = vpop.permute.xlu0 %1624
    %s1627 = sor.u32 256, 53
    %1628 = vbcast.lane.b32.xlu0 %v1621, %s1627
    %v1629 = vpop.permute.xlu0 %1628
    %v1630 = vlaneseq
    %v1631 = vshrl.u32 %v1630, 7
    %v1632 = vsub.s32 1, %v1631
    %v1633 = vrot.slane %v1591, %v1632
    %s1635 = sor.u32 256, 45
    %1636 = vbcast.lane.b32.xlu0 %v1633, %s1635
    %v1637 = vpop.permute.xlu0 %1636
    %s1639 = sor.u32 256, 53
    %1640 = vbcast.lane.b32.xlu0 %v1633, %s1639
    %v1641 = vpop.permute.xlu0 %1640
    %v1642 = vmul.f32 %v1625, %v237
    %v1643 = vmul.f32 %v1629, %v238
    %v1644 = vmul.f32 %v1637, %v237
    %v1645 = vmul.f32 %v1641, %v238
    %v1646 = vsel %vm222, %v1642, 0.0
    %v1647 = vsel %vm319, %v1643, 0.0
    %v1648 = vadd.f32 %v1646, %v1647
    %v1649 = vrot.slane %v1648, 4
    %v1650 = vadd.f32 %v1648, %v1649
    %v1651 = vrot.slane %v1650, 2
    %v1652 = vadd.f32 %v1650, %v1651
    %v1653 = vrot.slane %v1652, 1
    %v1654 = vadd.f32 %v1652, %v1653
    %v1655 = vsel %vm222, %v1644, 0.0
    %v1656 = vsel %vm319, %v1645, 0.0
    %v1657 = vadd.f32 %v1655, %v1656
    %v1658 = vrot.slane %v1657, 4
    %v1659 = vadd.f32 %v1657, %v1658
    %v1660 = vrot.slane %v1659, 2
    %v1661 = vadd.f32 %v1659, %v1660
    %v1662 = vrot.slane %v1661, 1
    %v1663 = vadd.f32 %v1661, %v1662
    %v1666 = vsel %vm339, %v1663, %v1654
    %v1668 = vadd.f32 %v1617, %v1666
    %v1669 = vxor.u32 %v1668, 2147483648
    %v1670 = vmul.f32 %v1669, 1.442695
    %v1671 = vpow.pop %v1670
    %v1672 = vadd.f32 %v1671, 1.0
    %v1673 = vrcp.pop %v1672
    %v1674 = vmul.f32 1.0, %v1673
    %v1675 = vmul.f32 %v1674, 2.0
    %v1676 = vsub.f32 %v1675, 1.0
    %v1677 = vmul.f32 %v1674, %v1585
    %1679 = vrot.lane.b32.xlu0 %v1676, 98
    %v1680 = vpop.permute.xlu0 %1679
    %v1682 = vmul.f32 %v1674, %v1680
    %1684 = vrot.lane.b32.xlu0 %v1682, 15
    %v1685 = vpop.permute.xlu0 %1684
    %v1687 = vadd.f32 %v1677, %v1685
    %v1688 = vtanh.pop %v1687
    %1690 = vrot.lane.b32.xlu0 %v1688, 30
    %v1691 = vpop.permute.xlu0 %1690
    %v1693 = vmul.f32 %v1674, %v1691
    %v1694 = vmax.f32 %v1693, 0.0
    %s1695 = scalar_lea.vmem %s4, 84
    %v1696 = vld [vmem:[%s1695] sm:$0x3]
    %1698 = vrot.lane.b32.xlu0 %v1696, 45
    %v1699 = vpop.permute.xlu0 %1698
    %v1701 = vmul.f32 %v1694, %v1699
    %v1702 = vadd.f32 %v1600, %v1701
    %s1703 = scalar_lea.vmem %s4, 86
    %v1704 = vld [vmem:[%s1703] sm:$0x3]
    %1706 = vrot.lane.b32.xlu0 %v1704, 45
    %v1707 = vpop.permute.xlu0 %1706
    %v1709 = vmul.f32 %v1694, %v1707
    %v1710 = vadd.f32 %v1608, %v1709
    %s1711 = scalar_lea.vmem %s4, 88
    %v1712 = vld [vmem:[%s1711] sm:$0x3]
    %1714 = vrot.lane.b32.xlu0 %v1712, 45
    %v1715 = vpop.permute.xlu0 %1714
    %v1717 = vmul.f32 %v1694, %v1715
    %v1718 = vadd.f32 %v1616, %v1717
    %v1719 = vld [vmem:[#allocation2 + $0x1e] sm:$0x3]
    %v1720 = vlaneseq
    %v1721 = vshrl.u32 %v1720, 7
    %v1722 = vsub.s32 0, %v1721
    %v1723 = vrot.slane %v1693, %v1722
    %s1725 = sor.u32 256, 45
    %1726 = vbcast.lane.b32.xlu0 %v1723, %s1725
    %v1727 = vpop.permute.xlu0 %1726
    %s1729 = sor.u32 256, 53
    %1730 = vbcast.lane.b32.xlu0 %v1723, %s1729
    %v1731 = vpop.permute.xlu0 %1730
    %v1732 = vlaneseq
    %v1733 = vshrl.u32 %v1732, 7
    %v1734 = vsub.s32 1, %v1733
    %v1735 = vrot.slane %v1693, %v1734
    %s1737 = sor.u32 256, 45
    %1738 = vbcast.lane.b32.xlu0 %v1735, %s1737
    %v1739 = vpop.permute.xlu0 %1738
    %s1741 = sor.u32 256, 53
    %1742 = vbcast.lane.b32.xlu0 %v1735, %s1741
    %v1743 = vpop.permute.xlu0 %1742
    %v1744 = vmul.f32 %v1727, %v237
    %v1745 = vmul.f32 %v1731, %v238
    %v1746 = vmul.f32 %v1739, %v237
    %v1747 = vmul.f32 %v1743, %v238
    %v1748 = vsel %vm222, %v1744, 0.0
    %v1749 = vsel %vm319, %v1745, 0.0
    %v1750 = vadd.f32 %v1748, %v1749
    %v1751 = vrot.slane %v1750, 4
    %v1752 = vadd.f32 %v1750, %v1751
    %v1753 = vrot.slane %v1752, 2
    %v1754 = vadd.f32 %v1752, %v1753
    %v1755 = vrot.slane %v1754, 1
    %v1756 = vadd.f32 %v1754, %v1755
    %v1757 = vsel %vm222, %v1746, 0.0
    %v1758 = vsel %vm319, %v1747, 0.0
    %v1759 = vadd.f32 %v1757, %v1758
    %v1760 = vrot.slane %v1759, 4
    %v1761 = vadd.f32 %v1759, %v1760
    %v1762 = vrot.slane %v1761, 2
    %v1763 = vadd.f32 %v1761, %v1762
    %v1764 = vrot.slane %v1763, 1
    %v1765 = vadd.f32 %v1763, %v1764
    %v1768 = vsel %vm339, %v1765, %v1756
    %v1770 = vadd.f32 %v1719, %v1768
    %v1771 = vxor.u32 %v1770, 2147483648
    %v1772 = vmul.f32 %v1771, 1.442695
    %v1773 = vpow.pop %v1772
    %v1774 = vadd.f32 %v1773, 1.0
    %v1775 = vrcp.pop %v1774
    %v1776 = vmul.f32 1.0, %v1775
    %v1777 = vmul.f32 %v1776, 2.0
    %v1778 = vsub.f32 %v1777, 1.0
    %v1779 = vmul.f32 %v1776, %v1687
    %1781 = vrot.lane.b32.xlu0 %v1778, 98
    %v1782 = vpop.permute.xlu0 %1781
    %v1784 = vmul.f32 %v1776, %v1782
    %1786 = vrot.lane.b32.xlu0 %v1784, 15
    %v1787 = vpop.permute.xlu0 %1786
    %v1789 = vadd.f32 %v1779, %v1787
    %v1790 = vtanh.pop %v1789
    %1792 = vrot.lane.b32.xlu0 %v1790, 30
    %v1793 = vpop.permute.xlu0 %1792
    %v1795 = vmul.f32 %v1776, %v1793
    %v1796 = vmax.f32 %v1795, 0.0
    %s1797 = scalar_lea.vmem %s4, 90
    %v1798 = vld [vmem:[%s1797] sm:$0x3]
    %1800 = vrot.lane.b32.xlu0 %v1798, 45
    %v1801 = vpop.permute.xlu0 %1800
    %v1803 = vmul.f32 %v1796, %v1801
    %v1804 = vadd.f32 %v1702, %v1803
    %s1805 = scalar_lea.vmem %s4, 92
    %v1806 = vld [vmem:[%s1805] sm:$0x3]
    %1808 = vrot.lane.b32.xlu0 %v1806, 45
    %v1809 = vpop.permute.xlu0 %1808
    %v1811 = vmul.f32 %v1796, %v1809
    %v1812 = vadd.f32 %v1710, %v1811
    %s1813 = scalar_lea.vmem %s4, 94
    %v1814 = vld [vmem:[%s1813] sm:$0x3]
    %1816 = vrot.lane.b32.xlu0 %v1814, 45
    %v1817 = vpop.permute.xlu0 %1816
    %v1819 = vmul.f32 %v1796, %v1817
    %v1820 = vadd.f32 %v1718, %v1819
    %v1821 = vld [vmem:[#allocation2 + $0x20] sm:$0x3]
    %v1822 = vlaneseq
    %v1823 = vshrl.u32 %v1822, 7
    %v1824 = vsub.s32 0, %v1823
    %v1825 = vrot.slane %v1795, %v1824
    %s1827 = sor.u32 256, 45
    %1828 = vbcast.lane.b32.xlu0 %v1825, %s1827
    %v1829 = vpop.permute.xlu0 %1828
    %s1831 = sor.u32 256, 53
    %1832 = vbcast.lane.b32.xlu0 %v1825, %s1831
    %v1833 = vpop.permute.xlu0 %1832
    %v1834 = vlaneseq
    %v1835 = vshrl.u32 %v1834, 7
    %v1836 = vsub.s32 1, %v1835
    %v1837 = vrot.slane %v1795, %v1836
    %s1839 = sor.u32 256, 45
    %1840 = vbcast.lane.b32.xlu0 %v1837, %s1839
    %v1841 = vpop.permute.xlu0 %1840
    %s1843 = sor.u32 256, 53
    %1844 = vbcast.lane.b32.xlu0 %v1837, %s1843
    %v1845 = vpop.permute.xlu0 %1844
    %v1846 = vmul.f32 %v1829, %v237
    %v1847 = vmul.f32 %v1833, %v238
    %v1848 = vmul.f32 %v1841, %v237
    %v1849 = vmul.f32 %v1845, %v238
    %v1850 = vsel %vm222, %v1846, 0.0
    %v1851 = vsel %vm319, %v1847, 0.0
    %v1852 = vadd.f32 %v1850, %v1851
    %v1853 = vrot.slane %v1852, 4
    %v1854 = vadd.f32 %v1852, %v1853
    %v1855 = vrot.slane %v1854, 2
    %v1856 = vadd.f32 %v1854, %v1855
    %v1857 = vrot.slane %v1856, 1
    %v1858 = vadd.f32 %v1856, %v1857
    %v1859 = vsel %vm222, %v1848, 0.0
    %v1860 = vsel %vm319, %v1849, 0.0
    %v1861 = vadd.f32 %v1859, %v1860
    %v1862 = vrot.slane %v1861, 4
    %v1863 = vadd.f32 %v1861, %v1862
    %v1864 = vrot.slane %v1863, 2
    %v1865 = vadd.f32 %v1863, %v1864
    %v1866 = vrot.slane %v1865, 1
    %v1867 = vadd.f32 %v1865, %v1866
    %v1870 = vsel %vm339, %v1867, %v1858
    %v1872 = vadd.f32 %v1821, %v1870
    %v1873 = vxor.u32 %v1872, 2147483648
    %v1874 = vmul.f32 %v1873, 1.442695
    %v1875 = vpow.pop %v1874
    %v1876 = vadd.f32 %v1875, 1.0
    %v1877 = vrcp.pop %v1876
    %v1878 = vmul.f32 1.0, %v1877
    %v1879 = vmul.f32 %v1878, 2.0
    %v1880 = vsub.f32 %v1879, 1.0
    %v1881 = vmul.f32 %v1878, %v1789
    %1883 = vrot.lane.b32.xlu0 %v1880, 98
    %v1884 = vpop.permute.xlu0 %1883
    %v1886 = vmul.f32 %v1878, %v1884
    %1888 = vrot.lane.b32.xlu0 %v1886, 15
    %v1889 = vpop.permute.xlu0 %1888
    %v1891 = vadd.f32 %v1881, %v1889
    %v1892 = vtanh.pop %v1891
    %1894 = vrot.lane.b32.xlu0 %v1892, 30
    %v1895 = vpop.permute.xlu0 %1894
    %v1897 = vmul.f32 %v1878, %v1895
    %v1898 = vmax.f32 %v1897, 0.0
    %s1899 = scalar_lea.vmem %s4, 96
    %v1900 = vld [vmem:[%s1899] sm:$0x3]
    %1902 = vrot.lane.b32.xlu0 %v1900, 45
    %v1903 = vpop.permute.xlu0 %1902
    %v1905 = vmul.f32 %v1898, %v1903
    %v1906 = vadd.f32 %v1804, %v1905
    %s1907 = scalar_lea.vmem %s4, 98
    %v1908 = vld [vmem:[%s1907] sm:$0x3]
    %1910 = vrot.lane.b32.xlu0 %v1908, 45
    %v1911 = vpop.permute.xlu0 %1910
    %v1913 = vmul.f32 %v1898, %v1911
    %v1914 = vadd.f32 %v1812, %v1913
    %s1915 = scalar_lea.vmem %s4, 100
    %v1916 = vld [vmem:[%s1915] sm:$0x3]
    %1918 = vrot.lane.b32.xlu0 %v1916, 45
    %v1919 = vpop.permute.xlu0 %1918
    %v1921 = vmul.f32 %v1898, %v1919
    %v1922 = vadd.f32 %v1820, %v1921
    %v1923 = vld [vmem:[#allocation2 + $0x22] sm:$0x3]
    %v1924 = vlaneseq
    %v1925 = vshrl.u32 %v1924, 7
    %v1926 = vsub.s32 0, %v1925
    %v1927 = vrot.slane %v1897, %v1926
    %s1929 = sor.u32 256, 45
    %1930 = vbcast.lane.b32.xlu0 %v1927, %s1929
    %v1931 = vpop.permute.xlu0 %1930
    %s1933 = sor.u32 256, 53
    %1934 = vbcast.lane.b32.xlu0 %v1927, %s1933
    %v1935 = vpop.permute.xlu0 %1934
    %v1936 = vlaneseq
    %v1937 = vshrl.u32 %v1936, 7
    %v1938 = vsub.s32 1, %v1937
    %v1939 = vrot.slane %v1897, %v1938
    %s1941 = sor.u32 256, 45
    %1942 = vbcast.lane.b32.xlu0 %v1939, %s1941
    %v1943 = vpop.permute.xlu0 %1942
    %s1945 = sor.u32 256, 53
    %1946 = vbcast.lane.b32.xlu0 %v1939, %s1945
    %v1947 = vpop.permute.xlu0 %1946
    %v1948 = vmul.f32 %v1931, %v237
    %v1949 = vmul.f32 %v1935, %v238
    %v1950 = vmul.f32 %v1943, %v237
    %v1951 = vmul.f32 %v1947, %v238
    %v1952 = vsel %vm222, %v1948, 0.0
    %v1953 = vsel %vm319, %v1949, 0.0
    %v1954 = vadd.f32 %v1952, %v1953
    %v1955 = vrot.slane %v1954, 4
    %v1956 = vadd.f32 %v1954, %v1955
    %v1957 = vrot.slane %v1956, 2
    %v1958 = vadd.f32 %v1956, %v1957
    %v1959 = vrot.slane %v1958, 1
    %v1960 = vadd.f32 %v1958, %v1959
    %v1961 = vsel %vm222, %v1950, 0.0
    %v1962 = vsel %vm319, %v1951, 0.0
    %v1963 = vadd.f32 %v1961, %v1962
    %v1964 = vrot.slane %v1963, 4
    %v1965 = vadd.f32 %v1963, %v1964
    %v1966 = vrot.slane %v1965, 2
    %v1967 = vadd.f32 %v1965, %v1966
    %v1968 = vrot.slane %v1967, 1
    %v1969 = vadd.f32 %v1967, %v1968
    %v1972 = vsel %vm339, %v1969, %v1960
    %v1974 = vadd.f32 %v1923, %v1972
    %v1975 = vxor.u32 %v1974, 2147483648
    %v1976 = vmul.f32 %v1975, 1.442695
    %v1977 = vpow.pop %v1976
    %v1978 = vadd.f32 %v1977, 1.0
    %v1979 = vrcp.pop %v1978
    %v1980 = vmul.f32 1.0, %v1979
    %v1981 = vmul.f32 %v1980, 2.0
    %v1982 = vsub.f32 %v1981, 1.0
    %v1983 = vmul.f32 %v1980, %v1891
    %1985 = vrot.lane.b32.xlu0 %v1982, 98
    %v1986 = vpop.permute.xlu0 %1985
    %v1988 = vmul.f32 %v1980, %v1986
    %1990 = vrot.lane.b32.xlu0 %v1988, 15
    %v1991 = vpop.permute.xlu0 %1990
    %v1993 = vadd.f32 %v1983, %v1991
    %v1994 = vtanh.pop %v1993
    %1996 = vrot.lane.b32.xlu0 %v1994, 30
    %v1997 = vpop.permute.xlu0 %1996
    %v1999 = vmul.f32 %v1980, %v1997
    %v2000 = vmax.f32 %v1999, 0.0
    %s2001 = scalar_lea.vmem %s4, 102
    %v2002 = vld [vmem:[%s2001] sm:$0x3]
    %2004 = vrot.lane.b32.xlu0 %v2002, 45
    %v2005 = vpop.permute.xlu0 %2004
    %v2007 = vmul.f32 %v2000, %v2005
    %v2008 = vadd.f32 %v1906, %v2007
    %s2009 = scalar_lea.vmem %s4, 104
    %v2010 = vld [vmem:[%s2009] sm:$0x3]
    %2012 = vrot.lane.b32.xlu0 %v2010, 45
    %v2013 = vpop.permute.xlu0 %2012
    %v2015 = vmul.f32 %v2000, %v2013
    %v2016 = vadd.f32 %v1914, %v2015
    %s2017 = scalar_lea.vmem %s4, 106
    %v2018 = vld [vmem:[%s2017] sm:$0x3]
    %2020 = vrot.lane.b32.xlu0 %v2018, 45
    %v2021 = vpop.permute.xlu0 %2020
    %v2023 = vmul.f32 %v2000, %v2021
    %v2024 = vadd.f32 %v1922, %v2023
    %v2025 = vld [vmem:[#allocation2 + $0x24] sm:$0x3]
    %v2026 = vlaneseq
    %v2027 = vshrl.u32 %v2026, 7
    %v2028 = vsub.s32 0, %v2027
    %v2029 = vrot.slane %v1999, %v2028
    %s2031 = sor.u32 256, 45
    %2032 = vbcast.lane.b32.xlu0 %v2029, %s2031
    %v2033 = vpop.permute.xlu0 %2032
    %s2035 = sor.u32 256, 53
    %2036 = vbcast.lane.b32.xlu0 %v2029, %s2035
    %v2037 = vpop.permute.xlu0 %2036
    %v2038 = vlaneseq
    %v2039 = vshrl.u32 %v2038, 7
    %v2040 = vsub.s32 1, %v2039
    %v2041 = vrot.slane %v1999, %v2040
    %s2043 = sor.u32 256, 45
    %2044 = vbcast.lane.b32.xlu0 %v2041, %s2043
    %v2045 = vpop.permute.xlu0 %2044
    %s2047 = sor.u32 256, 53
    %2048 = vbcast.lane.b32.xlu0 %v2041, %s2047
    %v2049 = vpop.permute.xlu0 %2048
    %v2050 = vmul.f32 %v2033, %v237
    %v2051 = vmul.f32 %v2037, %v238
    %v2052 = vmul.f32 %v2045, %v237
    %v2053 = vmul.f32 %v2049, %v238
    %v2054 = vsel %vm222, %v2050, 0.0
    %v2055 = vsel %vm319, %v2051, 0.0
    %v2056 = vadd.f32 %v2054, %v2055
    %v2057 = vrot.slane %v2056, 4
    %v2058 = vadd.f32 %v2056, %v2057
    %v2059 = vrot.slane %v2058, 2
    %v2060 = vadd.f32 %v2058, %v2059
    %v2061 = vrot.slane %v2060, 1
    %v2062 = vadd.f32 %v2060, %v2061
    %v2063 = vsel %vm222, %v2052, 0.0
    %v2064 = vsel %vm319, %v2053, 0.0
    %v2065 = vadd.f32 %v2063, %v2064
    %v2066 = vrot.slane %v2065, 4
    %v2067 = vadd.f32 %v2065, %v2066
    %v2068 = vrot.slane %v2067, 2
    %v2069 = vadd.f32 %v2067, %v2068
    %v2070 = vrot.slane %v2069, 1
    %v2071 = vadd.f32 %v2069, %v2070
    %v2074 = vsel %vm339, %v2071, %v2062
    %v2076 = vadd.f32 %v2025, %v2074
    %v2077 = vxor.u32 %v2076, 2147483648
    %v2078 = vmul.f32 %v2077, 1.442695
    %v2079 = vpow.pop %v2078
    %v2080 = vadd.f32 %v2079, 1.0
    %v2081 = vrcp.pop %v2080
    %v2082 = vmul.f32 1.0, %v2081
    %v2083 = vmul.f32 %v2082, 2.0
    %v2084 = vsub.f32 %v2083, 1.0
    %v2085 = vmul.f32 %v2082, %v1993
    %2087 = vrot.lane.b32.xlu0 %v2084, 98
    %v2088 = vpop.permute.xlu0 %2087
    %v2090 = vmul.f32 %v2082, %v2088
    %2092 = vrot.lane.b32.xlu0 %v2090, 15
    %v2093 = vpop.permute.xlu0 %2092
    %v2095 = vadd.f32 %v2085, %v2093
    %v2096 = vtanh.pop %v2095
    %2098 = vrot.lane.b32.xlu0 %v2096, 30
    %v2099 = vpop.permute.xlu0 %2098
    %v2101 = vmul.f32 %v2082, %v2099
    %v2102 = vmax.f32 %v2101, 0.0
    %s2103 = scalar_lea.vmem %s4, 108
    %v2104 = vld [vmem:[%s2103] sm:$0x3]
    %2106 = vrot.lane.b32.xlu0 %v2104, 45
    %v2107 = vpop.permute.xlu0 %2106
    %v2109 = vmul.f32 %v2102, %v2107
    %v2110 = vadd.f32 %v2008, %v2109
    %s2111 = scalar_lea.vmem %s4, 110
    %v2112 = vld [vmem:[%s2111] sm:$0x3]
    %2114 = vrot.lane.b32.xlu0 %v2112, 45
    %v2115 = vpop.permute.xlu0 %2114
    %v2117 = vmul.f32 %v2102, %v2115
    %v2118 = vadd.f32 %v2016, %v2117
    %s2119 = scalar_lea.vmem %s4, 112
    %v2120 = vld [vmem:[%s2119] sm:$0x3]
    %2122 = vrot.lane.b32.xlu0 %v2120, 45
    %v2123 = vpop.permute.xlu0 %2122
    %v2125 = vmul.f32 %v2102, %v2123
    %v2126 = vadd.f32 %v2024, %v2125
    %v2127 = vld [vmem:[#allocation2 + $0x26] sm:$0x3]
    %v2128 = vlaneseq
    %v2129 = vshrl.u32 %v2128, 7
    %v2130 = vsub.s32 0, %v2129
    %v2131 = vrot.slane %v2101, %v2130
    %s2133 = sor.u32 256, 45
    %2134 = vbcast.lane.b32.xlu0 %v2131, %s2133
    %v2135 = vpop.permute.xlu0 %2134
    %s2137 = sor.u32 256, 53
    %2138 = vbcast.lane.b32.xlu0 %v2131, %s2137
    %v2139 = vpop.permute.xlu0 %2138
    %v2140 = vlaneseq
    %v2141 = vshrl.u32 %v2140, 7
    %v2142 = vsub.s32 1, %v2141
    %v2143 = vrot.slane %v2101, %v2142
    %s2145 = sor.u32 256, 45
    %2146 = vbcast.lane.b32.xlu0 %v2143, %s2145
    %v2147 = vpop.permute.xlu0 %2146
    %s2149 = sor.u32 256, 53
    %2150 = vbcast.lane.b32.xlu0 %v2143, %s2149
    %v2151 = vpop.permute.xlu0 %2150
    %v2152 = vmul.f32 %v2135, %v237
    %v2153 = vmul.f32 %v2139, %v238
    %v2154 = vmul.f32 %v2147, %v237
    %v2155 = vmul.f32 %v2151, %v238
    %v2156 = vsel %vm222, %v2152, 0.0
    %v2157 = vsel %vm319, %v2153, 0.0
    %v2158 = vadd.f32 %v2156, %v2157
    %v2159 = vrot.slane %v2158, 4
    %v2160 = vadd.f32 %v2158, %v2159
    %v2161 = vrot.slane %v2160, 2
    %v2162 = vadd.f32 %v2160, %v2161
    %v2163 = vrot.slane %v2162, 1
    %v2164 = vadd.f32 %v2162, %v2163
    %v2165 = vsel %vm222, %v2154, 0.0
    %v2166 = vsel %vm319, %v2155, 0.0
    %v2167 = vadd.f32 %v2165, %v2166
    %v2168 = vrot.slane %v2167, 4
    %v2169 = vadd.f32 %v2167, %v2168
    %v2170 = vrot.slane %v2169, 2
    %v2171 = vadd.f32 %v2169, %v2170
    %v2172 = vrot.slane %v2171, 1
    %v2173 = vadd.f32 %v2171, %v2172
    %v2176 = vsel %vm339, %v2173, %v2164
    %v2178 = vadd.f32 %v2127, %v2176
    %v2179 = vxor.u32 %v2178, 2147483648
    %v2180 = vmul.f32 %v2179, 1.442695
    %v2181 = vpow.pop %v2180
    %v2182 = vadd.f32 %v2181, 1.0
    %v2183 = vrcp.pop %v2182
    %v2184 = vmul.f32 1.0, %v2183
    %v2185 = vmul.f32 %v2184, 2.0
    %v2186 = vsub.f32 %v2185, 1.0
    %v2187 = vmul.f32 %v2184, %v2095
    %2189 = vrot.lane.b32.xlu0 %v2186, 98
    %v2190 = vpop.permute.xlu0 %2189
    %v2192 = vmul.f32 %v2184, %v2190
    %2194 = vrot.lane.b32.xlu0 %v2192, 15
    %v2195 = vpop.permute.xlu0 %2194
    %v2197 = vadd.f32 %v2187, %v2195
    %v2198 = vtanh.pop %v2197
    %2200 = vrot.lane.b32.xlu0 %v2198, 30
    %v2201 = vpop.permute.xlu0 %2200
    %v2203 = vmul.f32 %v2184, %v2201
    %v2204 = vmax.f32 %v2203, 0.0
    %s2205 = scalar_lea.vmem %s4, 114
    %v2206 = vld [vmem:[%s2205] sm:$0x3]
    %2208 = vrot.lane.b32.xlu0 %v2206, 45
    %v2209 = vpop.permute.xlu0 %2208
    %v2211 = vmul.f32 %v2204, %v2209
    %v2212 = vadd.f32 %v2110, %v2211
    %s2213 = scalar_lea.vmem %s4, 116
    %v2214 = vld [vmem:[%s2213] sm:$0x3]
    %2216 = vrot.lane.b32.xlu0 %v2214, 45
    %v2217 = vpop.permute.xlu0 %2216
    %v2219 = vmul.f32 %v2204, %v2217
    %v2220 = vadd.f32 %v2118, %v2219
    %s2221 = scalar_lea.vmem %s4, 118
    %v2222 = vld [vmem:[%s2221] sm:$0x3]
    %2224 = vrot.lane.b32.xlu0 %v2222, 45
    %v2225 = vpop.permute.xlu0 %2224
    %v2227 = vmul.f32 %v2204, %v2225
    %v2228 = vadd.f32 %v2126, %v2227
    %v2229 = vld [vmem:[#allocation2 + $0x28] sm:$0x3]
    %v2230 = vlaneseq
    %v2231 = vshrl.u32 %v2230, 7
    %v2232 = vsub.s32 0, %v2231
    %v2233 = vrot.slane %v2203, %v2232
    %s2235 = sor.u32 256, 45
    %2236 = vbcast.lane.b32.xlu0 %v2233, %s2235
    %v2237 = vpop.permute.xlu0 %2236
    %s2239 = sor.u32 256, 53
    %2240 = vbcast.lane.b32.xlu0 %v2233, %s2239
    %v2241 = vpop.permute.xlu0 %2240
    %v2242 = vlaneseq
    %v2243 = vshrl.u32 %v2242, 7
    %v2244 = vsub.s32 1, %v2243
    %v2245 = vrot.slane %v2203, %v2244
    %s2247 = sor.u32 256, 45
    %2248 = vbcast.lane.b32.xlu0 %v2245, %s2247
    %v2249 = vpop.permute.xlu0 %2248
    %s2251 = sor.u32 256, 53
    %2252 = vbcast.lane.b32.xlu0 %v2245, %s2251
    %v2253 = vpop.permute.xlu0 %2252
    %v2254 = vmul.f32 %v2237, %v237
    %v2255 = vmul.f32 %v2241, %v238
    %v2256 = vmul.f32 %v2249, %v237
    %v2257 = vmul.f32 %v2253, %v238
    %v2258 = vsel %vm222, %v2254, 0.0
    %v2259 = vsel %vm319, %v2255, 0.0
    %v2260 = vadd.f32 %v2258, %v2259
    %v2261 = vrot.slane %v2260, 4
    %v2262 = vadd.f32 %v2260, %v2261
    %v2263 = vrot.slane %v2262, 2
    %v2264 = vadd.f32 %v2262, %v2263
    %v2265 = vrot.slane %v2264, 1
    %v2266 = vadd.f32 %v2264, %v2265
    %v2267 = vsel %vm222, %v2256, 0.0
    %v2268 = vsel %vm319, %v2257, 0.0
    %v2269 = vadd.f32 %v2267, %v2268
    %v2270 = vrot.slane %v2269, 4
    %v2271 = vadd.f32 %v2269, %v2270
    %v2272 = vrot.slane %v2271, 2
    %v2273 = vadd.f32 %v2271, %v2272
    %v2274 = vrot.slane %v2273, 1
    %v2275 = vadd.f32 %v2273, %v2274
    %v2278 = vsel %vm339, %v2275, %v2266
    %v2280 = vadd.f32 %v2229, %v2278
    %v2281 = vxor.u32 %v2280, 2147483648
    %v2282 = vmul.f32 %v2281, 1.442695
    %v2283 = vpow.pop %v2282
    %v2284 = vadd.f32 %v2283, 1.0
    %v2285 = vrcp.pop %v2284
    %v2286 = vmul.f32 1.0, %v2285
    %v2287 = vmul.f32 %v2286, 2.0
    %v2288 = vsub.f32 %v2287, 1.0
    %v2289 = vmul.f32 %v2286, %v2197
    %2291 = vrot.lane.b32.xlu0 %v2288, 98
    %v2292 = vpop.permute.xlu0 %2291
    %v2294 = vmul.f32 %v2286, %v2292
    %2296 = vrot.lane.b32.xlu0 %v2294, 15
    %v2297 = vpop.permute.xlu0 %2296
    %v2299 = vadd.f32 %v2289, %v2297
    %v2300 = vtanh.pop %v2299
    %2302 = vrot.lane.b32.xlu0 %v2300, 30
    %v2303 = vpop.permute.xlu0 %2302
    %v2305 = vmul.f32 %v2286, %v2303
    %v2306 = vmax.f32 %v2305, 0.0
    %s2307 = scalar_lea.vmem %s4, 120
    %v2308 = vld [vmem:[%s2307] sm:$0x3]
    %2310 = vrot.lane.b32.xlu0 %v2308, 45
    %v2311 = vpop.permute.xlu0 %2310
    %v2313 = vmul.f32 %v2306, %v2311
    %v2314 = vadd.f32 %v2212, %v2313
    %s2315 = scalar_lea.vmem %s4, 122
    %v2316 = vld [vmem:[%s2315] sm:$0x3]
    %2318 = vrot.lane.b32.xlu0 %v2316, 45
    %v2319 = vpop.permute.xlu0 %2318
    %v2321 = vmul.f32 %v2306, %v2319
    %v2322 = vadd.f32 %v2220, %v2321
    %s2323 = scalar_lea.vmem %s4, 124
    %v2324 = vld [vmem:[%s2323] sm:$0x3]
    %2326 = vrot.lane.b32.xlu0 %v2324, 45
    %v2327 = vpop.permute.xlu0 %2326
    %v2329 = vmul.f32 %v2306, %v2327
    %v2330 = vadd.f32 %v2228, %v2329
    %v2331 = vld [vmem:[#allocation2 + $0x2a] sm:$0x3]
    %v2332 = vlaneseq
    %v2333 = vshrl.u32 %v2332, 7
    %v2334 = vsub.s32 0, %v2333
    %v2335 = vrot.slane %v2305, %v2334
    %s2337 = sor.u32 256, 45
    %2338 = vbcast.lane.b32.xlu0 %v2335, %s2337
    %v2339 = vpop.permute.xlu0 %2338
    %s2341 = sor.u32 256, 53
    %2342 = vbcast.lane.b32.xlu0 %v2335, %s2341
    %v2343 = vpop.permute.xlu0 %2342
    %v2344 = vlaneseq
    %v2345 = vshrl.u32 %v2344, 7
    %v2346 = vsub.s32 1, %v2345
    %v2347 = vrot.slane %v2305, %v2346
    %s2349 = sor.u32 256, 45
    %2350 = vbcast.lane.b32.xlu0 %v2347, %s2349
    %v2351 = vpop.permute.xlu0 %2350
    %s2353 = sor.u32 256, 53
    %2354 = vbcast.lane.b32.xlu0 %v2347, %s2353
    %v2355 = vpop.permute.xlu0 %2354
    %v2356 = vmul.f32 %v2339, %v237
    %v2357 = vmul.f32 %v2343, %v238
    %v2358 = vmul.f32 %v2351, %v237
    %v2359 = vmul.f32 %v2355, %v238
    %v2360 = vsel %vm222, %v2356, 0.0
    %v2361 = vsel %vm319, %v2357, 0.0
    %v2362 = vadd.f32 %v2360, %v2361
    %v2363 = vrot.slane %v2362, 4
    %v2364 = vadd.f32 %v2362, %v2363
    %v2365 = vrot.slane %v2364, 2
    %v2366 = vadd.f32 %v2364, %v2365
    %v2367 = vrot.slane %v2366, 1
    %v2368 = vadd.f32 %v2366, %v2367
    %v2369 = vsel %vm222, %v2358, 0.0
    %v2370 = vsel %vm319, %v2359, 0.0
    %v2371 = vadd.f32 %v2369, %v2370
    %v2372 = vrot.slane %v2371, 4
    %v2373 = vadd.f32 %v2371, %v2372
    %v2374 = vrot.slane %v2373, 2
    %v2375 = vadd.f32 %v2373, %v2374
    %v2376 = vrot.slane %v2375, 1
    %v2377 = vadd.f32 %v2375, %v2376
    %v2380 = vsel %vm339, %v2377, %v2368
    %v2382 = vadd.f32 %v2331, %v2380
    %v2383 = vxor.u32 %v2382, 2147483648
    %v2384 = vmul.f32 %v2383, 1.442695
    %v2385 = vpow.pop %v2384
    %v2386 = vadd.f32 %v2385, 1.0
    %v2387 = vrcp.pop %v2386
    %v2388 = vmul.f32 1.0, %v2387
    %v2389 = vmul.f32 %v2388, 2.0
    %v2390 = vsub.f32 %v2389, 1.0
    %v2391 = vmul.f32 %v2388, %v2299
    %2393 = vrot.lane.b32.xlu0 %v2390, 98
    %v2394 = vpop.permute.xlu0 %2393
    %v2396 = vmul.f32 %v2388, %v2394
    %2398 = vrot.lane.b32.xlu0 %v2396, 15
    %v2399 = vpop.permute.xlu0 %2398
    %v2401 = vadd.f32 %v2391, %v2399
    %v2402 = vtanh.pop %v2401
    %2404 = vrot.lane.b32.xlu0 %v2402, 30
    %v2405 = vpop.permute.xlu0 %2404
    %v2407 = vmul.f32 %v2388, %v2405
    %v2408 = vmax.f32 %v2407, 0.0
    %s2409 = scalar_lea.vmem %s4, 126
    %v2410 = vld [vmem:[%s2409] sm:$0x3]
    %2412 = vrot.lane.b32.xlu0 %v2410, 45
    %v2413 = vpop.permute.xlu0 %2412
    %v2415 = vmul.f32 %v2408, %v2413
    %v2416 = vadd.f32 %v2314, %v2415
    %s2417 = scalar_lea.vmem %s4, 128
    %v2418 = vld [vmem:[%s2417] sm:$0x3]
    %2420 = vrot.lane.b32.xlu0 %v2418, 45
    %v2421 = vpop.permute.xlu0 %2420
    %v2423 = vmul.f32 %v2408, %v2421
    %v2424 = vadd.f32 %v2322, %v2423
    %s2425 = scalar_lea.vmem %s4, 130
    %v2426 = vld [vmem:[%s2425] sm:$0x3]
    %2428 = vrot.lane.b32.xlu0 %v2426, 45
    %v2429 = vpop.permute.xlu0 %2428
    %v2431 = vmul.f32 %v2408, %v2429
    %v2432 = vadd.f32 %v2330, %v2431
    %v2433 = vld [vmem:[#allocation2 + $0x2c] sm:$0x3]
    %v2434 = vlaneseq
    %v2435 = vshrl.u32 %v2434, 7
    %v2436 = vsub.s32 0, %v2435
    %v2437 = vrot.slane %v2407, %v2436
    %s2439 = sor.u32 256, 45
    %2440 = vbcast.lane.b32.xlu0 %v2437, %s2439
    %v2441 = vpop.permute.xlu0 %2440
    %s2443 = sor.u32 256, 53
    %2444 = vbcast.lane.b32.xlu0 %v2437, %s2443
    %v2445 = vpop.permute.xlu0 %2444
    %v2446 = vlaneseq
    %v2447 = vshrl.u32 %v2446, 7
    %v2448 = vsub.s32 1, %v2447
    %v2449 = vrot.slane %v2407, %v2448
    %s2451 = sor.u32 256, 45
    %2452 = vbcast.lane.b32.xlu0 %v2449, %s2451
    %v2453 = vpop.permute.xlu0 %2452
    %s2455 = sor.u32 256, 53
    %2456 = vbcast.lane.b32.xlu0 %v2449, %s2455
    %v2457 = vpop.permute.xlu0 %2456
    %v2458 = vmul.f32 %v2441, %v237
    %v2459 = vmul.f32 %v2445, %v238
    %v2460 = vmul.f32 %v2453, %v237
    %v2461 = vmul.f32 %v2457, %v238
    %v2462 = vsel %vm222, %v2458, 0.0
    %v2463 = vsel %vm319, %v2459, 0.0
    %v2464 = vadd.f32 %v2462, %v2463
    %v2465 = vrot.slane %v2464, 4
    %v2466 = vadd.f32 %v2464, %v2465
    %v2467 = vrot.slane %v2466, 2
    %v2468 = vadd.f32 %v2466, %v2467
    %v2469 = vrot.slane %v2468, 1
    %v2470 = vadd.f32 %v2468, %v2469
    %v2471 = vsel %vm222, %v2460, 0.0
    %v2472 = vsel %vm319, %v2461, 0.0
    %v2473 = vadd.f32 %v2471, %v2472
    %v2474 = vrot.slane %v2473, 4
    %v2475 = vadd.f32 %v2473, %v2474
    %v2476 = vrot.slane %v2475, 2
    %v2477 = vadd.f32 %v2475, %v2476
    %v2478 = vrot.slane %v2477, 1
    %v2479 = vadd.f32 %v2477, %v2478
    %v2482 = vsel %vm339, %v2479, %v2470
    %v2484 = vadd.f32 %v2433, %v2482
    %v2485 = vxor.u32 %v2484, 2147483648
    %v2486 = vmul.f32 %v2485, 1.442695
    %v2487 = vpow.pop %v2486
    %v2488 = vadd.f32 %v2487, 1.0
    %v2489 = vrcp.pop %v2488
    %v2490 = vmul.f32 1.0, %v2489
    %v2491 = vmul.f32 %v2490, 2.0
    %v2492 = vsub.f32 %v2491, 1.0
    %v2493 = vmul.f32 %v2490, %v2401
    %2495 = vrot.lane.b32.xlu0 %v2492, 98
    %v2496 = vpop.permute.xlu0 %2495
    %v2498 = vmul.f32 %v2490, %v2496
    %2500 = vrot.lane.b32.xlu0 %v2498, 15
    %v2501 = vpop.permute.xlu0 %2500
    %v2503 = vadd.f32 %v2493, %v2501
    %v2504 = vtanh.pop %v2503
    %2506 = vrot.lane.b32.xlu0 %v2504, 30
    %v2507 = vpop.permute.xlu0 %2506
    %v2509 = vmul.f32 %v2490, %v2507
    %v2510 = vmax.f32 %v2509, 0.0
    %s2511 = scalar_lea.vmem %s4, 132
    %v2512 = vld [vmem:[%s2511] sm:$0x3]
    %2514 = vrot.lane.b32.xlu0 %v2512, 45
    %v2515 = vpop.permute.xlu0 %2514
    %v2517 = vmul.f32 %v2510, %v2515
    %v2518 = vadd.f32 %v2416, %v2517
    %s2519 = scalar_lea.vmem %s4, 134
    %v2520 = vld [vmem:[%s2519] sm:$0x3]
    %2522 = vrot.lane.b32.xlu0 %v2520, 45
    %v2523 = vpop.permute.xlu0 %2522
    %v2525 = vmul.f32 %v2510, %v2523
    %v2526 = vadd.f32 %v2424, %v2525
    %s2527 = scalar_lea.vmem %s4, 136
    %v2528 = vld [vmem:[%s2527] sm:$0x3]
    %2530 = vrot.lane.b32.xlu0 %v2528, 45
    %v2531 = vpop.permute.xlu0 %2530
    %v2533 = vmul.f32 %v2510, %v2531
    %v2534 = vadd.f32 %v2432, %v2533
    %v2535 = vld [vmem:[#allocation2 + $0x2e] sm:$0x3]
    %v2536 = vlaneseq
    %v2537 = vshrl.u32 %v2536, 7
    %v2538 = vsub.s32 0, %v2537
    %v2539 = vrot.slane %v2509, %v2538
    %s2541 = sor.u32 256, 45
    %2542 = vbcast.lane.b32.xlu0 %v2539, %s2541
    %v2543 = vpop.permute.xlu0 %2542
    %s2545 = sor.u32 256, 53
    %2546 = vbcast.lane.b32.xlu0 %v2539, %s2545
    %v2547 = vpop.permute.xlu0 %2546
    %v2548 = vlaneseq
    %v2549 = vshrl.u32 %v2548, 7
    %v2550 = vsub.s32 1, %v2549
    %v2551 = vrot.slane %v2509, %v2550
    %s2553 = sor.u32 256, 45
    %2554 = vbcast.lane.b32.xlu0 %v2551, %s2553
    %v2555 = vpop.permute.xlu0 %2554
    %s2557 = sor.u32 256, 53
    %2558 = vbcast.lane.b32.xlu0 %v2551, %s2557
    %v2559 = vpop.permute.xlu0 %2558
    %v2560 = vmul.f32 %v2543, %v237
    %v2561 = vmul.f32 %v2547, %v238
    %v2562 = vmul.f32 %v2555, %v237
    %v2563 = vmul.f32 %v2559, %v238
    %v2564 = vsel %vm222, %v2560, 0.0
    %v2565 = vsel %vm319, %v2561, 0.0
    %v2566 = vadd.f32 %v2564, %v2565
    %v2567 = vrot.slane %v2566, 4
    %v2568 = vadd.f32 %v2566, %v2567
    %v2569 = vrot.slane %v2568, 2
    %v2570 = vadd.f32 %v2568, %v2569
    %v2571 = vrot.slane %v2570, 1
    %v2572 = vadd.f32 %v2570, %v2571
    %v2573 = vsel %vm222, %v2562, 0.0
    %v2574 = vsel %vm319, %v2563, 0.0
    %v2575 = vadd.f32 %v2573, %v2574
    %v2576 = vrot.slane %v2575, 4
    %v2577 = vadd.f32 %v2575, %v2576
    %v2578 = vrot.slane %v2577, 2
    %v2579 = vadd.f32 %v2577, %v2578
    %v2580 = vrot.slane %v2579, 1
    %v2581 = vadd.f32 %v2579, %v2580
    %v2584 = vsel %vm339, %v2581, %v2572
    %v2586 = vadd.f32 %v2535, %v2584
    %v2587 = vxor.u32 %v2586, 2147483648
    %v2588 = vmul.f32 %v2587, 1.442695
    %v2589 = vpow.pop %v2588
    %v2590 = vadd.f32 %v2589, 1.0
    %v2591 = vrcp.pop %v2590
    %v2592 = vmul.f32 1.0, %v2591
    %v2593 = vmul.f32 %v2592, 2.0
    %v2594 = vsub.f32 %v2593, 1.0
    %v2595 = vmul.f32 %v2592, %v2503
    %2597 = vrot.lane.b32.xlu0 %v2594, 98
    %v2598 = vpop.permute.xlu0 %2597
    %v2600 = vmul.f32 %v2592, %v2598
    %2602 = vrot.lane.b32.xlu0 %v2600, 15
    %v2603 = vpop.permute.xlu0 %2602
    %v2605 = vadd.f32 %v2595, %v2603
    %v2606 = vtanh.pop %v2605
    %2608 = vrot.lane.b32.xlu0 %v2606, 30
    %v2609 = vpop.permute.xlu0 %2608
    %v2611 = vmul.f32 %v2592, %v2609
    %v2612 = vmax.f32 %v2611, 0.0
    %s2613 = scalar_lea.vmem %s4, 138
    %v2614 = vld [vmem:[%s2613] sm:$0x3]
    %2616 = vrot.lane.b32.xlu0 %v2614, 45
    %v2617 = vpop.permute.xlu0 %2616
    %v2619 = vmul.f32 %v2612, %v2617
    %v2620 = vadd.f32 %v2518, %v2619
    %s2621 = scalar_lea.vmem %s4, 140
    %v2622 = vld [vmem:[%s2621] sm:$0x3]
    %2624 = vrot.lane.b32.xlu0 %v2622, 45
    %v2625 = vpop.permute.xlu0 %2624
    %v2627 = vmul.f32 %v2612, %v2625
    %v2628 = vadd.f32 %v2526, %v2627
    %s2629 = scalar_lea.vmem %s4, 142
    %v2630 = vld [vmem:[%s2629] sm:$0x3]
    %2632 = vrot.lane.b32.xlu0 %v2630, 45
    %v2633 = vpop.permute.xlu0 %2632
    %v2635 = vmul.f32 %v2612, %v2633
    %v2636 = vadd.f32 %v2534, %v2635
    %v2637 = vld [vmem:[#allocation2 + $0x30] sm:$0x3]
    %v2638 = vlaneseq
    %v2639 = vshrl.u32 %v2638, 7
    %v2640 = vsub.s32 0, %v2639
    %v2641 = vrot.slane %v2611, %v2640
    %s2643 = sor.u32 256, 45
    %2644 = vbcast.lane.b32.xlu0 %v2641, %s2643
    %v2645 = vpop.permute.xlu0 %2644
    %s2647 = sor.u32 256, 53
    %2648 = vbcast.lane.b32.xlu0 %v2641, %s2647
    %v2649 = vpop.permute.xlu0 %2648
    %v2650 = vlaneseq
    %v2651 = vshrl.u32 %v2650, 7
    %v2652 = vsub.s32 1, %v2651
    %v2653 = vrot.slane %v2611, %v2652
    %s2655 = sor.u32 256, 45
    %2656 = vbcast.lane.b32.xlu0 %v2653, %s2655
    %v2657 = vpop.permute.xlu0 %2656
    %s2659 = sor.u32 256, 53
    %2660 = vbcast.lane.b32.xlu0 %v2653, %s2659
    %v2661 = vpop.permute.xlu0 %2660
    %v2662 = vmul.f32 %v2645, %v237
    %v2663 = vmul.f32 %v2649, %v238
    %v2664 = vmul.f32 %v2657, %v237
    %v2665 = vmul.f32 %v2661, %v238
    %v2666 = vsel %vm222, %v2662, 0.0
    %v2667 = vsel %vm319, %v2663, 0.0
    %v2668 = vadd.f32 %v2666, %v2667
    %v2669 = vrot.slane %v2668, 4
    %v2670 = vadd.f32 %v2668, %v2669
    %v2671 = vrot.slane %v2670, 2
    %v2672 = vadd.f32 %v2670, %v2671
    %v2673 = vrot.slane %v2672, 1
    %v2674 = vadd.f32 %v2672, %v2673
    %v2675 = vsel %vm222, %v2664, 0.0
    %v2676 = vsel %vm319, %v2665, 0.0
    %v2677 = vadd.f32 %v2675, %v2676
    %v2678 = vrot.slane %v2677, 4
    %v2679 = vadd.f32 %v2677, %v2678
    %v2680 = vrot.slane %v2679, 2
    %v2681 = vadd.f32 %v2679, %v2680
    %v2682 = vrot.slane %v2681, 1
    %v2683 = vadd.f32 %v2681, %v2682
    %v2686 = vsel %vm339, %v2683, %v2674
    %v2688 = vadd.f32 %v2637, %v2686
    %v2689 = vxor.u32 %v2688, 2147483648
    %v2690 = vmul.f32 %v2689, 1.442695
    %v2691 = vpow.pop %v2690
    %v2692 = vadd.f32 %v2691, 1.0
    %v2693 = vrcp.pop %v2692
    %v2694 = vmul.f32 1.0, %v2693
    %v2695 = vmul.f32 %v2694, 2.0
    %v2696 = vsub.f32 %v2695, 1.0
    %v2697 = vmul.f32 %v2694, %v2605
    %2699 = vrot.lane.b32.xlu0 %v2696, 98
    %v2700 = vpop.permute.xlu0 %2699
    %v2702 = vmul.f32 %v2694, %v2700
    %2704 = vrot.lane.b32.xlu0 %v2702, 15
    %v2705 = vpop.permute.xlu0 %2704
    %v2707 = vadd.f32 %v2697, %v2705
    %v2708 = vtanh.pop %v2707
    %2710 = vrot.lane.b32.xlu0 %v2708, 30
    %v2711 = vpop.permute.xlu0 %2710
    %v2713 = vmul.f32 %v2694, %v2711
    %v2714 = vmax.f32 %v2713, 0.0
    %s2715 = scalar_lea.vmem %s4, 144
    %v2716 = vld [vmem:[%s2715] sm:$0x3]
    %2718 = vrot.lane.b32.xlu0 %v2716, 45
    %v2719 = vpop.permute.xlu0 %2718
    %v2721 = vmul.f32 %v2714, %v2719
    %v2722 = vadd.f32 %v2620, %v2721
    %s2723 = scalar_lea.vmem %s4, 146
    %v2724 = vld [vmem:[%s2723] sm:$0x3]
    %2726 = vrot.lane.b32.xlu0 %v2724, 45
    %v2727 = vpop.permute.xlu0 %2726
    %v2729 = vmul.f32 %v2714, %v2727
    %v2730 = vadd.f32 %v2628, %v2729
    %s2731 = scalar_lea.vmem %s4, 148
    %v2732 = vld [vmem:[%s2731] sm:$0x3]
    %2734 = vrot.lane.b32.xlu0 %v2732, 45
    %v2735 = vpop.permute.xlu0 %2734
    %v2737 = vmul.f32 %v2714, %v2735
    %v2738 = vadd.f32 %v2636, %v2737
    %v2739 = vld [vmem:[#allocation2 + $0x32] sm:$0x3]
    %v2740 = vlaneseq
    %v2741 = vshrl.u32 %v2740, 7
    %v2742 = vsub.s32 0, %v2741
    %v2743 = vrot.slane %v2713, %v2742
    %s2745 = sor.u32 256, 45
    %2746 = vbcast.lane.b32.xlu0 %v2743, %s2745
    %v2747 = vpop.permute.xlu0 %2746
    %s2749 = sor.u32 256, 53
    %2750 = vbcast.lane.b32.xlu0 %v2743, %s2749
    %v2751 = vpop.permute.xlu0 %2750
    %v2752 = vlaneseq
    %v2753 = vshrl.u32 %v2752, 7
    %v2754 = vsub.s32 1, %v2753
    %v2755 = vrot.slane %v2713, %v2754
    %s2757 = sor.u32 256, 45
    %2758 = vbcast.lane.b32.xlu0 %v2755, %s2757
    %v2759 = vpop.permute.xlu0 %2758
    %s2761 = sor.u32 256, 53
    %2762 = vbcast.lane.b32.xlu0 %v2755, %s2761
    %v2763 = vpop.permute.xlu0 %2762
    %v2764 = vmul.f32 %v2747, %v237
    %v2765 = vmul.f32 %v2751, %v238
    %v2766 = vmul.f32 %v2759, %v237
    %v2767 = vmul.f32 %v2763, %v238
    %v2768 = vsel %vm222, %v2764, 0.0
    %v2769 = vsel %vm319, %v2765, 0.0
    %v2770 = vadd.f32 %v2768, %v2769
    %v2771 = vrot.slane %v2770, 4
    %v2772 = vadd.f32 %v2770, %v2771
    %v2773 = vrot.slane %v2772, 2
    %v2774 = vadd.f32 %v2772, %v2773
    %v2775 = vrot.slane %v2774, 1
    %v2776 = vadd.f32 %v2774, %v2775
    %v2777 = vsel %vm222, %v2766, 0.0
    %v2778 = vsel %vm319, %v2767, 0.0
    %v2779 = vadd.f32 %v2777, %v2778
    %v2780 = vrot.slane %v2779, 4
    %v2781 = vadd.f32 %v2779, %v2780
    %v2782 = vrot.slane %v2781, 2
    %v2783 = vadd.f32 %v2781, %v2782
    %v2784 = vrot.slane %v2783, 1
    %v2785 = vadd.f32 %v2783, %v2784
    %v2788 = vsel %vm339, %v2785, %v2776
    %v2790 = vadd.f32 %v2739, %v2788
    %v2791 = vxor.u32 %v2790, 2147483648
    %v2792 = vmul.f32 %v2791, 1.442695
    %v2793 = vpow.pop %v2792
    %v2794 = vadd.f32 %v2793, 1.0
    %v2795 = vrcp.pop %v2794
    %v2796 = vmul.f32 1.0, %v2795
    %v2797 = vmul.f32 %v2796, 2.0
    %v2798 = vsub.f32 %v2797, 1.0
    %v2799 = vmul.f32 %v2796, %v2707
    %2801 = vrot.lane.b32.xlu0 %v2798, 98
    %v2802 = vpop.permute.xlu0 %2801
    %v2804 = vmul.f32 %v2796, %v2802
    %2806 = vrot.lane.b32.xlu0 %v2804, 15
    %v2807 = vpop.permute.xlu0 %2806
    %v2809 = vadd.f32 %v2799, %v2807
    %v2810 = vtanh.pop %v2809
    %2812 = vrot.lane.b32.xlu0 %v2810, 30
    %v2813 = vpop.permute.xlu0 %2812
    %v2815 = vmul.f32 %v2796, %v2813
    %v2816 = vmax.f32 %v2815, 0.0
    %s2817 = scalar_lea.vmem %s4, 150
    %v2818 = vld [vmem:[%s2817] sm:$0x3]
    %2820 = vrot.lane.b32.xlu0 %v2818, 45
    %v2821 = vpop.permute.xlu0 %2820
    %v2823 = vmul.f32 %v2816, %v2821
    %v2824 = vadd.f32 %v2823, 0.0
    %s2825 = scalar_lea.vmem %s4, 152
    %v2826 = vld [vmem:[%s2825] sm:$0x3]
    %2828 = vrot.lane.b32.xlu0 %v2826, 45
    %v2829 = vpop.permute.xlu0 %2828
    %v2831 = vmul.f32 %v2816, %v2829
    %v2832 = vadd.f32 %v2831, 0.0
    %s2833 = scalar_lea.vmem %s4, 154
    %v2834 = vld [vmem:[%s2833] sm:$0x3]
    %2836 = vrot.lane.b32.xlu0 %v2834, 45
    %v2837 = vpop.permute.xlu0 %2836
    %v2839 = vmul.f32 %v2816, %v2837
    %v2840 = vadd.f32 %v2839, 0.0
    %v2841 = vld [vmem:[#allocation2 + $0x34] sm:$0x3]
    %v2842 = vlaneseq
    %v2843 = vshrl.u32 %v2842, 7
    %v2844 = vsub.s32 0, %v2843
    %v2845 = vrot.slane %v2815, %v2844
    %s2847 = sor.u32 256, 45
    %2848 = vbcast.lane.b32.xlu0 %v2845, %s2847
    %v2849 = vpop.permute.xlu0 %2848
    %s2851 = sor.u32 256, 53
    %2852 = vbcast.lane.b32.xlu0 %v2845, %s2851
    %v2853 = vpop.permute.xlu0 %2852
    %v2854 = vlaneseq
    %v2855 = vshrl.u32 %v2854, 7
    %v2856 = vsub.s32 1, %v2855
    %v2857 = vrot.slane %v2815, %v2856
    %s2859 = sor.u32 256, 45
    %2860 = vbcast.lane.b32.xlu0 %v2857, %s2859
    %v2861 = vpop.permute.xlu0 %2860
    %s2863 = sor.u32 256, 53
    %2864 = vbcast.lane.b32.xlu0 %v2857, %s2863
    %v2865 = vpop.permute.xlu0 %2864
    %v2866 = vmul.f32 %v2849, %v237
    %v2867 = vmul.f32 %v2853, %v238
    %v2868 = vmul.f32 %v2861, %v237
    %v2869 = vmul.f32 %v2865, %v238
    %v2870 = vsel %vm222, %v2866, 0.0
    %v2871 = vsel %vm319, %v2867, 0.0
    %v2872 = vadd.f32 %v2870, %v2871
    %v2873 = vrot.slane %v2872, 4
    %v2874 = vadd.f32 %v2872, %v2873
    %v2875 = vrot.slane %v2874, 2
    %v2876 = vadd.f32 %v2874, %v2875
    %v2877 = vrot.slane %v2876, 1
    %v2878 = vadd.f32 %v2876, %v2877
    %v2879 = vsel %vm222, %v2868, 0.0
    %v2880 = vsel %vm319, %v2869, 0.0
    %v2881 = vadd.f32 %v2879, %v2880
    %v2882 = vrot.slane %v2881, 4
    %v2883 = vadd.f32 %v2881, %v2882
    %v2884 = vrot.slane %v2883, 2
    %v2885 = vadd.f32 %v2883, %v2884
    %v2886 = vrot.slane %v2885, 1
    %v2887 = vadd.f32 %v2885, %v2886
    %v2890 = vsel %vm339, %v2887, %v2878
    %v2892 = vadd.f32 %v2841, %v2890
    %v2893 = vxor.u32 %v2892, 2147483648
    %v2894 = vmul.f32 %v2893, 1.442695
    %v2895 = vpow.pop %v2894
    %v2896 = vadd.f32 %v2895, 1.0
    %v2897 = vrcp.pop %v2896
    %v2898 = vmul.f32 1.0, %v2897
    %v2899 = vmul.f32 %v2898, 2.0
    %v2900 = vsub.f32 %v2899, 1.0
    %v2901 = vmul.f32 %v2898, %v2809
    %2903 = vrot.lane.b32.xlu0 %v2900, 98
    %v2904 = vpop.permute.xlu0 %2903
    %v2906 = vmul.f32 %v2898, %v2904
    %2908 = vrot.lane.b32.xlu0 %v2906, 15
    %v2909 = vpop.permute.xlu0 %2908
    %v2911 = vadd.f32 %v2901, %v2909
    %v2912 = vtanh.pop %v2911
    %2914 = vrot.lane.b32.xlu0 %v2912, 30
    %v2915 = vpop.permute.xlu0 %2914
    %v2917 = vmul.f32 %v2898, %v2915
    %v2918 = vmax.f32 %v2917, 0.0
    %s2919 = scalar_lea.vmem %s4, 156
    %v2920 = vld [vmem:[%s2919] sm:$0x3]
    %2922 = vrot.lane.b32.xlu0 %v2920, 45
    %v2923 = vpop.permute.xlu0 %2922
    %v2925 = vmul.f32 %v2918, %v2923
    %v2926 = vadd.f32 %v2824, %v2925
    %s2927 = scalar_lea.vmem %s4, 158
    %v2928 = vld [vmem:[%s2927] sm:$0x3]
    %2930 = vrot.lane.b32.xlu0 %v2928, 45
    %v2931 = vpop.permute.xlu0 %2930
    %v2933 = vmul.f32 %v2918, %v2931
    %v2934 = vadd.f32 %v2832, %v2933
    %s2935 = scalar_lea.vmem %s4, 160
    %v2936 = vld [vmem:[%s2935] sm:$0x3]
    %2938 = vrot.lane.b32.xlu0 %v2936, 45
    %v2939 = vpop.permute.xlu0 %2938
    %v2941 = vmul.f32 %v2918, %v2939
    %v2942 = vadd.f32 %v2840, %v2941
    %v2943 = vld [vmem:[#allocation2 + $0x36] sm:$0x3]
    %v2944 = vlaneseq
    %v2945 = vshrl.u32 %v2944, 7
    %v2946 = vsub.s32 0, %v2945
    %v2947 = vrot.slane %v2917, %v2946
    %s2949 = sor.u32 256, 45
    %2950 = vbcast.lane.b32.xlu0 %v2947, %s2949
    %v2951 = vpop.permute.xlu0 %2950
    %s2953 = sor.u32 256, 53
    %2954 = vbcast.lane.b32.xlu0 %v2947, %s2953
    %v2955 = vpop.permute.xlu0 %2954
    %v2956 = vlaneseq
    %v2957 = vshrl.u32 %v2956, 7
    %v2958 = vsub.s32 1, %v2957
    %v2959 = vrot.slane %v2917, %v2958
    %s2961 = sor.u32 256, 45
    %2962 = vbcast.lane.b32.xlu0 %v2959, %s2961
    %v2963 = vpop.permute.xlu0 %2962
    %s2965 = sor.u32 256, 53
    %2966 = vbcast.lane.b32.xlu0 %v2959, %s2965
    %v2967 = vpop.permute.xlu0 %2966
    %v2968 = vmul.f32 %v2951, %v237
    %v2969 = vmul.f32 %v2955, %v238
    %v2970 = vmul.f32 %v2963, %v237
    %v2971 = vmul.f32 %v2967, %v238
    %v2972 = vsel %vm222, %v2968, 0.0
    %v2973 = vsel %vm319, %v2969, 0.0
    %v2974 = vadd.f32 %v2972, %v2973
    %v2975 = vrot.slane %v2974, 4
    %v2976 = vadd.f32 %v2974, %v2975
    %v2977 = vrot.slane %v2976, 2
    %v2978 = vadd.f32 %v2976, %v2977
    %v2979 = vrot.slane %v2978, 1
    %v2980 = vadd.f32 %v2978, %v2979
    %v2981 = vsel %vm222, %v2970, 0.0
    %v2982 = vsel %vm319, %v2971, 0.0
    %v2983 = vadd.f32 %v2981, %v2982
    %v2984 = vrot.slane %v2983, 4
    %v2985 = vadd.f32 %v2983, %v2984
    %v2986 = vrot.slane %v2985, 2
    %v2987 = vadd.f32 %v2985, %v2986
    %v2988 = vrot.slane %v2987, 1
    %v2989 = vadd.f32 %v2987, %v2988
    %v2992 = vsel %vm339, %v2989, %v2980
    %v2994 = vadd.f32 %v2943, %v2992
    %v2995 = vxor.u32 %v2994, 2147483648
    %v2996 = vmul.f32 %v2995, 1.442695
    %v2997 = vpow.pop %v2996
    %v2998 = vadd.f32 %v2997, 1.0
    %v2999 = vrcp.pop %v2998
    %v3000 = vmul.f32 1.0, %v2999
    %v3001 = vmul.f32 %v3000, 2.0
    %v3002 = vsub.f32 %v3001, 1.0
    %v3003 = vmul.f32 %v3000, %v2911
    %3005 = vrot.lane.b32.xlu0 %v3002, 98
    %v3006 = vpop.permute.xlu0 %3005
    %v3008 = vmul.f32 %v3000, %v3006
    %3010 = vrot.lane.b32.xlu0 %v3008, 15
    %v3011 = vpop.permute.xlu0 %3010
    %v3013 = vadd.f32 %v3003, %v3011
    %v3014 = vtanh.pop %v3013
    %3016 = vrot.lane.b32.xlu0 %v3014, 30
    %v3017 = vpop.permute.xlu0 %3016
    %v3019 = vmul.f32 %v3000, %v3017
    %v3020 = vmax.f32 %v3019, 0.0
    %s3021 = scalar_lea.vmem %s4, 162
    %v3022 = vld [vmem:[%s3021] sm:$0x3]
    %3024 = vrot.lane.b32.xlu0 %v3022, 45
    %v3025 = vpop.permute.xlu0 %3024
    %v3027 = vmul.f32 %v3020, %v3025
    %v3028 = vadd.f32 %v2926, %v3027
    %s3029 = scalar_lea.vmem %s4, 164
    %v3030 = vld [vmem:[%s3029] sm:$0x3]
    %3032 = vrot.lane.b32.xlu0 %v3030, 45
    %v3033 = vpop.permute.xlu0 %3032
    %v3035 = vmul.f32 %v3020, %v3033
    %v3036 = vadd.f32 %v2934, %v3035
    %s3037 = scalar_lea.vmem %s4, 166
    %v3038 = vld [vmem:[%s3037] sm:$0x3]
    %3040 = vrot.lane.b32.xlu0 %v3038, 45
    %v3041 = vpop.permute.xlu0 %3040
    %v3043 = vmul.f32 %v3020, %v3041
    %v3044 = vadd.f32 %v2942, %v3043
    %v3045 = vld [vmem:[#allocation2 + $0x38] sm:$0x3]
    %v3046 = vlaneseq
    %v3047 = vshrl.u32 %v3046, 7
    %v3048 = vsub.s32 0, %v3047
    %v3049 = vrot.slane %v3019, %v3048
    %s3051 = sor.u32 256, 45
    %3052 = vbcast.lane.b32.xlu0 %v3049, %s3051
    %v3053 = vpop.permute.xlu0 %3052
    %s3055 = sor.u32 256, 53
    %3056 = vbcast.lane.b32.xlu0 %v3049, %s3055
    %v3057 = vpop.permute.xlu0 %3056
    %v3058 = vlaneseq
    %v3059 = vshrl.u32 %v3058, 7
    %v3060 = vsub.s32 1, %v3059
    %v3061 = vrot.slane %v3019, %v3060
    %s3063 = sor.u32 256, 45
    %3064 = vbcast.lane.b32.xlu0 %v3061, %s3063
    %v3065 = vpop.permute.xlu0 %3064
    %s3067 = sor.u32 256, 53
    %3068 = vbcast.lane.b32.xlu0 %v3061, %s3067
    %v3069 = vpop.permute.xlu0 %3068
    %v3070 = vmul.f32 %v3053, %v237
    %v3071 = vmul.f32 %v3057, %v238
    %v3072 = vmul.f32 %v3065, %v237
    %v3073 = vmul.f32 %v3069, %v238
    %v3074 = vsel %vm222, %v3070, 0.0
    %v3075 = vsel %vm319, %v3071, 0.0
    %v3076 = vadd.f32 %v3074, %v3075
    %v3077 = vrot.slane %v3076, 4
    %v3078 = vadd.f32 %v3076, %v3077
    %v3079 = vrot.slane %v3078, 2
    %v3080 = vadd.f32 %v3078, %v3079
    %v3081 = vrot.slane %v3080, 1
    %v3082 = vadd.f32 %v3080, %v3081
    %v3083 = vsel %vm222, %v3072, 0.0
    %v3084 = vsel %vm319, %v3073, 0.0
    %v3085 = vadd.f32 %v3083, %v3084
    %v3086 = vrot.slane %v3085, 4
    %v3087 = vadd.f32 %v3085, %v3086
    %v3088 = vrot.slane %v3087, 2
    %v3089 = vadd.f32 %v3087, %v3088
    %v3090 = vrot.slane %v3089, 1
    %v3091 = vadd.f32 %v3089, %v3090
    %v3094 = vsel %vm339, %v3091, %v3082
    %v3096 = vadd.f32 %v3045, %v3094
    %v3097 = vxor.u32 %v3096, 2147483648
    %v3098 = vmul.f32 %v3097, 1.442695
    %v3099 = vpow.pop %v3098
    %v3100 = vadd.f32 %v3099, 1.0
    %v3101 = vrcp.pop %v3100
    %v3102 = vmul.f32 1.0, %v3101
    %v3103 = vmul.f32 %v3102, 2.0
    %v3104 = vsub.f32 %v3103, 1.0
    %v3105 = vmul.f32 %v3102, %v3013
    %3107 = vrot.lane.b32.xlu0 %v3104, 98
    %v3108 = vpop.permute.xlu0 %3107
    %v3110 = vmul.f32 %v3102, %v3108
    %3112 = vrot.lane.b32.xlu0 %v3110, 15
    %v3113 = vpop.permute.xlu0 %3112
    %v3115 = vadd.f32 %v3105, %v3113
    %v3116 = vtanh.pop %v3115
    %3118 = vrot.lane.b32.xlu0 %v3116, 30
    %v3119 = vpop.permute.xlu0 %3118
    %v3121 = vmul.f32 %v3102, %v3119
    %v3122 = vmax.f32 %v3121, 0.0
    %s3123 = scalar_lea.vmem %s4, 168
    %v3124 = vld [vmem:[%s3123] sm:$0x3]
    %3126 = vrot.lane.b32.xlu0 %v3124, 45
    %v3127 = vpop.permute.xlu0 %3126
    %v3129 = vmul.f32 %v3122, %v3127
    %v3130 = vadd.f32 %v3028, %v3129
    %s3131 = scalar_lea.vmem %s4, 170
    %v3132 = vld [vmem:[%s3131] sm:$0x3]
    %3134 = vrot.lane.b32.xlu0 %v3132, 45
    %v3135 = vpop.permute.xlu0 %3134
    %v3137 = vmul.f32 %v3122, %v3135
    %v3138 = vadd.f32 %v3036, %v3137
    %s3139 = scalar_lea.vmem %s4, 172
    %v3140 = vld [vmem:[%s3139] sm:$0x3]
    %3142 = vrot.lane.b32.xlu0 %v3140, 45
    %v3143 = vpop.permute.xlu0 %3142
    %v3145 = vmul.f32 %v3122, %v3143
    %v3146 = vadd.f32 %v3044, %v3145
    %v3147 = vld [vmem:[#allocation2 + $0x3a] sm:$0x3]
    %v3148 = vlaneseq
    %v3149 = vshrl.u32 %v3148, 7
    %v3150 = vsub.s32 0, %v3149
    %v3151 = vrot.slane %v3121, %v3150
    %s3153 = sor.u32 256, 45
    %3154 = vbcast.lane.b32.xlu0 %v3151, %s3153
    %v3155 = vpop.permute.xlu0 %3154
    %s3157 = sor.u32 256, 53
    %3158 = vbcast.lane.b32.xlu0 %v3151, %s3157
    %v3159 = vpop.permute.xlu0 %3158
    %v3160 = vlaneseq
    %v3161 = vshrl.u32 %v3160, 7
    %v3162 = vsub.s32 1, %v3161
    %v3163 = vrot.slane %v3121, %v3162
    %s3165 = sor.u32 256, 45
    %3166 = vbcast.lane.b32.xlu0 %v3163, %s3165
    %v3167 = vpop.permute.xlu0 %3166
    %s3169 = sor.u32 256, 53
    %3170 = vbcast.lane.b32.xlu0 %v3163, %s3169
    %v3171 = vpop.permute.xlu0 %3170
    %v3172 = vmul.f32 %v3155, %v237
    %v3173 = vmul.f32 %v3159, %v238
    %v3174 = vmul.f32 %v3167, %v237
    %v3175 = vmul.f32 %v3171, %v238
    %v3176 = vsel %vm222, %v3172, 0.0
    %v3177 = vsel %vm319, %v3173, 0.0
    %v3178 = vadd.f32 %v3176, %v3177
    %v3179 = vrot.slane %v3178, 4
    %v3180 = vadd.f32 %v3178, %v3179
    %v3181 = vrot.slane %v3180, 2
    %v3182 = vadd.f32 %v3180, %v3181
    %v3183 = vrot.slane %v3182, 1
    %v3184 = vadd.f32 %v3182, %v3183
    %v3185 = vsel %vm222, %v3174, 0.0
    %v3186 = vsel %vm319, %v3175, 0.0
    %v3187 = vadd.f32 %v3185, %v3186
    %v3188 = vrot.slane %v3187, 4
    %v3189 = vadd.f32 %v3187, %v3188
    %v3190 = vrot.slane %v3189, 2
    %v3191 = vadd.f32 %v3189, %v3190
    %v3192 = vrot.slane %v3191, 1
    %v3193 = vadd.f32 %v3191, %v3192
    %v3196 = vsel %vm339, %v3193, %v3184
    %v3198 = vadd.f32 %v3147, %v3196
    %v3199 = vxor.u32 %v3198, 2147483648
    %v3200 = vmul.f32 %v3199, 1.442695
    %v3201 = vpow.pop %v3200
    %v3202 = vadd.f32 %v3201, 1.0
    %v3203 = vrcp.pop %v3202
    %v3204 = vmul.f32 1.0, %v3203
    %v3205 = vmul.f32 %v3204, 2.0
    %v3206 = vsub.f32 %v3205, 1.0
    %v3207 = vmul.f32 %v3204, %v3115
    %3209 = vrot.lane.b32.xlu0 %v3206, 98
    %v3210 = vpop.permute.xlu0 %3209
    %v3212 = vmul.f32 %v3204, %v3210
    %3214 = vrot.lane.b32.xlu0 %v3212, 15
    %v3215 = vpop.permute.xlu0 %3214
    %v3217 = vadd.f32 %v3207, %v3215
    %v3218 = vtanh.pop %v3217
    %3220 = vrot.lane.b32.xlu0 %v3218, 30
    %v3221 = vpop.permute.xlu0 %3220
    %v3223 = vmul.f32 %v3204, %v3221
    %v3224 = vmax.f32 %v3223, 0.0
    %s3225 = scalar_lea.vmem %s4, 174
    %v3226 = vld [vmem:[%s3225] sm:$0x3]
    %3228 = vrot.lane.b32.xlu0 %v3226, 45
    %v3229 = vpop.permute.xlu0 %3228
    %v3231 = vmul.f32 %v3224, %v3229
    %v3232 = vadd.f32 %v3130, %v3231
    %s3233 = scalar_lea.vmem %s4, 176
    %v3234 = vld [vmem:[%s3233] sm:$0x3]
    %3236 = vrot.lane.b32.xlu0 %v3234, 45
    %v3237 = vpop.permute.xlu0 %3236
    %v3239 = vmul.f32 %v3224, %v3237
    %v3240 = vadd.f32 %v3138, %v3239
    %s3241 = scalar_lea.vmem %s4, 178
    %v3242 = vld [vmem:[%s3241] sm:$0x3]
    %3244 = vrot.lane.b32.xlu0 %v3242, 45
    %v3245 = vpop.permute.xlu0 %3244
    %v3247 = vmul.f32 %v3224, %v3245
    %v3248 = vadd.f32 %v3146, %v3247
    %v3249 = vld [vmem:[#allocation2 + $0x3c] sm:$0x3]
    %v3250 = vlaneseq
    %v3251 = vshrl.u32 %v3250, 7
    %v3252 = vsub.s32 0, %v3251
    %v3253 = vrot.slane %v3223, %v3252
    %s3255 = sor.u32 256, 45
    %3256 = vbcast.lane.b32.xlu0 %v3253, %s3255
    %v3257 = vpop.permute.xlu0 %3256
    %s3259 = sor.u32 256, 53
    %3260 = vbcast.lane.b32.xlu0 %v3253, %s3259
    %v3261 = vpop.permute.xlu0 %3260
    %v3262 = vlaneseq
    %v3263 = vshrl.u32 %v3262, 7
    %v3264 = vsub.s32 1, %v3263
    %v3265 = vrot.slane %v3223, %v3264
    %s3267 = sor.u32 256, 45
    %3268 = vbcast.lane.b32.xlu0 %v3265, %s3267
    %v3269 = vpop.permute.xlu0 %3268
    %s3271 = sor.u32 256, 53
    %3272 = vbcast.lane.b32.xlu0 %v3265, %s3271
    %v3273 = vpop.permute.xlu0 %3272
    %v3274 = vmul.f32 %v3257, %v237
    %v3275 = vmul.f32 %v3261, %v238
    %v3276 = vmul.f32 %v3269, %v237
    %v3277 = vmul.f32 %v3273, %v238
    %v3278 = vsel %vm222, %v3274, 0.0
    %v3279 = vsel %vm319, %v3275, 0.0
    %v3280 = vadd.f32 %v3278, %v3279
    %v3281 = vrot.slane %v3280, 4
    %v3282 = vadd.f32 %v3280, %v3281
    %v3283 = vrot.slane %v3282, 2
    %v3284 = vadd.f32 %v3282, %v3283
    %v3285 = vrot.slane %v3284, 1
    %v3286 = vadd.f32 %v3284, %v3285
    %v3287 = vsel %vm222, %v3276, 0.0
    %v3288 = vsel %vm319, %v3277, 0.0
    %v3289 = vadd.f32 %v3287, %v3288
    %v3290 = vrot.slane %v3289, 4
    %v3291 = vadd.f32 %v3289, %v3290
    %v3292 = vrot.slane %v3291, 2
    %v3293 = vadd.f32 %v3291, %v3292
    %v3294 = vrot.slane %v3293, 1
    %v3295 = vadd.f32 %v3293, %v3294
    %v3298 = vsel %vm339, %v3295, %v3286
    %v3300 = vadd.f32 %v3249, %v3298
    %v3301 = vxor.u32 %v3300, 2147483648
    %v3302 = vmul.f32 %v3301, 1.442695
    %v3303 = vpow.pop %v3302
    %v3304 = vadd.f32 %v3303, 1.0
    %v3305 = vrcp.pop %v3304
    %v3306 = vmul.f32 1.0, %v3305
    %v3307 = vmul.f32 %v3306, 2.0
    %v3308 = vsub.f32 %v3307, 1.0
    %v3309 = vmul.f32 %v3306, %v3217
    %3311 = vrot.lane.b32.xlu0 %v3308, 98
    %v3312 = vpop.permute.xlu0 %3311
    %v3314 = vmul.f32 %v3306, %v3312
    %3316 = vrot.lane.b32.xlu0 %v3314, 15
    %v3317 = vpop.permute.xlu0 %3316
    %v3319 = vadd.f32 %v3309, %v3317
    %v3320 = vtanh.pop %v3319
    %3322 = vrot.lane.b32.xlu0 %v3320, 30
    %v3323 = vpop.permute.xlu0 %3322
    %v3325 = vmul.f32 %v3306, %v3323
    %v3326 = vmax.f32 %v3325, 0.0
    %s3327 = scalar_lea.vmem %s4, 180
    %v3328 = vld [vmem:[%s3327] sm:$0x3]
    %3330 = vrot.lane.b32.xlu0 %v3328, 45
    %v3331 = vpop.permute.xlu0 %3330
    %v3333 = vmul.f32 %v3326, %v3331
    %v3334 = vadd.f32 %v3232, %v3333
    %s3335 = scalar_lea.vmem %s4, 182
    %v3336 = vld [vmem:[%s3335] sm:$0x3]
    %3338 = vrot.lane.b32.xlu0 %v3336, 45
    %v3339 = vpop.permute.xlu0 %3338
    %v3341 = vmul.f32 %v3326, %v3339
    %v3342 = vadd.f32 %v3240, %v3341
    %s3343 = scalar_lea.vmem %s4, 184
    %v3344 = vld [vmem:[%s3343] sm:$0x3]
    %3346 = vrot.lane.b32.xlu0 %v3344, 45
    %v3347 = vpop.permute.xlu0 %3346
    %v3349 = vmul.f32 %v3326, %v3347
    %v3350 = vadd.f32 %v3248, %v3349
    %v3351 = vld [vmem:[#allocation2 + $0x3e] sm:$0x3]
    %v3352 = vlaneseq
    %v3353 = vshrl.u32 %v3352, 7
    %v3354 = vsub.s32 0, %v3353
    %v3355 = vrot.slane %v3325, %v3354
    %s3357 = sor.u32 256, 45
    %3358 = vbcast.lane.b32.xlu0 %v3355, %s3357
    %v3359 = vpop.permute.xlu0 %3358
    %s3361 = sor.u32 256, 53
    %3362 = vbcast.lane.b32.xlu0 %v3355, %s3361
    %v3363 = vpop.permute.xlu0 %3362
    %v3364 = vlaneseq
    %v3365 = vshrl.u32 %v3364, 7
    %v3366 = vsub.s32 1, %v3365
    %v3367 = vrot.slane %v3325, %v3366
    %s3369 = sor.u32 256, 45
    %3370 = vbcast.lane.b32.xlu0 %v3367, %s3369
    %v3371 = vpop.permute.xlu0 %3370
    %s3373 = sor.u32 256, 53
    %3374 = vbcast.lane.b32.xlu0 %v3367, %s3373
    %v3375 = vpop.permute.xlu0 %3374
    %v3376 = vmul.f32 %v3359, %v237
    %v3377 = vmul.f32 %v3363, %v238
    %v3378 = vmul.f32 %v3371, %v237
    %v3379 = vmul.f32 %v3375, %v238
    %v3380 = vsel %vm222, %v3376, 0.0
    %v3381 = vsel %vm319, %v3377, 0.0
    %v3382 = vadd.f32 %v3380, %v3381
    %v3383 = vrot.slane %v3382, 4
    %v3384 = vadd.f32 %v3382, %v3383
    %v3385 = vrot.slane %v3384, 2
    %v3386 = vadd.f32 %v3384, %v3385
    %v3387 = vrot.slane %v3386, 1
    %v3388 = vadd.f32 %v3386, %v3387
    %v3389 = vsel %vm222, %v3378, 0.0
    %v3390 = vsel %vm319, %v3379, 0.0
    %v3391 = vadd.f32 %v3389, %v3390
    %v3392 = vrot.slane %v3391, 4
    %v3393 = vadd.f32 %v3391, %v3392
    %v3394 = vrot.slane %v3393, 2
    %v3395 = vadd.f32 %v3393, %v3394
    %v3396 = vrot.slane %v3395, 1
    %v3397 = vadd.f32 %v3395, %v3396
    %v3400 = vsel %vm339, %v3397, %v3388
    %v3402 = vadd.f32 %v3351, %v3400
    %v3403 = vxor.u32 %v3402, 2147483648
    %v3404 = vmul.f32 %v3403, 1.442695
    %v3405 = vpow.pop %v3404
    %v3406 = vadd.f32 %v3405, 1.0
    %v3407 = vrcp.pop %v3406
    %v3408 = vmul.f32 1.0, %v3407
    %v3409 = vmul.f32 %v3408, 2.0
    %v3410 = vsub.f32 %v3409, 1.0
    %v3411 = vmul.f32 %v3408, %v3319
    %3413 = vrot.lane.b32.xlu0 %v3410, 98
    %v3414 = vpop.permute.xlu0 %3413
    %v3416 = vmul.f32 %v3408, %v3414
    %3418 = vrot.lane.b32.xlu0 %v3416, 15
    %v3419 = vpop.permute.xlu0 %3418
    %v3421 = vadd.f32 %v3411, %v3419
    %v3422 = vtanh.pop %v3421
    %3424 = vrot.lane.b32.xlu0 %v3422, 30
    %v3425 = vpop.permute.xlu0 %3424
    %v3427 = vmul.f32 %v3408, %v3425
    %v3428 = vmax.f32 %v3427, 0.0
    %s3429 = scalar_lea.vmem %s4, 186
    %v3430 = vld [vmem:[%s3429] sm:$0x3]
    %3432 = vrot.lane.b32.xlu0 %v3430, 45
    %v3433 = vpop.permute.xlu0 %3432
    %v3435 = vmul.f32 %v3428, %v3433
    %v3436 = vadd.f32 %v3334, %v3435
    %s3437 = scalar_lea.vmem %s4, 188
    %v3438 = vld [vmem:[%s3437] sm:$0x3]
    %3440 = vrot.lane.b32.xlu0 %v3438, 45
    %v3441 = vpop.permute.xlu0 %3440
    %v3443 = vmul.f32 %v3428, %v3441
    %v3444 = vadd.f32 %v3342, %v3443
    %s3445 = scalar_lea.vmem %s4, 190
    %v3446 = vld [vmem:[%s3445] sm:$0x3]
    %3448 = vrot.lane.b32.xlu0 %v3446, 45
    %v3449 = vpop.permute.xlu0 %3448
    %v3451 = vmul.f32 %v3428, %v3449
    %v3452 = vadd.f32 %v3350, %v3451
    %v3453 = vld [vmem:[#allocation2 + $0x40] sm:$0x3]
    %v3454 = vlaneseq
    %v3455 = vshrl.u32 %v3454, 7
    %v3456 = vsub.s32 0, %v3455
    %v3457 = vrot.slane %v3427, %v3456
    %s3459 = sor.u32 256, 45
    %3460 = vbcast.lane.b32.xlu0 %v3457, %s3459
    %v3461 = vpop.permute.xlu0 %3460
    %s3463 = sor.u32 256, 53
    %3464 = vbcast.lane.b32.xlu0 %v3457, %s3463
    %v3465 = vpop.permute.xlu0 %3464
    %v3466 = vlaneseq
    %v3467 = vshrl.u32 %v3466, 7
    %v3468 = vsub.s32 1, %v3467
    %v3469 = vrot.slane %v3427, %v3468
    %s3471 = sor.u32 256, 45
    %3472 = vbcast.lane.b32.xlu0 %v3469, %s3471
    %v3473 = vpop.permute.xlu0 %3472
    %s3475 = sor.u32 256, 53
    %3476 = vbcast.lane.b32.xlu0 %v3469, %s3475
    %v3477 = vpop.permute.xlu0 %3476
    %v3478 = vmul.f32 %v3461, %v237
    %v3479 = vmul.f32 %v3465, %v238
    %v3480 = vmul.f32 %v3473, %v237
    %v3481 = vmul.f32 %v3477, %v238
    %v3482 = vsel %vm222, %v3478, 0.0
    %v3483 = vsel %vm319, %v3479, 0.0
    %v3484 = vadd.f32 %v3482, %v3483
    %v3485 = vrot.slane %v3484, 4
    %v3486 = vadd.f32 %v3484, %v3485
    %v3487 = vrot.slane %v3486, 2
    %v3488 = vadd.f32 %v3486, %v3487
    %v3489 = vrot.slane %v3488, 1
    %v3490 = vadd.f32 %v3488, %v3489
    %v3491 = vsel %vm222, %v3480, 0.0
    %v3492 = vsel %vm319, %v3481, 0.0
    %v3493 = vadd.f32 %v3491, %v3492
    %v3494 = vrot.slane %v3493, 4
    %v3495 = vadd.f32 %v3493, %v3494
    %v3496 = vrot.slane %v3495, 2
    %v3497 = vadd.f32 %v3495, %v3496
    %v3498 = vrot.slane %v3497, 1
    %v3499 = vadd.f32 %v3497, %v3498
    %v3502 = vsel %vm339, %v3499, %v3490
    %v3504 = vadd.f32 %v3453, %v3502
    %v3505 = vxor.u32 %v3504, 2147483648
    %v3506 = vmul.f32 %v3505, 1.442695
    %v3507 = vpow.pop %v3506
    %v3508 = vadd.f32 %v3507, 1.0
    %v3509 = vrcp.pop %v3508
    %v3510 = vmul.f32 1.0, %v3509
    %v3511 = vmul.f32 %v3510, 2.0
    %v3512 = vsub.f32 %v3511, 1.0
    %v3513 = vmul.f32 %v3510, %v3421
    %3515 = vrot.lane.b32.xlu0 %v3512, 98
    %v3516 = vpop.permute.xlu0 %3515
    %v3518 = vmul.f32 %v3510, %v3516
    %3520 = vrot.lane.b32.xlu0 %v3518, 15
    %v3521 = vpop.permute.xlu0 %3520
    %v3523 = vadd.f32 %v3513, %v3521
    %v3524 = vtanh.pop %v3523
    %3526 = vrot.lane.b32.xlu0 %v3524, 30
    %v3527 = vpop.permute.xlu0 %3526
    %v3529 = vmul.f32 %v3510, %v3527
    %v3530 = vmax.f32 %v3529, 0.0
    %s3531 = scalar_lea.vmem %s4, 192
    %v3532 = vld [vmem:[%s3531] sm:$0x3]
    %3534 = vrot.lane.b32.xlu0 %v3532, 45
    %v3535 = vpop.permute.xlu0 %3534
    %v3537 = vmul.f32 %v3530, %v3535
    %v3538 = vadd.f32 %v3436, %v3537
    %s3539 = scalar_lea.vmem %s4, 194
    %v3540 = vld [vmem:[%s3539] sm:$0x3]
    %3542 = vrot.lane.b32.xlu0 %v3540, 45
    %v3543 = vpop.permute.xlu0 %3542
    %v3545 = vmul.f32 %v3530, %v3543
    %v3546 = vadd.f32 %v3444, %v3545
    %s3547 = scalar_lea.vmem %s4, 196
    %v3548 = vld [vmem:[%s3547] sm:$0x3]
    %3550 = vrot.lane.b32.xlu0 %v3548, 45
    %v3551 = vpop.permute.xlu0 %3550
    %v3553 = vmul.f32 %v3530, %v3551
    %v3554 = vadd.f32 %v3452, %v3553
    %v3555 = vld [vmem:[#allocation2 + $0x42] sm:$0x3]
    %v3556 = vlaneseq
    %v3557 = vshrl.u32 %v3556, 7
    %v3558 = vsub.s32 0, %v3557
    %v3559 = vrot.slane %v3529, %v3558
    %s3561 = sor.u32 256, 45
    %3562 = vbcast.lane.b32.xlu0 %v3559, %s3561
    %v3563 = vpop.permute.xlu0 %3562
    %s3565 = sor.u32 256, 53
    %3566 = vbcast.lane.b32.xlu0 %v3559, %s3565
    %v3567 = vpop.permute.xlu0 %3566
    %v3568 = vlaneseq
    %v3569 = vshrl.u32 %v3568, 7
    %v3570 = vsub.s32 1, %v3569
    %v3571 = vrot.slane %v3529, %v3570
    %s3573 = sor.u32 256, 45
    %3574 = vbcast.lane.b32.xlu0 %v3571, %s3573
    %v3575 = vpop.permute.xlu0 %3574
    %s3577 = sor.u32 256, 53
    %3578 = vbcast.lane.b32.xlu0 %v3571, %s3577
    %v3579 = vpop.permute.xlu0 %3578
    %v3580 = vmul.f32 %v3563, %v237
    %v3581 = vmul.f32 %v3567, %v238
    %v3582 = vmul.f32 %v3575, %v237
    %v3583 = vmul.f32 %v3579, %v238
    %v3584 = vsel %vm222, %v3580, 0.0
    %v3585 = vsel %vm319, %v3581, 0.0
    %v3586 = vadd.f32 %v3584, %v3585
    %v3587 = vrot.slane %v3586, 4
    %v3588 = vadd.f32 %v3586, %v3587
    %v3589 = vrot.slane %v3588, 2
    %v3590 = vadd.f32 %v3588, %v3589
    %v3591 = vrot.slane %v3590, 1
    %v3592 = vadd.f32 %v3590, %v3591
    %v3593 = vsel %vm222, %v3582, 0.0
    %v3594 = vsel %vm319, %v3583, 0.0
    %v3595 = vadd.f32 %v3593, %v3594
    %v3596 = vrot.slane %v3595, 4
    %v3597 = vadd.f32 %v3595, %v3596
    %v3598 = vrot.slane %v3597, 2
    %v3599 = vadd.f32 %v3597, %v3598
    %v3600 = vrot.slane %v3599, 1
    %v3601 = vadd.f32 %v3599, %v3600
    %v3604 = vsel %vm339, %v3601, %v3592
    %v3606 = vadd.f32 %v3555, %v3604
    %v3607 = vxor.u32 %v3606, 2147483648
    %v3608 = vmul.f32 %v3607, 1.442695
    %v3609 = vpow.pop %v3608
    %v3610 = vadd.f32 %v3609, 1.0
    %v3611 = vrcp.pop %v3610
    %v3612 = vmul.f32 1.0, %v3611
    %v3613 = vmul.f32 %v3612, 2.0
    %v3614 = vsub.f32 %v3613, 1.0
    %v3615 = vmul.f32 %v3612, %v3523
    %3617 = vrot.lane.b32.xlu0 %v3614, 98
    %v3618 = vpop.permute.xlu0 %3617
    %v3620 = vmul.f32 %v3612, %v3618
    %3622 = vrot.lane.b32.xlu0 %v3620, 15
    %v3623 = vpop.permute.xlu0 %3622
    %v3625 = vadd.f32 %v3615, %v3623
    %v3626 = vtanh.pop %v3625
    %3628 = vrot.lane.b32.xlu0 %v3626, 30
    %v3629 = vpop.permute.xlu0 %3628
    %v3631 = vmul.f32 %v3612, %v3629
    %v3632 = vmax.f32 %v3631, 0.0
    %s3633 = scalar_lea.vmem %s4, 198
    %v3634 = vld [vmem:[%s3633] sm:$0x3]
    %3636 = vrot.lane.b32.xlu0 %v3634, 45
    %v3637 = vpop.permute.xlu0 %3636
    %v3639 = vmul.f32 %v3632, %v3637
    %v3640 = vadd.f32 %v3538, %v3639
    %s3641 = scalar_lea.vmem %s4, 200
    %v3642 = vld [vmem:[%s3641] sm:$0x3]
    %3644 = vrot.lane.b32.xlu0 %v3642, 45
    %v3645 = vpop.permute.xlu0 %3644
    %v3647 = vmul.f32 %v3632, %v3645
    %v3648 = vadd.f32 %v3546, %v3647
    %s3649 = scalar_lea.vmem %s4, 202
    %v3650 = vld [vmem:[%s3649] sm:$0x3]
    %3652 = vrot.lane.b32.xlu0 %v3650, 45
    %v3653 = vpop.permute.xlu0 %3652
    %v3655 = vmul.f32 %v3632, %v3653
    %v3656 = vadd.f32 %v3554, %v3655
    %v3657 = vld [vmem:[#allocation2 + $0x44] sm:$0x3]
    %v3658 = vlaneseq
    %v3659 = vshrl.u32 %v3658, 7
    %v3660 = vsub.s32 0, %v3659
    %v3661 = vrot.slane %v3631, %v3660
    %s3663 = sor.u32 256, 45
    %3664 = vbcast.lane.b32.xlu0 %v3661, %s3663
    %v3665 = vpop.permute.xlu0 %3664
    %s3667 = sor.u32 256, 53
    %3668 = vbcast.lane.b32.xlu0 %v3661, %s3667
    %v3669 = vpop.permute.xlu0 %3668
    %v3670 = vlaneseq
    %v3671 = vshrl.u32 %v3670, 7
    %v3672 = vsub.s32 1, %v3671
    %v3673 = vrot.slane %v3631, %v3672
    %s3675 = sor.u32 256, 45
    %3676 = vbcast.lane.b32.xlu0 %v3673, %s3675
    %v3677 = vpop.permute.xlu0 %3676
    %s3679 = sor.u32 256, 53
    %3680 = vbcast.lane.b32.xlu0 %v3673, %s3679
    %v3681 = vpop.permute.xlu0 %3680
    %v3682 = vmul.f32 %v3665, %v237
    %v3683 = vmul.f32 %v3669, %v238
    %v3684 = vmul.f32 %v3677, %v237
    %v3685 = vmul.f32 %v3681, %v238
    %v3686 = vsel %vm222, %v3682, 0.0
    %v3687 = vsel %vm319, %v3683, 0.0
    %v3688 = vadd.f32 %v3686, %v3687
    %v3689 = vrot.slane %v3688, 4
    %v3690 = vadd.f32 %v3688, %v3689
    %v3691 = vrot.slane %v3690, 2
    %v3692 = vadd.f32 %v3690, %v3691
    %v3693 = vrot.slane %v3692, 1
    %v3694 = vadd.f32 %v3692, %v3693
    %v3695 = vsel %vm222, %v3684, 0.0
    %v3696 = vsel %vm319, %v3685, 0.0
    %v3697 = vadd.f32 %v3695, %v3696
    %v3698 = vrot.slane %v3697, 4
    %v3699 = vadd.f32 %v3697, %v3698
    %v3700 = vrot.slane %v3699, 2
    %v3701 = vadd.f32 %v3699, %v3700
    %v3702 = vrot.slane %v3701, 1
    %v3703 = vadd.f32 %v3701, %v3702
    %v3706 = vsel %vm339, %v3703, %v3694
    %v3708 = vadd.f32 %v3657, %v3706
    %v3709 = vxor.u32 %v3708, 2147483648
    %v3710 = vmul.f32 %v3709, 1.442695
    %v3711 = vpow.pop %v3710
    %v3712 = vadd.f32 %v3711, 1.0
    %v3713 = vrcp.pop %v3712
    %v3714 = vmul.f32 1.0, %v3713
    %v3715 = vmul.f32 %v3714, 2.0
    %v3716 = vsub.f32 %v3715, 1.0
    %v3717 = vmul.f32 %v3714, %v3625
    %3719 = vrot.lane.b32.xlu0 %v3716, 98
    %v3720 = vpop.permute.xlu0 %3719
    %v3722 = vmul.f32 %v3714, %v3720
    %3724 = vrot.lane.b32.xlu0 %v3722, 15
    %v3725 = vpop.permute.xlu0 %3724
    %v3727 = vadd.f32 %v3717, %v3725
    %v3728 = vtanh.pop %v3727
    %3730 = vrot.lane.b32.xlu0 %v3728, 30
    %v3731 = vpop.permute.xlu0 %3730
    %v3733 = vmul.f32 %v3714, %v3731
    %v3734 = vmax.f32 %v3733, 0.0
    %s3735 = scalar_lea.vmem %s4, 204
    %v3736 = vld [vmem:[%s3735] sm:$0x3]
    %3738 = vrot.lane.b32.xlu0 %v3736, 45
    %v3739 = vpop.permute.xlu0 %3738
    %v3741 = vmul.f32 %v3734, %v3739
    %v3742 = vadd.f32 %v3640, %v3741
    %s3743 = scalar_lea.vmem %s4, 206
    %v3744 = vld [vmem:[%s3743] sm:$0x3]
    %3746 = vrot.lane.b32.xlu0 %v3744, 45
    %v3747 = vpop.permute.xlu0 %3746
    %v3749 = vmul.f32 %v3734, %v3747
    %v3750 = vadd.f32 %v3648, %v3749
    %s3751 = scalar_lea.vmem %s4, 208
    %v3752 = vld [vmem:[%s3751] sm:$0x3]
    %3754 = vrot.lane.b32.xlu0 %v3752, 45
    %v3755 = vpop.permute.xlu0 %3754
    %v3757 = vmul.f32 %v3734, %v3755
    %v3758 = vadd.f32 %v3656, %v3757
    %v3759 = vld [vmem:[#allocation2 + $0x46] sm:$0x3]
    %v3760 = vlaneseq
    %v3761 = vshrl.u32 %v3760, 7
    %v3762 = vsub.s32 0, %v3761
    %v3763 = vrot.slane %v3733, %v3762
    %s3765 = sor.u32 256, 45
    %3766 = vbcast.lane.b32.xlu0 %v3763, %s3765
    %v3767 = vpop.permute.xlu0 %3766
    %s3769 = sor.u32 256, 53
    %3770 = vbcast.lane.b32.xlu0 %v3763, %s3769
    %v3771 = vpop.permute.xlu0 %3770
    %v3772 = vlaneseq
    %v3773 = vshrl.u32 %v3772, 7
    %v3774 = vsub.s32 1, %v3773
    %v3775 = vrot.slane %v3733, %v3774
    %s3777 = sor.u32 256, 45
    %3778 = vbcast.lane.b32.xlu0 %v3775, %s3777
    %v3779 = vpop.permute.xlu0 %3778
    %s3781 = sor.u32 256, 53
    %3782 = vbcast.lane.b32.xlu0 %v3775, %s3781
    %v3783 = vpop.permute.xlu0 %3782
    %v3784 = vmul.f32 %v3767, %v237
    %v3785 = vmul.f32 %v3771, %v238
    %v3786 = vmul.f32 %v3779, %v237
    %v3787 = vmul.f32 %v3783, %v238
    %v3788 = vsel %vm222, %v3784, 0.0
    %v3789 = vsel %vm319, %v3785, 0.0
    %v3790 = vadd.f32 %v3788, %v3789
    %v3791 = vrot.slane %v3790, 4
    %v3792 = vadd.f32 %v3790, %v3791
    %v3793 = vrot.slane %v3792, 2
    %v3794 = vadd.f32 %v3792, %v3793
    %v3795 = vrot.slane %v3794, 1
    %v3796 = vadd.f32 %v3794, %v3795
    %v3797 = vsel %vm222, %v3786, 0.0
    %v3798 = vsel %vm319, %v3787, 0.0
    %v3799 = vadd.f32 %v3797, %v3798
    %v3800 = vrot.slane %v3799, 4
    %v3801 = vadd.f32 %v3799, %v3800
    %v3802 = vrot.slane %v3801, 2
    %v3803 = vadd.f32 %v3801, %v3802
    %v3804 = vrot.slane %v3803, 1
    %v3805 = vadd.f32 %v3803, %v3804
    %v3808 = vsel %vm339, %v3805, %v3796
    %v3810 = vadd.f32 %v3759, %v3808
    %v3811 = vxor.u32 %v3810, 2147483648
    %v3812 = vmul.f32 %v3811, 1.442695
    %v3813 = vpow.pop %v3812
    %v3814 = vadd.f32 %v3813, 1.0
    %v3815 = vrcp.pop %v3814
    %v3816 = vmul.f32 1.0, %v3815
    %v3817 = vmul.f32 %v3816, 2.0
    %v3818 = vsub.f32 %v3817, 1.0
    %v3819 = vmul.f32 %v3816, %v3727
    %3821 = vrot.lane.b32.xlu0 %v3818, 98
    %v3822 = vpop.permute.xlu0 %3821
    %v3824 = vmul.f32 %v3816, %v3822
    %3826 = vrot.lane.b32.xlu0 %v3824, 15
    %v3827 = vpop.permute.xlu0 %3826
    %v3829 = vadd.f32 %v3819, %v3827
    %v3830 = vtanh.pop %v3829
    %3832 = vrot.lane.b32.xlu0 %v3830, 30
    %v3833 = vpop.permute.xlu0 %3832
    %v3835 = vmul.f32 %v3816, %v3833
    %v3836 = vmax.f32 %v3835, 0.0
    %s3837 = scalar_lea.vmem %s4, 210
    %v3838 = vld [vmem:[%s3837] sm:$0x3]
    %3840 = vrot.lane.b32.xlu0 %v3838, 45
    %v3841 = vpop.permute.xlu0 %3840
    %v3843 = vmul.f32 %v3836, %v3841
    %v3844 = vadd.f32 %v3742, %v3843
    %s3845 = scalar_lea.vmem %s4, 212
    %v3846 = vld [vmem:[%s3845] sm:$0x3]
    %3848 = vrot.lane.b32.xlu0 %v3846, 45
    %v3849 = vpop.permute.xlu0 %3848
    %v3851 = vmul.f32 %v3836, %v3849
    %v3852 = vadd.f32 %v3750, %v3851
    %s3853 = scalar_lea.vmem %s4, 214
    %v3854 = vld [vmem:[%s3853] sm:$0x3]
    %3856 = vrot.lane.b32.xlu0 %v3854, 45
    %v3857 = vpop.permute.xlu0 %3856
    %v3859 = vmul.f32 %v3836, %v3857
    %v3860 = vadd.f32 %v3758, %v3859
    %v3861 = vld [vmem:[#allocation2 + $0x48] sm:$0x3]
    %v3862 = vlaneseq
    %v3863 = vshrl.u32 %v3862, 7
    %v3864 = vsub.s32 0, %v3863
    %v3865 = vrot.slane %v3835, %v3864
    %s3867 = sor.u32 256, 45
    %3868 = vbcast.lane.b32.xlu0 %v3865, %s3867
    %v3869 = vpop.permute.xlu0 %3868
    %s3871 = sor.u32 256, 53
    %3872 = vbcast.lane.b32.xlu0 %v3865, %s3871
    %v3873 = vpop.permute.xlu0 %3872
    %v3874 = vlaneseq
    %v3875 = vshrl.u32 %v3874, 7
    %v3876 = vsub.s32 1, %v3875
    %v3877 = vrot.slane %v3835, %v3876
    %s3879 = sor.u32 256, 45
    %3880 = vbcast.lane.b32.xlu0 %v3877, %s3879
    %v3881 = vpop.permute.xlu0 %3880
    %s3883 = sor.u32 256, 53
    %3884 = vbcast.lane.b32.xlu0 %v3877, %s3883
    %v3885 = vpop.permute.xlu0 %3884
    %v3886 = vmul.f32 %v3869, %v237
    %v3887 = vmul.f32 %v3873, %v238
    %v3888 = vmul.f32 %v3881, %v237
    %v3889 = vmul.f32 %v3885, %v238
    %v3890 = vsel %vm222, %v3886, 0.0
    %v3891 = vsel %vm319, %v3887, 0.0
    %v3892 = vadd.f32 %v3890, %v3891
    %v3893 = vrot.slane %v3892, 4
    %v3894 = vadd.f32 %v3892, %v3893
    %v3895 = vrot.slane %v3894, 2
    %v3896 = vadd.f32 %v3894, %v3895
    %v3897 = vrot.slane %v3896, 1
    %v3898 = vadd.f32 %v3896, %v3897
    %v3899 = vsel %vm222, %v3888, 0.0
    %v3900 = vsel %vm319, %v3889, 0.0
    %v3901 = vadd.f32 %v3899, %v3900
    %v3902 = vrot.slane %v3901, 4
    %v3903 = vadd.f32 %v3901, %v3902
    %v3904 = vrot.slane %v3903, 2
    %v3905 = vadd.f32 %v3903, %v3904
    %v3906 = vrot.slane %v3905, 1
    %v3907 = vadd.f32 %v3905, %v3906
    %v3910 = vsel %vm339, %v3907, %v3898
    %v3912 = vadd.f32 %v3861, %v3910
    %v3913 = vxor.u32 %v3912, 2147483648
    %v3914 = vmul.f32 %v3913, 1.442695
    %v3915 = vpow.pop %v3914
    %v3916 = vadd.f32 %v3915, 1.0
    %v3917 = vrcp.pop %v3916
    %v3918 = vmul.f32 1.0, %v3917
    %v3919 = vmul.f32 %v3918, 2.0
    %v3920 = vsub.f32 %v3919, 1.0
    %v3921 = vmul.f32 %v3918, %v3829
    %3923 = vrot.lane.b32.xlu0 %v3920, 98
    %v3924 = vpop.permute.xlu0 %3923
    %v3926 = vmul.f32 %v3918, %v3924
    %3928 = vrot.lane.b32.xlu0 %v3926, 15
    %v3929 = vpop.permute.xlu0 %3928
    %v3931 = vadd.f32 %v3921, %v3929
    %v3932 = vtanh.pop %v3931
    %3934 = vrot.lane.b32.xlu0 %v3932, 30
    %v3935 = vpop.permute.xlu0 %3934
    %v3937 = vmul.f32 %v3918, %v3935
    %v3938 = vmax.f32 %v3937, 0.0
    %s3939 = scalar_lea.vmem %s4, 216
    %v3940 = vld [vmem:[%s3939] sm:$0x3]
    %3942 = vrot.lane.b32.xlu0 %v3940, 45
    %v3943 = vpop.permute.xlu0 %3942
    %v3945 = vmul.f32 %v3938, %v3943
    %v3946 = vadd.f32 %v3844, %v3945
    %s3947 = scalar_lea.vmem %s4, 218
    %v3948 = vld [vmem:[%s3947] sm:$0x3]
    %3950 = vrot.lane.b32.xlu0 %v3948, 45
    %v3951 = vpop.permute.xlu0 %3950
    %v3953 = vmul.f32 %v3938, %v3951
    %v3954 = vadd.f32 %v3852, %v3953
    %s3955 = scalar_lea.vmem %s4, 220
    %v3956 = vld [vmem:[%s3955] sm:$0x3]
    %3958 = vrot.lane.b32.xlu0 %v3956, 45
    %v3959 = vpop.permute.xlu0 %3958
    %v3961 = vmul.f32 %v3938, %v3959
    %v3962 = vadd.f32 %v3860, %v3961
    %v3963 = vld [vmem:[#allocation2 + $0x4a] sm:$0x3]
    %v3964 = vlaneseq
    %v3965 = vshrl.u32 %v3964, 7
    %v3966 = vsub.s32 0, %v3965
    %v3967 = vrot.slane %v3937, %v3966
    %s3969 = sor.u32 256, 45
    %3970 = vbcast.lane.b32.xlu0 %v3967, %s3969
    %v3971 = vpop.permute.xlu0 %3970
    %s3973 = sor.u32 256, 53
    %3974 = vbcast.lane.b32.xlu0 %v3967, %s3973
    %v3975 = vpop.permute.xlu0 %3974
    %v3976 = vlaneseq
    %v3977 = vshrl.u32 %v3976, 7
    %v3978 = vsub.s32 1, %v3977
    %v3979 = vrot.slane %v3937, %v3978
    %s3981 = sor.u32 256, 45
    %3982 = vbcast.lane.b32.xlu0 %v3979, %s3981
    %v3983 = vpop.permute.xlu0 %3982
    %s3985 = sor.u32 256, 53
    %3986 = vbcast.lane.b32.xlu0 %v3979, %s3985
    %v3987 = vpop.permute.xlu0 %3986
    %v3988 = vmul.f32 %v3971, %v237
    %v3989 = vmul.f32 %v3975, %v238
    %v3990 = vmul.f32 %v3983, %v237
    %v3991 = vmul.f32 %v3987, %v238
    %v3992 = vsel %vm222, %v3988, 0.0
    %v3993 = vsel %vm319, %v3989, 0.0
    %v3994 = vadd.f32 %v3992, %v3993
    %v3995 = vrot.slane %v3994, 4
    %v3996 = vadd.f32 %v3994, %v3995
    %v3997 = vrot.slane %v3996, 2
    %v3998 = vadd.f32 %v3996, %v3997
    %v3999 = vrot.slane %v3998, 1
    %v4000 = vadd.f32 %v3998, %v3999
    %v4001 = vsel %vm222, %v3990, 0.0
    %v4002 = vsel %vm319, %v3991, 0.0
    %v4003 = vadd.f32 %v4001, %v4002
    %v4004 = vrot.slane %v4003, 4
    %v4005 = vadd.f32 %v4003, %v4004
    %v4006 = vrot.slane %v4005, 2
    %v4007 = vadd.f32 %v4005, %v4006
    %v4008 = vrot.slane %v4007, 1
    %v4009 = vadd.f32 %v4007, %v4008
    %v4012 = vsel %vm339, %v4009, %v4000
    %v4014 = vadd.f32 %v3963, %v4012
    %v4015 = vxor.u32 %v4014, 2147483648
    %v4016 = vmul.f32 %v4015, 1.442695
    %v4017 = vpow.pop %v4016
    %v4018 = vadd.f32 %v4017, 1.0
    %v4019 = vrcp.pop %v4018
    %v4020 = vmul.f32 1.0, %v4019
    %v4021 = vmul.f32 %v4020, 2.0
    %v4022 = vsub.f32 %v4021, 1.0
    %v4023 = vmul.f32 %v4020, %v3931
    %4025 = vrot.lane.b32.xlu0 %v4022, 98
    %v4026 = vpop.permute.xlu0 %4025
    %v4028 = vmul.f32 %v4020, %v4026
    %4030 = vrot.lane.b32.xlu0 %v4028, 15
    %v4031 = vpop.permute.xlu0 %4030
    %v4033 = vadd.f32 %v4023, %v4031
    %v4034 = vtanh.pop %v4033
    %4036 = vrot.lane.b32.xlu0 %v4034, 30
    %v4037 = vpop.permute.xlu0 %4036
    %v4039 = vmul.f32 %v4020, %v4037
    %v4040 = vmax.f32 %v4039, 0.0
    %s4041 = scalar_lea.vmem %s4, 222
    %v4042 = vld [vmem:[%s4041] sm:$0x3]
    %4044 = vrot.lane.b32.xlu0 %v4042, 45
    %v4045 = vpop.permute.xlu0 %4044
    %v4047 = vmul.f32 %v4040, %v4045
    %v4048 = vadd.f32 %v3946, %v4047
    %s4049 = scalar_lea.vmem %s4, 224
    %v4050 = vld [vmem:[%s4049] sm:$0x3]
    %4052 = vrot.lane.b32.xlu0 %v4050, 45
    %v4053 = vpop.permute.xlu0 %4052
    %v4055 = vmul.f32 %v4040, %v4053
    %v4056 = vadd.f32 %v3954, %v4055
    %s4057 = scalar_lea.vmem %s4, 226
    %v4058 = vld [vmem:[%s4057] sm:$0x3]
    %4060 = vrot.lane.b32.xlu0 %v4058, 45
    %v4061 = vpop.permute.xlu0 %4060
    %v4063 = vmul.f32 %v4040, %v4061
    %v4064 = vadd.f32 %v3962, %v4063
    %v4065 = vld [vmem:[#allocation2 + $0x4c] sm:$0x3]
    %v4066 = vlaneseq
    %v4067 = vshrl.u32 %v4066, 7
    %v4068 = vsub.s32 0, %v4067
    %v4069 = vrot.slane %v4039, %v4068
    %s4071 = sor.u32 256, 45
    %4072 = vbcast.lane.b32.xlu0 %v4069, %s4071
    %v4073 = vpop.permute.xlu0 %4072
    %s4075 = sor.u32 256, 53
    %4076 = vbcast.lane.b32.xlu0 %v4069, %s4075
    %v4077 = vpop.permute.xlu0 %4076
    %v4078 = vlaneseq
    %v4079 = vshrl.u32 %v4078, 7
    %v4080 = vsub.s32 1, %v4079
    %v4081 = vrot.slane %v4039, %v4080
    %s4083 = sor.u32 256, 45
    %4084 = vbcast.lane.b32.xlu0 %v4081, %s4083
    %v4085 = vpop.permute.xlu0 %4084
    %s4087 = sor.u32 256, 53
    %4088 = vbcast.lane.b32.xlu0 %v4081, %s4087
    %v4089 = vpop.permute.xlu0 %4088
    %v4090 = vmul.f32 %v4073, %v237
    %v4091 = vmul.f32 %v4077, %v238
    %v4092 = vmul.f32 %v4085, %v237
    %v4093 = vmul.f32 %v4089, %v238
    %v4094 = vsel %vm222, %v4090, 0.0
    %v4095 = vsel %vm319, %v4091, 0.0
    %v4096 = vadd.f32 %v4094, %v4095
    %v4097 = vrot.slane %v4096, 4
    %v4098 = vadd.f32 %v4096, %v4097
    %v4099 = vrot.slane %v4098, 2
    %v4100 = vadd.f32 %v4098, %v4099
    %v4101 = vrot.slane %v4100, 1
    %v4102 = vadd.f32 %v4100, %v4101
    %v4103 = vsel %vm222, %v4092, 0.0
    %v4104 = vsel %vm319, %v4093, 0.0
    %v4105 = vadd.f32 %v4103, %v4104
    %v4106 = vrot.slane %v4105, 4
    %v4107 = vadd.f32 %v4105, %v4106
    %v4108 = vrot.slane %v4107, 2
    %v4109 = vadd.f32 %v4107, %v4108
    %v4110 = vrot.slane %v4109, 1
    %v4111 = vadd.f32 %v4109, %v4110
    %v4114 = vsel %vm339, %v4111, %v4102
    %v4116 = vadd.f32 %v4065, %v4114
    %v4117 = vxor.u32 %v4116, 2147483648
    %v4118 = vmul.f32 %v4117, 1.442695
    %v4119 = vpow.pop %v4118
    %v4120 = vadd.f32 %v4119, 1.0
    %v4121 = vrcp.pop %v4120
    %v4122 = vmul.f32 1.0, %v4121
    %v4123 = vmul.f32 %v4122, 2.0
    %v4124 = vsub.f32 %v4123, 1.0
    %v4125 = vmul.f32 %v4122, %v4033
    %4127 = vrot.lane.b32.xlu0 %v4124, 98
    %v4128 = vpop.permute.xlu0 %4127
    %v4130 = vmul.f32 %v4122, %v4128
    %4132 = vrot.lane.b32.xlu0 %v4130, 15
    %v4133 = vpop.permute.xlu0 %4132
    %v4135 = vadd.f32 %v4125, %v4133
    %v4136 = vtanh.pop %v4135
    %4138 = vrot.lane.b32.xlu0 %v4136, 30
    %v4139 = vpop.permute.xlu0 %4138
    %v4141 = vmul.f32 %v4122, %v4139
    %v4142 = vmax.f32 %v4141, 0.0
    %s4143 = scalar_lea.vmem %s4, 228
    %v4144 = vld [vmem:[%s4143] sm:$0x3]
    %4146 = vrot.lane.b32.xlu0 %v4144, 45
    %v4147 = vpop.permute.xlu0 %4146
    %v4149 = vmul.f32 %v4142, %v4147
    %v4150 = vadd.f32 %v4048, %v4149
    %s4151 = scalar_lea.vmem %s4, 230
    %v4152 = vld [vmem:[%s4151] sm:$0x3]
    %4154 = vrot.lane.b32.xlu0 %v4152, 45
    %v4155 = vpop.permute.xlu0 %4154
    %v4157 = vmul.f32 %v4142, %v4155
    %v4158 = vadd.f32 %v4056, %v4157
    %s4159 = scalar_lea.vmem %s4, 232
    %v4160 = vld [vmem:[%s4159] sm:$0x3]
    %4162 = vrot.lane.b32.xlu0 %v4160, 45
    %v4163 = vpop.permute.xlu0 %4162
    %v4165 = vmul.f32 %v4142, %v4163
    %v4166 = vadd.f32 %v4064, %v4165
    %v4167 = vld [vmem:[#allocation2 + $0x4e] sm:$0x3]
    %v4168 = vlaneseq
    %v4169 = vshrl.u32 %v4168, 7
    %v4170 = vsub.s32 0, %v4169
    %v4171 = vrot.slane %v4141, %v4170
    %s4173 = sor.u32 256, 45
    %4174 = vbcast.lane.b32.xlu0 %v4171, %s4173
    %v4175 = vpop.permute.xlu0 %4174
    %s4177 = sor.u32 256, 53
    %4178 = vbcast.lane.b32.xlu0 %v4171, %s4177
    %v4179 = vpop.permute.xlu0 %4178
    %v4180 = vlaneseq
    %v4181 = vshrl.u32 %v4180, 7
    %v4182 = vsub.s32 1, %v4181
    %v4183 = vrot.slane %v4141, %v4182
    %s4185 = sor.u32 256, 45
    %4186 = vbcast.lane.b32.xlu0 %v4183, %s4185
    %v4187 = vpop.permute.xlu0 %4186
    %s4189 = sor.u32 256, 53
    %4190 = vbcast.lane.b32.xlu0 %v4183, %s4189
    %v4191 = vpop.permute.xlu0 %4190
    %v4192 = vmul.f32 %v4175, %v237
    %v4193 = vmul.f32 %v4179, %v238
    %v4194 = vmul.f32 %v4187, %v237
    %v4195 = vmul.f32 %v4191, %v238
    %v4196 = vsel %vm222, %v4192, 0.0
    %v4197 = vsel %vm319, %v4193, 0.0
    %v4198 = vadd.f32 %v4196, %v4197
    %v4199 = vrot.slane %v4198, 4
    %v4200 = vadd.f32 %v4198, %v4199
    %v4201 = vrot.slane %v4200, 2
    %v4202 = vadd.f32 %v4200, %v4201
    %v4203 = vrot.slane %v4202, 1
    %v4204 = vadd.f32 %v4202, %v4203
    %v4205 = vsel %vm222, %v4194, 0.0
    %v4206 = vsel %vm319, %v4195, 0.0
    %v4207 = vadd.f32 %v4205, %v4206
    %v4208 = vrot.slane %v4207, 4
    %v4209 = vadd.f32 %v4207, %v4208
    %v4210 = vrot.slane %v4209, 2
    %v4211 = vadd.f32 %v4209, %v4210
    %v4212 = vrot.slane %v4211, 1
    %v4213 = vadd.f32 %v4211, %v4212
    %v4216 = vsel %vm339, %v4213, %v4204
    %v4218 = vadd.f32 %v4167, %v4216
    %v4219 = vxor.u32 %v4218, 2147483648
    %v4220 = vmul.f32 %v4219, 1.442695
    %v4221 = vpow.pop %v4220
    %v4222 = vadd.f32 %v4221, 1.0
    %v4223 = vrcp.pop %v4222
    %v4224 = vmul.f32 1.0, %v4223
    %v4225 = vmul.f32 %v4224, 2.0
    %v4226 = vsub.f32 %v4225, 1.0
    %v4227 = vmul.f32 %v4224, %v4135
    %4229 = vrot.lane.b32.xlu0 %v4226, 98
    %v4230 = vpop.permute.xlu0 %4229
    %v4232 = vmul.f32 %v4224, %v4230
    %4234 = vrot.lane.b32.xlu0 %v4232, 15
    %v4235 = vpop.permute.xlu0 %4234
    %v4237 = vadd.f32 %v4227, %v4235
    %v4238 = vtanh.pop %v4237
    %4240 = vrot.lane.b32.xlu0 %v4238, 30
    %v4241 = vpop.permute.xlu0 %4240
    %v4243 = vmul.f32 %v4224, %v4241
    %v4244 = vmax.f32 %v4243, 0.0
    %s4245 = scalar_lea.vmem %s4, 234
    %v4246 = vld [vmem:[%s4245] sm:$0x3]
    %4248 = vrot.lane.b32.xlu0 %v4246, 45
    %v4249 = vpop.permute.xlu0 %4248
    %v4251 = vmul.f32 %v4244, %v4249
    %v4252 = vadd.f32 %v4150, %v4251
    %s4253 = scalar_lea.vmem %s4, 236
    %v4254 = vld [vmem:[%s4253] sm:$0x3]
    %4256 = vrot.lane.b32.xlu0 %v4254, 45
    %v4257 = vpop.permute.xlu0 %4256
    %v4259 = vmul.f32 %v4244, %v4257
    %v4260 = vadd.f32 %v4158, %v4259
    %s4261 = scalar_lea.vmem %s4, 238
    %v4262 = vld [vmem:[%s4261] sm:$0x3]
    %4264 = vrot.lane.b32.xlu0 %v4262, 45
    %v4265 = vpop.permute.xlu0 %4264
    %v4267 = vmul.f32 %v4244, %v4265
    %v4268 = vadd.f32 %v4166, %v4267
    %v4269 = vld [vmem:[#allocation2 + $0x50] sm:$0x3]
    %v4270 = vlaneseq
    %v4271 = vshrl.u32 %v4270, 7
    %v4272 = vsub.s32 0, %v4271
    %v4273 = vrot.slane %v4243, %v4272
    %s4275 = sor.u32 256, 45
    %4276 = vbcast.lane.b32.xlu0 %v4273, %s4275
    %v4277 = vpop.permute.xlu0 %4276
    %s4279 = sor.u32 256, 53
    %4280 = vbcast.lane.b32.xlu0 %v4273, %s4279
    %v4281 = vpop.permute.xlu0 %4280
    %v4282 = vlaneseq
    %v4283 = vshrl.u32 %v4282, 7
    %v4284 = vsub.s32 1, %v4283
    %v4285 = vrot.slane %v4243, %v4284
    %s4287 = sor.u32 256, 45
    %4288 = vbcast.lane.b32.xlu0 %v4285, %s4287
    %v4289 = vpop.permute.xlu0 %4288
    %s4291 = sor.u32 256, 53
    %4292 = vbcast.lane.b32.xlu0 %v4285, %s4291
    %v4293 = vpop.permute.xlu0 %4292
    %v4294 = vmul.f32 %v4277, %v237
    %v4295 = vmul.f32 %v4281, %v238
    %v4296 = vmul.f32 %v4289, %v237
    %v4297 = vmul.f32 %v4293, %v238
    %v4298 = vsel %vm222, %v4294, 0.0
    %v4299 = vsel %vm319, %v4295, 0.0
    %v4300 = vadd.f32 %v4298, %v4299
    %v4301 = vrot.slane %v4300, 4
    %v4302 = vadd.f32 %v4300, %v4301
    %v4303 = vrot.slane %v4302, 2
    %v4304 = vadd.f32 %v4302, %v4303
    %v4305 = vrot.slane %v4304, 1
    %v4306 = vadd.f32 %v4304, %v4305
    %v4307 = vsel %vm222, %v4296, 0.0
    %v4308 = vsel %vm319, %v4297, 0.0
    %v4309 = vadd.f32 %v4307, %v4308
    %v4310 = vrot.slane %v4309, 4
    %v4311 = vadd.f32 %v4309, %v4310
    %v4312 = vrot.slane %v4311, 2
    %v4313 = vadd.f32 %v4311, %v4312
    %v4314 = vrot.slane %v4313, 1
    %v4315 = vadd.f32 %v4313, %v4314
    %v4318 = vsel %vm339, %v4315, %v4306
    %v4320 = vadd.f32 %v4269, %v4318
    %v4321 = vxor.u32 %v4320, 2147483648
    %v4322 = vmul.f32 %v4321, 1.442695
    %v4323 = vpow.pop %v4322
    %v4324 = vadd.f32 %v4323, 1.0
    %v4325 = vrcp.pop %v4324
    %v4326 = vmul.f32 1.0, %v4325
    %v4327 = vmul.f32 %v4326, 2.0
    %v4328 = vsub.f32 %v4327, 1.0
    %v4329 = vmul.f32 %v4326, %v4237
    %4331 = vrot.lane.b32.xlu0 %v4328, 98
    %v4332 = vpop.permute.xlu0 %4331
    %v4334 = vmul.f32 %v4326, %v4332
    %4336 = vrot.lane.b32.xlu0 %v4334, 15
    %v4337 = vpop.permute.xlu0 %4336
    %v4339 = vadd.f32 %v4329, %v4337
    %v4340 = vtanh.pop %v4339
    %4342 = vrot.lane.b32.xlu0 %v4340, 30
    %v4343 = vpop.permute.xlu0 %4342
    %v4345 = vmul.f32 %v4326, %v4343
    %v4346 = vmax.f32 %v4345, 0.0
    %s4347 = scalar_lea.vmem %s4, 240
    %v4348 = vld [vmem:[%s4347] sm:$0x3]
    %4350 = vrot.lane.b32.xlu0 %v4348, 45
    %v4351 = vpop.permute.xlu0 %4350
    %v4353 = vmul.f32 %v4346, %v4351
    %v4354 = vadd.f32 %v4252, %v4353
    %s4355 = scalar_lea.vmem %s4, 242
    %v4356 = vld [vmem:[%s4355] sm:$0x3]
    %4358 = vrot.lane.b32.xlu0 %v4356, 45
    %v4359 = vpop.permute.xlu0 %4358
    %v4361 = vmul.f32 %v4346, %v4359
    %v4362 = vadd.f32 %v4260, %v4361
    %s4363 = scalar_lea.vmem %s4, 244
    %v4364 = vld [vmem:[%s4363] sm:$0x3]
    %4366 = vrot.lane.b32.xlu0 %v4364, 45
    %v4367 = vpop.permute.xlu0 %4366
    %v4369 = vmul.f32 %v4346, %v4367
    %v4370 = vadd.f32 %v4268, %v4369
    %v4371 = vld [vmem:[#allocation2 + $0x52] sm:$0x3]
    %v4372 = vlaneseq
    %v4373 = vshrl.u32 %v4372, 7
    %v4374 = vsub.s32 0, %v4373
    %v4375 = vrot.slane %v4345, %v4374
    %s4377 = sor.u32 256, 45
    %4378 = vbcast.lane.b32.xlu0 %v4375, %s4377
    %v4379 = vpop.permute.xlu0 %4378
    %s4381 = sor.u32 256, 53
    %4382 = vbcast.lane.b32.xlu0 %v4375, %s4381
    %v4383 = vpop.permute.xlu0 %4382
    %v4384 = vlaneseq
    %v4385 = vshrl.u32 %v4384, 7
    %v4386 = vsub.s32 1, %v4385
    %v4387 = vrot.slane %v4345, %v4386
    %s4389 = sor.u32 256, 45
    %4390 = vbcast.lane.b32.xlu0 %v4387, %s4389
    %v4391 = vpop.permute.xlu0 %4390
    %s4393 = sor.u32 256, 53
    %4394 = vbcast.lane.b32.xlu0 %v4387, %s4393
    %v4395 = vpop.permute.xlu0 %4394
    %v4396 = vmul.f32 %v4379, %v237
    %v4397 = vmul.f32 %v4383, %v238
    %v4398 = vmul.f32 %v4391, %v237
    %v4399 = vmul.f32 %v4395, %v238
    %v4400 = vsel %vm222, %v4396, 0.0
    %v4401 = vsel %vm319, %v4397, 0.0
    %v4402 = vadd.f32 %v4400, %v4401
    %v4403 = vrot.slane %v4402, 4
    %v4404 = vadd.f32 %v4402, %v4403
    %v4405 = vrot.slane %v4404, 2
    %v4406 = vadd.f32 %v4404, %v4405
    %v4407 = vrot.slane %v4406, 1
    %v4408 = vadd.f32 %v4406, %v4407
    %v4409 = vsel %vm222, %v4398, 0.0
    %v4410 = vsel %vm319, %v4399, 0.0
    %v4411 = vadd.f32 %v4409, %v4410
    %v4412 = vrot.slane %v4411, 4
    %v4413 = vadd.f32 %v4411, %v4412
    %v4414 = vrot.slane %v4413, 2
    %v4415 = vadd.f32 %v4413, %v4414
    %v4416 = vrot.slane %v4415, 1
    %v4417 = vadd.f32 %v4415, %v4416
    %v4420 = vsel %vm339, %v4417, %v4408
    %v4422 = vadd.f32 %v4371, %v4420
    %v4423 = vxor.u32 %v4422, 2147483648
    %v4424 = vmul.f32 %v4423, 1.442695
    %v4425 = vpow.pop %v4424
    %v4426 = vadd.f32 %v4425, 1.0
    %v4427 = vrcp.pop %v4426
    %v4428 = vmul.f32 1.0, %v4427
    %v4429 = vmul.f32 %v4428, 2.0
    %v4430 = vsub.f32 %v4429, 1.0
    %v4431 = vmul.f32 %v4428, %v4339
    %4433 = vrot.lane.b32.xlu0 %v4430, 98
    %v4434 = vpop.permute.xlu0 %4433
    %v4436 = vmul.f32 %v4428, %v4434
    %4438 = vrot.lane.b32.xlu0 %v4436, 15
    %v4439 = vpop.permute.xlu0 %4438
    %v4441 = vadd.f32 %v4431, %v4439
    %v4442 = vtanh.pop %v4441
    %4444 = vrot.lane.b32.xlu0 %v4442, 30
    %v4445 = vpop.permute.xlu0 %4444
    %v4447 = vmul.f32 %v4428, %v4445
    %v4448 = vmax.f32 %v4447, 0.0
    %s4449 = scalar_lea.vmem %s4, 246
    %v4450 = vld [vmem:[%s4449] sm:$0x3]
    %4452 = vrot.lane.b32.xlu0 %v4450, 45
    %v4453 = vpop.permute.xlu0 %4452
    %v4455 = vmul.f32 %v4448, %v4453
    %v4456 = vadd.f32 %v4354, %v4455
    %s4457 = scalar_lea.vmem %s4, 248
    %v4458 = vld [vmem:[%s4457] sm:$0x3]
    %4460 = vrot.lane.b32.xlu0 %v4458, 45
    %v4461 = vpop.permute.xlu0 %4460
    %v4463 = vmul.f32 %v4448, %v4461
    %v4464 = vadd.f32 %v4362, %v4463
    %s4465 = scalar_lea.vmem %s4, 250
    %v4466 = vld [vmem:[%s4465] sm:$0x3]
    %4468 = vrot.lane.b32.xlu0 %v4466, 45
    %v4469 = vpop.permute.xlu0 %4468
    %v4471 = vmul.f32 %v4448, %v4469
    %v4472 = vadd.f32 %v4370, %v4471
    %v4473 = vld [vmem:[#allocation2 + $0x54] sm:$0x3]
    %v4474 = vlaneseq
    %v4475 = vshrl.u32 %v4474, 7
    %v4476 = vsub.s32 0, %v4475
    %v4477 = vrot.slane %v4447, %v4476
    %s4479 = sor.u32 256, 45
    %4480 = vbcast.lane.b32.xlu0 %v4477, %s4479
    %v4481 = vpop.permute.xlu0 %4480
    %s4483 = sor.u32 256, 53
    %4484 = vbcast.lane.b32.xlu0 %v4477, %s4483
    %v4485 = vpop.permute.xlu0 %4484
    %v4486 = vlaneseq
    %v4487 = vshrl.u32 %v4486, 7
    %v4488 = vsub.s32 1, %v4487
    %v4489 = vrot.slane %v4447, %v4488
    %s4491 = sor.u32 256, 45
    %4492 = vbcast.lane.b32.xlu0 %v4489, %s4491
    %v4493 = vpop.permute.xlu0 %4492
    %s4495 = sor.u32 256, 53
    %4496 = vbcast.lane.b32.xlu0 %v4489, %s4495
    %v4497 = vpop.permute.xlu0 %4496
    %v4498 = vmul.f32 %v4481, %v237
    %v4499 = vmul.f32 %v4485, %v238
    %v4500 = vmul.f32 %v4493, %v237
    %v4501 = vmul.f32 %v4497, %v238
    %v4502 = vsel %vm222, %v4498, 0.0
    %v4503 = vsel %vm319, %v4499, 0.0
    %v4504 = vadd.f32 %v4502, %v4503
    %v4505 = vrot.slane %v4504, 4
    %v4506 = vadd.f32 %v4504, %v4505
    %v4507 = vrot.slane %v4506, 2
    %v4508 = vadd.f32 %v4506, %v4507
    %v4509 = vrot.slane %v4508, 1
    %v4510 = vadd.f32 %v4508, %v4509
    %v4511 = vsel %vm222, %v4500, 0.0
    %v4512 = vsel %vm319, %v4501, 0.0
    %v4513 = vadd.f32 %v4511, %v4512
    %v4514 = vrot.slane %v4513, 4
    %v4515 = vadd.f32 %v4513, %v4514
    %v4516 = vrot.slane %v4515, 2
    %v4517 = vadd.f32 %v4515, %v4516
    %v4518 = vrot.slane %v4517, 1
    %v4519 = vadd.f32 %v4517, %v4518
    %v4522 = vsel %vm339, %v4519, %v4510
    %v4524 = vadd.f32 %v4473, %v4522
    %v4525 = vxor.u32 %v4524, 2147483648
    %v4526 = vmul.f32 %v4525, 1.442695
    %v4527 = vpow.pop %v4526
    %v4528 = vadd.f32 %v4527, 1.0
    %v4529 = vrcp.pop %v4528
    %v4530 = vmul.f32 1.0, %v4529
    %v4531 = vmul.f32 %v4530, 2.0
    %v4532 = vsub.f32 %v4531, 1.0
    %v4533 = vmul.f32 %v4530, %v4441
    %4535 = vrot.lane.b32.xlu0 %v4532, 98
    %v4536 = vpop.permute.xlu0 %4535
    %v4538 = vmul.f32 %v4530, %v4536
    %4540 = vrot.lane.b32.xlu0 %v4538, 15
    %v4541 = vpop.permute.xlu0 %4540
    %v4543 = vadd.f32 %v4533, %v4541
    %v4544 = vtanh.pop %v4543
    %4546 = vrot.lane.b32.xlu0 %v4544, 30
    %v4547 = vpop.permute.xlu0 %4546
    %v4549 = vmul.f32 %v4530, %v4547
    %v4550 = vmax.f32 %v4549, 0.0
    %s4551 = scalar_lea.vmem %s4, 252
    %v4552 = vld [vmem:[%s4551] sm:$0x3]
    %4554 = vrot.lane.b32.xlu0 %v4552, 45
    %v4555 = vpop.permute.xlu0 %4554
    %v4557 = vmul.f32 %v4550, %v4555
    %v4558 = vadd.f32 %v4456, %v4557
    %s4559 = scalar_lea.vmem %s4, 254
    %v4560 = vld [vmem:[%s4559] sm:$0x3]
    %4562 = vrot.lane.b32.xlu0 %v4560, 45
    %v4563 = vpop.permute.xlu0 %4562
    %v4565 = vmul.f32 %v4550, %v4563
    %v4566 = vadd.f32 %v4464, %v4565
    %s4567 = scalar_lea.vmem %s4, 256
    %v4568 = vld [vmem:[%s4567] sm:$0x3]
    %4570 = vrot.lane.b32.xlu0 %v4568, 45
    %v4571 = vpop.permute.xlu0 %4570
    %v4573 = vmul.f32 %v4550, %v4571
    %v4574 = vadd.f32 %v4472, %v4573
    %v4575 = vld [vmem:[#allocation2 + $0x56] sm:$0x3]
    %v4576 = vlaneseq
    %v4577 = vshrl.u32 %v4576, 7
    %v4578 = vsub.s32 0, %v4577
    %v4579 = vrot.slane %v4549, %v4578
    %s4581 = sor.u32 256, 45
    %4582 = vbcast.lane.b32.xlu0 %v4579, %s4581
    %v4583 = vpop.permute.xlu0 %4582
    %s4585 = sor.u32 256, 53
    %4586 = vbcast.lane.b32.xlu0 %v4579, %s4585
    %v4587 = vpop.permute.xlu0 %4586
    %v4588 = vlaneseq
    %v4589 = vshrl.u32 %v4588, 7
    %v4590 = vsub.s32 1, %v4589
    %v4591 = vrot.slane %v4549, %v4590
    %s4593 = sor.u32 256, 45
    %4594 = vbcast.lane.b32.xlu0 %v4591, %s4593
    %v4595 = vpop.permute.xlu0 %4594
    %s4597 = sor.u32 256, 53
    %4598 = vbcast.lane.b32.xlu0 %v4591, %s4597
    %v4599 = vpop.permute.xlu0 %4598
    %v4600 = vmul.f32 %v4583, %v237
    %v4601 = vmul.f32 %v4587, %v238
    %v4602 = vmul.f32 %v4595, %v237
    %v4603 = vmul.f32 %v4599, %v238
    %v4604 = vsel %vm222, %v4600, 0.0
    %v4605 = vsel %vm319, %v4601, 0.0
    %v4606 = vadd.f32 %v4604, %v4605
    %v4607 = vrot.slane %v4606, 4
    %v4608 = vadd.f32 %v4606, %v4607
    %v4609 = vrot.slane %v4608, 2
    %v4610 = vadd.f32 %v4608, %v4609
    %v4611 = vrot.slane %v4610, 1
    %v4612 = vadd.f32 %v4610, %v4611
    %v4613 = vsel %vm222, %v4602, 0.0
    %v4614 = vsel %vm319, %v4603, 0.0
    %v4615 = vadd.f32 %v4613, %v4614
    %v4616 = vrot.slane %v4615, 4
    %v4617 = vadd.f32 %v4615, %v4616
    %v4618 = vrot.slane %v4617, 2
    %v4619 = vadd.f32 %v4617, %v4618
    %v4620 = vrot.slane %v4619, 1
    %v4621 = vadd.f32 %v4619, %v4620
    %v4624 = vsel %vm339, %v4621, %v4612
    %v4626 = vadd.f32 %v4575, %v4624
    %v4627 = vxor.u32 %v4626, 2147483648
    %v4628 = vmul.f32 %v4627, 1.442695
    %v4629 = vpow.pop %v4628
    %v4630 = vadd.f32 %v4629, 1.0
    %v4631 = vrcp.pop %v4630
    %v4632 = vmul.f32 1.0, %v4631
    %v4633 = vmul.f32 %v4632, 2.0
    %v4634 = vsub.f32 %v4633, 1.0
    %v4635 = vmul.f32 %v4632, %v4543
    %4637 = vrot.lane.b32.xlu0 %v4634, 98
    %v4638 = vpop.permute.xlu0 %4637
    %v4640 = vmul.f32 %v4632, %v4638
    %4642 = vrot.lane.b32.xlu0 %v4640, 15
    %v4643 = vpop.permute.xlu0 %4642
    %v4645 = vadd.f32 %v4635, %v4643
    %v4646 = vtanh.pop %v4645
    %4648 = vrot.lane.b32.xlu0 %v4646, 30
    %v4649 = vpop.permute.xlu0 %4648
    %v4651 = vmul.f32 %v4632, %v4649
    %v4652 = vmax.f32 %v4651, 0.0
    %s4653 = scalar_lea.vmem %s4, 258
    %v4654 = vld [vmem:[%s4653] sm:$0x3]
    %4656 = vrot.lane.b32.xlu0 %v4654, 45
    %v4657 = vpop.permute.xlu0 %4656
    %v4659 = vmul.f32 %v4652, %v4657
    %v4660 = vadd.f32 %v4558, %v4659
    %s4661 = scalar_lea.vmem %s4, 260
    %v4662 = vld [vmem:[%s4661] sm:$0x3]
    %4664 = vrot.lane.b32.xlu0 %v4662, 45
    %v4665 = vpop.permute.xlu0 %4664
    %v4667 = vmul.f32 %v4652, %v4665
    %v4668 = vadd.f32 %v4566, %v4667
    %s4669 = scalar_lea.vmem %s4, 262
    %v4670 = vld [vmem:[%s4669] sm:$0x3]
    %4672 = vrot.lane.b32.xlu0 %v4670, 45
    %v4673 = vpop.permute.xlu0 %4672
    %v4675 = vmul.f32 %v4652, %v4673
    %v4676 = vadd.f32 %v4574, %v4675
    %v4677 = vld [vmem:[#allocation2 + $0x58] sm:$0x3]
    %v4678 = vlaneseq
    %v4679 = vshrl.u32 %v4678, 7
    %v4680 = vsub.s32 0, %v4679
    %v4681 = vrot.slane %v4651, %v4680
    %s4683 = sor.u32 256, 45
    %4684 = vbcast.lane.b32.xlu0 %v4681, %s4683
    %v4685 = vpop.permute.xlu0 %4684
    %s4687 = sor.u32 256, 53
    %4688 = vbcast.lane.b32.xlu0 %v4681, %s4687
    %v4689 = vpop.permute.xlu0 %4688
    %v4690 = vlaneseq
    %v4691 = vshrl.u32 %v4690, 7
    %v4692 = vsub.s32 1, %v4691
    %v4693 = vrot.slane %v4651, %v4692
    %s4695 = sor.u32 256, 45
    %4696 = vbcast.lane.b32.xlu0 %v4693, %s4695
    %v4697 = vpop.permute.xlu0 %4696
    %s4699 = sor.u32 256, 53
    %4700 = vbcast.lane.b32.xlu0 %v4693, %s4699
    %v4701 = vpop.permute.xlu0 %4700
    %v4702 = vmul.f32 %v4685, %v237
    %v4703 = vmul.f32 %v4689, %v238
    %v4704 = vmul.f32 %v4697, %v237
    %v4705 = vmul.f32 %v4701, %v238
    %v4706 = vsel %vm222, %v4702, 0.0
    %v4707 = vsel %vm319, %v4703, 0.0
    %v4708 = vadd.f32 %v4706, %v4707
    %v4709 = vrot.slane %v4708, 4
    %v4710 = vadd.f32 %v4708, %v4709
    %v4711 = vrot.slane %v4710, 2
    %v4712 = vadd.f32 %v4710, %v4711
    %v4713 = vrot.slane %v4712, 1
    %v4714 = vadd.f32 %v4712, %v4713
    %v4715 = vsel %vm222, %v4704, 0.0
    %v4716 = vsel %vm319, %v4705, 0.0
    %v4717 = vadd.f32 %v4715, %v4716
    %v4718 = vrot.slane %v4717, 4
    %v4719 = vadd.f32 %v4717, %v4718
    %v4720 = vrot.slane %v4719, 2
    %v4721 = vadd.f32 %v4719, %v4720
    %v4722 = vrot.slane %v4721, 1
    %v4723 = vadd.f32 %v4721, %v4722
    %v4726 = vsel %vm339, %v4723, %v4714
    %v4728 = vadd.f32 %v4677, %v4726
    %v4729 = vxor.u32 %v4728, 2147483648
    %v4730 = vmul.f32 %v4729, 1.442695
    %v4731 = vpow.pop %v4730
    %v4732 = vadd.f32 %v4731, 1.0
    %v4733 = vrcp.pop %v4732
    %v4734 = vmul.f32 1.0, %v4733
    %v4735 = vmul.f32 %v4734, 2.0
    %v4736 = vsub.f32 %v4735, 1.0
    %v4737 = vmul.f32 %v4734, %v4645
    %4739 = vrot.lane.b32.xlu0 %v4736, 98
    %v4740 = vpop.permute.xlu0 %4739
    %v4742 = vmul.f32 %v4734, %v4740
    %4744 = vrot.lane.b32.xlu0 %v4742, 15
    %v4745 = vpop.permute.xlu0 %4744
    %v4747 = vadd.f32 %v4737, %v4745
    %v4748 = vtanh.pop %v4747
    %4750 = vrot.lane.b32.xlu0 %v4748, 30
    %v4751 = vpop.permute.xlu0 %4750
    %v4753 = vmul.f32 %v4734, %v4751
    %v4754 = vmax.f32 %v4753, 0.0
    %s4755 = scalar_lea.vmem %s4, 264
    %v4756 = vld [vmem:[%s4755] sm:$0x3]
    %4758 = vrot.lane.b32.xlu0 %v4756, 45
    %v4759 = vpop.permute.xlu0 %4758
    %v4761 = vmul.f32 %v4754, %v4759
    %v4762 = vadd.f32 %v4660, %v4761
    %s4763 = scalar_lea.vmem %s4, 266
    %v4764 = vld [vmem:[%s4763] sm:$0x3]
    %4766 = vrot.lane.b32.xlu0 %v4764, 45
    %v4767 = vpop.permute.xlu0 %4766
    %v4769 = vmul.f32 %v4754, %v4767
    %v4770 = vadd.f32 %v4668, %v4769
    %s4771 = scalar_lea.vmem %s4, 268
    %v4772 = vld [vmem:[%s4771] sm:$0x3]
    %4774 = vrot.lane.b32.xlu0 %v4772, 45
    %v4775 = vpop.permute.xlu0 %4774
    %v4777 = vmul.f32 %v4754, %v4775
    %v4778 = vadd.f32 %v4676, %v4777
    %v4779 = vld [vmem:[#allocation2 + $0x5a] sm:$0x3]
    %v4780 = vlaneseq
    %v4781 = vshrl.u32 %v4780, 7
    %v4782 = vsub.s32 0, %v4781
    %v4783 = vrot.slane %v4753, %v4782
    %s4785 = sor.u32 256, 45
    %4786 = vbcast.lane.b32.xlu0 %v4783, %s4785
    %v4787 = vpop.permute.xlu0 %4786
    %s4789 = sor.u32 256, 53
    %4790 = vbcast.lane.b32.xlu0 %v4783, %s4789
    %v4791 = vpop.permute.xlu0 %4790
    %v4792 = vlaneseq
    %v4793 = vshrl.u32 %v4792, 7
    %v4794 = vsub.s32 1, %v4793
    %v4795 = vrot.slane %v4753, %v4794
    %s4797 = sor.u32 256, 45
    %4798 = vbcast.lane.b32.xlu0 %v4795, %s4797
    %v4799 = vpop.permute.xlu0 %4798
    %s4801 = sor.u32 256, 53
    %4802 = vbcast.lane.b32.xlu0 %v4795, %s4801
    %v4803 = vpop.permute.xlu0 %4802
    %v4804 = vmul.f32 %v4787, %v237
    %v4805 = vmul.f32 %v4791, %v238
    %v4806 = vmul.f32 %v4799, %v237
    %v4807 = vmul.f32 %v4803, %v238
    %v4808 = vsel %vm222, %v4804, 0.0
    %v4809 = vsel %vm319, %v4805, 0.0
    %v4810 = vadd.f32 %v4808, %v4809
    %v4811 = vrot.slane %v4810, 4
    %v4812 = vadd.f32 %v4810, %v4811
    %v4813 = vrot.slane %v4812, 2
    %v4814 = vadd.f32 %v4812, %v4813
    %v4815 = vrot.slane %v4814, 1
    %v4816 = vadd.f32 %v4814, %v4815
    %v4817 = vsel %vm222, %v4806, 0.0
    %v4818 = vsel %vm319, %v4807, 0.0
    %v4819 = vadd.f32 %v4817, %v4818
    %v4820 = vrot.slane %v4819, 4
    %v4821 = vadd.f32 %v4819, %v4820
    %v4822 = vrot.slane %v4821, 2
    %v4823 = vadd.f32 %v4821, %v4822
    %v4824 = vrot.slane %v4823, 1
    %v4825 = vadd.f32 %v4823, %v4824
    %v4828 = vsel %vm339, %v4825, %v4816
    %v4830 = vadd.f32 %v4779, %v4828
    %v4831 = vxor.u32 %v4830, 2147483648
    %v4832 = vmul.f32 %v4831, 1.442695
    %v4833 = vpow.pop %v4832
    %v4834 = vadd.f32 %v4833, 1.0
    %v4835 = vrcp.pop %v4834
    %v4836 = vmul.f32 1.0, %v4835
    %v4837 = vmul.f32 %v4836, 2.0
    %v4838 = vsub.f32 %v4837, 1.0
    %v4839 = vmul.f32 %v4836, %v4747
    %4841 = vrot.lane.b32.xlu0 %v4838, 98
    %v4842 = vpop.permute.xlu0 %4841
    %v4844 = vmul.f32 %v4836, %v4842
    %4846 = vrot.lane.b32.xlu0 %v4844, 15
    %v4847 = vpop.permute.xlu0 %4846
    %v4849 = vadd.f32 %v4839, %v4847
    %v4850 = vtanh.pop %v4849
    %4852 = vrot.lane.b32.xlu0 %v4850, 30
    %v4853 = vpop.permute.xlu0 %4852
    %v4855 = vmul.f32 %v4836, %v4853
    %v4856 = vmax.f32 %v4855, 0.0
    %s4857 = scalar_lea.vmem %s4, 270
    %v4858 = vld [vmem:[%s4857] sm:$0x3]
    %4860 = vrot.lane.b32.xlu0 %v4858, 45
    %v4861 = vpop.permute.xlu0 %4860
    %v4863 = vmul.f32 %v4856, %v4861
    %v4864 = vadd.f32 %v4762, %v4863
    %s4865 = scalar_lea.vmem %s4, 272
    %v4866 = vld [vmem:[%s4865] sm:$0x3]
    %4868 = vrot.lane.b32.xlu0 %v4866, 45
    %v4869 = vpop.permute.xlu0 %4868
    %v4871 = vmul.f32 %v4856, %v4869
    %v4872 = vadd.f32 %v4770, %v4871
    %s4873 = scalar_lea.vmem %s4, 274
    %v4874 = vld [vmem:[%s4873] sm:$0x3]
    %4876 = vrot.lane.b32.xlu0 %v4874, 45
    %v4877 = vpop.permute.xlu0 %4876
    %v4879 = vmul.f32 %v4856, %v4877
    %v4880 = vadd.f32 %v4778, %v4879
    %v4881 = vld [vmem:[#allocation2 + $0x5c] sm:$0x3]
    %v4882 = vlaneseq
    %v4883 = vshrl.u32 %v4882, 7
    %v4884 = vsub.s32 0, %v4883
    %v4885 = vrot.slane %v4855, %v4884
    %s4887 = sor.u32 256, 45
    %4888 = vbcast.lane.b32.xlu0 %v4885, %s4887
    %v4889 = vpop.permute.xlu0 %4888
    %s4891 = sor.u32 256, 53
    %4892 = vbcast.lane.b32.xlu0 %v4885, %s4891
    %v4893 = vpop.permute.xlu0 %4892
    %v4894 = vlaneseq
    %v4895 = vshrl.u32 %v4894, 7
    %v4896 = vsub.s32 1, %v4895
    %v4897 = vrot.slane %v4855, %v4896
    %s4899 = sor.u32 256, 45
    %4900 = vbcast.lane.b32.xlu0 %v4897, %s4899
    %v4901 = vpop.permute.xlu0 %4900
    %s4903 = sor.u32 256, 53
    %4904 = vbcast.lane.b32.xlu0 %v4897, %s4903
    %v4905 = vpop.permute.xlu0 %4904
    %v4906 = vmul.f32 %v4889, %v237
    %v4907 = vmul.f32 %v4893, %v238
    %v4908 = vmul.f32 %v4901, %v237
    %v4909 = vmul.f32 %v4905, %v238
    %v4910 = vsel %vm222, %v4906, 0.0
    %v4911 = vsel %vm319, %v4907, 0.0
    %v4912 = vadd.f32 %v4910, %v4911
    %v4913 = vrot.slane %v4912, 4
    %v4914 = vadd.f32 %v4912, %v4913
    %v4915 = vrot.slane %v4914, 2
    %v4916 = vadd.f32 %v4914, %v4915
    %v4917 = vrot.slane %v4916, 1
    %v4918 = vadd.f32 %v4916, %v4917
    %v4919 = vsel %vm222, %v4908, 0.0
    %v4920 = vsel %vm319, %v4909, 0.0
    %v4921 = vadd.f32 %v4919, %v4920
    %v4922 = vrot.slane %v4921, 4
    %v4923 = vadd.f32 %v4921, %v4922
    %v4924 = vrot.slane %v4923, 2
    %v4925 = vadd.f32 %v4923, %v4924
    %v4926 = vrot.slane %v4925, 1
    %v4927 = vadd.f32 %v4925, %v4926
    %v4930 = vsel %vm339, %v4927, %v4918
    %v4932 = vadd.f32 %v4881, %v4930
    %v4933 = vxor.u32 %v4932, 2147483648
    %v4934 = vmul.f32 %v4933, 1.442695
    %v4935 = vpow.pop %v4934
    %v4936 = vadd.f32 %v4935, 1.0
    %v4937 = vrcp.pop %v4936
    %v4938 = vmul.f32 1.0, %v4937
    %v4939 = vmul.f32 %v4938, 2.0
    %v4940 = vsub.f32 %v4939, 1.0
    %v4941 = vmul.f32 %v4938, %v4849
    %4943 = vrot.lane.b32.xlu0 %v4940, 98
    %v4944 = vpop.permute.xlu0 %4943
    %v4946 = vmul.f32 %v4938, %v4944
    %4948 = vrot.lane.b32.xlu0 %v4946, 15
    %v4949 = vpop.permute.xlu0 %4948
    %v4951 = vadd.f32 %v4941, %v4949
    %v4952 = vtanh.pop %v4951
    %4954 = vrot.lane.b32.xlu0 %v4952, 30
    %v4955 = vpop.permute.xlu0 %4954
    %v4957 = vmul.f32 %v4938, %v4955
    %v4958 = vmax.f32 %v4957, 0.0
    %s4959 = scalar_lea.vmem %s4, 276
    %v4960 = vld [vmem:[%s4959] sm:$0x3]
    %4962 = vrot.lane.b32.xlu0 %v4960, 45
    %v4963 = vpop.permute.xlu0 %4962
    %v4965 = vmul.f32 %v4958, %v4963
    %v4966 = vadd.f32 %v4864, %v4965
    %s4967 = scalar_lea.vmem %s4, 278
    %v4968 = vld [vmem:[%s4967] sm:$0x3]
    %4970 = vrot.lane.b32.xlu0 %v4968, 45
    %v4971 = vpop.permute.xlu0 %4970
    %v4973 = vmul.f32 %v4958, %v4971
    %v4974 = vadd.f32 %v4872, %v4973
    %s4975 = scalar_lea.vmem %s4, 280
    %v4976 = vld [vmem:[%s4975] sm:$0x3]
    %4978 = vrot.lane.b32.xlu0 %v4976, 45
    %v4979 = vpop.permute.xlu0 %4978
    %v4981 = vmul.f32 %v4958, %v4979
    %v4982 = vadd.f32 %v4880, %v4981
    %v4983 = vld [vmem:[#allocation2 + $0x5e] sm:$0x3]
    %v4984 = vlaneseq
    %v4985 = vshrl.u32 %v4984, 7
    %v4986 = vsub.s32 0, %v4985
    %v4987 = vrot.slane %v4957, %v4986
    %s4989 = sor.u32 256, 45
    %4990 = vbcast.lane.b32.xlu0 %v4987, %s4989
    %v4991 = vpop.permute.xlu0 %4990
    %s4993 = sor.u32 256, 53
    %4994 = vbcast.lane.b32.xlu0 %v4987, %s4993
    %v4995 = vpop.permute.xlu0 %4994
    %v4996 = vlaneseq
    %v4997 = vshrl.u32 %v4996, 7
    %v4998 = vsub.s32 1, %v4997
    %v4999 = vrot.slane %v4957, %v4998
    %s5001 = sor.u32 256, 45
    %5002 = vbcast.lane.b32.xlu0 %v4999, %s5001
    %v5003 = vpop.permute.xlu0 %5002
    %s5005 = sor.u32 256, 53
    %5006 = vbcast.lane.b32.xlu0 %v4999, %s5005
    %v5007 = vpop.permute.xlu0 %5006
    %v5008 = vmul.f32 %v4991, %v237
    %v5009 = vmul.f32 %v4995, %v238
    %v5010 = vmul.f32 %v5003, %v237
    %v5011 = vmul.f32 %v5007, %v238
    %v5012 = vsel %vm222, %v5008, 0.0
    %v5013 = vsel %vm319, %v5009, 0.0
    %v5014 = vadd.f32 %v5012, %v5013
    %v5015 = vrot.slane %v5014, 4
    %v5016 = vadd.f32 %v5014, %v5015
    %v5017 = vrot.slane %v5016, 2
    %v5018 = vadd.f32 %v5016, %v5017
    %v5019 = vrot.slane %v5018, 1
    %v5020 = vadd.f32 %v5018, %v5019
    %v5021 = vsel %vm222, %v5010, 0.0
    %v5022 = vsel %vm319, %v5011, 0.0
    %v5023 = vadd.f32 %v5021, %v5022
    %v5024 = vrot.slane %v5023, 4
    %v5025 = vadd.f32 %v5023, %v5024
    %v5026 = vrot.slane %v5025, 2
    %v5027 = vadd.f32 %v5025, %v5026
    %v5028 = vrot.slane %v5027, 1
    %v5029 = vadd.f32 %v5027, %v5028
    %v5032 = vsel %vm339, %v5029, %v5020
    %v5034 = vadd.f32 %v4983, %v5032
    %v5035 = vxor.u32 %v5034, 2147483648
    %v5036 = vmul.f32 %v5035, 1.442695
    %v5037 = vpow.pop %v5036
    %v5038 = vadd.f32 %v5037, 1.0
    %v5039 = vrcp.pop %v5038
    %v5040 = vmul.f32 1.0, %v5039
    %v5041 = vmul.f32 %v5040, 2.0
    %v5042 = vsub.f32 %v5041, 1.0
    %v5043 = vmul.f32 %v5040, %v4951
    %5045 = vrot.lane.b32.xlu0 %v5042, 98
    %v5046 = vpop.permute.xlu0 %5045
    %v5048 = vmul.f32 %v5040, %v5046
    %5050 = vrot.lane.b32.xlu0 %v5048, 15
    %v5051 = vpop.permute.xlu0 %5050
    %v5053 = vadd.f32 %v5043, %v5051
    %v5054 = vtanh.pop %v5053
    %5056 = vrot.lane.b32.xlu0 %v5054, 30
    %v5057 = vpop.permute.xlu0 %5056
    %v5059 = vmul.f32 %v5040, %v5057
    %v5060 = vmax.f32 %v5059, 0.0
    %s5061 = scalar_lea.vmem %s4, 282
    %v5062 = vld [vmem:[%s5061] sm:$0x3]
    %5064 = vrot.lane.b32.xlu0 %v5062, 45
    %v5065 = vpop.permute.xlu0 %5064
    %v5067 = vmul.f32 %v5060, %v5065
    %v5068 = vadd.f32 %v4966, %v5067
    %s5069 = scalar_lea.vmem %s4, 284
    %v5070 = vld [vmem:[%s5069] sm:$0x3]
    %5072 = vrot.lane.b32.xlu0 %v5070, 45
    %v5073 = vpop.permute.xlu0 %5072
    %v5075 = vmul.f32 %v5060, %v5073
    %v5076 = vadd.f32 %v4974, %v5075
    %s5077 = scalar_lea.vmem %s4, 286
    %v5078 = vld [vmem:[%s5077] sm:$0x3]
    %5080 = vrot.lane.b32.xlu0 %v5078, 45
    %v5081 = vpop.permute.xlu0 %5080
    %v5083 = vmul.f32 %v5060, %v5081
    %v5084 = vadd.f32 %v4982, %v5083
    %v5085 = vld [vmem:[#allocation2 + $0x60] sm:$0x3]
    %v5086 = vlaneseq
    %v5087 = vshrl.u32 %v5086, 7
    %v5088 = vsub.s32 0, %v5087
    %v5089 = vrot.slane %v5059, %v5088
    %s5091 = sor.u32 256, 45
    %5092 = vbcast.lane.b32.xlu0 %v5089, %s5091
    %v5093 = vpop.permute.xlu0 %5092
    %s5095 = sor.u32 256, 53
    %5096 = vbcast.lane.b32.xlu0 %v5089, %s5095
    %v5097 = vpop.permute.xlu0 %5096
    %v5098 = vlaneseq
    %v5099 = vshrl.u32 %v5098, 7
    %v5100 = vsub.s32 1, %v5099
    %v5101 = vrot.slane %v5059, %v5100
    %s5103 = sor.u32 256, 45
    %5104 = vbcast.lane.b32.xlu0 %v5101, %s5103
    %v5105 = vpop.permute.xlu0 %5104
    %s5107 = sor.u32 256, 53
    %5108 = vbcast.lane.b32.xlu0 %v5101, %s5107
    %v5109 = vpop.permute.xlu0 %5108
    %v5110 = vmul.f32 %v5093, %v237
    %v5111 = vmul.f32 %v5097, %v238
    %v5112 = vmul.f32 %v5105, %v237
    %v5113 = vmul.f32 %v5109, %v238
    %v5114 = vsel %vm222, %v5110, 0.0
    %v5115 = vsel %vm319, %v5111, 0.0
    %v5116 = vadd.f32 %v5114, %v5115
    %v5117 = vrot.slane %v5116, 4
    %v5118 = vadd.f32 %v5116, %v5117
    %v5119 = vrot.slane %v5118, 2
    %v5120 = vadd.f32 %v5118, %v5119
    %v5121 = vrot.slane %v5120, 1
    %v5122 = vadd.f32 %v5120, %v5121
    %v5123 = vsel %vm222, %v5112, 0.0
    %v5124 = vsel %vm319, %v5113, 0.0
    %v5125 = vadd.f32 %v5123, %v5124
    %v5126 = vrot.slane %v5125, 4
    %v5127 = vadd.f32 %v5125, %v5126
    %v5128 = vrot.slane %v5127, 2
    %v5129 = vadd.f32 %v5127, %v5128
    %v5130 = vrot.slane %v5129, 1
    %v5131 = vadd.f32 %v5129, %v5130
    %v5134 = vsel %vm339, %v5131, %v5122
    %v5136 = vadd.f32 %v5085, %v5134
    %v5137 = vxor.u32 %v5136, 2147483648
    %v5138 = vmul.f32 %v5137, 1.442695
    %v5139 = vpow.pop %v5138
    %v5140 = vadd.f32 %v5139, 1.0
    %v5141 = vrcp.pop %v5140
    %v5142 = vmul.f32 1.0, %v5141
    %v5143 = vmul.f32 %v5142, 2.0
    %v5144 = vsub.f32 %v5143, 1.0
    %v5145 = vmul.f32 %v5142, %v5053
    %5147 = vrot.lane.b32.xlu0 %v5144, 98
    %v5148 = vpop.permute.xlu0 %5147
    %v5150 = vmul.f32 %v5142, %v5148
    %5152 = vrot.lane.b32.xlu0 %v5150, 15
    %v5153 = vpop.permute.xlu0 %5152
    %v5155 = vadd.f32 %v5145, %v5153
    %v5156 = vtanh.pop %v5155
    %5158 = vrot.lane.b32.xlu0 %v5156, 30
    %v5159 = vpop.permute.xlu0 %5158
    %v5161 = vmul.f32 %v5142, %v5159
    %v5162 = vmax.f32 %v5161, 0.0
    %s5163 = scalar_lea.vmem %s4, 288
    %v5164 = vld [vmem:[%s5163] sm:$0x3]
    %5166 = vrot.lane.b32.xlu0 %v5164, 45
    %v5167 = vpop.permute.xlu0 %5166
    %v5169 = vmul.f32 %v5162, %v5167
    %v5170 = vadd.f32 %v5068, %v5169
    %s5171 = scalar_lea.vmem %s4, 290
    %v5172 = vld [vmem:[%s5171] sm:$0x3]
    %5174 = vrot.lane.b32.xlu0 %v5172, 45
    %v5175 = vpop.permute.xlu0 %5174
    %v5177 = vmul.f32 %v5162, %v5175
    %v5178 = vadd.f32 %v5076, %v5177
    %s5179 = scalar_lea.vmem %s4, 292
    %v5180 = vld [vmem:[%s5179] sm:$0x3]
    %5182 = vrot.lane.b32.xlu0 %v5180, 45
    %v5183 = vpop.permute.xlu0 %5182
    %v5185 = vmul.f32 %v5162, %v5183
    %v5186 = vadd.f32 %v5084, %v5185
    %v5187 = vld [vmem:[#allocation2 + $0x62] sm:$0x3]
    %v5188 = vlaneseq
    %v5189 = vshrl.u32 %v5188, 7
    %v5190 = vsub.s32 0, %v5189
    %v5191 = vrot.slane %v5161, %v5190
    %s5193 = sor.u32 256, 45
    %5194 = vbcast.lane.b32.xlu0 %v5191, %s5193
    %v5195 = vpop.permute.xlu0 %5194
    %s5197 = sor.u32 256, 53
    %5198 = vbcast.lane.b32.xlu0 %v5191, %s5197
    %v5199 = vpop.permute.xlu0 %5198
    %v5200 = vlaneseq
    %v5201 = vshrl.u32 %v5200, 7
    %v5202 = vsub.s32 1, %v5201
    %v5203 = vrot.slane %v5161, %v5202
    %s5205 = sor.u32 256, 45
    %5206 = vbcast.lane.b32.xlu0 %v5203, %s5205
    %v5207 = vpop.permute.xlu0 %5206
    %s5209 = sor.u32 256, 53
    %5210 = vbcast.lane.b32.xlu0 %v5203, %s5209
    %v5211 = vpop.permute.xlu0 %5210
    %v5212 = vmul.f32 %v5195, %v237
    %v5213 = vmul.f32 %v5199, %v238
    %v5214 = vmul.f32 %v5207, %v237
    %v5215 = vmul.f32 %v5211, %v238
    %v5216 = vsel %vm222, %v5212, 0.0
    %v5217 = vsel %vm319, %v5213, 0.0
    %v5218 = vadd.f32 %v5216, %v5217
    %v5219 = vrot.slane %v5218, 4
    %v5220 = vadd.f32 %v5218, %v5219
    %v5221 = vrot.slane %v5220, 2
    %v5222 = vadd.f32 %v5220, %v5221
    %v5223 = vrot.slane %v5222, 1
    %v5224 = vadd.f32 %v5222, %v5223
    %v5225 = vsel %vm222, %v5214, 0.0
    %v5226 = vsel %vm319, %v5215, 0.0
    %v5227 = vadd.f32 %v5225, %v5226
    %v5228 = vrot.slane %v5227, 4
    %v5229 = vadd.f32 %v5227, %v5228
    %v5230 = vrot.slane %v5229, 2
    %v5231 = vadd.f32 %v5229, %v5230
    %v5232 = vrot.slane %v5231, 1
    %v5233 = vadd.f32 %v5231, %v5232
    %v5236 = vsel %vm339, %v5233, %v5224
    %v5238 = vadd.f32 %v5187, %v5236
    %v5239 = vxor.u32 %v5238, 2147483648
    %v5240 = vmul.f32 %v5239, 1.442695
    %v5241 = vpow.pop %v5240
    %v5242 = vadd.f32 %v5241, 1.0
    %v5243 = vrcp.pop %v5242
    %v5244 = vmul.f32 1.0, %v5243
    %v5245 = vmul.f32 %v5244, 2.0
    %v5246 = vsub.f32 %v5245, 1.0
    %v5247 = vmul.f32 %v5244, %v5155
    %5249 = vrot.lane.b32.xlu0 %v5246, 98
    %v5250 = vpop.permute.xlu0 %5249
    %v5252 = vmul.f32 %v5244, %v5250
    %5254 = vrot.lane.b32.xlu0 %v5252, 15
    %v5255 = vpop.permute.xlu0 %5254
    %v5257 = vadd.f32 %v5247, %v5255
    %v5258 = vtanh.pop %v5257
    %5260 = vrot.lane.b32.xlu0 %v5258, 30
    %v5261 = vpop.permute.xlu0 %5260
    %v5263 = vmul.f32 %v5244, %v5261
    %v5264 = vmax.f32 %v5263, 0.0
    %s5265 = scalar_lea.vmem %s4, 294
    %v5266 = vld [vmem:[%s5265] sm:$0x3]
    %5268 = vrot.lane.b32.xlu0 %v5266, 45
    %v5269 = vpop.permute.xlu0 %5268
    %v5271 = vmul.f32 %v5264, %v5269
    %v5272 = vadd.f32 %v5170, %v5271
    %s5273 = scalar_lea.vmem %s4, 296
    %v5274 = vld [vmem:[%s5273] sm:$0x3]
    %5276 = vrot.lane.b32.xlu0 %v5274, 45
    %v5277 = vpop.permute.xlu0 %5276
    %v5279 = vmul.f32 %v5264, %v5277
    %v5280 = vadd.f32 %v5178, %v5279
    %s5281 = scalar_lea.vmem %s4, 298
    %v5282 = vld [vmem:[%s5281] sm:$0x3]
    %5284 = vrot.lane.b32.xlu0 %v5282, 45
    %v5285 = vpop.permute.xlu0 %5284
    %v5287 = vmul.f32 %v5264, %v5285
    %v5288 = vadd.f32 %v5186, %v5287
    %5290 = vrot.lane.b32.xlu0 %v2722, 83
    %v5291 = vpop.permute.xlu0 %5290
    %vm5293 = vcmask 115712
    %v5294 = vsel %vm5293, %v5291, 0.0
    %5295 = vadd.xlane.f32.xlu0 %v5294
    %v5296 = vpop.xlane.xlu0 %5295
    %v5297 = vrot.slane %v5296, 4
    %v5298 = vadd.f32 %v5296, %v5297
    %v5299 = vrot.slane %v5298, 2
    %v5300 = vadd.f32 %v5298, %v5299
    %v5301 = vrot.slane %v5300, 1
    %v5302 = vadd.f32 %v5300, %v5301
    %s5303 = vtos %v5302
    %v5304 = vstv %s5303
    %5306 = vrot.lane.b32.xlu0 %v2730, 83
    %v5307 = vpop.permute.xlu0 %5306
    %v5309 = vsel %vm5293, %v5307, 0.0
    %5310 = vadd.xlane.f32.xlu0 %v5309
    %v5311 = vpop.xlane.xlu0 %5310
    %v5312 = vrot.slane %v5311, 4
    %v5313 = vadd.f32 %v5311, %v5312
    %v5314 = vrot.slane %v5313, 2
    %v5315 = vadd.f32 %v5313, %v5314
    %v5316 = vrot.slane %v5315, 1
    %v5317 = vadd.f32 %v5315, %v5316
    %s5318 = vtos %v5317
    %v5319 = vstv %s5318
    %5321 = vrot.lane.b32.xlu0 %v2738, 83
    %v5322 = vpop.permute.xlu0 %5321
    %v5324 = vsel %vm5293, %v5322, 0.0
    %5325 = vadd.xlane.f32.xlu0 %v5324
    %v5326 = vpop.xlane.xlu0 %5325
    %v5327 = vrot.slane %v5326, 4
    %v5328 = vadd.f32 %v5326, %v5327
    %v5329 = vrot.slane %v5328, 2
    %v5330 = vadd.f32 %v5328, %v5329
    %v5331 = vrot.slane %v5330, 1
    %v5332 = vadd.f32 %v5330, %v5331
    %s5333 = vtos %v5332
    %v5334 = vstv %s5333
    %vm5335 = vcmask 7168
    %v5336 = vsel %vm5335, %v5304, %v5319
    %vm5337 = vcmask 15360
    %v5338 = vsel %vm5337, %v5336, %v5334
    %5340 = vrot.lane.b32.xlu0 %v5272, 83
    %v5341 = vpop.permute.xlu0 %5340
    %v5343 = vsel %vm5293, %v5341, 0.0
    %5344 = vadd.xlane.f32.xlu0 %v5343
    %v5345 = vpop.xlane.xlu0 %5344
    %v5346 = vrot.slane %v5345, 4
    %v5347 = vadd.f32 %v5345, %v5346
    %v5348 = vrot.slane %v5347, 2
    %v5349 = vadd.f32 %v5347, %v5348
    %v5350 = vrot.slane %v5349, 1
    %v5351 = vadd.f32 %v5349, %v5350
    %s5352 = vtos %v5351
    %v5353 = vstv %s5352
    %5355 = vrot.lane.b32.xlu0 %v5280, 83
    %v5356 = vpop.permute.xlu0 %5355
    %v5358 = vsel %vm5293, %v5356, 0.0
    %5359 = vadd.xlane.f32.xlu0 %v5358
    %v5360 = vpop.xlane.xlu0 %5359
    %v5361 = vrot.slane %v5360, 4
    %v5362 = vadd.f32 %v5360, %v5361
    %v5363 = vrot.slane %v5362, 2
    %v5364 = vadd.f32 %v5362, %v5363
    %v5365 = vrot.slane %v5364, 1
    %v5366 = vadd.f32 %v5364, %v5365
    %s5367 = vtos %v5366
    %v5368 = vstv %s5367
    %5370 = vrot.lane.b32.xlu0 %v5288, 83
    %v5371 = vpop.permute.xlu0 %5370
    %v5373 = vsel %vm5293, %v5371, 0.0
    %5374 = vadd.xlane.f32.xlu0 %v5373
    %v5375 = vpop.xlane.xlu0 %5374
    %v5376 = vrot.slane %v5375, 4
    %v5377 = vadd.f32 %v5375, %v5376
    %v5378 = vrot.slane %v5377, 2
    %v5379 = vadd.f32 %v5377, %v5378
    %v5380 = vrot.slane %v5379, 1
    %v5381 = vadd.f32 %v5379, %v5380
    %s5382 = vtos %v5381
    %v5383 = vstv %s5382
    %v5384 = vsel %vm5335, %v5353, %v5368
    %v5385 = vsel %vm5337, %v5384, %v5383
    %v5387 = vrot.slane %v5385, 7
    %vm5389 = vcmask 1040384
    %v5390 = vsel %vm5389, %v5338, %v5387
    %v5391 = vld [vmem:[%s5] sm:$0x1]
    %v5393 = vlaneseq
    %v5394 = vshrl.u32 %v5393, 7
    %v5395 = vsub.s32 0, %v5394
    %v5396 = vrot.slane %v5391, %v5395
    %v5398 = vadd.f32 %v5390, %v5396
    %vm5399 = vcmask 17408
    %5400 = vst.msk [vmem:[#allocation3] sm:$0x3] %vm5399, %v5398
    // Predicated region
    $region26: #{lstm_forward.1} parent=1 // pred_check
      _
    $region27: #{lstm_forward.1} parent=1 // pred_check_branch
      %5402 = sbr.rel (0) target = $region29
    $region28: #{lstm_forward.1} parent=1 // pred_region
      %s5404 = ssub.s32 32, 32
      %5405 = vsyncadd [#allocation4], %s5404
      %s5407 = sshll.u32 [#allocation3], 4
      %s5408 = int_to_ptr.vmem [resolvable:$true] %s5407
      %5410 = dma.vmem_to_hbm [thread:$0]  %s5408, 32, %s6, [#allocation4]
    $region29: #{lstm_forward.1} parent=1 // pred_fallthru
      _
    // Predicated region
    $region30: #{lstm_forward.1} parent=1 // pred_check
      _
    $region31: #{lstm_forward.1} parent=1 // pred_check_branch
      %5412 = sbr.rel (0) target = $region33
    $region32: #{lstm_forward.1} parent=1 // pred_region
      %5413 = dma.done [#allocation4], 32
    $region33: #{lstm_forward.1} parent=1 // pred_fallthru
      _
    %5414 = vsyncpa [#allocation4], 1

</llo_original>
